<compile_context>
chip_gen: v5e
topology: v5e:2x2
jax: 0.10.0
libtpu: 0.0.40
codegen_flags: <defaults>
</compile_context>

<pallas_src>
import functools

import jax
import jax.numpy as jnp
from jax.experimental import pallas as pl
from jax.experimental.pallas import tpu as pltpu


VMEM_LIMIT_BYTES = 32 * 1024 * 1024          # safe on v5e/v6e/v7x
WEIGHT_TILE_BYTES = 4 * 1024 * 1024          # per-buffer weight-tile budget (bf16)


def _round_up(v, m):
    return (v + m - 1) // m * m


def _plan(K, N, *, tn_cap=512, weight_tile_bytes=WEIGHT_TILE_BYTES, elem_bytes=2):
    """Deterministic tile plan shared by prepare_params() and the forward pass."""
    Np = _round_up(N, 128)
    tn = min(Np, tn_cap)                     # keep >=2 j-blocks for fc1 (v7x megacore)
    Np = _round_up(Np, tn)
    Kp = _round_up(K, 128)
    tk_max = max(128, (weight_tile_bytes // (tn * elem_bytes)) // 128 * 128)
    nk = -(-Kp // tk_max)
    tk = _round_up(-(-Kp // nk), 128)
    Kp = nk * tk
    return Kp, Np, tk, tn


# ---------------------------------------------------------------------------
# Fused matmul kernel:  y = relu(x @ w + b) * scale + shift   (relu optional)
# Accumulates directly into the VMEM-resident output block (no scratch).
# ---------------------------------------------------------------------------
def _fused_matmul_kernel(x_ref, w_ref, b_ref, s_ref, t_ref, o_ref, *, apply_relu):
    k = pl.program_id(1)

    @pl.when(k == 0)
    def _():
        o_ref[...] = jnp.zeros_like(o_ref)

    o_ref[...] += jnp.dot(x_ref[...], w_ref[...],
                          preferred_element_type=jnp.float32)

    @pl.when(k == pl.num_programs(1) - 1)
    def _():
        y = o_ref[...] + b_ref[...]
        if apply_relu:
            y = jnp.maximum(y, 0.0)
        o_ref[...] = y * s_ref[...] + t_ref[...]


def fused_matmul(x, w, b, s, t, *, n_out, apply_relu):
    """x:(M,K) f32, w:(Kp,Np) bf16 (pre-padded), b/s/t:(1,Np) f32 -> (M,n_out) f32."""
    M, K = x.shape
    Kp, Np, tk, tn = _plan(K, n_out)
    assert w.shape == (Kp, Np), (w.shape, (Kp, Np))

    xp = x if K == Kp else jnp.pad(x, ((0, 0), (0, Kp - K)))
    xp = xp.astype(jnp.bfloat16)

    out = pl.pallas_call(
        functools.partial(_fused_matmul_kernel, apply_relu=apply_relu),
        out_shape=jax.ShapeDtypeStruct((M, Np), jnp.float32),
        grid_spec=pltpu.PrefetchScalarGridSpec(
            num_scalar_prefetch=0,
            grid=(Np // tn, Kp // tk),
            in_specs=[
                pl.BlockSpec((M, tk), lambda j, k: (0, k)),   # activations (bf16)
                pl.BlockSpec((tk, tn), lambda j, k: (k, j)),  # weights     (bf16)
                pl.BlockSpec((1, tn), lambda j, k: (0, j)),   # bias        (f32)
                pl.BlockSpec((1, tn), lambda j, k: (0, j)),   # bn scale    (f32)
                pl.BlockSpec((1, tn), lambda j, k: (0, j)),   # bn shift    (f32)
            ],
            out_specs=pl.BlockSpec((M, tn), lambda j, k: (0, j)),
        ),
        compiler_params=pltpu.CompilerParams(
            dimension_semantics=("parallel", "arbitrary"),
            vmem_limit_bytes=VMEM_LIMIT_BYTES),
    )(xp, w, b, s, t)
    return out[:, :n_out]


# ---------------------------------------------------------------------------
# Fused fc2 -> fc3 -> fc4 tail: all weights VMEM-resident, single grid step.
# ---------------------------------------------------------------------------
def _fc_tail_kernel(x_ref, w2_ref, b2_ref, s2_ref, t2_ref,
                    w3_ref, b3_ref, s3_ref, t3_ref,
                    w4_ref, b4_ref, o_ref):
    h = jnp.dot(x_ref[...], w2_ref[...], preferred_element_type=jnp.float32)
    h = jnp.maximum(h + b2_ref[...], 0.0) * s2_ref[...] + t2_ref[...]
    h = jnp.dot(h.astype(jnp.bfloat16), w3_ref[...],
                preferred_element_type=jnp.float32)
    h = jnp.maximum(h + b3_ref[...], 0.0) * s3_ref[...] + t3_ref[...]
    h = jnp.dot(h.astype(jnp.bfloat16), w4_ref[...],
                preferred_element_type=jnp.float32)
    o_ref[...] = h + b4_ref[...]


def _full_spec(shape):
    return pl.BlockSpec(shape, lambda i: (0,) * len(shape))


def fc_tail(x, p, *, n_out=9):
    M = x.shape[0]
    xb = x.astype(jnp.bfloat16)
    n_pad = p["w4"].shape[1]
    args = (xb, p["w2"], p["b2"], p["s2"], p["t2"],
            p["w3"], p["b3"], p["s3"], p["t3"],
            p["w4"], p["b4"])
    out = pl.pallas_call(
        _fc_tail_kernel,
        out_shape=jax.ShapeDtypeStruct((M, n_pad), jnp.float32),
        grid_spec=pltpu.PrefetchScalarGridSpec(
            num_scalar_prefetch=0,
            grid=(1,),
            in_specs=[_full_spec(a.shape) for a in args],
            out_specs=_full_spec((M, n_pad)),
        ),
        compiler_params=pltpu.CompilerParams(
            dimension_semantics=("arbitrary",),
            vmem_limit_bytes=VMEM_LIMIT_BYTES),
    )(*args)
    return out[:, :n_out]


# ---------------------------------------------------------------------------
# im2col (XLA glue; tiny at these sizes)
# ---------------------------------------------------------------------------
def im2col_nhwc(x, ksize, pad):
    N, H, W, C = x.shape
    xp = jnp.pad(x, ((0, 0), (pad, pad), (pad, pad), (0, 0)))
    cols = []
    for kh in range(ksize):
        for kw in range(ksize):
            cols.append(xp[:, kh:kh + H, kw:kw + W, :])
    patches = jnp.concatenate(cols, axis=-1)            # (N, H, W, k*k*C)
    return patches.reshape(N * H * W, ksize * ksize * C)


# ---------------------------------------------------------------------------
# Parameter initialisation (deterministic, synthetic) + one-time preparation
# ---------------------------------------------------------------------------
def _bn_fold(gamma, beta, rmean, rvar, eps=1e-5):
    scale = gamma / jnp.sqrt(rvar + eps)
    shift = beta - rmean * scale
    return scale, shift


def _conv_params(key, k, cin, cout):
    kw, kb, kg, kbt, km, kv = jax.random.split(key, 6)
    bound = 1.0 / jnp.sqrt(cin * k * k)
    w = jax.random.uniform(kw, (k, k, cin, cout), jnp.float32, -bound, bound)
    b = jax.random.uniform(kb, (cout,), jnp.float32, -bound, bound)
    gamma = jax.random.uniform(kg, (cout,), jnp.float32, 0.5, 1.5)
    beta = jax.random.uniform(kbt, (cout,), jnp.float32, -0.1, 0.1)
    rmean = jax.random.uniform(km, (cout,), jnp.float32, -0.1, 0.1)
    rvar = jax.random.uniform(kv, (cout,), jnp.float32, 0.5, 1.5)
    scale, shift = _bn_fold(gamma, beta, rmean, rvar)
    return dict(w=w, b=b, bn_scale=scale, bn_shift=shift)


def _linear_params(key, din, dout, with_bn):
    kw, kb, kg, kbt, km, kv = jax.random.split(key, 6)
    bound = 1.0 / jnp.sqrt(din)
    w = jax.random.uniform(kw, (din, dout), jnp.float32, -bound, bound)
    b = jax.random.uniform(kb, (dout,), jnp.float32, -bound, bound)
    if with_bn:
        gamma = jax.random.uniform(kg, (dout,), jnp.float32, 0.5, 1.5)
        beta = jax.random.uniform(kbt, (dout,), jnp.float32, -0.1, 0.1)
        rmean = jax.random.uniform(km, (dout,), jnp.float32, -0.1, 0.1)
        rvar = jax.random.uniform(kv, (dout,), jnp.float32, 0.5, 1.5)
        scale, shift = _bn_fold(gamma, beta, rmean, rvar)
    else:
        scale = jnp.ones((dout,), jnp.float32)
        shift = jnp.zeros((dout,), jnp.float32)
    return dict(w=w, b=b, bn_scale=scale, bn_shift=shift)


def init_params(key, map_x, map_y):
    ks = jax.random.split(key, 7)
    flat_dim = 96 * map_x * map_y
    return dict(
        global_conv=_conv_params(ks[0], 9, 3, 32),
        local_conv1=_conv_params(ks[1], 5, 3, 64),
        local_conv2=_conv_params(ks[2], 3, 64, 64),
        fc1=_linear_params(ks[3], flat_dim, 1024, with_bn=True),
        fc2=_linear_params(ks[4], 1024, 512, with_bn=True),
        fc3=_linear_params(ks[5], 512, 256, with_bn=True),
        fc4=_linear_params(ks[6], 256, 9, with_bn=False),
    )


def _prep_matmul(w, b, scale, shift):
    """Pad to the tile plan, cast weights to bf16; done once at init time."""
    K, N = w.shape
    Kp, Np, _, _ = _plan(K, N)
    wp = jnp.zeros((Kp, Np), jnp.bfloat16).at[:K, :N].set(w.astype(jnp.bfloat16))
    row = lambda v: jnp.zeros((1, Np), jnp.float32).at[0, :N].set(
        v.astype(jnp.float32))
    return dict(w=wp, b=row(b), s=row(scale), t=row(shift))


def _prep_tail(fc2, fc3, fc4):
    def wpad(w):
        K, N = w.shape
        Kp, Np = _round_up(K, 128), _round_up(N, 128)
        return jnp.zeros((Kp, Np), jnp.bfloat16).at[:K, :N].set(
            w.astype(jnp.bfloat16))

    def rpad(v):
        Np = _round_up(v.shape[0], 128)
        return jnp.zeros((1, Np), jnp.float32).at[0, :v.shape[0]].set(v)

    return dict(
        w2=wpad(fc2["w"]), b2=rpad(fc2["b"]),
        s2=rpad(fc2["bn_scale"]), t2=rpad(fc2["bn_shift"]),
        w3=wpad(fc3["w"]), b3=rpad(fc3["b"]),
        s3=rpad(fc3["bn_scale"]), t3=rpad(fc3["bn_shift"]),
        w4=wpad(fc4["w"]), b4=rpad(fc4["b"]),
    )


def prepare_params(params):
    g, l1, l2 = params["global_conv"], params["local_conv1"], params["local_conv2"]
    # Zero-pad local_conv1's 5x5 kernel to 9x9 (centered) and merge with
    # global_conv: the two first-scale convs become one (243 -> 96) matmul.
    l1w9 = jnp.pad(l1["w"], ((2, 2), (2, 2), (0, 0), (0, 0)))
    w1 = jnp.concatenate([g["w"], l1w9], axis=-1)              # (9,9,3,96)
    conv1 = _prep_matmul(
        w1.reshape(9 * 9 * 3, 96),
        jnp.concatenate([g["b"], l1["b"]]),
        jnp.concatenate([g["bn_scale"], l1["bn_scale"]]),
        jnp.concatenate([g["bn_shift"], l1["bn_shift"]]))
    conv2 = _prep_matmul(l2["w"].reshape(3 * 3 * 64, 64),
                         l2["b"], l2["bn_scale"], l2["bn_shift"])
    fc1 = _prep_matmul(params["fc1"]["w"], params["fc1"]["b"],
                       params["fc1"]["bn_scale"], params["fc1"]["bn_shift"])
    tail = _prep_tail(params["fc2"], params["fc3"], params["fc4"])
    return dict(conv1=conv1, conv2=conv2, fc1=fc1, tail=tail)


# ---------------------------------------------------------------------------
# Full forward pass (mirrors MultiScaleNet.forward)
# ---------------------------------------------------------------------------
def multiscale_forward(prep, x_nchw):
    x = jnp.transpose(x_nchw, (0, 2, 3, 1))                     # NCHW -> NHWC
    N, H, W, _ = x.shape

    # Merged first-scale convs (global 9x9 -> 32, local1 5x5 -> 64): one matmul.
    patches1 = im2col_nhwc(x, 9, 4)                             # (N*H*W, 243)
    c1 = prep["conv1"]
    feat1 = fused_matmul(patches1, c1["w"], c1["b"], c1["s"], c1["t"],
                         n_out=96, apply_relu=True).reshape(N, H, W, 96)
    global_feat = feat1[..., :32]
    local_feat1 = feat1[..., 32:]

    patches2 = im2col_nhwc(local_feat1, 3, 1)                   # (N*H*W, 576)
    c2 = prep["conv2"]
    local_feat2 = fused_matmul(patches2, c2["w"], c2["b"], c2["s"], c2["t"],
                               n_out=64, apply_relu=True).reshape(N, H, W, 64)

    combined = jnp.concatenate([global_feat, local_feat2], axis=-1)  # (N,H,W,96)
    flat = jnp.transpose(combined, (0, 3, 1, 2)).reshape(N, -1)      # torch Flatten

    f1 = prep["fc1"]
    h = fused_matmul(flat, f1["w"], f1["b"], f1["s"], f1["t"],
                     n_out=1024, apply_relu=True)
    return fc_tail(h, prep["tail"], n_out=9)                         # (N, 9)


# ---------------------------------------------------------------------------
if __name__ == "__main__":
    key = jax.random.PRNGKey(0)
    kp, kx = jax.random.split(key)

    MAP_X, MAP_Y = 8, 8            # map_size.x, map_size.y
    BATCH = 2

    raw_params = init_params(kp, MAP_X, MAP_Y)
    prep = prepare_params(raw_params)          # pad / fold / bf16 cast ONCE
    x = jax.random.normal(kx, (BATCH, 3, MAP_X, MAP_Y), jnp.float32)  # NCHW

    fwd = jax.jit(multiscale_forward)
    out = jax.block_until_ready(fwd(prep, x))

    assert out.shape == (BATCH, 9), out.shape
    assert bool(jnp.all(jnp.isfinite(out)))
    print("KERNEL_OK")
</pallas_src>

<mosaic_0001>
module attributes {stable_mosaic.version = 11 : i64} {
  func.func @_fused_matmul_kernel(%arg0: i32, %arg1: i32, %arg2: memref<128x256xbf16, #tpu.memory_space<vmem>>, %arg3: memref<256x128xbf16, #tpu.memory_space<vmem>>, %arg4: memref<1x128xf32, #tpu.memory_space<vmem>>, %arg5: memref<1x128xf32, #tpu.memory_space<vmem>>, %arg6: memref<1x128xf32, #tpu.memory_space<vmem>>, %arg7: memref<128x128xf32, #tpu.memory_space<vmem>>) attributes {dimension_semantics = [#tpu.dimension_semantics<parallel>, #tpu.dimension_semantics<arbitrary>], iteration_bounds = array<i64: 1, 1>, scalar_prefetch = 0 : i64, scratch_operands = 0 : i64, tpu.core_type = #tpu.core_type<tc>, window_params = [{transform_indices = @transform_0, window_bounds = array<i64: 128, 256>}, {transform_indices = @transform_1, window_bounds = array<i64: 256, 128>}, {transform_indices = @transform_2, window_bounds = array<i64: 1, 128>}, {transform_indices = @transform_3, window_bounds = array<i64: 1, 128>}, {transform_indices = @transform_4, window_bounds = array<i64: 1, 128>}, {transform_indices = @transform_5, window_bounds = array<i64: 128, 128>}]} {
    %c0_i32 = arith.constant 0 : i32
    %0 = arith.cmpi eq, %arg1, %c0_i32 : i32
    %1 = arith.extui %0 : i1 to i32
    %c0_i32_0 = arith.constant 0 : i32
    %2 = arith.cmpi ne, %1, %c0_i32_0 : i32
    scf.if %2 {
      %cst_10 = arith.constant 0.000000e+00 : f32
      %12 = vector.broadcast %cst_10 : f32 to vector<128x128xf32>
      %c0_11 = arith.constant 0 : index
      %c0_12 = arith.constant 0 : index
      %13 = vector.load %arg7[%c0_11, %c0_12] : memref<128x128xf32, #tpu.memory_space<vmem>>, vector<128x128xf32>
      tpu.vector_store %arg7[%c0_11, %c0_12], %12 {strides = array<i32>} : memref<128x128xf32, #tpu.memory_space<vmem>>, vector<128x128xf32>,
    } else {
    }
    %c0 = arith.constant 0 : index
    %c0_1 = arith.constant 0 : index
    %3 = vector.load %arg7[%c0, %c0_1] : memref<128x128xf32, #tpu.memory_space<vmem>>, vector<128x128xf32>
    %c0_2 = arith.constant 0 : index
    %c0_3 = arith.constant 0 : index
    %4 = vector.load %arg2[%c0_2, %c0_3] : memref<128x256xbf16, #tpu.memory_space<vmem>>, vector<128x256xbf16>
    %c0_4 = arith.constant 0 : index
    %c0_5 = arith.constant 0 : index
    %5 = vector.load %arg3[%c0_4, %c0_5] : memref<256x128xbf16, #tpu.memory_space<vmem>>, vector<256x128xbf16>
    %cst = arith.constant dense<0.000000e+00> : vector<128x128xf32>
    %6 = tpu.matmul %4, %5, %cst {dimension_numbers = #tpu.dot_dimension_numbers<[1], [0], [0], [1], [0, 0, 1, 1], [], []>} : vector<128x256xbf16>, vector<256x128xbf16>, vector<128x128xf32> -> vector<128x128xf32>
    %7 = arith.addf %3, %6 : vector<128x128xf32>
    %c0_6 = arith.constant 0 : index
    %c0_7 = arith.constant 0 : index
    %8 = vector.load %arg7[%c0_6, %c0_7] : memref<128x128xf32, #tpu.memory_space<vmem>>, vector<128x128xf32>
    tpu.vector_store %arg7[%c0_6, %c0_7], %7 {strides = array<i32>} : memref<128x128xf32, #tpu.memory_space<vmem>>, vector<128x128xf32>,
    %c0_i32_8 = arith.constant 0 : i32
    %9 = arith.cmpi eq, %arg1, %c0_i32_8 : i32
    %10 = arith.extui %9 : i1 to i32
    %c0_i32_9 = arith.constant 0 : i32
    %11 = arith.cmpi ne, %10, %c0_i32_9 : i32
    scf.if %11 {
      %c0_10 = arith.constant 0 : index
      %c0_11 = arith.constant 0 : index
      %12 = vector.load %arg7[%c0_10, %c0_11] : memref<128x128xf32, #tpu.memory_space<vmem>>, vector<128x128xf32>
      %c0_12 = arith.constant 0 : index
      %c0_13 = arith.constant 0 : index
      %13 = vector.load %arg4[%c0_12, %c0_13] : memref<1x128xf32, #tpu.memory_space<vmem>>, vector<1x128xf32>
      %14 = vector.broadcast %13 : vector<1x128xf32> to vector<128x128xf32>
      %15 = arith.addf %12, %14 : vector<128x128xf32>
      %cst_14 = arith.constant 0.000000e+00 : f32
      %16 = vector.broadcast %cst_14 : f32 to vector<128x128xf32>
      %17 = arith.maximumf %15, %16 : vector<128x128xf32>
      %c0_15 = arith.constant 0 : index
      %c0_16 = arith.constant 0 : index
      %18 = vector.load %arg5[%c0_15, %c0_16] : memref<1x128xf32, #tpu.memory_space<vmem>>, vector<1x128xf32>
      %19 = vector.broadcast %18 : vector<1x128xf32> to vector<128x128xf32>
      %20 = arith.mulf %17, %19 : vector<128x128xf32>
      %c0_17 = arith.constant 0 : index
      %c0_18 = arith.constant 0 : index
      %21 = vector.load %arg6[%c0_17, %c0_18] : memref<1x128xf32, #tpu.memory_space<vmem>>, vector<1x128xf32>
      %22 = vector.broadcast %21 : vector<1x128xf32> to vector<128x128xf32>
      %23 = arith.addf %20, %22 : vector<128x128xf32>
      %c0_19 = arith.constant 0 : index
      %c0_20 = arith.constant 0 : index
      %24 = vector.load %arg7[%c0_19, %c0_20] : memref<128x128xf32, #tpu.memory_space<vmem>>, vector<128x128xf32>
      tpu.vector_store %arg7[%c0_19, %c0_20], %23 {strides = array<i32>} : memref<128x128xf32, #tpu.memory_space<vmem>>, vector<128x128xf32>,
    } else {
    }
    return
  }
  func.func @transform_0(%arg0: i32, %arg1: i32) -> (i32, i32) {
    %c0_i32 = arith.constant 0 : i32
    %c0_i32_0 = arith.constant 0 : i32
    return %c0_i32, %arg1 : i32, i32
  }
  func.func @transform_1(%arg0: i32, %arg1: i32) -> (i32, i32) {
    %c0_i32 = arith.constant 0 : i32
    return %arg1, %arg0 : i32, i32
  }
  func.func @transform_2(%arg0: i32, %arg1: i32) -> (i32, i32) {
    %c0_i32 = arith.constant 0 : i32
    %c0_i32_0 = arith.constant 0 : i32
    return %c0_i32, %arg0 : i32, i32
  }
  func.func @transform_3(%arg0: i32, %arg1: i32) -> (i32, i32) {
    %c0_i32 = arith.constant 0 : i32
    %c0_i32_0 = arith.constant 0 : i32
    return %c0_i32, %arg0 : i32, i32
  }
  func.func @transform_4(%arg0: i32, %arg1: i32) -> (i32, i32) {
    %c0_i32 = arith.constant 0 : i32
    %c0_i32_0 = arith.constant 0 : i32
    return %c0_i32, %arg0 : i32, i32
  }
  func.func @transform_5(%arg0: i32, %arg1: i32) -> (i32, i32) {
    %c0_i32 = arith.constant 0 : i32
    %c0_i32_0 = arith.constant 0 : i32
    return %c0_i32, %arg0 : i32, i32
  }
}

module attributes {stable_mosaic.version = 11 : i64} {
  func.func @_fused_matmul_kernel(%arg0: i32, %arg1: i32, %arg2: memref<128x640xbf16, #tpu.memory_space<vmem>>, %arg3: memref<640x128xbf16, #tpu.memory_space<vmem>>, %arg4: memref<1x128xf32, #tpu.memory_space<vmem>>, %arg5: memref<1x128xf32, #tpu.memory_space<vmem>>, %arg6: memref<1x128xf32, #tpu.memory_space<vmem>>, %arg7: memref<128x128xf32, #tpu.memory_space<vmem>>) attributes {dimension_semantics = [#tpu.dimension_semantics<parallel>, #tpu.dimension_semantics<arbitrary>], iteration_bounds = array<i64: 1, 1>, scalar_prefetch = 0 : i64, scratch_operands = 0 : i64, tpu.core_type = #tpu.core_type<tc>, window_params = [{transform_indices = @transform_0, window_bounds = array<i64: 128, 640>}, {transform_indices = @transform_1, window_bounds = array<i64: 640, 128>}, {transform_indices = @transform_2, window_bounds = array<i64: 1, 128>}, {transform_indices = @transform_3, window_bounds = array<i64: 1, 128>}, {transform_indices = @transform_4, window_bounds = array<i64: 1, 128>}, {transform_indices = @transform_5, window_bounds = array<i64: 128, 128>}]} {
    %c0_i32 = arith.constant 0 : i32
    %0 = arith.cmpi eq, %arg1, %c0_i32 : i32
    %1 = arith.extui %0 : i1 to i32
    %c0_i32_0 = arith.constant 0 : i32
    %2 = arith.cmpi ne, %1, %c0_i32_0 : i32
    scf.if %2 {
      %cst_10 = arith.constant 0.000000e+00 : f32
      %12 = vector.broadcast %cst_10 : f32 to vector<128x128xf32>
      %c0_11 = arith.constant 0 : index
      %c0_12 = arith.constant 0 : index
      %13 = vector.load %arg7[%c0_11, %c0_12] : memref<128x128xf32, #tpu.memory_space<vmem>>, vector<128x128xf32>
      tpu.vector_store %arg7[%c0_11, %c0_12], %12 {strides = array<i32>} : memref<128x128xf32, #tpu.memory_space<vmem>>, vector<128x128xf32>,
    } else {
    }
    %c0 = arith.constant 0 : index
    %c0_1 = arith.constant 0 : index
    %3 = vector.load %arg7[%c0, %c0_1] : memref<128x128xf32, #tpu.memory_space<vmem>>, vector<128x128xf32>
    %c0_2 = arith.constant 0 : index
    %c0_3 = arith.constant 0 : index
    %4 = vector.load %arg2[%c0_2, %c0_3] : memref<128x640xbf16, #tpu.memory_space<vmem>>, vector<128x640xbf16>
    %c0_4 = arith.constant 0 : index
    %c0_5 = arith.constant 0 : index
    %5 = vector.load %arg3[%c0_4, %c0_5] : memref<640x128xbf16, #tpu.memory_space<vmem>>, vector<640x128xbf16>
    %cst = arith.constant dense<0.000000e+00> : vector<128x128xf32>
    %6 = tpu.matmul %4, %5, %cst {dimension_numbers = #tpu.dot_dimension_numbers<[1], [0], [0], [1], [0, 0, 1, 1], [], []>} : vector<128x640xbf16>, vector<640x128xbf16>, vector<128x128xf32> -> vector<128x128xf32>
    %7 = arith.addf %3, %6 : vector<128x128xf32>
    %c0_6 = arith.constant 0 : index
    %c0_7 = arith.constant 0 : index
    %8 = vector.load %arg7[%c0_6, %c0_7] : memref<128x128xf32, #tpu.memory_space<vmem>>, vector<128x128xf32>
    tpu.vector_store %arg7[%c0_6, %c0_7], %7 {strides = array<i32>} : memref<128x128xf32, #tpu.memory_space<vmem>>, vector<128x128xf32>,
    %c0_i32_8 = arith.constant 0 : i32
    %9 = arith.cmpi eq, %arg1, %c0_i32_8 : i32
    %10 = arith.extui %9 : i1 to i32
    %c0_i32_9 = arith.constant 0 : i32
    %11 = arith.cmpi ne, %10, %c0_i32_9 : i32
    scf.if %11 {
      %c0_10 = arith.constant 0 : index
      %c0_11 = arith.constant 0 : index
      %12 = vector.load %arg7[%c0_10, %c0_11] : memref<128x128xf32, #tpu.memory_space<vmem>>, vector<128x128xf32>
      %c0_12 = arith.constant 0 : index
      %c0_13 = arith.constant 0 : index
      %13 = vector.load %arg4[%c0_12, %c0_13] : memref<1x128xf32, #tpu.memory_space<vmem>>, vector<1x128xf32>
      %14 = vector.broadcast %13 : vector<1x128xf32> to vector<128x128xf32>
      %15 = arith.addf %12, %14 : vector<128x128xf32>
      %cst_14 = arith.constant 0.000000e+00 : f32
      %16 = vector.broadcast %cst_14 : f32 to vector<128x128xf32>
      %17 = arith.maximumf %15, %16 : vector<128x128xf32>
      %c0_15 = arith.constant 0 : index
      %c0_16 = arith.constant 0 : index
      %18 = vector.load %arg5[%c0_15, %c0_16] : memref<1x128xf32, #tpu.memory_space<vmem>>, vector<1x128xf32>
      %19 = vector.broadcast %18 : vector<1x128xf32> to vector<128x128xf32>
      %20 = arith.mulf %17, %19 : vector<128x128xf32>
      %c0_17 = arith.constant 0 : index
      %c0_18 = arith.constant 0 : index
      %21 = vector.load %arg6[%c0_17, %c0_18] : memref<1x128xf32, #tpu.memory_space<vmem>>, vector<1x128xf32>
      %22 = vector.broadcast %21 : vector<1x128xf32> to vector<128x128xf32>
      %23 = arith.addf %20, %22 : vector<128x128xf32>
      %c0_19 = arith.constant 0 : index
      %c0_20 = arith.constant 0 : index
      %24 = vector.load %arg7[%c0_19, %c0_20] : memref<128x128xf32, #tpu.memory_space<vmem>>, vector<128x128xf32>
      tpu.vector_store %arg7[%c0_19, %c0_20], %23 {strides = array<i32>} : memref<128x128xf32, #tpu.memory_space<vmem>>, vector<128x128xf32>,
    } else {
    }
    return
  }
  func.func @transform_0(%arg0: i32, %arg1: i32) -> (i32, i32) {
    %c0_i32 = arith.constant 0 : i32
    %c0_i32_0 = arith.constant 0 : i32
    return %c0_i32, %arg1 : i32, i32
  }
  func.func @transform_1(%arg0: i32, %arg1: i32) -> (i32, i32) {
    %c0_i32 = arith.constant 0 : i32
    return %arg1, %arg0 : i32, i32
  }
  func.func @transform_2(%arg0: i32, %arg1: i32) -> (i32, i32) {
    %c0_i32 = arith.constant 0 : i32
    %c0_i32_0 = arith.constant 0 : i32
    return %c0_i32, %arg0 : i32, i32
  }
  func.func @transform_3(%arg0: i32, %arg1: i32) -> (i32, i32) {
    %c0_i32 = arith.constant 0 : i32
    %c0_i32_0 = arith.constant 0 : i32
    return %c0_i32, %arg0 : i32, i32
  }
  func.func @transform_4(%arg0: i32, %arg1: i32) -> (i32, i32) {
    %c0_i32 = arith.constant 0 : i32
    %c0_i32_0 = arith.constant 0 : i32
    return %c0_i32, %arg0 : i32, i32
  }
  func.func @transform_5(%arg0: i32, %arg1: i32) -> (i32, i32) {
    %c0_i32 = arith.constant 0 : i32
    %c0_i32_0 = arith.constant 0 : i32
    return %c0_i32, %arg0 : i32, i32
  }
}

module attributes {stable_mosaic.version = 11 : i64} {
  func.func @_fused_matmul_kernel(%arg0: i32, %arg1: i32, %arg2: memref<2x3072xbf16, #tpu.memory_space<vmem>>, %arg3: memref<3072x512xbf16, #tpu.memory_space<vmem>>, %arg4: memref<1x512xf32, #tpu.memory_space<vmem>>, %arg5: memref<1x512xf32, #tpu.memory_space<vmem>>, %arg6: memref<1x512xf32, #tpu.memory_space<vmem>>, %arg7: memref<2x512xf32, #tpu.memory_space<vmem>>) attributes {dimension_semantics = [#tpu.dimension_semantics<parallel>, #tpu.dimension_semantics<arbitrary>], iteration_bounds = array<i64: 2, 2>, scalar_prefetch = 0 : i64, scratch_operands = 0 : i64, tpu.core_type = #tpu.core_type<tc>, window_params = [{transform_indices = @transform_0, window_bounds = array<i64: 2, 3072>}, {transform_indices = @transform_1, window_bounds = array<i64: 3072, 512>}, {transform_indices = @transform_2, window_bounds = array<i64: 1, 512>}, {transform_indices = @transform_3, window_bounds = array<i64: 1, 512>}, {transform_indices = @transform_4, window_bounds = array<i64: 1, 512>}, {transform_indices = @transform_5, window_bounds = array<i64: 2, 512>}]} {
    %c0_i32 = arith.constant 0 : i32
    %0 = arith.cmpi eq, %arg1, %c0_i32 : i32
    %1 = arith.extui %0 : i1 to i32
    %c0_i32_0 = arith.constant 0 : i32
    %2 = arith.cmpi ne, %1, %c0_i32_0 : i32
    scf.if %2 {
      %cst_9 = arith.constant 0.000000e+00 : f32
      %12 = vector.broadcast %cst_9 : f32 to vector<2x512xf32>
      %c0_10 = arith.constant 0 : index
      %c0_11 = arith.constant 0 : index
      %13 = vector.load %arg7[%c0_10, %c0_11] : memref<2x512xf32, #tpu.memory_space<vmem>>, vector<2x512xf32>
      tpu.vector_store %arg7[%c0_10, %c0_11], %12 {strides = array<i32>} : memref<2x512xf32, #tpu.memory_space<vmem>>, vector<2x512xf32>,
    } else {
    }
    %c0 = arith.constant 0 : index
    %c0_1 = arith.constant 0 : index
    %3 = vector.load %arg7[%c0, %c0_1] : memref<2x512xf32, #tpu.memory_space<vmem>>, vector<2x512xf32>
    %c0_2 = arith.constant 0 : index
    %c0_3 = arith.constant 0 : index
    %4 = vector.load %arg2[%c0_2, %c0_3] : memref<2x3072xbf16, #tpu.memory_space<vmem>>, vector<2x3072xbf16>
    %c0_4 = arith.constant 0 : index
    %c0_5 = arith.constant 0 : index
    %5 = vector.load %arg3[%c0_4, %c0_5] : memref<3072x512xbf16, #tpu.memory_space<vmem>>, vector<3072x512xbf16>
    %cst = arith.constant dense<0.000000e+00> : vector<2x512xf32>
    %6 = tpu.matmul %4, %5, %cst {dimension_numbers = #tpu.dot_dimension_numbers<[1], [0], [0], [1], [0, 0, 1, 1], [], []>} : vector<2x3072xbf16>, vector<3072x512xbf16>, vector<2x512xf32> -> vector<2x512xf32>
    %7 = arith.addf %3, %6 : vector<2x512xf32>
    %c0_6 = arith.constant 0 : index
    %c0_7 = arith.constant 0 : index
    %8 = vector.load %arg7[%c0_6, %c0_7] : memref<2x512xf32, #tpu.memory_space<vmem>>, vector<2x512xf32>
    tpu.vector_store %arg7[%c0_6, %c0_7], %7 {strides = array<i32>} : memref<2x512xf32, #tpu.memory_space<vmem>>, vector<2x512xf32>,
    %c1_i32 = arith.constant 1 : i32
    %9 = arith.cmpi eq, %arg1, %c1_i32 : i32
    %10 = arith.extui %9 : i1 to i32
    %c0_i32_8 = arith.constant 0 : i32
    %11 = arith.cmpi ne, %10, %c0_i32_8 : i32
    scf.if %11 {
      %c0_9 = arith.constant 0 : index
      %c0_10 = arith.constant 0 : index
      %12 = vector.load %arg7[%c0_9, %c0_10] : memref<2x512xf32, #tpu.memory_space<vmem>>, vector<2x512xf32>
      %c0_11 = arith.constant 0 : index
      %c0_12 = arith.constant 0 : index
      %13 = vector.load %arg4[%c0_11, %c0_12] : memref<1x512xf32, #tpu.memory_space<vmem>>, vector<1x512xf32>
      %14 = vector.broadcast %13 : vector<1x512xf32> to vector<2x512xf32>
      %15 = arith.addf %12, %14 : vector<2x512xf32>
      %cst_13 = arith.constant 0.000000e+00 : f32
      %16 = vector.broadcast %cst_13 : f32 to vector<2x512xf32>
      %17 = arith.maximumf %15, %16 : vector<2x512xf32>
      %c0_14 = arith.constant 0 : index
      %c0_15 = arith.constant 0 : index
      %18 = vector.load %arg5[%c0_14, %c0_15] : memref<1x512xf32, #tpu.memory_space<vmem>>, vector<1x512xf32>
      %19 = vector.broadcast %18 : vector<1x512xf32> to vector<2x512xf32>
      %20 = arith.mulf %17, %19 : vector<2x512xf32>
      %c0_16 = arith.constant 0 : index
      %c0_17 = arith.constant 0 : index
      %21 = vector.load %arg6[%c0_16, %c0_17] : memref<1x512xf32, #tpu.memory_space<vmem>>, vector<1x512xf32>
      %22 = vector.broadcast %21 : vector<1x512xf32> to vector<2x512xf32>
      %23 = arith.addf %20, %22 : vector<2x512xf32>
      %c0_18 = arith.constant 0 : index
      %c0_19 = arith.constant 0 : index
      %24 = vector.load %arg7[%c0_18, %c0_19] : memref<2x512xf32, #tpu.memory_space<vmem>>, vector<2x512xf32>
      tpu.vector_store %arg7[%c0_18, %c0_19], %23 {strides = array<i32>} : memref<2x512xf32, #tpu.memory_space<vmem>>, vector<2x512xf32>,
    } else {
    }
    return
  }
  func.func @transform_0(%arg0: i32, %arg1: i32) -> (i32, i32) {
    %c0_i32 = arith.constant 0 : i32
    %c0_i32_0 = arith.constant 0 : i32
    return %c0_i32, %arg1 : i32, i32
  }
  func.func @transform_1(%arg0: i32, %arg1: i32) -> (i32, i32) {
    %c0_i32 = arith.constant 0 : i32
    return %arg1, %arg0 : i32, i32
  }
  func.func @transform_2(%arg0: i32, %arg1: i32) -> (i32, i32) {
    %c0_i32 = arith.constant 0 : i32
    %c0_i32_0 = arith.constant 0 : i32
    return %c0_i32, %arg0 : i32, i32
  }
  func.func @transform_3(%arg0: i32, %arg1: i32) -> (i32, i32) {
    %c0_i32 = arith.constant 0 : i32
    %c0_i32_0 = arith.constant 0 : i32
    return %c0_i32, %arg0 : i32, i32
  }
  func.func @transform_4(%arg0: i32, %arg1: i32) -> (i32, i32) {
    %c0_i32 = arith.constant 0 : i32
    %c0_i32_0 = arith.constant 0 : i32
    return %c0_i32, %arg0 : i32, i32
  }
  func.func @transform_5(%arg0: i32, %arg1: i32) -> (i32, i32) {
    %c0_i32 = arith.constant 0 : i32
    %c0_i32_0 = arith.constant 0 : i32
    return %c0_i32, %arg0 : i32, i32
  }
}

module attributes {stable_mosaic.version = 11 : i64} {
  func.func @_fc_tail_kernel(%arg0: i32, %arg1: memref<2x1024xbf16, #tpu.memory_space<vmem>>, %arg2: memref<1024x512xbf16, #tpu.memory_space<vmem>>, %arg3: memref<1x512xf32, #tpu.memory_space<vmem>>, %arg4: memref<1x512xf32, #tpu.memory_space<vmem>>, %arg5: memref<1x512xf32, #tpu.memory_space<vmem>>, %arg6: memref<512x256xbf16, #tpu.memory_space<vmem>>, %arg7: memref<1x256xf32, #tpu.memory_space<vmem>>, %arg8: memref<1x256xf32, #tpu.memory_space<vmem>>, %arg9: memref<1x256xf32, #tpu.memory_space<vmem>>, %arg10: memref<256x128xbf16, #tpu.memory_space<vmem>>, %arg11: memref<1x128xf32, #tpu.memory_space<vmem>>, %arg12: memref<2x128xf32, #tpu.memory_space<vmem>>) attributes {dimension_semantics = [#tpu.dimension_semantics<arbitrary>], iteration_bounds = array<i64: 1>, scalar_prefetch = 0 : i64, scratch_operands = 0 : i64, tpu.core_type = #tpu.core_type<tc>, window_params = [{pipeline_mode = #tpu.pipeline_mode<synchronous>, transform_indices = @transform_0, window_bounds = array<i64: 2, 1024>}, {pipeline_mode = #tpu.pipeline_mode<synchronous>, transform_indices = @transform_1, window_bounds = array<i64: 1024, 512>}, {pipeline_mode = #tpu.pipeline_mode<synchronous>, transform_indices = @transform_2, window_bounds = array<i64: 1, 512>}, {pipeline_mode = #tpu.pipeline_mode<synchronous>, transform_indices = @transform_3, window_bounds = array<i64: 1, 512>}, {pipeline_mode = #tpu.pipeline_mode<synchronous>, transform_indices = @transform_4, window_bounds = array<i64: 1, 512>}, {pipeline_mode = #tpu.pipeline_mode<synchronous>, transform_indices = @transform_5, window_bounds = array<i64: 512, 256>}, {pipeline_mode = #tpu.pipeline_mode<synchronous>, transform_indices = @transform_6, window_bounds = array<i64: 1, 256>}, {pipeline_mode = #tpu.pipeline_mode<synchronous>, transform_indices = @transform_7, window_bounds = array<i64: 1, 256>}, {pipeline_mode = #tpu.pipeline_mode<synchronous>, transform_indices = @transform_8, window_bounds = array<i64: 1, 256>}, {pipeline_mode = #tpu.pipeline_mode<synchronous>, transform_indices = @transform_9, window_bounds = array<i64: 256, 128>}, {pipeline_mode = #tpu.pipeline_mode<synchronous>, transform_indices = @transform_10, window_bounds = array<i64: 1, 128>}, {pipeline_mode = #tpu.pipeline_mode<synchronous>, transform_indices = @transform_11, window_bounds = array<i64: 2, 128>}]} {
    %c0 = arith.constant 0 : index
    %c0_0 = arith.constant 0 : index
    %0 = vector.load %arg1[%c0, %c0_0] : memref<2x1024xbf16, #tpu.memory_space<vmem>>, vector<2x1024xbf16>
    %c0_1 = arith.constant 0 : index
    %c0_2 = arith.constant 0 : index
    %1 = vector.load %arg2[%c0_1, %c0_2] : memref<1024x512xbf16, #tpu.memory_space<vmem>>, vector<1024x512xbf16>
    %cst = arith.constant dense<0.000000e+00> : vector<2x512xf32>
    %2 = tpu.matmul %0, %1, %cst {dimension_numbers = #tpu.dot_dimension_numbers<[1], [0], [0], [1], [0, 0, 1, 1], [], []>} : vector<2x1024xbf16>, vector<1024x512xbf16>, vector<2x512xf32> -> vector<2x512xf32>
    %c0_3 = arith.constant 0 : index
    %c0_4 = arith.constant 0 : index
    %3 = vector.load %arg3[%c0_3, %c0_4] : memref<1x512xf32, #tpu.memory_space<vmem>>, vector<1x512xf32>
    %4 = vector.broadcast %3 : vector<1x512xf32> to vector<2x512xf32>
    %5 = arith.addf %2, %4 : vector<2x512xf32>
    %cst_5 = arith.constant 0.000000e+00 : f32
    %6 = vector.broadcast %cst_5 : f32 to vector<2x512xf32>
    %7 = arith.maximumf %5, %6 : vector<2x512xf32>
    %c0_6 = arith.constant 0 : index
    %c0_7 = arith.constant 0 : index
    %8 = vector.load %arg4[%c0_6, %c0_7] : memref<1x512xf32, #tpu.memory_space<vmem>>, vector<1x512xf32>
    %9 = vector.broadcast %8 : vector<1x512xf32> to vector<2x512xf32>
    %10 = arith.mulf %7, %9 : vector<2x512xf32>
    %c0_8 = arith.constant 0 : index
    %c0_9 = arith.constant 0 : index
    %11 = vector.load %arg5[%c0_8, %c0_9] : memref<1x512xf32, #tpu.memory_space<vmem>>, vector<1x512xf32>
    %12 = vector.broadcast %11 : vector<1x512xf32> to vector<2x512xf32>
    %13 = arith.addf %10, %12 : vector<2x512xf32>
    %14 = arith.truncf %13 : vector<2x512xf32> to vector<2x512xbf16>
    %c0_10 = arith.constant 0 : index
    %c0_11 = arith.constant 0 : index
    %15 = vector.load %arg6[%c0_10, %c0_11] : memref<512x256xbf16, #tpu.memory_space<vmem>>, vector<512x256xbf16>
    %cst_12 = arith.constant dense<0.000000e+00> : vector<2x256xf32>
    %16 = tpu.matmul %14, %15, %cst_12 {dimension_numbers = #tpu.dot_dimension_numbers<[1], [0], [0], [1], [0, 0, 1, 1], [], []>} : vector<2x512xbf16>, vector<512x256xbf16>, vector<2x256xf32> -> vector<2x256xf32>
    %c0_13 = arith.constant 0 : index
    %c0_14 = arith.constant 0 : index
    %17 = vector.load %arg7[%c0_13, %c0_14] : memref<1x256xf32, #tpu.memory_space<vmem>>, vector<1x256xf32>
    %18 = vector.broadcast %17 : vector<1x256xf32> to vector<2x256xf32>
    %19 = arith.addf %16, %18 : vector<2x256xf32>
    %cst_15 = arith.constant 0.000000e+00 : f32
    %20 = vector.broadcast %cst_15 : f32 to vector<2x256xf32>
    %21 = arith.maximumf %19, %20 : vector<2x256xf32>
    %c0_16 = arith.constant 0 : index
    %c0_17 = arith.constant 0 : index
    %22 = vector.load %arg8[%c0_16, %c0_17] : memref<1x256xf32, #tpu.memory_space<vmem>>, vector<1x256xf32>
    %23 = vector.broadcast %22 : vector<1x256xf32> to vector<2x256xf32>
    %24 = arith.mulf %21, %23 : vector<2x256xf32>
    %c0_18 = arith.constant 0 : index
    %c0_19 = arith.constant 0 : index
    %25 = vector.load %arg9[%c0_18, %c0_19] : memref<1x256xf32, #tpu.memory_space<vmem>>, vector<1x256xf32>
    %26 = vector.broadcast %25 : vector<1x256xf32> to vector<2x256xf32>
    %27 = arith.addf %24, %26 : vector<2x256xf32>
    %28 = arith.truncf %27 : vector<2x256xf32> to vector<2x256xbf16>
    %c0_20 = arith.constant 0 : index
    %c0_21 = arith.constant 0 : index
    %29 = vector.load %arg10[%c0_20, %c0_21] : memref<256x128xbf16, #tpu.memory_space<vmem>>, vector<256x128xbf16>
    %cst_22 = arith.constant dense<0.000000e+00> : vector<2x128xf32>
    %30 = tpu.matmul %28, %29, %cst_22 {dimension_numbers = #tpu.dot_dimension_numbers<[1], [0], [0], [1], [0, 0, 1, 1], [], []>} : vector<2x256xbf16>, vector<256x128xbf16>, vector<2x128xf32> -> vector<2x128xf32>
    %c0_23 = arith.constant 0 : index
    %c0_24 = arith.constant 0 : index
    %31 = vector.load %arg11[%c0_23, %c0_24] : memref<1x128xf32, #tpu.memory_space<vmem>>, vector<1x128xf32>
    %32 = vector.broadcast %31 : vector<1x128xf32> to vector<2x128xf32>
    %33 = arith.addf %30, %32 : vector<2x128xf32>
    %c0_25 = arith.constant 0 : index
    %c0_26 = arith.constant 0 : index
    %34 = vector.load %arg12[%c0_25, %c0_26] : memref<2x128xf32, #tpu.memory_space<vmem>>, vector<2x128xf32>
    tpu.vector_store %arg12[%c0_25, %c0_26], %33 {strides = array<i32>} : memref<2x128xf32, #tpu.memory_space<vmem>>, vector<2x128xf32>,
    return
  }
  func.func @transform_0(%arg0: i32) -> (i32, i32) {
    %c0_i32 = arith.constant 0 : i32
    %c0_i32_0 = arith.constant 0 : i32
    %c0_i32_1 = arith.constant 0 : i32
    return %c0_i32, %c0_i32_0 : i32, i32
  }
  func.func @transform_1(%arg0: i32) -> (i32, i32) {
    %c0_i32 = arith.constant 0 : i32
    %c0_i32_0 = arith.constant 0 : i32
    %c0_i32_1 = arith.constant 0 : i32
    return %c0_i32, %c0_i32_0 : i32, i32
  }
  func.func @transform_2(%arg0: i32) -> (i32, i32) {
    %c0_i32 = arith.constant 0 : i32
    %c0_i32_0 = arith.constant 0 : i32
    %c0_i32_1 = arith.constant 0 : i32
    return %c0_i32, %c0_i32_0 : i32, i32
  }
  func.func @transform_3(%arg0: i32) -> (i32, i32) {
    %c0_i32 = arith.constant 0 : i32
    %c0_i32_0 = arith.constant 0 : i32
    %c0_i32_1 = arith.constant 0 : i32
    return %c0_i32, %c0_i32_0 : i32, i32
  }
  func.func @transform_4(%arg0: i32) -> (i32, i32) {
    %c0_i32 = arith.constant 0 : i32
    %c0_i32_0 = arith.constant 0 : i32
    %c0_i32_1 = arith.constant 0 : i32
    return %c0_i32, %c0_i32_0 : i32, i32
  }
  func.func @transform_5(%arg0: i32) -> (i32, i32) {
    %c0_i32 = arith.constant 0 : i32
    %c0_i32_0 = arith.constant 0 : i32
    %c0_i32_1 = arith.constant 0 : i32
    return %c0_i32, %c0_i32_0 : i32, i32
  }
  func.func @transform_6(%arg0: i32) -> (i32, i32) {
    %c0_i32 = arith.constant 0 : i32
    %c0_i32_0 = arith.constant 0 : i32
    %c0_i32_1 = arith.constant 0 : i32
    return %c0_i32, %c0_i32_0 : i32, i32
  }
  func.func @transform_7(%arg0: i32) -> (i32, i32) {
    %c0_i32 = arith.constant 0 : i32
    %c0_i32_0 = arith.constant 0 : i32
    %c0_i32_1 = arith.constant 0 : i32
    return %c0_i32, %c0_i32_0 : i32, i32
  }
  func.func @transform_8(%arg0: i32) -> (i32, i32) {
    %c0_i32 = arith.constant 0 : i32
    %c0_i32_0 = arith.constant 0 : i32
    %c0_i32_1 = arith.constant 0 : i32
    return %c0_i32, %c0_i32_0 : i32, i32
  }
  func.func @transform_9(%arg0: i32) -> (i32, i32) {
    %c0_i32 = arith.constant 0 : i32
    %c0_i32_0 = arith.constant 0 : i32
    %c0_i32_1 = arith.constant 0 : i32
    return %c0_i32, %c0_i32_0 : i32, i32
  }
  func.func @transform_10(%arg0: i32) -> (i32, i32) {
    %c0_i32 = arith.constant 0 : i32
    %c0_i32_0 = arith.constant 0 : i32
    %c0_i32_1 = arith.constant 0 : i32
    return %c0_i32, %c0_i32_0 : i32, i32
  }
  func.func @transform_11(%arg0: i32) -> (i32, i32) {
    %c0_i32 = arith.constant 0 : i32
    %c0_i32_0 = arith.constant 0 : i32
    %c0_i32_1 = arith.constant 0 : i32
    return %c0_i32, %c0_i32_0 : i32, i32
  }
}

</mosaic_0001>

<llo_original>
// kernel: multiscale_forward.4
$region0: #{multiscale_forward.4}
  #allocation0 [shape = 'u32[]', space=smem, size = 0x4, offset = 0x4, fixed_abs, tag = 'smem constant byte address 0x4 - core index']
  #allocation1 [shape = 'u32[72,128]{1,0:T(1,128)}', space=vmem, size = 0x9000, scoped, tag = 'internal scratch']
  %s0 = inlined_call_operand.vmem [shape: bf16[128,256], index: 0, kind: input, shape index: {}]
  %s1 = inlined_call_operand.hbm [shape: bf16[256,128], index: 1, kind: input, shape index: {}]
  %s2 = inlined_call_operand.hbm [shape: f32[1,128], index: 2, kind: input, shape index: {}]
  %s3 = inlined_call_operand.hbm [shape: f32[1,128], index: 3, kind: input, shape index: {}]
  %s4 = inlined_call_operand.hbm [shape: f32[1,128], index: 4, kind: input, shape index: {}]
  %s5 = inlined_call_operand.vmem [shape: f32[128,128], index: 5, kind: output, shape index: {}]
  %s6 = sld [smem:[#allocation0]]
  $region54: #{multiscale_forward.4} parent=0
    _
  %s8 = ssub.s32 1, %s6
  %s9 = scalar_select 0, %s8, %s6
  $region1: #{multiscale_forward.4} parent=0
    #allocation2 [shape = 'u8[65536]{0}', space=vmem, size = 0x10000, scoped, tag = 'input window, operand 1, single buffered']
    #allocation3 [shape = 's32[1]{0}', space=sflag, size = 0x4, scoped, tag = 'scoped memory for multiscale_forward.4']
    #allocation4 [shape = 'u8[512]{0}', space=vmem, size = 0x400, scoped, tag = 'input window, operand 2, single buffered']
    #allocation5 [shape = 's32[1]{0}', space=sflag, size = 0x4, scoped, tag = 'scoped memory for multiscale_forward.4']
    #allocation6 [shape = 'u8[512]{0}', space=vmem, size = 0x400, scoped, tag = 'input window, operand 3, single buffered']
    #allocation7 [shape = 'u8[512]{0}', space=vmem, size = 0x400, scoped, tag = 'input window, operand 4, single buffered']
    #allocation8 [shape = 's32[1]{0}', space=sflag, size = 0x4, scoped, tag = 'scoped memory for multiscale_forward.4']
    %10 = vsyncpa [#allocation3], 0
    %11 = vsyncpa [#allocation5], 0
    %12 = vsyncpa [#allocation8], 0
    // Predicated region
    $region2: #{multiscale_forward.4} parent=1 // pred_check
      _
    $region3: #{multiscale_forward.4} parent=1 // pred_check_branch
      %14 = sbr.rel (0) target = $region5
    $region4: #{multiscale_forward.4} parent=1 // pred_region
      _
    $region5: #{multiscale_forward.4} parent=1 // pred_fallthru
      _
    // Predicated region
    $region6: #{multiscale_forward.4} parent=1 // pred_check
      _
    $region7: #{multiscale_forward.4} parent=1 // pred_check_branch
      %16 = sbr.rel (0) target = $region9
    $region8: #{multiscale_forward.4} parent=1 // pred_region
      %18 = vsyncadd [#allocation3], 0
      %s19 = sshll.u32 %s1, 4
      %s20 = int_to_ptr.hbm [resolvable:$true] %s19
      %s21 = sshll.u32 [#allocation2], 4
      %s22 = int_to_ptr.vmem [resolvable:$true] %s21
      %27 = dma.hbm_to_vmem [thread:$0]  %s20, 2048, %s22, [#allocation3], 64, 64, 4
    $region9: #{multiscale_forward.4} parent=1 // pred_fallthru
      _
    // Predicated region
    $region10: #{multiscale_forward.4} parent=1 // pred_check
      _
    $region11: #{multiscale_forward.4} parent=1 // pred_check_branch
      %29 = sbr.rel (0) target = $region13
    $region12: #{multiscale_forward.4} parent=1 // pred_region
      %31 = vsyncadd [#allocation5], 0
      %s33 = sshll.u32 %s2, 4
      %s34 = int_to_ptr.hbm [resolvable:$true] %s33
      %s35 = sshll.u32 [#allocation4], 4
      %s36 = int_to_ptr.vmem [resolvable:$true] %s35
      %38 = dma.hbm_to_vmem [thread:$0]  %s34, 16, %s36, [#allocation5]
    $region13: #{multiscale_forward.4} parent=1 // pred_fallthru
      _
    // Predicated region
    $region14: #{multiscale_forward.4} parent=1 // pred_check
      _
    $region15: #{multiscale_forward.4} parent=1 // pred_check_branch
      %40 = sbr.rel (0) target = $region17
    $region16: #{multiscale_forward.4} parent=1 // pred_region
      %42 = vsyncadd [#allocation5], 0
      %s44 = sshll.u32 %s3, 4
      %s45 = int_to_ptr.hbm [resolvable:$true] %s44
      %s46 = sshll.u32 [#allocation6], 4
      %s47 = int_to_ptr.vmem [resolvable:$true] %s46
      %49 = dma.hbm_to_vmem [thread:$0]  %s45, 16, %s47, [#allocation5]
    $region17: #{multiscale_forward.4} parent=1 // pred_fallthru
      _
    // Predicated region
    $region18: #{multiscale_forward.4} parent=1 // pred_check
      _
    $region19: #{multiscale_forward.4} parent=1 // pred_check_branch
      %51 = sbr.rel (0) target = $region21
    $region20: #{multiscale_forward.4} parent=1 // pred_region
      %53 = vsyncadd [#allocation8], 0
      %s55 = sshll.u32 %s4, 4
      %s56 = int_to_ptr.hbm [resolvable:$true] %s55
      %s57 = sshll.u32 [#allocation7], 4
      %s58 = int_to_ptr.vmem [resolvable:$true] %s57
      %60 = dma.hbm_to_vmem [thread:$0]  %s56, 16, %s58, [#allocation8]
    $region21: #{multiscale_forward.4} parent=1 // pred_fallthru
      _
    // Predicated region
    $region22: #{multiscale_forward.4} parent=1 // pred_check
      _
    $region23: #{multiscale_forward.4} parent=1 // pred_check_branch
      %62 = sbr.rel (0) target = $region25
    $region24: #{multiscale_forward.4} parent=1 // pred_region
      %64 = dma.done [#allocation3], 2048
    $region25: #{multiscale_forward.4} parent=1 // pred_fallthru
      _
    // Predicated region
    $region26: #{multiscale_forward.4} parent=1 // pred_check
      _
    $region27: #{multiscale_forward.4} parent=1 // pred_check_branch
      %66 = sbr.rel (0) target = $region29
    $region28: #{multiscale_forward.4} parent=1 // pred_region
      %68 = dma.done [#allocation5], 16
    $region29: #{multiscale_forward.4} parent=1 // pred_fallthru
      _
    // Predicated region
    $region30: #{multiscale_forward.4} parent=1 // pred_check
      _
    $region31: #{multiscale_forward.4} parent=1 // pred_check_branch
      %70 = sbr.rel (0) target = $region33
    $region32: #{multiscale_forward.4} parent=1 // pred_region
      %72 = dma.done [#allocation5], 16
    $region33: #{multiscale_forward.4} parent=1 // pred_fallthru
      _
    // Predicated region
    $region34: #{multiscale_forward.4} parent=1 // pred_check
      _
    $region35: #{multiscale_forward.4} parent=1 // pred_check_branch
      %74 = sbr.rel (0) target = $region37
    $region36: #{multiscale_forward.4} parent=1 // pred_region
      %76 = dma.done [#allocation8], 16
    $region37: #{multiscale_forward.4} parent=1 // pred_fallthru
      _
    %p77 = scmp.eq.s32.totalorder 0, 0
    // Predicated region
    $region38: #{multiscale_forward.4} parent=1 // pred_check
      %p78 = pneg %p77
    $region39: #{multiscale_forward.4} parent=1 // pred_check_branch
      %80 = sbr.rel (%p78) target = $region41
    $region40: #{multiscale_forward.4} parent=1 // pred_region
      %81 = vst [vmem:[%s5] sm:$0xff] 0.0
      %82 = vst [vmem:[%s5 + $0x8] sm:$0xff] 0.0
      %83 = vst [vmem:[%s5 + $0x10] sm:$0xff] 0.0
      %84 = vst [vmem:[%s5 + $0x18] sm:$0xff] 0.0
      %85 = vst [vmem:[%s5 + $0x20] sm:$0xff] 0.0
      %86 = vst [vmem:[%s5 + $0x28] sm:$0xff] 0.0
      %87 = vst [vmem:[%s5 + $0x30] sm:$0xff] 0.0
      %88 = vst [vmem:[%s5 + $0x38] sm:$0xff] 0.0
      %89 = vst [vmem:[%s5 + $0x40] sm:$0xff] 0.0
      %90 = vst [vmem:[%s5 + $0x48] sm:$0xff] 0.0
      %91 = vst [vmem:[%s5 + $0x50] sm:$0xff] 0.0
      %92 = vst [vmem:[%s5 + $0x58] sm:$0xff] 0.0
      %93 = vst [vmem:[%s5 + $0x60] sm:$0xff] 0.0
      %94 = vst [vmem:[%s5 + $0x68] sm:$0xff] 0.0
      %95 = vst [vmem:[%s5 + $0x70] sm:$0xff] 0.0
      %96 = vst [vmem:[%s5 + $0x78] sm:$0xff] 0.0
    $region41: #{multiscale_forward.4} parent=1 // pred_fallthru
      _
    %v97 = vld [vmem:[%s5] sm:$0xff]
    %v98 = vld [vmem:[%s5 + $0x8] sm:$0xff]
    %v99 = vld [vmem:[%s5 + $0x10] sm:$0xff]
    %v100 = vld [vmem:[%s5 + $0x18] sm:$0xff]
    %v101 = vld [vmem:[%s5 + $0x20] sm:$0xff]
    %v102 = vld [vmem:[%s5 + $0x28] sm:$0xff]
    %v103 = vld [vmem:[%s5 + $0x30] sm:$0xff]
    %v104 = vld [vmem:[%s5 + $0x38] sm:$0xff]
    %v105 = vld [vmem:[%s5 + $0x40] sm:$0xff]
    %v106 = vld [vmem:[%s5 + $0x48] sm:$0xff]
    %v107 = vld [vmem:[%s5 + $0x50] sm:$0xff]
    %v108 = vld [vmem:[%s5 + $0x58] sm:$0xff]
    %v109 = vld [vmem:[%s5 + $0x60] sm:$0xff]
    %v110 = vld [vmem:[%s5 + $0x68] sm:$0xff]
    %v111 = vld [vmem:[%s5 + $0x70] sm:$0xff]
    %v112 = vld [vmem:[%s5 + $0x78] sm:$0xff]
    %v113 = vld [vmem:[%s0] sm:$0xff]
    %v114 = vld [vmem:[%s0 + $0x8] sm:$0xff]
    %v115 = vld [vmem:[%s0 + $0x10] sm:$0xff]
    %v116 = vld [vmem:[%s0 + $0x18] sm:$0xff]
    %v117 = vld [vmem:[%s0 + $0x20] sm:$0xff]
    %v118 = vld [vmem:[%s0 + $0x28] sm:$0xff]
    %v119 = vld [vmem:[%s0 + $0x30] sm:$0xff]
    %v120 = vld [vmem:[%s0 + $0x38] sm:$0xff]
    %v121 = vld [vmem:[%s0 + $0x40] sm:$0xff]
    %v122 = vld [vmem:[%s0 + $0x48] sm:$0xff]
    %v123 = vld [vmem:[%s0 + $0x50] sm:$0xff]
    %v124 = vld [vmem:[%s0 + $0x58] sm:$0xff]
    %v125 = vld [vmem:[%s0 + $0x60] sm:$0xff]
    %v126 = vld [vmem:[%s0 + $0x68] sm:$0xff]
    %v127 = vld [vmem:[%s0 + $0x70] sm:$0xff]
    %v128 = vld [vmem:[%s0 + $0x78] sm:$0xff]
    %v129 = vld [vmem:[#allocation2] sm:$0xf]
    %v130 = vld [vmem:[#allocation2 + $0x4] sm:$0xf]
    %v131 = vld [vmem:[#allocation2 + $0x8] sm:$0xf]
    %v132 = vld [vmem:[#allocation2 + $0xc] sm:$0xf]
    %v133 = vld [vmem:[#allocation2 + $0x10] sm:$0xf]
    %v134 = vld [vmem:[#allocation2 + $0x14] sm:$0xf]
    %v135 = vld [vmem:[#allocation2 + $0x18] sm:$0xf]
    %v136 = vld [vmem:[#allocation2 + $0x1c] sm:$0xf]
    %v137 = vld [vmem:[#allocation2 + $0x20] sm:$0xf]
    %v138 = vld [vmem:[#allocation2 + $0x24] sm:$0xf]
    %v139 = vld [vmem:[#allocation2 + $0x28] sm:$0xf]
    %v140 = vld [vmem:[#allocation2 + $0x2c] sm:$0xf]
    %v141 = vld [vmem:[#allocation2 + $0x30] sm:$0xf]
    %v142 = vld [vmem:[#allocation2 + $0x34] sm:$0xf]
    %v143 = vld [vmem:[#allocation2 + $0x38] sm:$0xf]
    %v144 = vld [vmem:[#allocation2 + $0x3c] sm:$0xf]
    %v145 = vld [vmem:[#allocation2 + $0x40] sm:$0xf]
    %v146 = vld [vmem:[#allocation2 + $0x44] sm:$0xf]
    %v147 = vld [vmem:[#allocation2 + $0x48] sm:$0xf]
    %v148 = vld [vmem:[#allocation2 + $0x4c] sm:$0xf]
    %v149 = vld [vmem:[#allocation2 + $0x50] sm:$0xf]
    %v150 = vld [vmem:[#allocation2 + $0x54] sm:$0xf]
    %v151 = vld [vmem:[#allocation2 + $0x58] sm:$0xf]
    %v152 = vld [vmem:[#allocation2 + $0x5c] sm:$0xf]
    %v153 = vld [vmem:[#allocation2 + $0x60] sm:$0xf]
    %v154 = vld [vmem:[#allocation2 + $0x64] sm:$0xf]
    %v155 = vld [vmem:[#allocation2 + $0x68] sm:$0xf]
    %v156 = vld [vmem:[#allocation2 + $0x6c] sm:$0xf]
    %v157 = vld [vmem:[#allocation2 + $0x70] sm:$0xf]
    %v158 = vld [vmem:[#allocation2 + $0x74] sm:$0xf]
    %v159 = vld [vmem:[#allocation2 + $0x78] sm:$0xf]
    %v160 = vld [vmem:[#allocation2 + $0x7c] sm:$0xf]
    %v177 = vunpack.c.l.b16 %v113
    %v178 = vunpack.c.h.b16 %v113
    %v179 = vunpack.c.l.b16 %v114
    %v180 = vunpack.c.h.b16 %v114
    %v181 = vunpack.c.l.b16 %v115
    %v182 = vunpack.c.h.b16 %v115
    %v183 = vunpack.c.l.b16 %v116
    %v184 = vunpack.c.h.b16 %v116
    %v185 = vunpack.c.l.b16 %v117
    %v186 = vunpack.c.h.b16 %v117
    %v187 = vunpack.c.l.b16 %v118
    %v188 = vunpack.c.h.b16 %v118
    %v189 = vunpack.c.l.b16 %v119
    %v190 = vunpack.c.h.b16 %v119
    %v191 = vunpack.c.l.b16 %v120
    %v192 = vunpack.c.h.b16 %v120
    %v193 = vunpack.c.l.b16 %v121
    %v194 = vunpack.c.h.b16 %v121
    %v195 = vunpack.c.l.b16 %v122
    %v196 = vunpack.c.h.b16 %v122
    %v197 = vunpack.c.l.b16 %v123
    %v198 = vunpack.c.h.b16 %v123
    %v199 = vunpack.c.l.b16 %v124
    %v200 = vunpack.c.h.b16 %v124
    %v201 = vunpack.c.l.b16 %v125
    %v202 = vunpack.c.h.b16 %v125
    %v203 = vunpack.c.l.b16 %v126
    %v204 = vunpack.c.h.b16 %v126
    %v205 = vunpack.c.l.b16 %v127
    %v206 = vunpack.c.h.b16 %v127
    %v207 = vunpack.c.l.b16 %v128
    %v208 = vunpack.c.h.b16 %v128
    %v209 = vpack.c.b16 %v179, %v177
    %v210 = vpack.c.b16 %v180, %v178
    %v211 = vpack.c.b16 %v183, %v181
    %v212 = vpack.c.b16 %v184, %v182
    %v213 = vpack.c.b16 %v187, %v185
    %v214 = vpack.c.b16 %v188, %v186
    %v215 = vpack.c.b16 %v191, %v189
    %v216 = vpack.c.b16 %v192, %v190
    %v217 = vpack.c.b16 %v195, %v193
    %v218 = vpack.c.b16 %v196, %v194
    %v219 = vpack.c.b16 %v199, %v197
    %v220 = vpack.c.b16 %v200, %v198
    %v221 = vpack.c.b16 %v203, %v201
    %v222 = vpack.c.b16 %v204, %v202
    %v223 = vpack.c.b16 %v207, %v205
    %v224 = vpack.c.b16 %v208, %v206
    %v273 = vunpack.c.l.b16 %v129
    %v274 = vunpack.c.l.b16 %v130
    %v275 = vunpack.c.l.b16 %v131
    %v276 = vunpack.c.l.b16 %v132
    %v277 = vunpack.c.l.b16 %v133
    %v278 = vunpack.c.l.b16 %v134
    %v279 = vunpack.c.l.b16 %v135
    %v280 = vunpack.c.l.b16 %v136
    %v281 = vunpack.c.l.b16 %v137
    %v282 = vunpack.c.l.b16 %v138
    %v283 = vunpack.c.l.b16 %v139
    %v284 = vunpack.c.l.b16 %v140
    %v285 = vunpack.c.l.b16 %v141
    %v286 = vunpack.c.l.b16 %v142
    %v287 = vunpack.c.l.b16 %v143
    %v288 = vunpack.c.l.b16 %v144
    %v289 = vunpack.c.l.b16 %v145
    %v290 = vunpack.c.l.b16 %v146
    %v291 = vunpack.c.l.b16 %v147
    %v292 = vunpack.c.l.b16 %v148
    %v293 = vunpack.c.l.b16 %v149
    %v294 = vunpack.c.l.b16 %v150
    %v295 = vunpack.c.l.b16 %v151
    %v296 = vunpack.c.l.b16 %v152
    %v297 = vunpack.c.l.b16 %v153
    %v298 = vunpack.c.l.b16 %v154
    %v299 = vunpack.c.l.b16 %v155
    %v300 = vunpack.c.l.b16 %v156
    %v301 = vunpack.c.l.b16 %v157
    %v302 = vunpack.c.l.b16 %v158
    %v303 = vunpack.c.l.b16 %v159
    %v304 = vunpack.c.l.b16 %v160
    %v305 = vpack.c.b16 %v274, %v273
    %v306 = vpack.c.b16 %v276, %v275
    %v307 = vpack.c.b16 %v278, %v277
    %v308 = vpack.c.b16 %v280, %v279
    %v309 = vpack.c.b16 %v282, %v281
    %v310 = vpack.c.b16 %v284, %v283
    %v311 = vpack.c.b16 %v286, %v285
    %v312 = vpack.c.b16 %v288, %v287
    %v313 = vpack.c.b16 %v290, %v289
    %v314 = vpack.c.b16 %v292, %v291
    %v315 = vpack.c.b16 %v294, %v293
    %v316 = vpack.c.b16 %v296, %v295
    %v317 = vpack.c.b16 %v298, %v297
    %v318 = vpack.c.b16 %v300, %v299
    %v319 = vpack.c.b16 %v302, %v301
    %v320 = vpack.c.b16 %v304, %v303
    %337 = vmatpush.bf16.msra.mxu0 %v312
    %338 = vmatpush.bf16.msra.mxu0 %v311
    %339 = vmatpush.bf16.msra.mxu0 %v310
    %340 = vmatpush.bf16.msra.mxu0 %v309
    %341 = vmatpush.bf16.msra.mxu0 %v308
    %342 = vmatpush.bf16.msra.mxu0 %v307
    %343 = vmatpush.bf16.msra.mxu0 %v306
    %344 = vmatpush.bf16.msra.mxu0 %v305
    %345 = vmatmul.bf16.gmra.mxu0 %v209
    %v346 = vpop.f32.mrf.mxu0
    %v347 = vadd.f32 0.0, %v346
    %v348 = vpop.f32.mrf.mxu0
    %v349 = vadd.f32 0.0, %v348
    %350 = vmatmul.bf16.gmra.mxu0 %v211
    %v351 = vpop.f32.mrf.mxu0
    %v352 = vadd.f32 0.0, %v351
    %v353 = vpop.f32.mrf.mxu0
    %v354 = vadd.f32 0.0, %v353
    %355 = vmatmul.bf16.gmra.mxu0 %v213
    %v356 = vpop.f32.mrf.mxu0
    %v357 = vadd.f32 0.0, %v356
    %v358 = vpop.f32.mrf.mxu0
    %v359 = vadd.f32 0.0, %v358
    %360 = vmatmul.bf16.gmra.mxu0 %v215
    %v361 = vpop.f32.mrf.mxu0
    %v362 = vadd.f32 0.0, %v361
    %v363 = vpop.f32.mrf.mxu0
    %v364 = vadd.f32 0.0, %v363
    %365 = vmatmul.bf16.gmra.mxu0 %v217
    %v366 = vpop.f32.mrf.mxu0
    %v367 = vadd.f32 0.0, %v366
    %v368 = vpop.f32.mrf.mxu0
    %v369 = vadd.f32 0.0, %v368
    %370 = vmatmul.bf16.gmra.mxu0 %v219
    %v371 = vpop.f32.mrf.mxu0
    %v372 = vadd.f32 0.0, %v371
    %v373 = vpop.f32.mrf.mxu0
    %v374 = vadd.f32 0.0, %v373
    %375 = vmatmul.bf16.gmra.mxu0 %v221
    %v376 = vpop.f32.mrf.mxu0
    %v377 = vadd.f32 0.0, %v376
    %v378 = vpop.f32.mrf.mxu0
    %v379 = vadd.f32 0.0, %v378
    %380 = vmatmul.bf16.gmra.mxu0 %v223
    %v381 = vpop.f32.mrf.mxu0
    %v382 = vadd.f32 0.0, %v381
    %v383 = vpop.f32.mrf.mxu0
    %v384 = vadd.f32 0.0, %v383
    %385 = vdwg.mxu0
    %386 = vmatpush.bf16.msra.mxu0 %v320
    %387 = vmatpush.bf16.msra.mxu0 %v319
    %388 = vmatpush.bf16.msra.mxu0 %v318
    %389 = vmatpush.bf16.msra.mxu0 %v317
    %390 = vmatpush.bf16.msra.mxu0 %v316
    %391 = vmatpush.bf16.msra.mxu0 %v315
    %392 = vmatpush.bf16.msra.mxu0 %v314
    %393 = vmatpush.bf16.msra.mxu0 %v313
    %394 = vmatmul.bf16.gmra.mxu0 %v210
    %v395 = vpop.f32.mrf.mxu0
    %v396 = vadd.f32 %v347, %v395
    %v397 = vpop.f32.mrf.mxu0
    %v398 = vadd.f32 %v349, %v397
    %399 = vmatmul.bf16.gmra.mxu0 %v212
    %v400 = vpop.f32.mrf.mxu0
    %v401 = vadd.f32 %v352, %v400
    %v402 = vpop.f32.mrf.mxu0
    %v403 = vadd.f32 %v354, %v402
    %404 = vmatmul.bf16.gmra.mxu0 %v214
    %v405 = vpop.f32.mrf.mxu0
    %v406 = vadd.f32 %v357, %v405
    %v407 = vpop.f32.mrf.mxu0
    %v408 = vadd.f32 %v359, %v407
    %409 = vmatmul.bf16.gmra.mxu0 %v216
    %v410 = vpop.f32.mrf.mxu0
    %v411 = vadd.f32 %v362, %v410
    %v412 = vpop.f32.mrf.mxu0
    %v413 = vadd.f32 %v364, %v412
    %414 = vmatmul.bf16.gmra.mxu0 %v218
    %v415 = vpop.f32.mrf.mxu0
    %v416 = vadd.f32 %v367, %v415
    %v417 = vpop.f32.mrf.mxu0
    %v418 = vadd.f32 %v369, %v417
    %419 = vmatmul.bf16.gmra.mxu0 %v220
    %v420 = vpop.f32.mrf.mxu0
    %v421 = vadd.f32 %v372, %v420
    %v422 = vpop.f32.mrf.mxu0
    %v423 = vadd.f32 %v374, %v422
    %424 = vmatmul.bf16.gmra.mxu0 %v222
    %v425 = vpop.f32.mrf.mxu0
    %v426 = vadd.f32 %v377, %v425
    %v427 = vpop.f32.mrf.mxu0
    %v428 = vadd.f32 %v379, %v427
    %429 = vmatmul.bf16.gmra.mxu0 %v224
    %v430 = vpop.f32.mrf.mxu0
    %v431 = vadd.f32 %v382, %v430
    %v432 = vpop.f32.mrf.mxu0
    %v433 = vadd.f32 %v384, %v432
    %434 = vdwg.mxu0
    %v435 = vadd.f32 %v97, %v396
    %v436 = vadd.f32 %v98, %v398
    %v437 = vadd.f32 %v99, %v401
    %v438 = vadd.f32 %v100, %v403
    %v439 = vadd.f32 %v101, %v406
    %v440 = vadd.f32 %v102, %v408
    %v441 = vadd.f32 %v103, %v411
    %v442 = vadd.f32 %v104, %v413
    %v443 = vadd.f32 %v105, %v416
    %v444 = vadd.f32 %v106, %v418
    %v445 = vadd.f32 %v107, %v421
    %v446 = vadd.f32 %v108, %v423
    %v447 = vadd.f32 %v109, %v426
    %v448 = vadd.f32 %v110, %v428
    %v449 = vadd.f32 %v111, %v431
    %v450 = vadd.f32 %v112, %v433
    %451 = vst [vmem:[%s5] sm:$0xff] %v435
    %452 = vst [vmem:[%s5 + $0x8] sm:$0xff] %v436
    %453 = vst [vmem:[%s5 + $0x10] sm:$0xff] %v437
    %454 = vst [vmem:[%s5 + $0x18] sm:$0xff] %v438
    %455 = vst [vmem:[%s5 + $0x20] sm:$0xff] %v439
    %456 = vst [vmem:[%s5 + $0x28] sm:$0xff] %v440
    %457 = vst [vmem:[%s5 + $0x30] sm:$0xff] %v441
    %458 = vst [vmem:[%s5 + $0x38] sm:$0xff] %v442
    %459 = vst [vmem:[%s5 + $0x40] sm:$0xff] %v443
    %460 = vst [vmem:[%s5 + $0x48] sm:$0xff] %v444
    %461 = vst [vmem:[%s5 + $0x50] sm:$0xff] %v445
    %462 = vst [vmem:[%s5 + $0x58] sm:$0xff] %v446
    %463 = vst [vmem:[%s5 + $0x60] sm:$0xff] %v447
    %464 = vst [vmem:[%s5 + $0x68] sm:$0xff] %v448
    %465 = vst [vmem:[%s5 + $0x70] sm:$0xff] %v449
    %466 = vst [vmem:[%s5 + $0x78] sm:$0xff] %v450
    // Predicated region
    $region42: #{multiscale_forward.4} parent=1 // pred_check
      %p467 = pneg %p77
    $region43: #{multiscale_forward.4} parent=1 // pred_check_branch
      %469 = sbr.rel (%p467) target = $region45
    $region44: #{multiscale_forward.4} parent=1 // pred_region
      %v470 = vld [vmem:[%s5] sm:$0xff]
      %v471 = vld [vmem:[%s5 + $0x8] sm:$0xff]
      %v472 = vld [vmem:[%s5 + $0x10] sm:$0xff]
      %v473 = vld [vmem:[%s5 + $0x18] sm:$0xff]
      %v474 = vld [vmem:[%s5 + $0x20] sm:$0xff]
      %v475 = vld [vmem:[%s5 + $0x28] sm:$0xff]
      %v476 = vld [vmem:[%s5 + $0x30] sm:$0xff]
      %v477 = vld [vmem:[%s5 + $0x38] sm:$0xff]
      %v478 = vld [vmem:[%s5 + $0x40] sm:$0xff]
      %v479 = vld [vmem:[%s5 + $0x48] sm:$0xff]
      %v480 = vld [vmem:[%s5 + $0x50] sm:$0xff]
      %v481 = vld [vmem:[%s5 + $0x58] sm:$0xff]
      %v482 = vld [vmem:[%s5 + $0x60] sm:$0xff]
      %v483 = vld [vmem:[%s5 + $0x68] sm:$0xff]
      %v484 = vld [vmem:[%s5 + $0x70] sm:$0xff]
      %v485 = vld [vmem:[%s5 + $0x78] sm:$0xff]
      %v486 = vld [vmem:[#allocation4] sm:$0x1]
      %v488 = vperm.slane %v486, 0
      %v490 = vadd.f32 %v470, %v488
      %v491 = vadd.f32 %v471, %v488
      %v492 = vadd.f32 %v472, %v488
      %v493 = vadd.f32 %v473, %v488
      %v494 = vadd.f32 %v474, %v488
      %v495 = vadd.f32 %v475, %v488
      %v496 = vadd.f32 %v476, %v488
      %v497 = vadd.f32 %v477, %v488
      %v498 = vadd.f32 %v478, %v488
      %v499 = vadd.f32 %v479, %v488
      %v500 = vadd.f32 %v480, %v488
      %v501 = vadd.f32 %v481, %v488
      %v502 = vadd.f32 %v482, %v488
      %v503 = vadd.f32 %v483, %v488
      %v504 = vadd.f32 %v484, %v488
      %v505 = vadd.f32 %v485, %v488
      %v506 = vmax.f32 %v490, 0.0
      %v507 = vmax.f32 %v491, 0.0
      %v508 = vmax.f32 %v492, 0.0
      %v509 = vmax.f32 %v493, 0.0
      %v510 = vmax.f32 %v494, 0.0
      %v511 = vmax.f32 %v495, 0.0
      %v512 = vmax.f32 %v496, 0.0
      %v513 = vmax.f32 %v497, 0.0
      %v514 = vmax.f32 %v498, 0.0
      %v515 = vmax.f32 %v499, 0.0
      %v516 = vmax.f32 %v500, 0.0
      %v517 = vmax.f32 %v501, 0.0
      %v518 = vmax.f32 %v502, 0.0
      %v519 = vmax.f32 %v503, 0.0
      %v520 = vmax.f32 %v504, 0.0
      %v521 = vmax.f32 %v505, 0.0
      %v522 = vld [vmem:[#allocation6] sm:$0x1]
      %v524 = vperm.slane %v522, 0
      %v526 = vmul.f32 %v506, %v524
      %v527 = vmul.f32 %v507, %v524
      %v528 = vmul.f32 %v508, %v524
      %v529 = vmul.f32 %v509, %v524
      %v530 = vmul.f32 %v510, %v524
      %v531 = vmul.f32 %v511, %v524
      %v532 = vmul.f32 %v512, %v524
      %v533 = vmul.f32 %v513, %v524
      %v534 = vmul.f32 %v514, %v524
      %v535 = vmul.f32 %v515, %v524
      %v536 = vmul.f32 %v516, %v524
      %v537 = vmul.f32 %v517, %v524
      %v538 = vmul.f32 %v518, %v524
      %v539 = vmul.f32 %v519, %v524
      %v540 = vmul.f32 %v520, %v524
      %v541 = vmul.f32 %v521, %v524
      %v542 = vld [vmem:[#allocation7] sm:$0x1]
      %v544 = vperm.slane %v542, 0
      %v546 = vadd.f32 %v526, %v544
      %v547 = vadd.f32 %v527, %v544
      %v548 = vadd.f32 %v528, %v544
      %v549 = vadd.f32 %v529, %v544
      %v550 = vadd.f32 %v530, %v544
      %v551 = vadd.f32 %v531, %v544
      %v552 = vadd.f32 %v532, %v544
      %v553 = vadd.f32 %v533, %v544
      %v554 = vadd.f32 %v534, %v544
      %v555 = vadd.f32 %v535, %v544
      %v556 = vadd.f32 %v536, %v544
      %v557 = vadd.f32 %v537, %v544
      %v558 = vadd.f32 %v538, %v544
      %v559 = vadd.f32 %v539, %v544
      %v560 = vadd.f32 %v540, %v544
      %v561 = vadd.f32 %v541, %v544
      %562 = vst [vmem:[%s5] sm:$0xff] %v546
      %563 = vst [vmem:[%s5 + $0x8] sm:$0xff] %v547
      %564 = vst [vmem:[%s5 + $0x10] sm:$0xff] %v548
      %565 = vst [vmem:[%s5 + $0x18] sm:$0xff] %v549
      %566 = vst [vmem:[%s5 + $0x20] sm:$0xff] %v550
      %567 = vst [vmem:[%s5 + $0x28] sm:$0xff] %v551
      %568 = vst [vmem:[%s5 + $0x30] sm:$0xff] %v552
      %569 = vst [vmem:[%s5 + $0x38] sm:$0xff] %v553
      %570 = vst [vmem:[%s5 + $0x40] sm:$0xff] %v554
      %571 = vst [vmem:[%s5 + $0x48] sm:$0xff] %v555
      %572 = vst [vmem:[%s5 + $0x50] sm:$0xff] %v556
      %573 = vst [vmem:[%s5 + $0x58] sm:$0xff] %v557
      %574 = vst [vmem:[%s5 + $0x60] sm:$0xff] %v558
      %575 = vst [vmem:[%s5 + $0x68] sm:$0xff] %v559
      %576 = vst [vmem:[%s5 + $0x70] sm:$0xff] %v560
      %577 = vst [vmem:[%s5 + $0x78] sm:$0xff] %v561
    $region45: #{multiscale_forward.4} parent=1 // pred_fallthru
      _
    // Predicated region
    $region46: #{multiscale_forward.4} parent=1 // pred_check
      _
    $region47: #{multiscale_forward.4} parent=1 // pred_check_branch
      %579 = sbr.rel (0) target = $region49
    $region48: #{multiscale_forward.4} parent=1 // pred_region
      _
    $region49: #{multiscale_forward.4} parent=1 // pred_fallthru
      _
    // Predicated region
    $region50: #{multiscale_forward.4} parent=1 // pred_check
      _
    $region51: #{multiscale_forward.4} parent=1 // pred_check_branch
      %581 = sbr.rel (0) target = $region53
    $region52: #{multiscale_forward.4} parent=1 // pred_region
      _
    $region53: #{multiscale_forward.4} parent=1 // pred_fallthru
      _
    %582 = vsyncpa [#allocation3], 1
    %583 = vsyncpa [#allocation5], 1
    %584 = vsyncpa [#allocation8], 1

// kernel: multiscale_forward.5
$region0: #{multiscale_forward.5}
  #allocation0 [shape = 'u32[]', space=smem, size = 0x4, offset = 0x4, fixed_abs, tag = 'smem constant byte address 0x4 - core index']
  #allocation1 [shape = 'u32[72,128]{1,0:T(1,128)}', space=vmem, size = 0x9000, scoped, tag = 'internal scratch']
  %s0 = inlined_call_operand.vmem [shape: bf16[128,640], index: 0, kind: input, shape index: {}]
  %s1 = inlined_call_operand.hbm [shape: bf16[640,128], index: 1, kind: input, shape index: {}]
  %s2 = inlined_call_operand.hbm [shape: f32[1,128], index: 2, kind: input, shape index: {}]
  %s3 = inlined_call_operand.hbm [shape: f32[1,128], index: 3, kind: input, shape index: {}]
  %s4 = inlined_call_operand.hbm [shape: f32[1,128], index: 4, kind: input, shape index: {}]
  %s5 = inlined_call_operand.vmem [shape: f32[128,128], index: 5, kind: output, shape index: {}]
  %s6 = sld [smem:[#allocation0]]
  $region54: #{multiscale_forward.5} parent=0
    _
  %s8 = ssub.s32 1, %s6
  %s9 = scalar_select 0, %s8, %s6
  $region1: #{multiscale_forward.5} parent=0
    #allocation2 [shape = 'u8[163840]{0}', space=vmem, size = 0x28000, scoped, tag = 'input window, operand 1, single buffered']
    #allocation3 [shape = 's32[1]{0}', space=sflag, size = 0x4, scoped, tag = 'scoped memory for multiscale_forward.5']
    #allocation4 [shape = 'u8[512]{0}', space=vmem, size = 0x400, scoped, tag = 'input window, operand 2, single buffered']
    #allocation5 [shape = 's32[1]{0}', space=sflag, size = 0x4, scoped, tag = 'scoped memory for multiscale_forward.5']
    #allocation6 [shape = 'u8[512]{0}', space=vmem, size = 0x400, scoped, tag = 'input window, operand 3, single buffered']
    #allocation7 [shape = 'u8[512]{0}', space=vmem, size = 0x400, scoped, tag = 'input window, operand 4, single buffered']
    #allocation8 [shape = 's32[1]{0}', space=sflag, size = 0x4, scoped, tag = 'scoped memory for multiscale_forward.5']
    %10 = vsyncpa [#allocation3], 0
    %11 = vsyncpa [#allocation5], 0
    %12 = vsyncpa [#allocation8], 0
    // Predicated region
    $region2: #{multiscale_forward.5} parent=1 // pred_check
      _
    $region3: #{multiscale_forward.5} parent=1 // pred_check_branch
      %14 = sbr.rel (0) target = $region5
    $region4: #{multiscale_forward.5} parent=1 // pred_region
      _
    $region5: #{multiscale_forward.5} parent=1 // pred_fallthru
      _
    // Predicated region
    $region6: #{multiscale_forward.5} parent=1 // pred_check
      _
    $region7: #{multiscale_forward.5} parent=1 // pred_check_branch
      %16 = sbr.rel (0) target = $region9
    $region8: #{multiscale_forward.5} parent=1 // pred_region
      %18 = vsyncadd [#allocation3], 0
      %s19 = sshll.u32 %s1, 4
      %s20 = int_to_ptr.hbm [resolvable:$true] %s19
      %s21 = sshll.u32 [#allocation2], 4
      %s22 = int_to_ptr.vmem [resolvable:$true] %s21
      %27 = dma.hbm_to_vmem [thread:$0]  %s20, 5120, %s22, [#allocation3], 64, 64, 4
    $region9: #{multiscale_forward.5} parent=1 // pred_fallthru
      _
    // Predicated region
    $region10: #{multiscale_forward.5} parent=1 // pred_check
      _
    $region11: #{multiscale_forward.5} parent=1 // pred_check_branch
      %29 = sbr.rel (0) target = $region13
    $region12: #{multiscale_forward.5} parent=1 // pred_region
      %31 = vsyncadd [#allocation5], 0
      %s33 = sshll.u32 %s2, 4
      %s34 = int_to_ptr.hbm [resolvable:$true] %s33
      %s35 = sshll.u32 [#allocation4], 4
      %s36 = int_to_ptr.vmem [resolvable:$true] %s35
      %38 = dma.hbm_to_vmem [thread:$0]  %s34, 16, %s36, [#allocation5]
    $region13: #{multiscale_forward.5} parent=1 // pred_fallthru
      _
    // Predicated region
    $region14: #{multiscale_forward.5} parent=1 // pred_check
      _
    $region15: #{multiscale_forward.5} parent=1 // pred_check_branch
      %40 = sbr.rel (0) target = $region17
    $region16: #{multiscale_forward.5} parent=1 // pred_region
      %42 = vsyncadd [#allocation5], 0
      %s44 = sshll.u32 %s3, 4
      %s45 = int_to_ptr.hbm [resolvable:$true] %s44
      %s46 = sshll.u32 [#allocation6], 4
      %s47 = int_to_ptr.vmem [resolvable:$true] %s46
      %49 = dma.hbm_to_vmem [thread:$0]  %s45, 16, %s47, [#allocation5]
    $region17: #{multiscale_forward.5} parent=1 // pred_fallthru
      _
    // Predicated region
    $region18: #{multiscale_forward.5} parent=1 // pred_check
      _
    $region19: #{multiscale_forward.5} parent=1 // pred_check_branch
      %51 = sbr.rel (0) target = $region21
    $region20: #{multiscale_forward.5} parent=1 // pred_region
      %53 = vsyncadd [#allocation8], 0
      %s55 = sshll.u32 %s4, 4
      %s56 = int_to_ptr.hbm [resolvable:$true] %s55
      %s57 = sshll.u32 [#allocation7], 4
      %s58 = int_to_ptr.vmem [resolvable:$true] %s57
      %60 = dma.hbm_to_vmem [thread:$0]  %s56, 16, %s58, [#allocation8]
    $region21: #{multiscale_forward.5} parent=1 // pred_fallthru
      _
    // Predicated region
    $region22: #{multiscale_forward.5} parent=1 // pred_check
      _
    $region23: #{multiscale_forward.5} parent=1 // pred_check_branch
      %62 = sbr.rel (0) target = $region25
    $region24: #{multiscale_forward.5} parent=1 // pred_region
      %64 = dma.done [#allocation3], 5120
    $region25: #{multiscale_forward.5} parent=1 // pred_fallthru
      _
    // Predicated region
    $region26: #{multiscale_forward.5} parent=1 // pred_check
      _
    $region27: #{multiscale_forward.5} parent=1 // pred_check_branch
      %66 = sbr.rel (0) target = $region29
    $region28: #{multiscale_forward.5} parent=1 // pred_region
      %68 = dma.done [#allocation5], 16
    $region29: #{multiscale_forward.5} parent=1 // pred_fallthru
      _
    // Predicated region
    $region30: #{multiscale_forward.5} parent=1 // pred_check
      _
    $region31: #{multiscale_forward.5} parent=1 // pred_check_branch
      %70 = sbr.rel (0) target = $region33
    $region32: #{multiscale_forward.5} parent=1 // pred_region
      %72 = dma.done [#allocation5], 16
    $region33: #{multiscale_forward.5} parent=1 // pred_fallthru
      _
    // Predicated region
    $region34: #{multiscale_forward.5} parent=1 // pred_check
      _
    $region35: #{multiscale_forward.5} parent=1 // pred_check_branch
      %74 = sbr.rel (0) target = $region37
    $region36: #{multiscale_forward.5} parent=1 // pred_region
      %76 = dma.done [#allocation8], 16
    $region37: #{multiscale_forward.5} parent=1 // pred_fallthru
      _
    %p77 = scmp.eq.s32.totalorder 0, 0
    // Predicated region
    $region38: #{multiscale_forward.5} parent=1 // pred_check
      %p78 = pneg %p77
    $region39: #{multiscale_forward.5} parent=1 // pred_check_branch
      %80 = sbr.rel (%p78) target = $region41
    $region40: #{multiscale_forward.5} parent=1 // pred_region
      %81 = vst [vmem:[%s5] sm:$0xff] 0.0
      %82 = vst [vmem:[%s5 + $0x8] sm:$0xff] 0.0
      %83 = vst [vmem:[%s5 + $0x10] sm:$0xff] 0.0
      %84 = vst [vmem:[%s5 + $0x18] sm:$0xff] 0.0
      %85 = vst [vmem:[%s5 + $0x20] sm:$0xff] 0.0
      %86 = vst [vmem:[%s5 + $0x28] sm:$0xff] 0.0
      %87 = vst [vmem:[%s5 + $0x30] sm:$0xff] 0.0
      %88 = vst [vmem:[%s5 + $0x38] sm:$0xff] 0.0
      %89 = vst [vmem:[%s5 + $0x40] sm:$0xff] 0.0
      %90 = vst [vmem:[%s5 + $0x48] sm:$0xff] 0.0
      %91 = vst [vmem:[%s5 + $0x50] sm:$0xff] 0.0
      %92 = vst [vmem:[%s5 + $0x58] sm:$0xff] 0.0
      %93 = vst [vmem:[%s5 + $0x60] sm:$0xff] 0.0
      %94 = vst [vmem:[%s5 + $0x68] sm:$0xff] 0.0
      %95 = vst [vmem:[%s5 + $0x70] sm:$0xff] 0.0
      %96 = vst [vmem:[%s5 + $0x78] sm:$0xff] 0.0
    $region41: #{multiscale_forward.5} parent=1 // pred_fallthru
      _
    %v97 = vld [vmem:[%s5] sm:$0xff]
    %v98 = vld [vmem:[%s5 + $0x8] sm:$0xff]
    %v99 = vld [vmem:[%s5 + $0x10] sm:$0xff]
    %v100 = vld [vmem:[%s5 + $0x18] sm:$0xff]
    %v101 = vld [vmem:[%s5 + $0x20] sm:$0xff]
    %v102 = vld [vmem:[%s5 + $0x28] sm:$0xff]
    %v103 = vld [vmem:[%s5 + $0x30] sm:$0xff]
    %v104 = vld [vmem:[%s5 + $0x38] sm:$0xff]
    %v105 = vld [vmem:[%s5 + $0x40] sm:$0xff]
    %v106 = vld [vmem:[%s5 + $0x48] sm:$0xff]
    %v107 = vld [vmem:[%s5 + $0x50] sm:$0xff]
    %v108 = vld [vmem:[%s5 + $0x58] sm:$0xff]
    %v109 = vld [vmem:[%s5 + $0x60] sm:$0xff]
    %v110 = vld [vmem:[%s5 + $0x68] sm:$0xff]
    %v111 = vld [vmem:[%s5 + $0x70] sm:$0xff]
    %v112 = vld [vmem:[%s5 + $0x78] sm:$0xff]
    %v113 = vld [vmem:[%s0] sm:$0xff]
    %v114 = vld [vmem:[%s0 + $0x8] sm:$0xff]
    %v115 = vld [vmem:[%s0 + $0x10] sm:$0xf]
    %v116 = vld [vmem:[%s0 + $0x14] sm:$0xff]
    %v117 = vld [vmem:[%s0 + $0x1c] sm:$0xff]
    %v118 = vld [vmem:[%s0 + $0x24] sm:$0xf]
    %v119 = vld [vmem:[%s0 + $0x28] sm:$0xff]
    %v120 = vld [vmem:[%s0 + $0x30] sm:$0xff]
    %v121 = vld [vmem:[%s0 + $0x38] sm:$0xf]
    %v122 = vld [vmem:[%s0 + $0x3c] sm:$0xff]
    %v123 = vld [vmem:[%s0 + $0x44] sm:$0xff]
    %v124 = vld [vmem:[%s0 + $0x4c] sm:$0xf]
    %v125 = vld [vmem:[%s0 + $0x50] sm:$0xff]
    %v126 = vld [vmem:[%s0 + $0x58] sm:$0xff]
    %v127 = vld [vmem:[%s0 + $0x60] sm:$0xf]
    %v128 = vld [vmem:[%s0 + $0x64] sm:$0xff]
    %v129 = vld [vmem:[%s0 + $0x6c] sm:$0xff]
    %v130 = vld [vmem:[%s0 + $0x74] sm:$0xf]
    %v131 = vld [vmem:[%s0 + $0x78] sm:$0xff]
    %v132 = vld [vmem:[%s0 + $0x80] sm:$0xff]
    %v133 = vld [vmem:[%s0 + $0x88] sm:$0xf]
    %v134 = vld [vmem:[%s0 + $0x8c] sm:$0xff]
    %v135 = vld [vmem:[%s0 + $0x94] sm:$0xff]
    %v136 = vld [vmem:[%s0 + $0x9c] sm:$0xf]
    %v137 = vld [vmem:[%s0 + $0xa0] sm:$0xff]
    %v138 = vld [vmem:[%s0 + $0xa8] sm:$0xff]
    %v139 = vld [vmem:[%s0 + $0xb0] sm:$0xf]
    %v140 = vld [vmem:[%s0 + $0xb4] sm:$0xff]
    %v141 = vld [vmem:[%s0 + $0xbc] sm:$0xff]
    %v142 = vld [vmem:[%s0 + $0xc4] sm:$0xf]
    %v143 = vld [vmem:[%s0 + $0xc8] sm:$0xff]
    %v144 = vld [vmem:[%s0 + $0xd0] sm:$0xff]
    %v145 = vld [vmem:[%s0 + $0xd8] sm:$0xf]
    %v146 = vld [vmem:[%s0 + $0xdc] sm:$0xff]
    %v147 = vld [vmem:[%s0 + $0xe4] sm:$0xff]
    %v148 = vld [vmem:[%s0 + $0xec] sm:$0xf]
    %v149 = vld [vmem:[%s0 + $0xf0] sm:$0xff]
    %v150 = vld [vmem:[%s0 + $0xf8] sm:$0xff]
    %v151 = vld [vmem:[%s0 + $0x100] sm:$0xf]
    %v152 = vld [vmem:[%s0 + $0x104] sm:$0xff]
    %v153 = vld [vmem:[%s0 + $0x10c] sm:$0xff]
    %v154 = vld [vmem:[%s0 + $0x114] sm:$0xf]
    %v155 = vld [vmem:[%s0 + $0x118] sm:$0xff]
    %v156 = vld [vmem:[%s0 + $0x120] sm:$0xff]
    %v157 = vld [vmem:[%s0 + $0x128] sm:$0xf]
    %v158 = vld [vmem:[%s0 + $0x12c] sm:$0xff]
    %v159 = vld [vmem:[%s0 + $0x134] sm:$0xff]
    %v160 = vld [vmem:[%s0 + $0x13c] sm:$0xf]
    %v161 = vld [vmem:[#allocation2] sm:$0xf]
    %v162 = vld [vmem:[#allocation2 + $0x4] sm:$0xf]
    %v163 = vld [vmem:[#allocation2 + $0x8] sm:$0xf]
    %v164 = vld [vmem:[#allocation2 + $0xc] sm:$0xf]
    %v165 = vld [vmem:[#allocation2 + $0x10] sm:$0xf]
    %v166 = vld [vmem:[#allocation2 + $0x14] sm:$0xf]
    %v167 = vld [vmem:[#allocation2 + $0x18] sm:$0xf]
    %v168 = vld [vmem:[#allocation2 + $0x1c] sm:$0xf]
    %v169 = vld [vmem:[#allocation2 + $0x20] sm:$0xf]
    %v170 = vld [vmem:[#allocation2 + $0x24] sm:$0xf]
    %v171 = vld [vmem:[#allocation2 + $0x28] sm:$0xf]
    %v172 = vld [vmem:[#allocation2 + $0x2c] sm:$0xf]
    %v173 = vld [vmem:[#allocation2 + $0x30] sm:$0xf]
    %v174 = vld [vmem:[#allocation2 + $0x34] sm:$0xf]
    %v175 = vld [vmem:[#allocation2 + $0x38] sm:$0xf]
    %v176 = vld [vmem:[#allocation2 + $0x3c] sm:$0xf]
    %v177 = vld [vmem:[#allocation2 + $0x40] sm:$0xf]
    %v178 = vld [vmem:[#allocation2 + $0x44] sm:$0xf]
    %v179 = vld [vmem:[#allocation2 + $0x48] sm:$0xf]
    %v180 = vld [vmem:[#allocation2 + $0x4c] sm:$0xf]
    %v181 = vld [vmem:[#allocation2 + $0x50] sm:$0xf]
    %v182 = vld [vmem:[#allocation2 + $0x54] sm:$0xf]
    %v183 = vld [vmem:[#allocation2 + $0x58] sm:$0xf]
    %v184 = vld [vmem:[#allocation2 + $0x5c] sm:$0xf]
    %v185 = vld [vmem:[#allocation2 + $0x60] sm:$0xf]
    %v186 = vld [vmem:[#allocation2 + $0x64] sm:$0xf]
    %v187 = vld [vmem:[#allocation2 + $0x68] sm:$0xf]
    %v188 = vld [vmem:[#allocation2 + $0x6c] sm:$0xf]
    %v189 = vld [vmem:[#allocation2 + $0x70] sm:$0xf]
    %v190 = vld [vmem:[#allocation2 + $0x74] sm:$0xf]
    %v191 = vld [vmem:[#allocation2 + $0x78] sm:$0xf]
    %v192 = vld [vmem:[#allocation2 + $0x7c] sm:$0xf]
    %v193 = vld [vmem:[#allocation2 + $0x80] sm:$0xf]
    %v194 = vld [vmem:[#allocation2 + $0x84] sm:$0xf]
    %v195 = vld [vmem:[#allocation2 + $0x88] sm:$0xf]
    %v196 = vld [vmem:[#allocation2 + $0x8c] sm:$0xf]
    %v197 = vld [vmem:[#allocation2 + $0x90] sm:$0xf]
    %v198 = vld [vmem:[#allocation2 + $0x94] sm:$0xf]
    %v199 = vld [vmem:[#allocation2 + $0x98] sm:$0xf]
    %v200 = vld [vmem:[#allocation2 + $0x9c] sm:$0xf]
    %v201 = vld [vmem:[#allocation2 + $0xa0] sm:$0xf]
    %v202 = vld [vmem:[#allocation2 + $0xa4] sm:$0xf]
    %v203 = vld [vmem:[#allocation2 + $0xa8] sm:$0xf]
    %v204 = vld [vmem:[#allocation2 + $0xac] sm:$0xf]
    %v205 = vld [vmem:[#allocation2 + $0xb0] sm:$0xf]
    %v206 = vld [vmem:[#allocation2 + $0xb4] sm:$0xf]
    %v207 = vld [vmem:[#allocation2 + $0xb8] sm:$0xf]
    %v208 = vld [vmem:[#allocation2 + $0xbc] sm:$0xf]
    %v209 = vld [vmem:[#allocation2 + $0xc0] sm:$0xf]
    %v210 = vld [vmem:[#allocation2 + $0xc4] sm:$0xf]
    %v211 = vld [vmem:[#allocation2 + $0xc8] sm:$0xf]
    %v212 = vld [vmem:[#allocation2 + $0xcc] sm:$0xf]
    %v213 = vld [vmem:[#allocation2 + $0xd0] sm:$0xf]
    %v214 = vld [vmem:[#allocation2 + $0xd4] sm:$0xf]
    %v215 = vld [vmem:[#allocation2 + $0xd8] sm:$0xf]
    %v216 = vld [vmem:[#allocation2 + $0xdc] sm:$0xf]
    %v217 = vld [vmem:[#allocation2 + $0xe0] sm:$0xf]
    %v218 = vld [vmem:[#allocation2 + $0xe4] sm:$0xf]
    %v219 = vld [vmem:[#allocation2 + $0xe8] sm:$0xf]
    %v220 = vld [vmem:[#allocation2 + $0xec] sm:$0xf]
    %v221 = vld [vmem:[#allocation2 + $0xf0] sm:$0xf]
    %v222 = vld [vmem:[#allocation2 + $0xf4] sm:$0xf]
    %v223 = vld [vmem:[#allocation2 + $0xf8] sm:$0xf]
    %v224 = vld [vmem:[#allocation2 + $0xfc] sm:$0xf]
    %v225 = vld [vmem:[#allocation2 + $0x100] sm:$0xf]
    %v226 = vld [vmem:[#allocation2 + $0x104] sm:$0xf]
    %v227 = vld [vmem:[#allocation2 + $0x108] sm:$0xf]
    %v228 = vld [vmem:[#allocation2 + $0x10c] sm:$0xf]
    %v229 = vld [vmem:[#allocation2 + $0x110] sm:$0xf]
    %v230 = vld [vmem:[#allocation2 + $0x114] sm:$0xf]
    %v231 = vld [vmem:[#allocation2 + $0x118] sm:$0xf]
    %v232 = vld [vmem:[#allocation2 + $0x11c] sm:$0xf]
    %v233 = vld [vmem:[#allocation2 + $0x120] sm:$0xf]
    %v234 = vld [vmem:[#allocation2 + $0x124] sm:$0xf]
    %v235 = vld [vmem:[#allocation2 + $0x128] sm:$0xf]
    %v236 = vld [vmem:[#allocation2 + $0x12c] sm:$0xf]
    %v237 = vld [vmem:[#allocation2 + $0x130] sm:$0xf]
    %v238 = vld [vmem:[#allocation2 + $0x134] sm:$0xf]
    %v239 = vld [vmem:[#allocation2 + $0x138] sm:$0xf]
    %v240 = vld [vmem:[#allocation2 + $0x13c] sm:$0xf]
    %v289 = vunpack.c.l.b16 %v113
    %v290 = vunpack.c.h.b16 %v113
    %v291 = vunpack.c.l.b16 %v114
    %v292 = vunpack.c.h.b16 %v114
    %v293 = vunpack.c.l.b16 %v115
    %v294 = vunpack.c.l.b16 %v116
    %v295 = vunpack.c.h.b16 %v116
    %v296 = vunpack.c.l.b16 %v117
    %v297 = vunpack.c.h.b16 %v117
    %v298 = vunpack.c.l.b16 %v118
    %v299 = vunpack.c.l.b16 %v119
    %v300 = vunpack.c.h.b16 %v119
    %v301 = vunpack.c.l.b16 %v120
    %v302 = vunpack.c.h.b16 %v120
    %v303 = vunpack.c.l.b16 %v121
    %v304 = vunpack.c.l.b16 %v122
    %v305 = vunpack.c.h.b16 %v122
    %v306 = vunpack.c.l.b16 %v123
    %v307 = vunpack.c.h.b16 %v123
    %v308 = vunpack.c.l.b16 %v124
    %v309 = vunpack.c.l.b16 %v125
    %v310 = vunpack.c.h.b16 %v125
    %v311 = vunpack.c.l.b16 %v126
    %v312 = vunpack.c.h.b16 %v126
    %v313 = vunpack.c.l.b16 %v127
    %v314 = vunpack.c.l.b16 %v128
    %v315 = vunpack.c.h.b16 %v128
    %v316 = vunpack.c.l.b16 %v129
    %v317 = vunpack.c.h.b16 %v129
    %v318 = vunpack.c.l.b16 %v130
    %v319 = vunpack.c.l.b16 %v131
    %v320 = vunpack.c.h.b16 %v131
    %v321 = vunpack.c.l.b16 %v132
    %v322 = vunpack.c.h.b16 %v132
    %v323 = vunpack.c.l.b16 %v133
    %v324 = vunpack.c.l.b16 %v134
    %v325 = vunpack.c.h.b16 %v134
    %v326 = vunpack.c.l.b16 %v135
    %v327 = vunpack.c.h.b16 %v135
    %v328 = vunpack.c.l.b16 %v136
    %v329 = vunpack.c.l.b16 %v137
    %v330 = vunpack.c.h.b16 %v137
    %v331 = vunpack.c.l.b16 %v138
    %v332 = vunpack.c.h.b16 %v138
    %v333 = vunpack.c.l.b16 %v139
    %v334 = vunpack.c.l.b16 %v140
    %v335 = vunpack.c.h.b16 %v140
    %v336 = vunpack.c.l.b16 %v141
    %v337 = vunpack.c.h.b16 %v141
    %v338 = vunpack.c.l.b16 %v142
    %v339 = vunpack.c.l.b16 %v143
    %v340 = vunpack.c.h.b16 %v143
    %v341 = vunpack.c.l.b16 %v144
    %v342 = vunpack.c.h.b16 %v144
    %v343 = vunpack.c.l.b16 %v145
    %v344 = vunpack.c.l.b16 %v146
    %v345 = vunpack.c.h.b16 %v146
    %v346 = vunpack.c.l.b16 %v147
    %v347 = vunpack.c.h.b16 %v147
    %v348 = vunpack.c.l.b16 %v148
    %v349 = vunpack.c.l.b16 %v149
    %v350 = vunpack.c.h.b16 %v149
    %v351 = vunpack.c.l.b16 %v150
    %v352 = vunpack.c.h.b16 %v150
    %v353 = vunpack.c.l.b16 %v151
    %v354 = vunpack.c.l.b16 %v152
    %v355 = vunpack.c.h.b16 %v152
    %v356 = vunpack.c.l.b16 %v153
    %v357 = vunpack.c.h.b16 %v153
    %v358 = vunpack.c.l.b16 %v154
    %v359 = vunpack.c.l.b16 %v155
    %v360 = vunpack.c.h.b16 %v155
    %v361 = vunpack.c.l.b16 %v156
    %v362 = vunpack.c.h.b16 %v156
    %v363 = vunpack.c.l.b16 %v157
    %v364 = vunpack.c.l.b16 %v158
    %v365 = vunpack.c.h.b16 %v158
    %v366 = vunpack.c.l.b16 %v159
    %v367 = vunpack.c.h.b16 %v159
    %v368 = vunpack.c.l.b16 %v160
    %v369 = vpack.c.b16 %v294, %v289
    %v370 = vpack.c.b16 %v295, %v290
    %v371 = vpack.c.b16 %v296, %v291
    %v372 = vpack.c.b16 %v297, %v292
    %v373 = vpack.c.b16 %v298, %v293
    %v374 = vpack.c.b16 %v304, %v299
    %v375 = vpack.c.b16 %v305, %v300
    %v376 = vpack.c.b16 %v306, %v301
    %v377 = vpack.c.b16 %v307, %v302
    %v378 = vpack.c.b16 %v308, %v303
    %v379 = vpack.c.b16 %v314, %v309
    %v380 = vpack.c.b16 %v315, %v310
    %v381 = vpack.c.b16 %v316, %v311
    %v382 = vpack.c.b16 %v317, %v312
    %v383 = vpack.c.b16 %v318, %v313
    %v384 = vpack.c.b16 %v324, %v319
    %v385 = vpack.c.b16 %v325, %v320
    %v386 = vpack.c.b16 %v326, %v321
    %v387 = vpack.c.b16 %v327, %v322
    %v388 = vpack.c.b16 %v328, %v323
    %v389 = vpack.c.b16 %v334, %v329
    %v390 = vpack.c.b16 %v335, %v330
    %v391 = vpack.c.b16 %v336, %v331
    %v392 = vpack.c.b16 %v337, %v332
    %v393 = vpack.c.b16 %v338, %v333
    %v394 = vpack.c.b16 %v344, %v339
    %v395 = vpack.c.b16 %v345, %v340
    %v396 = vpack.c.b16 %v346, %v341
    %v397 = vpack.c.b16 %v347, %v342
    %v398 = vpack.c.b16 %v348, %v343
    %v399 = vpack.c.b16 %v354, %v349
    %v400 = vpack.c.b16 %v355, %v350
    %v401 = vpack.c.b16 %v356, %v351
    %v402 = vpack.c.b16 %v357, %v352
    %v403 = vpack.c.b16 %v358, %v353
    %v404 = vpack.c.b16 %v364, %v359
    %v405 = vpack.c.b16 %v365, %v360
    %v406 = vpack.c.b16 %v366, %v361
    %v407 = vpack.c.b16 %v367, %v362
    %v408 = vpack.c.b16 %v368, %v363
    %v529 = vunpack.c.l.b16 %v161
    %v530 = vunpack.c.l.b16 %v162
    %v531 = vunpack.c.l.b16 %v163
    %v532 = vunpack.c.l.b16 %v164
    %v533 = vunpack.c.l.b16 %v165
    %v534 = vunpack.c.l.b16 %v166
    %v535 = vunpack.c.l.b16 %v167
    %v536 = vunpack.c.l.b16 %v168
    %v537 = vunpack.c.l.b16 %v169
    %v538 = vunpack.c.l.b16 %v170
    %v539 = vunpack.c.l.b16 %v171
    %v540 = vunpack.c.l.b16 %v172
    %v541 = vunpack.c.l.b16 %v173
    %v542 = vunpack.c.l.b16 %v174
    %v543 = vunpack.c.l.b16 %v175
    %v544 = vunpack.c.l.b16 %v176
    %v545 = vunpack.c.l.b16 %v177
    %v546 = vunpack.c.l.b16 %v178
    %v547 = vunpack.c.l.b16 %v179
    %v548 = vunpack.c.l.b16 %v180
    %v549 = vunpack.c.l.b16 %v181
    %v550 = vunpack.c.l.b16 %v182
    %v551 = vunpack.c.l.b16 %v183
    %v552 = vunpack.c.l.b16 %v184
    %v553 = vunpack.c.l.b16 %v185
    %v554 = vunpack.c.l.b16 %v186
    %v555 = vunpack.c.l.b16 %v187
    %v556 = vunpack.c.l.b16 %v188
    %v557 = vunpack.c.l.b16 %v189
    %v558 = vunpack.c.l.b16 %v190
    %v559 = vunpack.c.l.b16 %v191
    %v560 = vunpack.c.l.b16 %v192
    %v561 = vunpack.c.l.b16 %v193
    %v562 = vunpack.c.l.b16 %v194
    %v563 = vunpack.c.l.b16 %v195
    %v564 = vunpack.c.l.b16 %v196
    %v565 = vunpack.c.l.b16 %v197
    %v566 = vunpack.c.l.b16 %v198
    %v567 = vunpack.c.l.b16 %v199
    %v568 = vunpack.c.l.b16 %v200
    %v569 = vunpack.c.l.b16 %v201
    %v570 = vunpack.c.l.b16 %v202
    %v571 = vunpack.c.l.b16 %v203
    %v572 = vunpack.c.l.b16 %v204
    %v573 = vunpack.c.l.b16 %v205
    %v574 = vunpack.c.l.b16 %v206
    %v575 = vunpack.c.l.b16 %v207
    %v576 = vunpack.c.l.b16 %v208
    %v577 = vunpack.c.l.b16 %v209
    %v578 = vunpack.c.l.b16 %v210
    %v579 = vunpack.c.l.b16 %v211
    %v580 = vunpack.c.l.b16 %v212
    %v581 = vunpack.c.l.b16 %v213
    %v582 = vunpack.c.l.b16 %v214
    %v583 = vunpack.c.l.b16 %v215
    %v584 = vunpack.c.l.b16 %v216
    %v585 = vunpack.c.l.b16 %v217
    %v586 = vunpack.c.l.b16 %v218
    %v587 = vunpack.c.l.b16 %v219
    %v588 = vunpack.c.l.b16 %v220
    %v589 = vunpack.c.l.b16 %v221
    %v590 = vunpack.c.l.b16 %v222
    %v591 = vunpack.c.l.b16 %v223
    %v592 = vunpack.c.l.b16 %v224
    %v593 = vunpack.c.l.b16 %v225
    %v594 = vunpack.c.l.b16 %v226
    %v595 = vunpack.c.l.b16 %v227
    %v596 = vunpack.c.l.b16 %v228
    %v597 = vunpack.c.l.b16 %v229
    %v598 = vunpack.c.l.b16 %v230
    %v599 = vunpack.c.l.b16 %v231
    %v600 = vunpack.c.l.b16 %v232
    %v601 = vunpack.c.l.b16 %v233
    %v602 = vunpack.c.l.b16 %v234
    %v603 = vunpack.c.l.b16 %v235
    %v604 = vunpack.c.l.b16 %v236
    %v605 = vunpack.c.l.b16 %v237
    %v606 = vunpack.c.l.b16 %v238
    %v607 = vunpack.c.l.b16 %v239
    %v608 = vunpack.c.l.b16 %v240
    %v609 = vpack.c.b16 %v530, %v529
    %v610 = vpack.c.b16 %v532, %v531
    %v611 = vpack.c.b16 %v534, %v533
    %v612 = vpack.c.b16 %v536, %v535
    %v613 = vpack.c.b16 %v538, %v537
    %v614 = vpack.c.b16 %v540, %v539
    %v615 = vpack.c.b16 %v542, %v541
    %v616 = vpack.c.b16 %v544, %v543
    %v617 = vpack.c.b16 %v546, %v545
    %v618 = vpack.c.b16 %v548, %v547
    %v619 = vpack.c.b16 %v550, %v549
    %v620 = vpack.c.b16 %v552, %v551
    %v621 = vpack.c.b16 %v554, %v553
    %v622 = vpack.c.b16 %v556, %v555
    %v623 = vpack.c.b16 %v558, %v557
    %v624 = vpack.c.b16 %v560, %v559
    %v625 = vpack.c.b16 %v562, %v561
    %v626 = vpack.c.b16 %v564, %v563
    %v627 = vpack.c.b16 %v566, %v565
    %v628 = vpack.c.b16 %v568, %v567
    %v629 = vpack.c.b16 %v570, %v569
    %v630 = vpack.c.b16 %v572, %v571
    %v631 = vpack.c.b16 %v574, %v573
    %v632 = vpack.c.b16 %v576, %v575
    %v633 = vpack.c.b16 %v578, %v577
    %v634 = vpack.c.b16 %v580, %v579
    %v635 = vpack.c.b16 %v582, %v581
    %v636 = vpack.c.b16 %v584, %v583
    %v637 = vpack.c.b16 %v586, %v585
    %v638 = vpack.c.b16 %v588, %v587
    %v639 = vpack.c.b16 %v590, %v589
    %v640 = vpack.c.b16 %v592, %v591
    %v641 = vpack.c.b16 %v594, %v593
    %v642 = vpack.c.b16 %v596, %v595
    %v643 = vpack.c.b16 %v598, %v597
    %v644 = vpack.c.b16 %v600, %v599
    %v645 = vpack.c.b16 %v602, %v601
    %v646 = vpack.c.b16 %v604, %v603
    %v647 = vpack.c.b16 %v606, %v605
    %v648 = vpack.c.b16 %v608, %v607
    %689 = vmatpush.bf16.msra.mxu0 %v616
    %690 = vmatpush.bf16.msra.mxu0 %v615
    %691 = vmatpush.bf16.msra.mxu0 %v614
    %692 = vmatpush.bf16.msra.mxu0 %v613
    %693 = vmatpush.bf16.msra.mxu0 %v612
    %694 = vmatpush.bf16.msra.mxu0 %v611
    %695 = vmatpush.bf16.msra.mxu0 %v610
    %696 = vmatpush.bf16.msra.mxu0 %v609
    %697 = vmatmul.bf16.gmra.mxu0 %v369
    %v698 = vpop.f32.mrf.mxu0
    %v699 = vadd.f32 0.0, %v698
    %v700 = vpop.f32.mrf.mxu0
    %v701 = vadd.f32 0.0, %v700
    %702 = vmatmul.bf16.gmra.mxu0 %v374
    %v703 = vpop.f32.mrf.mxu0
    %v704 = vadd.f32 0.0, %v703
    %v705 = vpop.f32.mrf.mxu0
    %v706 = vadd.f32 0.0, %v705
    %707 = vmatmul.bf16.gmra.mxu0 %v379
    %v708 = vpop.f32.mrf.mxu0
    %v709 = vadd.f32 0.0, %v708
    %v710 = vpop.f32.mrf.mxu0
    %v711 = vadd.f32 0.0, %v710
    %712 = vmatmul.bf16.gmra.mxu0 %v384
    %v713 = vpop.f32.mrf.mxu0
    %v714 = vadd.f32 0.0, %v713
    %v715 = vpop.f32.mrf.mxu0
    %v716 = vadd.f32 0.0, %v715
    %717 = vmatmul.bf16.gmra.mxu0 %v389
    %v718 = vpop.f32.mrf.mxu0
    %v719 = vadd.f32 0.0, %v718
    %v720 = vpop.f32.mrf.mxu0
    %v721 = vadd.f32 0.0, %v720
    %722 = vmatmul.bf16.gmra.mxu0 %v394
    %v723 = vpop.f32.mrf.mxu0
    %v724 = vadd.f32 0.0, %v723
    %v725 = vpop.f32.mrf.mxu0
    %v726 = vadd.f32 0.0, %v725
    %727 = vmatmul.bf16.gmra.mxu0 %v399
    %v728 = vpop.f32.mrf.mxu0
    %v729 = vadd.f32 0.0, %v728
    %v730 = vpop.f32.mrf.mxu0
    %v731 = vadd.f32 0.0, %v730
    %732 = vmatmul.bf16.gmra.mxu0 %v404
    %v733 = vpop.f32.mrf.mxu0
    %v734 = vadd.f32 0.0, %v733
    %v735 = vpop.f32.mrf.mxu0
    %v736 = vadd.f32 0.0, %v735
    %737 = vdwg.mxu0
    %738 = vmatpush.bf16.msra.mxu0 %v624
    %739 = vmatpush.bf16.msra.mxu0 %v623
    %740 = vmatpush.bf16.msra.mxu0 %v622
    %741 = vmatpush.bf16.msra.mxu0 %v621
    %742 = vmatpush.bf16.msra.mxu0 %v620
    %743 = vmatpush.bf16.msra.mxu0 %v619
    %744 = vmatpush.bf16.msra.mxu0 %v618
    %745 = vmatpush.bf16.msra.mxu0 %v617
    %746 = vmatmul.bf16.gmra.mxu0 %v370
    %v747 = vpop.f32.mrf.mxu0
    %v748 = vadd.f32 %v699, %v747
    %v749 = vpop.f32.mrf.mxu0
    %v750 = vadd.f32 %v701, %v749
    %751 = vmatmul.bf16.gmra.mxu0 %v375
    %v752 = vpop.f32.mrf.mxu0
    %v753 = vadd.f32 %v704, %v752
    %v754 = vpop.f32.mrf.mxu0
    %v755 = vadd.f32 %v706, %v754
    %756 = vmatmul.bf16.gmra.mxu0 %v380
    %v757 = vpop.f32.mrf.mxu0
    %v758 = vadd.f32 %v709, %v757
    %v759 = vpop.f32.mrf.mxu0
    %v760 = vadd.f32 %v711, %v759
    %761 = vmatmul.bf16.gmra.mxu0 %v385
    %v762 = vpop.f32.mrf.mxu0
    %v763 = vadd.f32 %v714, %v762
    %v764 = vpop.f32.mrf.mxu0
    %v765 = vadd.f32 %v716, %v764
    %766 = vmatmul.bf16.gmra.mxu0 %v390
    %v767 = vpop.f32.mrf.mxu0
    %v768 = vadd.f32 %v719, %v767
    %v769 = vpop.f32.mrf.mxu0
    %v770 = vadd.f32 %v721, %v769
    %771 = vmatmul.bf16.gmra.mxu0 %v395
    %v772 = vpop.f32.mrf.mxu0
    %v773 = vadd.f32 %v724, %v772
    %v774 = vpop.f32.mrf.mxu0
    %v775 = vadd.f32 %v726, %v774
    %776 = vmatmul.bf16.gmra.mxu0 %v400
    %v777 = vpop.f32.mrf.mxu0
    %v778 = vadd.f32 %v729, %v777
    %v779 = vpop.f32.mrf.mxu0
    %v780 = vadd.f32 %v731, %v779
    %781 = vmatmul.bf16.gmra.mxu0 %v405
    %v782 = vpop.f32.mrf.mxu0
    %v783 = vadd.f32 %v734, %v782
    %v784 = vpop.f32.mrf.mxu0
    %v785 = vadd.f32 %v736, %v784
    %786 = vdwg.mxu0
    %787 = vmatpush.bf16.msra.mxu0 %v632
    %788 = vmatpush.bf16.msra.mxu0 %v631
    %789 = vmatpush.bf16.msra.mxu0 %v630
    %790 = vmatpush.bf16.msra.mxu0 %v629
    %791 = vmatpush.bf16.msra.mxu0 %v628
    %792 = vmatpush.bf16.msra.mxu0 %v627
    %793 = vmatpush.bf16.msra.mxu0 %v626
    %794 = vmatpush.bf16.msra.mxu0 %v625
    %795 = vmatmul.bf16.gmra.mxu0 %v371
    %v796 = vpop.f32.mrf.mxu0
    %v797 = vadd.f32 %v748, %v796
    %v798 = vpop.f32.mrf.mxu0
    %v799 = vadd.f32 %v750, %v798
    %800 = vmatmul.bf16.gmra.mxu0 %v376
    %v801 = vpop.f32.mrf.mxu0
    %v802 = vadd.f32 %v753, %v801
    %v803 = vpop.f32.mrf.mxu0
    %v804 = vadd.f32 %v755, %v803
    %805 = vmatmul.bf16.gmra.mxu0 %v381
    %v806 = vpop.f32.mrf.mxu0
    %v807 = vadd.f32 %v758, %v806
    %v808 = vpop.f32.mrf.mxu0
    %v809 = vadd.f32 %v760, %v808
    %810 = vmatmul.bf16.gmra.mxu0 %v386
    %v811 = vpop.f32.mrf.mxu0
    %v812 = vadd.f32 %v763, %v811
    %v813 = vpop.f32.mrf.mxu0
    %v814 = vadd.f32 %v765, %v813
    %815 = vmatmul.bf16.gmra.mxu0 %v391
    %v816 = vpop.f32.mrf.mxu0
    %v817 = vadd.f32 %v768, %v816
    %v818 = vpop.f32.mrf.mxu0
    %v819 = vadd.f32 %v770, %v818
    %820 = vmatmul.bf16.gmra.mxu0 %v396
    %v821 = vpop.f32.mrf.mxu0
    %v822 = vadd.f32 %v773, %v821
    %v823 = vpop.f32.mrf.mxu0
    %v824 = vadd.f32 %v775, %v823
    %825 = vmatmul.bf16.gmra.mxu0 %v401
    %v826 = vpop.f32.mrf.mxu0
    %v827 = vadd.f32 %v778, %v826
    %v828 = vpop.f32.mrf.mxu0
    %v829 = vadd.f32 %v780, %v828
    %830 = vmatmul.bf16.gmra.mxu0 %v406
    %v831 = vpop.f32.mrf.mxu0
    %v832 = vadd.f32 %v783, %v831
    %v833 = vpop.f32.mrf.mxu0
    %v834 = vadd.f32 %v785, %v833
    %835 = vdwg.mxu0
    %836 = vmatpush.bf16.msra.mxu0 %v640
    %837 = vmatpush.bf16.msra.mxu0 %v639
    %838 = vmatpush.bf16.msra.mxu0 %v638
    %839 = vmatpush.bf16.msra.mxu0 %v637
    %840 = vmatpush.bf16.msra.mxu0 %v636
    %841 = vmatpush.bf16.msra.mxu0 %v635
    %842 = vmatpush.bf16.msra.mxu0 %v634
    %843 = vmatpush.bf16.msra.mxu0 %v633
    %844 = vmatmul.bf16.gmra.mxu0 %v372
    %v845 = vpop.f32.mrf.mxu0
    %v846 = vadd.f32 %v797, %v845
    %v847 = vpop.f32.mrf.mxu0
    %v848 = vadd.f32 %v799, %v847
    %849 = vmatmul.bf16.gmra.mxu0 %v377
    %v850 = vpop.f32.mrf.mxu0
    %v851 = vadd.f32 %v802, %v850
    %v852 = vpop.f32.mrf.mxu0
    %v853 = vadd.f32 %v804, %v852
    %854 = vmatmul.bf16.gmra.mxu0 %v382
    %v855 = vpop.f32.mrf.mxu0
    %v856 = vadd.f32 %v807, %v855
    %v857 = vpop.f32.mrf.mxu0
    %v858 = vadd.f32 %v809, %v857
    %859 = vmatmul.bf16.gmra.mxu0 %v387
    %v860 = vpop.f32.mrf.mxu0
    %v861 = vadd.f32 %v812, %v860
    %v862 = vpop.f32.mrf.mxu0
    %v863 = vadd.f32 %v814, %v862
    %864 = vmatmul.bf16.gmra.mxu0 %v392
    %v865 = vpop.f32.mrf.mxu0
    %v866 = vadd.f32 %v817, %v865
    %v867 = vpop.f32.mrf.mxu0
    %v868 = vadd.f32 %v819, %v867
    %869 = vmatmul.bf16.gmra.mxu0 %v397
    %v870 = vpop.f32.mrf.mxu0
    %v871 = vadd.f32 %v822, %v870
    %v872 = vpop.f32.mrf.mxu0
    %v873 = vadd.f32 %v824, %v872
    %874 = vmatmul.bf16.gmra.mxu0 %v402
    %v875 = vpop.f32.mrf.mxu0
    %v876 = vadd.f32 %v827, %v875
    %v877 = vpop.f32.mrf.mxu0
    %v878 = vadd.f32 %v829, %v877
    %879 = vmatmul.bf16.gmra.mxu0 %v407
    %v880 = vpop.f32.mrf.mxu0
    %v881 = vadd.f32 %v832, %v880
    %v882 = vpop.f32.mrf.mxu0
    %v883 = vadd.f32 %v834, %v882
    %884 = vdwg.mxu0
    %885 = vmatpush.bf16.msra.mxu0 %v648
    %886 = vmatpush.bf16.msra.mxu0 %v647
    %887 = vmatpush.bf16.msra.mxu0 %v646
    %888 = vmatpush.bf16.msra.mxu0 %v645
    %889 = vmatpush.bf16.msra.mxu0 %v644
    %890 = vmatpush.bf16.msra.mxu0 %v643
    %891 = vmatpush.bf16.msra.mxu0 %v642
    %892 = vmatpush.bf16.msra.mxu0 %v641
    %893 = vmatmul.bf16.gmra.mxu0 %v373
    %v894 = vpop.f32.mrf.mxu0
    %v895 = vadd.f32 %v846, %v894
    %v896 = vpop.f32.mrf.mxu0
    %v897 = vadd.f32 %v848, %v896
    %898 = vmatmul.bf16.gmra.mxu0 %v378
    %v899 = vpop.f32.mrf.mxu0
    %v900 = vadd.f32 %v851, %v899
    %v901 = vpop.f32.mrf.mxu0
    %v902 = vadd.f32 %v853, %v901
    %903 = vmatmul.bf16.gmra.mxu0 %v383
    %v904 = vpop.f32.mrf.mxu0
    %v905 = vadd.f32 %v856, %v904
    %v906 = vpop.f32.mrf.mxu0
    %v907 = vadd.f32 %v858, %v906
    %908 = vmatmul.bf16.gmra.mxu0 %v388
    %v909 = vpop.f32.mrf.mxu0
    %v910 = vadd.f32 %v861, %v909
    %v911 = vpop.f32.mrf.mxu0
    %v912 = vadd.f32 %v863, %v911
    %913 = vmatmul.bf16.gmra.mxu0 %v393
    %v914 = vpop.f32.mrf.mxu0
    %v915 = vadd.f32 %v866, %v914
    %v916 = vpop.f32.mrf.mxu0
    %v917 = vadd.f32 %v868, %v916
    %918 = vmatmul.bf16.gmra.mxu0 %v398
    %v919 = vpop.f32.mrf.mxu0
    %v920 = vadd.f32 %v871, %v919
    %v921 = vpop.f32.mrf.mxu0
    %v922 = vadd.f32 %v873, %v921
    %923 = vmatmul.bf16.gmra.mxu0 %v403
    %v924 = vpop.f32.mrf.mxu0
    %v925 = vadd.f32 %v876, %v924
    %v926 = vpop.f32.mrf.mxu0
    %v927 = vadd.f32 %v878, %v926
    %928 = vmatmul.bf16.gmra.mxu0 %v408
    %v929 = vpop.f32.mrf.mxu0
    %v930 = vadd.f32 %v881, %v929
    %v931 = vpop.f32.mrf.mxu0
    %v932 = vadd.f32 %v883, %v931
    %933 = vdwg.mxu0
    %v934 = vadd.f32 %v97, %v895
    %v935 = vadd.f32 %v98, %v897
    %v936 = vadd.f32 %v99, %v900
    %v937 = vadd.f32 %v100, %v902
    %v938 = vadd.f32 %v101, %v905
    %v939 = vadd.f32 %v102, %v907
    %v940 = vadd.f32 %v103, %v910
    %v941 = vadd.f32 %v104, %v912
    %v942 = vadd.f32 %v105, %v915
    %v943 = vadd.f32 %v106, %v917
    %v944 = vadd.f32 %v107, %v920
    %v945 = vadd.f32 %v108, %v922
    %v946 = vadd.f32 %v109, %v925
    %v947 = vadd.f32 %v110, %v927
    %v948 = vadd.f32 %v111, %v930
    %v949 = vadd.f32 %v112, %v932
    %950 = vst [vmem:[%s5] sm:$0xff] %v934
    %951 = vst [vmem:[%s5 + $0x8] sm:$0xff] %v935
    %952 = vst [vmem:[%s5 + $0x10] sm:$0xff] %v936
    %953 = vst [vmem:[%s5 + $0x18] sm:$0xff] %v937
    %954 = vst [vmem:[%s5 + $0x20] sm:$0xff] %v938
    %955 = vst [vmem:[%s5 + $0x28] sm:$0xff] %v939
    %956 = vst [vmem:[%s5 + $0x30] sm:$0xff] %v940
    %957 = vst [vmem:[%s5 + $0x38] sm:$0xff] %v941
    %958 = vst [vmem:[%s5 + $0x40] sm:$0xff] %v942
    %959 = vst [vmem:[%s5 + $0x48] sm:$0xff] %v943
    %960 = vst [vmem:[%s5 + $0x50] sm:$0xff] %v944
    %961 = vst [vmem:[%s5 + $0x58] sm:$0xff] %v945
    %962 = vst [vmem:[%s5 + $0x60] sm:$0xff] %v946
    %963 = vst [vmem:[%s5 + $0x68] sm:$0xff] %v947
    %964 = vst [vmem:[%s5 + $0x70] sm:$0xff] %v948
    %965 = vst [vmem:[%s5 + $0x78] sm:$0xff] %v949
    // Predicated region
    $region42: #{multiscale_forward.5} parent=1 // pred_check
      %p966 = pneg %p77
    $region43: #{multiscale_forward.5} parent=1 // pred_check_branch
      %968 = sbr.rel (%p966) target = $region45
    $region44: #{multiscale_forward.5} parent=1 // pred_region
      %v969 = vld [vmem:[%s5] sm:$0xff]
      %v970 = vld [vmem:[%s5 + $0x8] sm:$0xff]
      %v971 = vld [vmem:[%s5 + $0x10] sm:$0xff]
      %v972 = vld [vmem:[%s5 + $0x18] sm:$0xff]
      %v973 = vld [vmem:[%s5 + $0x20] sm:$0xff]
      %v974 = vld [vmem:[%s5 + $0x28] sm:$0xff]
      %v975 = vld [vmem:[%s5 + $0x30] sm:$0xff]
      %v976 = vld [vmem:[%s5 + $0x38] sm:$0xff]
      %v977 = vld [vmem:[%s5 + $0x40] sm:$0xff]
      %v978 = vld [vmem:[%s5 + $0x48] sm:$0xff]
      %v979 = vld [vmem:[%s5 + $0x50] sm:$0xff]
      %v980 = vld [vmem:[%s5 + $0x58] sm:$0xff]
      %v981 = vld [vmem:[%s5 + $0x60] sm:$0xff]
      %v982 = vld [vmem:[%s5 + $0x68] sm:$0xff]
      %v983 = vld [vmem:[%s5 + $0x70] sm:$0xff]
      %v984 = vld [vmem:[%s5 + $0x78] sm:$0xff]
      %v985 = vld [vmem:[#allocation4] sm:$0x1]
      %v987 = vperm.slane %v985, 0
      %v989 = vadd.f32 %v969, %v987
      %v990 = vadd.f32 %v970, %v987
      %v991 = vadd.f32 %v971, %v987
      %v992 = vadd.f32 %v972, %v987
      %v993 = vadd.f32 %v973, %v987
      %v994 = vadd.f32 %v974, %v987
      %v995 = vadd.f32 %v975, %v987
      %v996 = vadd.f32 %v976, %v987
      %v997 = vadd.f32 %v977, %v987
      %v998 = vadd.f32 %v978, %v987
      %v999 = vadd.f32 %v979, %v987
      %v1000 = vadd.f32 %v980, %v987
      %v1001 = vadd.f32 %v981, %v987
      %v1002 = vadd.f32 %v982, %v987
      %v1003 = vadd.f32 %v983, %v987
      %v1004 = vadd.f32 %v984, %v987
      %v1005 = vmax.f32 %v989, 0.0
      %v1006 = vmax.f32 %v990, 0.0
      %v1007 = vmax.f32 %v991, 0.0
      %v1008 = vmax.f32 %v992, 0.0
      %v1009 = vmax.f32 %v993, 0.0
      %v1010 = vmax.f32 %v994, 0.0
      %v1011 = vmax.f32 %v995, 0.0
      %v1012 = vmax.f32 %v996, 0.0
      %v1013 = vmax.f32 %v997, 0.0
      %v1014 = vmax.f32 %v998, 0.0
      %v1015 = vmax.f32 %v999, 0.0
      %v1016 = vmax.f32 %v1000, 0.0
      %v1017 = vmax.f32 %v1001, 0.0
      %v1018 = vmax.f32 %v1002, 0.0
      %v1019 = vmax.f32 %v1003, 0.0
      %v1020 = vmax.f32 %v1004, 0.0
      %v1021 = vld [vmem:[#allocation6] sm:$0x1]
      %v1023 = vperm.slane %v1021, 0
      %v1025 = vmul.f32 %v1005, %v1023
      %v1026 = vmul.f32 %v1006, %v1023
      %v1027 = vmul.f32 %v1007, %v1023
      %v1028 = vmul.f32 %v1008, %v1023
      %v1029 = vmul.f32 %v1009, %v1023
      %v1030 = vmul.f32 %v1010, %v1023
      %v1031 = vmul.f32 %v1011, %v1023
      %v1032 = vmul.f32 %v1012, %v1023
      %v1033 = vmul.f32 %v1013, %v1023
      %v1034 = vmul.f32 %v1014, %v1023
      %v1035 = vmul.f32 %v1015, %v1023
      %v1036 = vmul.f32 %v1016, %v1023
      %v1037 = vmul.f32 %v1017, %v1023
      %v1038 = vmul.f32 %v1018, %v1023
      %v1039 = vmul.f32 %v1019, %v1023
      %v1040 = vmul.f32 %v1020, %v1023
      %v1041 = vld [vmem:[#allocation7] sm:$0x1]
      %v1043 = vperm.slane %v1041, 0
      %v1045 = vadd.f32 %v1025, %v1043
      %v1046 = vadd.f32 %v1026, %v1043
      %v1047 = vadd.f32 %v1027, %v1043
      %v1048 = vadd.f32 %v1028, %v1043
      %v1049 = vadd.f32 %v1029, %v1043
      %v1050 = vadd.f32 %v1030, %v1043
      %v1051 = vadd.f32 %v1031, %v1043
      %v1052 = vadd.f32 %v1032, %v1043
      %v1053 = vadd.f32 %v1033, %v1043
      %v1054 = vadd.f32 %v1034, %v1043
      %v1055 = vadd.f32 %v1035, %v1043
      %v1056 = vadd.f32 %v1036, %v1043
      %v1057 = vadd.f32 %v1037, %v1043
      %v1058 = vadd.f32 %v1038, %v1043
      %v1059 = vadd.f32 %v1039, %v1043
      %v1060 = vadd.f32 %v1040, %v1043
      %1061 = vst [vmem:[%s5] sm:$0xff] %v1045
      %1062 = vst [vmem:[%s5 + $0x8] sm:$0xff] %v1046
      %1063 = vst [vmem:[%s5 + $0x10] sm:$0xff] %v1047
      %1064 = vst [vmem:[%s5 + $0x18] sm:$0xff] %v1048
      %1065 = vst [vmem:[%s5 + $0x20] sm:$0xff] %v1049
      %1066 = vst [vmem:[%s5 + $0x28] sm:$0xff] %v1050
      %1067 = vst [vmem:[%s5 + $0x30] sm:$0xff] %v1051
      %1068 = vst [vmem:[%s5 + $0x38] sm:$0xff] %v1052
      %1069 = vst [vmem:[%s5 + $0x40] sm:$0xff] %v1053
      %1070 = vst [vmem:[%s5 + $0x48] sm:$0xff] %v1054
      %1071 = vst [vmem:[%s5 + $0x50] sm:$0xff] %v1055
      %1072 = vst [vmem:[%s5 + $0x58] sm:$0xff] %v1056
      %1073 = vst [vmem:[%s5 + $0x60] sm:$0xff] %v1057
      %1074 = vst [vmem:[%s5 + $0x68] sm:$0xff] %v1058
      %1075 = vst [vmem:[%s5 + $0x70] sm:$0xff] %v1059
      %1076 = vst [vmem:[%s5 + $0x78] sm:$0xff] %v1060
    $region45: #{multiscale_forward.5} parent=1 // pred_fallthru
      _
    // Predicated region
    $region46: #{multiscale_forward.5} parent=1 // pred_check
      _
    $region47: #{multiscale_forward.5} parent=1 // pred_check_branch
      %1078 = sbr.rel (0) target = $region49
    $region48: #{multiscale_forward.5} parent=1 // pred_region
      _
    $region49: #{multiscale_forward.5} parent=1 // pred_fallthru
      _
    // Predicated region
    $region50: #{multiscale_forward.5} parent=1 // pred_check
      _
    $region51: #{multiscale_forward.5} parent=1 // pred_check_branch
      %1080 = sbr.rel (0) target = $region53
    $region52: #{multiscale_forward.5} parent=1 // pred_region
      _
    $region53: #{multiscale_forward.5} parent=1 // pred_fallthru
      _
    %1081 = vsyncpa [#allocation3], 1
    %1082 = vsyncpa [#allocation5], 1
    %1083 = vsyncpa [#allocation8], 1

// kernel: multiscale_forward.7
$region0: #{multiscale_forward.7}
  #allocation0 [shape = 'u32[]', space=smem, size = 0x4, offset = 0x4, fixed_abs, tag = 'smem constant byte address 0x4 - core index']
  #allocation1 [shape = 'u32[72,128]{1,0:T(1,128)}', space=vmem, size = 0x9000, scoped, tag = 'internal scratch']
  %s0 = inlined_call_operand.vmem [shape: bf16[2,1024], index: 0, kind: input, shape index: {}]
  %s1 = inlined_call_operand.hbm [shape: bf16[1024,512], index: 1, kind: input, shape index: {}]
  %s2 = inlined_call_operand.hbm [shape: f32[1,512], index: 2, kind: input, shape index: {}]
  %s3 = inlined_call_operand.hbm [shape: f32[1,512], index: 3, kind: input, shape index: {}]
  %s4 = inlined_call_operand.hbm [shape: f32[1,512], index: 4, kind: input, shape index: {}]
  %s5 = inlined_call_operand.hbm [shape: bf16[512,256], index: 5, kind: input, shape index: {}]
  %s6 = inlined_call_operand.hbm [shape: f32[1,256], index: 6, kind: input, shape index: {}]
  %s7 = inlined_call_operand.hbm [shape: f32[1,256], index: 7, kind: input, shape index: {}]
  %s8 = inlined_call_operand.hbm [shape: f32[1,256], index: 8, kind: input, shape index: {}]
  %s9 = inlined_call_operand.hbm [shape: bf16[256,128], index: 9, kind: input, shape index: {}]
  %s10 = inlined_call_operand.hbm [shape: f32[1,128], index: 10, kind: input, shape index: {}]
  %s11 = inlined_call_operand.hbm [shape: f32[2,128], index: 11, kind: output, shape index: {}]
  %s12 = sld [smem:[#allocation0]]
  $region94: #{multiscale_forward.7} parent=0
    _
  %s14 = ssub.s32 1, %s12
  %s15 = scalar_select 0, %s14, %s12
  $region1: #{multiscale_forward.7} parent=0
    #allocation2 [shape = 'u8[1048576]{0}', space=vmem, size = 0x100000, scoped, tag = 'input window, operand 1, single buffered']
    #allocation3 [shape = 's32[1]{0}', space=sflag, size = 0x4, scoped, tag = 'scoped memory for multiscale_forward.7']
    #allocation4 [shape = 's32[1]{0}', space=sflag, size = 0x4, scoped, tag = 'scoped memory for multiscale_forward.7']
    #allocation5 [shape = 'u8[2048]{0}', space=vmem, size = 0x800, scoped, tag = 'input window, operand 2, single buffered']
    #allocation6 [shape = 's32[1]{0}', space=sflag, size = 0x4, scoped, tag = 'scoped memory for multiscale_forward.7']
    #allocation7 [shape = 'u8[2048]{0}', space=vmem, size = 0x800, scoped, tag = 'input window, operand 3, single buffered']
    #allocation8 [shape = 'u8[2048]{0}', space=vmem, size = 0x800, scoped, tag = 'input window, operand 4, single buffered']
    #allocation9 [shape = 's32[1]{0}', space=sflag, size = 0x4, scoped, tag = 'scoped memory for multiscale_forward.7']
    #allocation10 [shape = 'u8[262144]{0}', space=vmem, size = 0x40000, scoped, tag = 'input window, operand 5, single buffered']
    #allocation11 [shape = 'u8[1024]{0}', space=vmem, size = 0x400, scoped, tag = 'input window, operand 6, single buffered']
    #allocation12 [shape = 's32[1]{0}', space=sflag, size = 0x4, scoped, tag = 'scoped memory for multiscale_forward.7']
    #allocation13 [shape = 'u8[1024]{0}', space=vmem, size = 0x400, scoped, tag = 'input window, operand 7, single buffered']
    #allocation14 [shape = 'u8[1024]{0}', space=vmem, size = 0x400, scoped, tag = 'input window, operand 8, single buffered']
    #allocation15 [shape = 's32[1]{0}', space=sflag, size = 0x4, scoped, tag = 'scoped memory for multiscale_forward.7']
    #allocation16 [shape = 'u8[65536]{0}', space=vmem, size = 0x10000, scoped, tag = 'input window, operand 9, single buffered']
    #allocation17 [shape = 'u8[512]{0}', space=vmem, size = 0x400, scoped, tag = 'input window, operand 10, single buffered']
    #allocation18 [shape = 's32[1]{0}', space=sflag, size = 0x4, scoped, tag = 'scoped memory for multiscale_forward.7']
    #allocation19 [shape = 'u8[1024]{0}', space=vmem, size = 0x400, scoped, tag = 'output window, operand 0, single buffered']
    %16 = vsyncpa [#allocation3], 0
    %17 = vsyncpa [#allocation6], 0
    %18 = vsyncpa [#allocation9], 0
    %19 = vsyncpa [#allocation12], 0
    %20 = vsyncpa [#allocation15], 0
    %21 = vsyncpa [#allocation18], 0
    %22 = vsyncpa [#allocation4], 0
    // Predicated region
    $region2: #{multiscale_forward.7} parent=1 // pred_check
      _
    $region3: #{multiscale_forward.7} parent=1 // pred_check_branch
      %24 = sbr.rel (0) target = $region5
    $region4: #{multiscale_forward.7} parent=1 // pred_region
      _
    $region5: #{multiscale_forward.7} parent=1 // pred_fallthru
      _
    // Predicated region
    $region6: #{multiscale_forward.7} parent=1 // pred_check
      _
    $region7: #{multiscale_forward.7} parent=1 // pred_check_branch
      %26 = sbr.rel (0) target = $region9
    $region8: #{multiscale_forward.7} parent=1 // pred_region
      %28 = vsyncadd [#allocation3], 0
      %s29 = sshll.u32 %s1, 4
      %s30 = int_to_ptr.hbm [resolvable:$true] %s29
      %s31 = sshll.u32 [#allocation2], 4
      %s32 = int_to_ptr.vmem [resolvable:$true] %s31
      %37 = dma.hbm_to_vmem [thread:$0]  %s30, 32768, %s32, [#allocation3], 256, 256, 16
    $region9: #{multiscale_forward.7} parent=1 // pred_fallthru
      _
    // Predicated region
    $region10: #{multiscale_forward.7} parent=1 // pred_check
      _
    $region11: #{multiscale_forward.7} parent=1 // pred_check_branch
      %39 = sbr.rel (0) target = $region13
    $region12: #{multiscale_forward.7} parent=1 // pred_region
      %41 = vsyncadd [#allocation6], 0
      %s43 = sshll.u32 %s2, 4
      %s44 = int_to_ptr.hbm [resolvable:$true] %s43
      %s45 = sshll.u32 [#allocation5], 4
      %s46 = int_to_ptr.vmem [resolvable:$true] %s45
      %48 = dma.hbm_to_vmem [thread:$0]  %s44, 64, %s46, [#allocation6]
    $region13: #{multiscale_forward.7} parent=1 // pred_fallthru
      _
    // Predicated region
    $region14: #{multiscale_forward.7} parent=1 // pred_check
      _
    $region15: #{multiscale_forward.7} parent=1 // pred_check_branch
      %50 = sbr.rel (0) target = $region17
    $region16: #{multiscale_forward.7} parent=1 // pred_region
      %52 = vsyncadd [#allocation6], 0
      %s54 = sshll.u32 %s3, 4
      %s55 = int_to_ptr.hbm [resolvable:$true] %s54
      %s56 = sshll.u32 [#allocation7], 4
      %s57 = int_to_ptr.vmem [resolvable:$true] %s56
      %59 = dma.hbm_to_vmem [thread:$0]  %s55, 64, %s57, [#allocation6]
    $region17: #{multiscale_forward.7} parent=1 // pred_fallthru
      _
    // Predicated region
    $region18: #{multiscale_forward.7} parent=1 // pred_check
      _
    $region19: #{multiscale_forward.7} parent=1 // pred_check_branch
      %61 = sbr.rel (0) target = $region21
    $region20: #{multiscale_forward.7} parent=1 // pred_region
      %63 = vsyncadd [#allocation9], 0
      %s65 = sshll.u32 %s4, 4
      %s66 = int_to_ptr.hbm [resolvable:$true] %s65
      %s67 = sshll.u32 [#allocation8], 4
      %s68 = int_to_ptr.vmem [resolvable:$true] %s67
      %70 = dma.hbm_to_vmem [thread:$0]  %s66, 64, %s68, [#allocation9]
    $region21: #{multiscale_forward.7} parent=1 // pred_fallthru
      _
    // Predicated region
    $region22: #{multiscale_forward.7} parent=1 // pred_check
      _
    $region23: #{multiscale_forward.7} parent=1 // pred_check_branch
      %72 = sbr.rel (0) target = $region25
    $region24: #{multiscale_forward.7} parent=1 // pred_region
      %74 = vsyncadd [#allocation9], 0
      %s75 = sshll.u32 %s5, 4
      %s76 = int_to_ptr.hbm [resolvable:$true] %s75
      %s77 = sshll.u32 [#allocation10], 4
      %s78 = int_to_ptr.vmem [resolvable:$true] %s77
      %83 = dma.hbm_to_vmem [thread:$0]  %s76, 8192, %s78, [#allocation9], 128, 128, 8
    $region25: #{multiscale_forward.7} parent=1 // pred_fallthru
      _
    // Predicated region
    $region26: #{multiscale_forward.7} parent=1 // pred_check
      _
    $region27: #{multiscale_forward.7} parent=1 // pred_check_branch
      %85 = sbr.rel (0) target = $region29
    $region28: #{multiscale_forward.7} parent=1 // pred_region
      %87 = vsyncadd [#allocation12], 0
      %s89 = sshll.u32 %s6, 4
      %s90 = int_to_ptr.hbm [resolvable:$true] %s89
      %s91 = sshll.u32 [#allocation11], 4
      %s92 = int_to_ptr.vmem [resolvable:$true] %s91
      %94 = dma.hbm_to_vmem [thread:$0]  %s90, 32, %s92, [#allocation12]
    $region29: #{multiscale_forward.7} parent=1 // pred_fallthru
      _
    // Predicated region
    $region30: #{multiscale_forward.7} parent=1 // pred_check
      _
    $region31: #{multiscale_forward.7} parent=1 // pred_check_branch
      %96 = sbr.rel (0) target = $region33
    $region32: #{multiscale_forward.7} parent=1 // pred_region
      %98 = vsyncadd [#allocation12], 0
      %s100 = sshll.u32 %s7, 4
      %s101 = int_to_ptr.hbm [resolvable:$true] %s100
      %s102 = sshll.u32 [#allocation13], 4
      %s103 = int_to_ptr.vmem [resolvable:$true] %s102
      %105 = dma.hbm_to_vmem [thread:$0]  %s101, 32, %s103, [#allocation12]
    $region33: #{multiscale_forward.7} parent=1 // pred_fallthru
      _
    // Predicated region
    $region34: #{multiscale_forward.7} parent=1 // pred_check
      _
    $region35: #{multiscale_forward.7} parent=1 // pred_check_branch
      %107 = sbr.rel (0) target = $region37
    $region36: #{multiscale_forward.7} parent=1 // pred_region
      %109 = vsyncadd [#allocation15], 0
      %s111 = sshll.u32 %s8, 4
      %s112 = int_to_ptr.hbm [resolvable:$true] %s111
      %s113 = sshll.u32 [#allocation14], 4
      %s114 = int_to_ptr.vmem [resolvable:$true] %s113
      %116 = dma.hbm_to_vmem [thread:$0]  %s112, 32, %s114, [#allocation15]
    $region37: #{multiscale_forward.7} parent=1 // pred_fallthru
      _
    // Predicated region
    $region38: #{multiscale_forward.7} parent=1 // pred_check
      _
    $region39: #{multiscale_forward.7} parent=1 // pred_check_branch
      %118 = sbr.rel (0) target = $region41
    $region40: #{multiscale_forward.7} parent=1 // pred_region
      %120 = vsyncadd [#allocation15], 0
      %s121 = sshll.u32 %s9, 4
      %s122 = int_to_ptr.hbm [resolvable:$true] %s121
      %s123 = sshll.u32 [#allocation16], 4
      %s124 = int_to_ptr.vmem [resolvable:$true] %s123
      %129 = dma.hbm_to_vmem [thread:$0]  %s122, 2048, %s124, [#allocation15], 64, 64, 4
    $region41: #{multiscale_forward.7} parent=1 // pred_fallthru
      _
    // Predicated region
    $region42: #{multiscale_forward.7} parent=1 // pred_check
      _
    $region43: #{multiscale_forward.7} parent=1 // pred_check_branch
      %131 = sbr.rel (0) target = $region45
    $region44: #{multiscale_forward.7} parent=1 // pred_region
      %133 = vsyncadd [#allocation18], 0
      %s135 = sshll.u32 %s10, 4
      %s136 = int_to_ptr.hbm [resolvable:$true] %s135
      %s137 = sshll.u32 [#allocation17], 4
      %s138 = int_to_ptr.vmem [resolvable:$true] %s137
      %140 = dma.hbm_to_vmem [thread:$0]  %s136, 16, %s138, [#allocation18]
    $region45: #{multiscale_forward.7} parent=1 // pred_fallthru
      _
    // Predicated region
    $region46: #{multiscale_forward.7} parent=1 // pred_check
      _
    $region47: #{multiscale_forward.7} parent=1 // pred_check_branch
      %142 = sbr.rel (0) target = $region49
    $region48: #{multiscale_forward.7} parent=1 // pred_region
      %144 = dma.done [#allocation3], 32768
    $region49: #{multiscale_forward.7} parent=1 // pred_fallthru
      _
    // Predicated region
    $region50: #{multiscale_forward.7} parent=1 // pred_check
      _
    $region51: #{multiscale_forward.7} parent=1 // pred_check_branch
      %146 = sbr.rel (0) target = $region53
    $region52: #{multiscale_forward.7} parent=1 // pred_region
      %148 = dma.done [#allocation6], 64
    $region53: #{multiscale_forward.7} parent=1 // pred_fallthru
      _
    // Predicated region
    $region54: #{multiscale_forward.7} parent=1 // pred_check
      _
    $region55: #{multiscale_forward.7} parent=1 // pred_check_branch
      %150 = sbr.rel (0) target = $region57
    $region56: #{multiscale_forward.7} parent=1 // pred_region
      %152 = dma.done [#allocation6], 64
    $region57: #{multiscale_forward.7} parent=1 // pred_fallthru
      _
    // Predicated region
    $region58: #{multiscale_forward.7} parent=1 // pred_check
      _
    $region59: #{multiscale_forward.7} parent=1 // pred_check_branch
      %154 = sbr.rel (0) target = $region61
    $region60: #{multiscale_forward.7} parent=1 // pred_region
      %156 = dma.done [#allocation9], 64
    $region61: #{multiscale_forward.7} parent=1 // pred_fallthru
      _
    // Predicated region
    $region62: #{multiscale_forward.7} parent=1 // pred_check
      _
    $region63: #{multiscale_forward.7} parent=1 // pred_check_branch
      %158 = sbr.rel (0) target = $region65
    $region64: #{multiscale_forward.7} parent=1 // pred_region
      %160 = dma.done [#allocation9], 8192
    $region65: #{multiscale_forward.7} parent=1 // pred_fallthru
      _
    // Predicated region
    $region66: #{multiscale_forward.7} parent=1 // pred_check
      _
    $region67: #{multiscale_forward.7} parent=1 // pred_check_branch
      %162 = sbr.rel (0) target = $region69
    $region68: #{multiscale_forward.7} parent=1 // pred_region
      %164 = dma.done [#allocation12], 32
    $region69: #{multiscale_forward.7} parent=1 // pred_fallthru
      _
    // Predicated region
    $region70: #{multiscale_forward.7} parent=1 // pred_check
      _
    $region71: #{multiscale_forward.7} parent=1 // pred_check_branch
      %166 = sbr.rel (0) target = $region73
    $region72: #{multiscale_forward.7} parent=1 // pred_region
      %168 = dma.done [#allocation12], 32
    $region73: #{multiscale_forward.7} parent=1 // pred_fallthru
      _
    // Predicated region
    $region74: #{multiscale_forward.7} parent=1 // pred_check
      _
    $region75: #{multiscale_forward.7} parent=1 // pred_check_branch
      %170 = sbr.rel (0) target = $region77
    $region76: #{multiscale_forward.7} parent=1 // pred_region
      %172 = dma.done [#allocation15], 32
    $region77: #{multiscale_forward.7} parent=1 // pred_fallthru
      _
    // Predicated region
    $region78: #{multiscale_forward.7} parent=1 // pred_check
      _
    $region79: #{multiscale_forward.7} parent=1 // pred_check_branch
      %174 = sbr.rel (0) target = $region81
    $region80: #{multiscale_forward.7} parent=1 // pred_region
      %176 = dma.done [#allocation15], 2048
    $region81: #{multiscale_forward.7} parent=1 // pred_fallthru
      _
    // Predicated region
    $region82: #{multiscale_forward.7} parent=1 // pred_check
      _
    $region83: #{multiscale_forward.7} parent=1 // pred_check_branch
      %178 = sbr.rel (0) target = $region85
    $region84: #{multiscale_forward.7} parent=1 // pred_region
      %180 = dma.done [#allocation18], 16
    $region85: #{multiscale_forward.7} parent=1 // pred_fallthru
      _
    %v181 = vld [vmem:[%s0] sm:$0xff]
    %v182 = vld [vmem:[#allocation2] sm:$0xff]
    %v183 = vld [vmem:[#allocation2 + $0x8] sm:$0xff]
    %v184 = vld [vmem:[#allocation2 + $0x10] sm:$0xff]
    %v185 = vld [vmem:[#allocation2 + $0x18] sm:$0xff]
    %v186 = vld [vmem:[#allocation2 + $0x20] sm:$0xff]
    %v187 = vld [vmem:[#allocation2 + $0x28] sm:$0xff]
    %v188 = vld [vmem:[#allocation2 + $0x30] sm:$0xff]
    %v189 = vld [vmem:[#allocation2 + $0x38] sm:$0xff]
    %v190 = vld [vmem:[#allocation2 + $0x40] sm:$0xff]
    %v191 = vld [vmem:[#allocation2 + $0x48] sm:$0xff]
    %v192 = vld [vmem:[#allocation2 + $0x50] sm:$0xff]
    %v193 = vld [vmem:[#allocation2 + $0x58] sm:$0xff]
    %v194 = vld [vmem:[#allocation2 + $0x60] sm:$0xff]
    %v195 = vld [vmem:[#allocation2 + $0x68] sm:$0xff]
    %v196 = vld [vmem:[#allocation2 + $0x70] sm:$0xff]
    %v197 = vld [vmem:[#allocation2 + $0x78] sm:$0xff]
    %v198 = vld [vmem:[#allocation2 + $0x80] sm:$0xff]
    %v199 = vld [vmem:[#allocation2 + $0x88] sm:$0xff]
    %v200 = vld [vmem:[#allocation2 + $0x90] sm:$0xff]
    %v201 = vld [vmem:[#allocation2 + $0x98] sm:$0xff]
    %v202 = vld [vmem:[#allocation2 + $0xa0] sm:$0xff]
    %v203 = vld [vmem:[#allocation2 + $0xa8] sm:$0xff]
    %v204 = vld [vmem:[#allocation2 + $0xb0] sm:$0xff]
    %v205 = vld [vmem:[#allocation2 + $0xb8] sm:$0xff]
    %v206 = vld [vmem:[#allocation2 + $0xc0] sm:$0xff]
    %v207 = vld [vmem:[#allocation2 + $0xc8] sm:$0xff]
    %v208 = vld [vmem:[#allocation2 + $0xd0] sm:$0xff]
    %v209 = vld [vmem:[#allocation2 + $0xd8] sm:$0xff]
    %v210 = vld [vmem:[#allocation2 + $0xe0] sm:$0xff]
    %v211 = vld [vmem:[#allocation2 + $0xe8] sm:$0xff]
    %v212 = vld [vmem:[#allocation2 + $0xf0] sm:$0xff]
    %v213 = vld [vmem:[#allocation2 + $0xf8] sm:$0xff]
    %v214 = vld [vmem:[#allocation2 + $0x100] sm:$0xff]
    %v215 = vld [vmem:[#allocation2 + $0x108] sm:$0xff]
    %v216 = vld [vmem:[#allocation2 + $0x110] sm:$0xff]
    %v217 = vld [vmem:[#allocation2 + $0x118] sm:$0xff]
    %v218 = vld [vmem:[#allocation2 + $0x120] sm:$0xff]
    %v219 = vld [vmem:[#allocation2 + $0x128] sm:$0xff]
    %v220 = vld [vmem:[#allocation2 + $0x130] sm:$0xff]
    %v221 = vld [vmem:[#allocation2 + $0x138] sm:$0xff]
    %v222 = vld [vmem:[#allocation2 + $0x140] sm:$0xff]
    %v223 = vld [vmem:[#allocation2 + $0x148] sm:$0xff]
    %v224 = vld [vmem:[#allocation2 + $0x150] sm:$0xff]
    %v225 = vld [vmem:[#allocation2 + $0x158] sm:$0xff]
    %v226 = vld [vmem:[#allocation2 + $0x160] sm:$0xff]
    %v227 = vld [vmem:[#allocation2 + $0x168] sm:$0xff]
    %v228 = vld [vmem:[#allocation2 + $0x170] sm:$0xff]
    %v229 = vld [vmem:[#allocation2 + $0x178] sm:$0xff]
    %v230 = vld [vmem:[#allocation2 + $0x180] sm:$0xff]
    %v231 = vld [vmem:[#allocation2 + $0x188] sm:$0xff]
    %v232 = vld [vmem:[#allocation2 + $0x190] sm:$0xff]
    %v233 = vld [vmem:[#allocation2 + $0x198] sm:$0xff]
    %v234 = vld [vmem:[#allocation2 + $0x1a0] sm:$0xff]
    %v235 = vld [vmem:[#allocation2 + $0x1a8] sm:$0xff]
    %v236 = vld [vmem:[#allocation2 + $0x1b0] sm:$0xff]
    %v237 = vld [vmem:[#allocation2 + $0x1b8] sm:$0xff]
    %v238 = vld [vmem:[#allocation2 + $0x1c0] sm:$0xff]
    %v239 = vld [vmem:[#allocation2 + $0x1c8] sm:$0xff]
    %v240 = vld [vmem:[#allocation2 + $0x1d0] sm:$0xff]
    %v241 = vld [vmem:[#allocation2 + $0x1d8] sm:$0xff]
    %v242 = vld [vmem:[#allocation2 + $0x1e0] sm:$0xff]
    %v243 = vld [vmem:[#allocation2 + $0x1e8] sm:$0xff]
    %v244 = vld [vmem:[#allocation2 + $0x1f0] sm:$0xff]
    %v245 = vld [vmem:[#allocation2 + $0x1f8] sm:$0xff]
    %v246 = vld [vmem:[#allocation2 + $0x200] sm:$0xff]
    %v247 = vld [vmem:[#allocation2 + $0x208] sm:$0xff]
    %v248 = vld [vmem:[#allocation2 + $0x210] sm:$0xff]
    %v249 = vld [vmem:[#allocation2 + $0x218] sm:$0xff]
    %v250 = vld [vmem:[#allocation2 + $0x220] sm:$0xff]
    %v251 = vld [vmem:[#allocation2 + $0x228] sm:$0xff]
    %v252 = vld [vmem:[#allocation2 + $0x230] sm:$0xff]
    %v253 = vld [vmem:[#allocation2 + $0x238] sm:$0xff]
    %v254 = vld [vmem:[#allocation2 + $0x240] sm:$0xff]
    %v255 = vld [vmem:[#allocation2 + $0x248] sm:$0xff]
    %v256 = vld [vmem:[#allocation2 + $0x250] sm:$0xff]
    %v257 = vld [vmem:[#allocation2 + $0x258] sm:$0xff]
    %v258 = vld [vmem:[#allocation2 + $0x260] sm:$0xff]
    %v259 = vld [vmem:[#allocation2 + $0x268] sm:$0xff]
    %v260 = vld [vmem:[#allocation2 + $0x270] sm:$0xff]
    %v261 = vld [vmem:[#allocation2 + $0x278] sm:$0xff]
    %v262 = vld [vmem:[#allocation2 + $0x280] sm:$0xff]
    %v263 = vld [vmem:[#allocation2 + $0x288] sm:$0xff]
    %v264 = vld [vmem:[#allocation2 + $0x290] sm:$0xff]
    %v265 = vld [vmem:[#allocation2 + $0x298] sm:$0xff]
    %v266 = vld [vmem:[#allocation2 + $0x2a0] sm:$0xff]
    %v267 = vld [vmem:[#allocation2 + $0x2a8] sm:$0xff]
    %v268 = vld [vmem:[#allocation2 + $0x2b0] sm:$0xff]
    %v269 = vld [vmem:[#allocation2 + $0x2b8] sm:$0xff]
    %v270 = vld [vmem:[#allocation2 + $0x2c0] sm:$0xff]
    %v271 = vld [vmem:[#allocation2 + $0x2c8] sm:$0xff]
    %v272 = vld [vmem:[#allocation2 + $0x2d0] sm:$0xff]
    %v273 = vld [vmem:[#allocation2 + $0x2d8] sm:$0xff]
    %v274 = vld [vmem:[#allocation2 + $0x2e0] sm:$0xff]
    %v275 = vld [vmem:[#allocation2 + $0x2e8] sm:$0xff]
    %v276 = vld [vmem:[#allocation2 + $0x2f0] sm:$0xff]
    %v277 = vld [vmem:[#allocation2 + $0x2f8] sm:$0xff]
    %v278 = vld [vmem:[#allocation2 + $0x300] sm:$0xff]
    %v279 = vld [vmem:[#allocation2 + $0x308] sm:$0xff]
    %v280 = vld [vmem:[#allocation2 + $0x310] sm:$0xff]
    %v281 = vld [vmem:[#allocation2 + $0x318] sm:$0xff]
    %v282 = vld [vmem:[#allocation2 + $0x320] sm:$0xff]
    %v283 = vld [vmem:[#allocation2 + $0x328] sm:$0xff]
    %v284 = vld [vmem:[#allocation2 + $0x330] sm:$0xff]
    %v285 = vld [vmem:[#allocation2 + $0x338] sm:$0xff]
    %v286 = vld [vmem:[#allocation2 + $0x340] sm:$0xff]
    %v287 = vld [vmem:[#allocation2 + $0x348] sm:$0xff]
    %v288 = vld [vmem:[#allocation2 + $0x350] sm:$0xff]
    %v289 = vld [vmem:[#allocation2 + $0x358] sm:$0xff]
    %v290 = vld [vmem:[#allocation2 + $0x360] sm:$0xff]
    %v291 = vld [vmem:[#allocation2 + $0x368] sm:$0xff]
    %v292 = vld [vmem:[#allocation2 + $0x370] sm:$0xff]
    %v293 = vld [vmem:[#allocation2 + $0x378] sm:$0xff]
    %v294 = vld [vmem:[#allocation2 + $0x380] sm:$0xff]
    %v295 = vld [vmem:[#allocation2 + $0x388] sm:$0xff]
    %v296 = vld [vmem:[#allocation2 + $0x390] sm:$0xff]
    %v297 = vld [vmem:[#allocation2 + $0x398] sm:$0xff]
    %v298 = vld [vmem:[#allocation2 + $0x3a0] sm:$0xff]
    %v299 = vld [vmem:[#allocation2 + $0x3a8] sm:$0xff]
    %v300 = vld [vmem:[#allocation2 + $0x3b0] sm:$0xff]
    %v301 = vld [vmem:[#allocation2 + $0x3b8] sm:$0xff]
    %v302 = vld [vmem:[#allocation2 + $0x3c0] sm:$0xff]
    %v303 = vld [vmem:[#allocation2 + $0x3c8] sm:$0xff]
    %v304 = vld [vmem:[#allocation2 + $0x3d0] sm:$0xff]
    %v305 = vld [vmem:[#allocation2 + $0x3d8] sm:$0xff]
    %v306 = vld [vmem:[#allocation2 + $0x3e0] sm:$0xff]
    %v307 = vld [vmem:[#allocation2 + $0x3e8] sm:$0xff]
    %v308 = vld [vmem:[#allocation2 + $0x3f0] sm:$0xff]
    %v309 = vld [vmem:[#allocation2 + $0x3f8] sm:$0xff]
    %v310 = vld [vmem:[#allocation2 + $0x400] sm:$0xff]
    %v311 = vld [vmem:[#allocation2 + $0x408] sm:$0xff]
    %v312 = vld [vmem:[#allocation2 + $0x410] sm:$0xff]
    %v313 = vld [vmem:[#allocation2 + $0x418] sm:$0xff]
    %v314 = vld [vmem:[#allocation2 + $0x420] sm:$0xff]
    %v315 = vld [vmem:[#allocation2 + $0x428] sm:$0xff]
    %v316 = vld [vmem:[#allocation2 + $0x430] sm:$0xff]
    %v317 = vld [vmem:[#allocation2 + $0x438] sm:$0xff]
    %v318 = vld [vmem:[#allocation2 + $0x440] sm:$0xff]
    %v319 = vld [vmem:[#allocation2 + $0x448] sm:$0xff]
    %v320 = vld [vmem:[#allocation2 + $0x450] sm:$0xff]
    %v321 = vld [vmem:[#allocation2 + $0x458] sm:$0xff]
    %v322 = vld [vmem:[#allocation2 + $0x460] sm:$0xff]
    %v323 = vld [vmem:[#allocation2 + $0x468] sm:$0xff]
    %v324 = vld [vmem:[#allocation2 + $0x470] sm:$0xff]
    %v325 = vld [vmem:[#allocation2 + $0x478] sm:$0xff]
    %v326 = vld [vmem:[#allocation2 + $0x480] sm:$0xff]
    %v327 = vld [vmem:[#allocation2 + $0x488] sm:$0xff]
    %v328 = vld [vmem:[#allocation2 + $0x490] sm:$0xff]
    %v329 = vld [vmem:[#allocation2 + $0x498] sm:$0xff]
    %v330 = vld [vmem:[#allocation2 + $0x4a0] sm:$0xff]
    %v331 = vld [vmem:[#allocation2 + $0x4a8] sm:$0xff]
    %v332 = vld [vmem:[#allocation2 + $0x4b0] sm:$0xff]
    %v333 = vld [vmem:[#allocation2 + $0x4b8] sm:$0xff]
    %v334 = vld [vmem:[#allocation2 + $0x4c0] sm:$0xff]
    %v335 = vld [vmem:[#allocation2 + $0x4c8] sm:$0xff]
    %v336 = vld [vmem:[#allocation2 + $0x4d0] sm:$0xff]
    %v337 = vld [vmem:[#allocation2 + $0x4d8] sm:$0xff]
    %v338 = vld [vmem:[#allocation2 + $0x4e0] sm:$0xff]
    %v339 = vld [vmem:[#allocation2 + $0x4e8] sm:$0xff]
    %v340 = vld [vmem:[#allocation2 + $0x4f0] sm:$0xff]
    %v341 = vld [vmem:[#allocation2 + $0x4f8] sm:$0xff]
    %v342 = vld [vmem:[#allocation2 + $0x500] sm:$0xff]
    %v343 = vld [vmem:[#allocation2 + $0x508] sm:$0xff]
    %v344 = vld [vmem:[#allocation2 + $0x510] sm:$0xff]
    %v345 = vld [vmem:[#allocation2 + $0x518] sm:$0xff]
    %v346 = vld [vmem:[#allocation2 + $0x520] sm:$0xff]
    %v347 = vld [vmem:[#allocation2 + $0x528] sm:$0xff]
    %v348 = vld [vmem:[#allocation2 + $0x530] sm:$0xff]
    %v349 = vld [vmem:[#allocation2 + $0x538] sm:$0xff]
    %v350 = vld [vmem:[#allocation2 + $0x540] sm:$0xff]
    %v351 = vld [vmem:[#allocation2 + $0x548] sm:$0xff]
    %v352 = vld [vmem:[#allocation2 + $0x550] sm:$0xff]
    %v353 = vld [vmem:[#allocation2 + $0x558] sm:$0xff]
    %v354 = vld [vmem:[#allocation2 + $0x560] sm:$0xff]
    %v355 = vld [vmem:[#allocation2 + $0x568] sm:$0xff]
    %v356 = vld [vmem:[#allocation2 + $0x570] sm:$0xff]
    %v357 = vld [vmem:[#allocation2 + $0x578] sm:$0xff]
    %v358 = vld [vmem:[#allocation2 + $0x580] sm:$0xff]
    %v359 = vld [vmem:[#allocation2 + $0x588] sm:$0xff]
    %v360 = vld [vmem:[#allocation2 + $0x590] sm:$0xff]
    %v361 = vld [vmem:[#allocation2 + $0x598] sm:$0xff]
    %v362 = vld [vmem:[#allocation2 + $0x5a0] sm:$0xff]
    %v363 = vld [vmem:[#allocation2 + $0x5a8] sm:$0xff]
    %v364 = vld [vmem:[#allocation2 + $0x5b0] sm:$0xff]
    %v365 = vld [vmem:[#allocation2 + $0x5b8] sm:$0xff]
    %v366 = vld [vmem:[#allocation2 + $0x5c0] sm:$0xff]
    %v367 = vld [vmem:[#allocation2 + $0x5c8] sm:$0xff]
    %v368 = vld [vmem:[#allocation2 + $0x5d0] sm:$0xff]
    %v369 = vld [vmem:[#allocation2 + $0x5d8] sm:$0xff]
    %v370 = vld [vmem:[#allocation2 + $0x5e0] sm:$0xff]
    %v371 = vld [vmem:[#allocation2 + $0x5e8] sm:$0xff]
    %v372 = vld [vmem:[#allocation2 + $0x5f0] sm:$0xff]
    %v373 = vld [vmem:[#allocation2 + $0x5f8] sm:$0xff]
    %v374 = vld [vmem:[#allocation2 + $0x600] sm:$0xff]
    %v375 = vld [vmem:[#allocation2 + $0x608] sm:$0xff]
    %v376 = vld [vmem:[#allocation2 + $0x610] sm:$0xff]
    %v377 = vld [vmem:[#allocation2 + $0x618] sm:$0xff]
    %v378 = vld [vmem:[#allocation2 + $0x620] sm:$0xff]
    %v379 = vld [vmem:[#allocation2 + $0x628] sm:$0xff]
    %v380 = vld [vmem:[#allocation2 + $0x630] sm:$0xff]
    %v381 = vld [vmem:[#allocation2 + $0x638] sm:$0xff]
    %v382 = vld [vmem:[#allocation2 + $0x640] sm:$0xff]
    %v383 = vld [vmem:[#allocation2 + $0x648] sm:$0xff]
    %v384 = vld [vmem:[#allocation2 + $0x650] sm:$0xff]
    %v385 = vld [vmem:[#allocation2 + $0x658] sm:$0xff]
    %v386 = vld [vmem:[#allocation2 + $0x660] sm:$0xff]
    %v387 = vld [vmem:[#allocation2 + $0x668] sm:$0xff]
    %v388 = vld [vmem:[#allocation2 + $0x670] sm:$0xff]
    %v389 = vld [vmem:[#allocation2 + $0x678] sm:$0xff]
    %v390 = vld [vmem:[#allocation2 + $0x680] sm:$0xff]
    %v391 = vld [vmem:[#allocation2 + $0x688] sm:$0xff]
    %v392 = vld [vmem:[#allocation2 + $0x690] sm:$0xff]
    %v393 = vld [vmem:[#allocation2 + $0x698] sm:$0xff]
    %v394 = vld [vmem:[#allocation2 + $0x6a0] sm:$0xff]
    %v395 = vld [vmem:[#allocation2 + $0x6a8] sm:$0xff]
    %v396 = vld [vmem:[#allocation2 + $0x6b0] sm:$0xff]
    %v397 = vld [vmem:[#allocation2 + $0x6b8] sm:$0xff]
    %v398 = vld [vmem:[#allocation2 + $0x6c0] sm:$0xff]
    %v399 = vld [vmem:[#allocation2 + $0x6c8] sm:$0xff]
    %v400 = vld [vmem:[#allocation2 + $0x6d0] sm:$0xff]
    %v401 = vld [vmem:[#allocation2 + $0x6d8] sm:$0xff]
    %v402 = vld [vmem:[#allocation2 + $0x6e0] sm:$0xff]
    %v403 = vld [vmem:[#allocation2 + $0x6e8] sm:$0xff]
    %v404 = vld [vmem:[#allocation2 + $0x6f0] sm:$0xff]
    %v405 = vld [vmem:[#allocation2 + $0x6f8] sm:$0xff]
    %v406 = vld [vmem:[#allocation2 + $0x700] sm:$0xff]
    %v407 = vld [vmem:[#allocation2 + $0x708] sm:$0xff]
    %v408 = vld [vmem:[#allocation2 + $0x710] sm:$0xff]
    %v409 = vld [vmem:[#allocation2 + $0x718] sm:$0xff]
    %v410 = vld [vmem:[#allocation2 + $0x720] sm:$0xff]
    %v411 = vld [vmem:[#allocation2 + $0x728] sm:$0xff]
    %v412 = vld [vmem:[#allocation2 + $0x730] sm:$0xff]
    %v413 = vld [vmem:[#allocation2 + $0x738] sm:$0xff]
    %v414 = vld [vmem:[#allocation2 + $0x740] sm:$0xff]
    %v415 = vld [vmem:[#allocation2 + $0x748] sm:$0xff]
    %v416 = vld [vmem:[#allocation2 + $0x750] sm:$0xff]
    %v417 = vld [vmem:[#allocation2 + $0x758] sm:$0xff]
    %v418 = vld [vmem:[#allocation2 + $0x760] sm:$0xff]
    %v419 = vld [vmem:[#allocation2 + $0x768] sm:$0xff]
    %v420 = vld [vmem:[#allocation2 + $0x770] sm:$0xff]
    %v421 = vld [vmem:[#allocation2 + $0x778] sm:$0xff]
    %v422 = vld [vmem:[#allocation2 + $0x780] sm:$0xff]
    %v423 = vld [vmem:[#allocation2 + $0x788] sm:$0xff]
    %v424 = vld [vmem:[#allocation2 + $0x790] sm:$0xff]
    %v425 = vld [vmem:[#allocation2 + $0x798] sm:$0xff]
    %v426 = vld [vmem:[#allocation2 + $0x7a0] sm:$0xff]
    %v427 = vld [vmem:[#allocation2 + $0x7a8] sm:$0xff]
    %v428 = vld [vmem:[#allocation2 + $0x7b0] sm:$0xff]
    %v429 = vld [vmem:[#allocation2 + $0x7b8] sm:$0xff]
    %v430 = vld [vmem:[#allocation2 + $0x7c0] sm:$0xff]
    %v431 = vld [vmem:[#allocation2 + $0x7c8] sm:$0xff]
    %v432 = vld [vmem:[#allocation2 + $0x7d0] sm:$0xff]
    %v433 = vld [vmem:[#allocation2 + $0x7d8] sm:$0xff]
    %v434 = vld [vmem:[#allocation2 + $0x7e0] sm:$0xff]
    %v435 = vld [vmem:[#allocation2 + $0x7e8] sm:$0xff]
    %v436 = vld [vmem:[#allocation2 + $0x7f0] sm:$0xff]
    %v437 = vld [vmem:[#allocation2 + $0x7f8] sm:$0xff]
    %v438 = vld [vmem:[#allocation5] sm:$0xf]
    %v440 = vperm.slane %v438, 0
    %v441 = vperm.slane %v438, 1
    %v442 = vperm.slane %v438, 2
    %v443 = vperm.slane %v438, 3
    %449 = vst [vmem:[#allocation1] ss:$9 sm:$0xff] %v181
    %v450 = vld [vmem:[#allocation1] sm:$0xff]
    %v451 = vld [vmem:[#allocation1 + $0x9] sm:$0xff]
    %v452 = vld [vmem:[#allocation1 + $0x12] sm:$0xff]
    %v453 = vld [vmem:[#allocation1 + $0x1b] sm:$0xff]
    %v454 = vld [vmem:[#allocation1 + $0x24] sm:$0xff]
    %v455 = vld [vmem:[#allocation1 + $0x2d] sm:$0xff]
    %v456 = vld [vmem:[#allocation1 + $0x36] sm:$0xff]
    %v457 = vld [vmem:[#allocation1 + $0x3f] sm:$0xff]
    %v722 = vunpack.c.l.b16 %v182
    %v723 = vunpack.c.h.b16 %v182
    %v724 = vunpack.c.l.b16 %v183
    %v725 = vunpack.c.h.b16 %v183
    %v726 = vunpack.c.l.b16 %v184
    %v727 = vunpack.c.h.b16 %v184
    %v728 = vunpack.c.l.b16 %v185
    %v729 = vunpack.c.h.b16 %v185
    %v730 = vunpack.c.l.b16 %v186
    %v731 = vunpack.c.h.b16 %v186
    %v732 = vunpack.c.l.b16 %v187
    %v733 = vunpack.c.h.b16 %v187
    %v734 = vunpack.c.l.b16 %v188
    %v735 = vunpack.c.h.b16 %v188
    %v736 = vunpack.c.l.b16 %v189
    %v737 = vunpack.c.h.b16 %v189
    %v738 = vunpack.c.l.b16 %v190
    %v739 = vunpack.c.h.b16 %v190
    %v740 = vunpack.c.l.b16 %v191
    %v741 = vunpack.c.h.b16 %v191
    %v742 = vunpack.c.l.b16 %v192
    %v743 = vunpack.c.h.b16 %v192
    %v744 = vunpack.c.l.b16 %v193
    %v745 = vunpack.c.h.b16 %v193
    %v746 = vunpack.c.l.b16 %v194
    %v747 = vunpack.c.h.b16 %v194
    %v748 = vunpack.c.l.b16 %v195
    %v749 = vunpack.c.h.b16 %v195
    %v750 = vunpack.c.l.b16 %v196
    %v751 = vunpack.c.h.b16 %v196
    %v752 = vunpack.c.l.b16 %v197
    %v753 = vunpack.c.h.b16 %v197
    %v754 = vunpack.c.l.b16 %v198
    %v755 = vunpack.c.h.b16 %v198
    %v756 = vunpack.c.l.b16 %v199
    %v757 = vunpack.c.h.b16 %v199
    %v758 = vunpack.c.l.b16 %v200
    %v759 = vunpack.c.h.b16 %v200
    %v760 = vunpack.c.l.b16 %v201
    %v761 = vunpack.c.h.b16 %v201
    %v762 = vunpack.c.l.b16 %v202
    %v763 = vunpack.c.h.b16 %v202
    %v764 = vunpack.c.l.b16 %v203
    %v765 = vunpack.c.h.b16 %v203
    %v766 = vunpack.c.l.b16 %v204
    %v767 = vunpack.c.h.b16 %v204
    %v768 = vunpack.c.l.b16 %v205
    %v769 = vunpack.c.h.b16 %v205
    %v770 = vunpack.c.l.b16 %v206
    %v771 = vunpack.c.h.b16 %v206
    %v772 = vunpack.c.l.b16 %v207
    %v773 = vunpack.c.h.b16 %v207
    %v774 = vunpack.c.l.b16 %v208
    %v775 = vunpack.c.h.b16 %v208
    %v776 = vunpack.c.l.b16 %v209
    %v777 = vunpack.c.h.b16 %v209
    %v778 = vunpack.c.l.b16 %v210
    %v779 = vunpack.c.h.b16 %v210
    %v780 = vunpack.c.l.b16 %v211
    %v781 = vunpack.c.h.b16 %v211
    %v782 = vunpack.c.l.b16 %v212
    %v783 = vunpack.c.h.b16 %v212
    %v784 = vunpack.c.l.b16 %v213
    %v785 = vunpack.c.h.b16 %v213
    %v786 = vunpack.c.l.b16 %v214
    %v787 = vunpack.c.h.b16 %v214
    %v788 = vunpack.c.l.b16 %v215
    %v789 = vunpack.c.h.b16 %v215
    %v790 = vunpack.c.l.b16 %v216
    %v791 = vunpack.c.h.b16 %v216
    %v792 = vunpack.c.l.b16 %v217
    %v793 = vunpack.c.h.b16 %v217
    %v794 = vunpack.c.l.b16 %v218
    %v795 = vunpack.c.h.b16 %v218
    %v796 = vunpack.c.l.b16 %v219
    %v797 = vunpack.c.h.b16 %v219
    %v798 = vunpack.c.l.b16 %v220
    %v799 = vunpack.c.h.b16 %v220
    %v800 = vunpack.c.l.b16 %v221
    %v801 = vunpack.c.h.b16 %v221
    %v802 = vunpack.c.l.b16 %v222
    %v803 = vunpack.c.h.b16 %v222
    %v804 = vunpack.c.l.b16 %v223
    %v805 = vunpack.c.h.b16 %v223
    %v806 = vunpack.c.l.b16 %v224
    %v807 = vunpack.c.h.b16 %v224
    %v808 = vunpack.c.l.b16 %v225
    %v809 = vunpack.c.h.b16 %v225
    %v810 = vunpack.c.l.b16 %v226
    %v811 = vunpack.c.h.b16 %v226
    %v812 = vunpack.c.l.b16 %v227
    %v813 = vunpack.c.h.b16 %v227
    %v814 = vunpack.c.l.b16 %v228
    %v815 = vunpack.c.h.b16 %v228
    %v816 = vunpack.c.l.b16 %v229
    %v817 = vunpack.c.h.b16 %v229
    %v818 = vunpack.c.l.b16 %v230
    %v819 = vunpack.c.h.b16 %v230
    %v820 = vunpack.c.l.b16 %v231
    %v821 = vunpack.c.h.b16 %v231
    %v822 = vunpack.c.l.b16 %v232
    %v823 = vunpack.c.h.b16 %v232
    %v824 = vunpack.c.l.b16 %v233
    %v825 = vunpack.c.h.b16 %v233
    %v826 = vunpack.c.l.b16 %v234
    %v827 = vunpack.c.h.b16 %v234
    %v828 = vunpack.c.l.b16 %v235
    %v829 = vunpack.c.h.b16 %v235
    %v830 = vunpack.c.l.b16 %v236
    %v831 = vunpack.c.h.b16 %v236
    %v832 = vunpack.c.l.b16 %v237
    %v833 = vunpack.c.h.b16 %v237
    %v834 = vunpack.c.l.b16 %v238
    %v835 = vunpack.c.h.b16 %v238
    %v836 = vunpack.c.l.b16 %v239
    %v837 = vunpack.c.h.b16 %v239
    %v838 = vunpack.c.l.b16 %v240
    %v839 = vunpack.c.h.b16 %v240
    %v840 = vunpack.c.l.b16 %v241
    %v841 = vunpack.c.h.b16 %v241
    %v842 = vunpack.c.l.b16 %v242
    %v843 = vunpack.c.h.b16 %v242
    %v844 = vunpack.c.l.b16 %v243
    %v845 = vunpack.c.h.b16 %v243
    %v846 = vunpack.c.l.b16 %v244
    %v847 = vunpack.c.h.b16 %v244
    %v848 = vunpack.c.l.b16 %v245
    %v849 = vunpack.c.h.b16 %v245
    %v850 = vunpack.c.l.b16 %v246
    %v851 = vunpack.c.h.b16 %v246
    %v852 = vunpack.c.l.b16 %v247
    %v853 = vunpack.c.h.b16 %v247
    %v854 = vunpack.c.l.b16 %v248
    %v855 = vunpack.c.h.b16 %v248
    %v856 = vunpack.c.l.b16 %v249
    %v857 = vunpack.c.h.b16 %v249
    %v858 = vunpack.c.l.b16 %v250
    %v859 = vunpack.c.h.b16 %v250
    %v860 = vunpack.c.l.b16 %v251
    %v861 = vunpack.c.h.b16 %v251
    %v862 = vunpack.c.l.b16 %v252
    %v863 = vunpack.c.h.b16 %v252
    %v864 = vunpack.c.l.b16 %v253
    %v865 = vunpack.c.h.b16 %v253
    %v866 = vunpack.c.l.b16 %v254
    %v867 = vunpack.c.h.b16 %v254
    %v868 = vunpack.c.l.b16 %v255
    %v869 = vunpack.c.h.b16 %v255
    %v870 = vunpack.c.l.b16 %v256
    %v871 = vunpack.c.h.b16 %v256
    %v872 = vunpack.c.l.b16 %v257
    %v873 = vunpack.c.h.b16 %v257
    %v874 = vunpack.c.l.b16 %v258
    %v875 = vunpack.c.h.b16 %v258
    %v876 = vunpack.c.l.b16 %v259
    %v877 = vunpack.c.h.b16 %v259
    %v878 = vunpack.c.l.b16 %v260
    %v879 = vunpack.c.h.b16 %v260
    %v880 = vunpack.c.l.b16 %v261
    %v881 = vunpack.c.h.b16 %v261
    %v882 = vunpack.c.l.b16 %v262
    %v883 = vunpack.c.h.b16 %v262
    %v884 = vunpack.c.l.b16 %v263
    %v885 = vunpack.c.h.b16 %v263
    %v886 = vunpack.c.l.b16 %v264
    %v887 = vunpack.c.h.b16 %v264
    %v888 = vunpack.c.l.b16 %v265
    %v889 = vunpack.c.h.b16 %v265
    %v890 = vunpack.c.l.b16 %v266
    %v891 = vunpack.c.h.b16 %v266
    %v892 = vunpack.c.l.b16 %v267
    %v893 = vunpack.c.h.b16 %v267
    %v894 = vunpack.c.l.b16 %v268
    %v895 = vunpack.c.h.b16 %v268
    %v896 = vunpack.c.l.b16 %v269
    %v897 = vunpack.c.h.b16 %v269
    %v898 = vunpack.c.l.b16 %v270
    %v899 = vunpack.c.h.b16 %v270
    %v900 = vunpack.c.l.b16 %v271
    %v901 = vunpack.c.h.b16 %v271
    %v902 = vunpack.c.l.b16 %v272
    %v903 = vunpack.c.h.b16 %v272
    %v904 = vunpack.c.l.b16 %v273
    %v905 = vunpack.c.h.b16 %v273
    %v906 = vunpack.c.l.b16 %v274
    %v907 = vunpack.c.h.b16 %v274
    %v908 = vunpack.c.l.b16 %v275
    %v909 = vunpack.c.h.b16 %v275
    %v910 = vunpack.c.l.b16 %v276
    %v911 = vunpack.c.h.b16 %v276
    %v912 = vunpack.c.l.b16 %v277
    %v913 = vunpack.c.h.b16 %v277
    %v914 = vunpack.c.l.b16 %v278
    %v915 = vunpack.c.h.b16 %v278
    %v916 = vunpack.c.l.b16 %v279
    %v917 = vunpack.c.h.b16 %v279
    %v918 = vunpack.c.l.b16 %v280
    %v919 = vunpack.c.h.b16 %v280
    %v920 = vunpack.c.l.b16 %v281
    %v921 = vunpack.c.h.b16 %v281
    %v922 = vunpack.c.l.b16 %v282
    %v923 = vunpack.c.h.b16 %v282
    %v924 = vunpack.c.l.b16 %v283
    %v925 = vunpack.c.h.b16 %v283
    %v926 = vunpack.c.l.b16 %v284
    %v927 = vunpack.c.h.b16 %v284
    %v928 = vunpack.c.l.b16 %v285
    %v929 = vunpack.c.h.b16 %v285
    %v930 = vunpack.c.l.b16 %v286
    %v931 = vunpack.c.h.b16 %v286
    %v932 = vunpack.c.l.b16 %v287
    %v933 = vunpack.c.h.b16 %v287
    %v934 = vunpack.c.l.b16 %v288
    %v935 = vunpack.c.h.b16 %v288
    %v936 = vunpack.c.l.b16 %v289
    %v937 = vunpack.c.h.b16 %v289
    %v938 = vunpack.c.l.b16 %v290
    %v939 = vunpack.c.h.b16 %v290
    %v940 = vunpack.c.l.b16 %v291
    %v941 = vunpack.c.h.b16 %v291
    %v942 = vunpack.c.l.b16 %v292
    %v943 = vunpack.c.h.b16 %v292
    %v944 = vunpack.c.l.b16 %v293
    %v945 = vunpack.c.h.b16 %v293
    %v946 = vunpack.c.l.b16 %v294
    %v947 = vunpack.c.h.b16 %v294
    %v948 = vunpack.c.l.b16 %v295
    %v949 = vunpack.c.h.b16 %v295
    %v950 = vunpack.c.l.b16 %v296
    %v951 = vunpack.c.h.b16 %v296
    %v952 = vunpack.c.l.b16 %v297
    %v953 = vunpack.c.h.b16 %v297
    %v954 = vunpack.c.l.b16 %v298
    %v955 = vunpack.c.h.b16 %v298
    %v956 = vunpack.c.l.b16 %v299
    %v957 = vunpack.c.h.b16 %v299
    %v958 = vunpack.c.l.b16 %v300
    %v959 = vunpack.c.h.b16 %v300
    %v960 = vunpack.c.l.b16 %v301
    %v961 = vunpack.c.h.b16 %v301
    %v962 = vunpack.c.l.b16 %v302
    %v963 = vunpack.c.h.b16 %v302
    %v964 = vunpack.c.l.b16 %v303
    %v965 = vunpack.c.h.b16 %v303
    %v966 = vunpack.c.l.b16 %v304
    %v967 = vunpack.c.h.b16 %v304
    %v968 = vunpack.c.l.b16 %v305
    %v969 = vunpack.c.h.b16 %v305
    %v970 = vunpack.c.l.b16 %v306
    %v971 = vunpack.c.h.b16 %v306
    %v972 = vunpack.c.l.b16 %v307
    %v973 = vunpack.c.h.b16 %v307
    %v974 = vunpack.c.l.b16 %v308
    %v975 = vunpack.c.h.b16 %v308
    %v976 = vunpack.c.l.b16 %v309
    %v977 = vunpack.c.h.b16 %v309
    %v978 = vunpack.c.l.b16 %v310
    %v979 = vunpack.c.h.b16 %v310
    %v980 = vunpack.c.l.b16 %v311
    %v981 = vunpack.c.h.b16 %v311
    %v982 = vunpack.c.l.b16 %v312
    %v983 = vunpack.c.h.b16 %v312
    %v984 = vunpack.c.l.b16 %v313
    %v985 = vunpack.c.h.b16 %v313
    %v986 = vunpack.c.l.b16 %v314
    %v987 = vunpack.c.h.b16 %v314
    %v988 = vunpack.c.l.b16 %v315
    %v989 = vunpack.c.h.b16 %v315
    %v990 = vunpack.c.l.b16 %v316
    %v991 = vunpack.c.h.b16 %v316
    %v992 = vunpack.c.l.b16 %v317
    %v993 = vunpack.c.h.b16 %v317
    %v994 = vunpack.c.l.b16 %v318
    %v995 = vunpack.c.h.b16 %v318
    %v996 = vunpack.c.l.b16 %v319
    %v997 = vunpack.c.h.b16 %v319
    %v998 = vunpack.c.l.b16 %v320
    %v999 = vunpack.c.h.b16 %v320
    %v1000 = vunpack.c.l.b16 %v321
    %v1001 = vunpack.c.h.b16 %v321
    %v1002 = vunpack.c.l.b16 %v322
    %v1003 = vunpack.c.h.b16 %v322
    %v1004 = vunpack.c.l.b16 %v323
    %v1005 = vunpack.c.h.b16 %v323
    %v1006 = vunpack.c.l.b16 %v324
    %v1007 = vunpack.c.h.b16 %v324
    %v1008 = vunpack.c.l.b16 %v325
    %v1009 = vunpack.c.h.b16 %v325
    %v1010 = vunpack.c.l.b16 %v326
    %v1011 = vunpack.c.h.b16 %v326
    %v1012 = vunpack.c.l.b16 %v327
    %v1013 = vunpack.c.h.b16 %v327
    %v1014 = vunpack.c.l.b16 %v328
    %v1015 = vunpack.c.h.b16 %v328
    %v1016 = vunpack.c.l.b16 %v329
    %v1017 = vunpack.c.h.b16 %v329
    %v1018 = vunpack.c.l.b16 %v330
    %v1019 = vunpack.c.h.b16 %v330
    %v1020 = vunpack.c.l.b16 %v331
    %v1021 = vunpack.c.h.b16 %v331
    %v1022 = vunpack.c.l.b16 %v332
    %v1023 = vunpack.c.h.b16 %v332
    %v1024 = vunpack.c.l.b16 %v333
    %v1025 = vunpack.c.h.b16 %v333
    %v1026 = vunpack.c.l.b16 %v334
    %v1027 = vunpack.c.h.b16 %v334
    %v1028 = vunpack.c.l.b16 %v335
    %v1029 = vunpack.c.h.b16 %v335
    %v1030 = vunpack.c.l.b16 %v336
    %v1031 = vunpack.c.h.b16 %v336
    %v1032 = vunpack.c.l.b16 %v337
    %v1033 = vunpack.c.h.b16 %v337
    %v1034 = vunpack.c.l.b16 %v338
    %v1035 = vunpack.c.h.b16 %v338
    %v1036 = vunpack.c.l.b16 %v339
    %v1037 = vunpack.c.h.b16 %v339
    %v1038 = vunpack.c.l.b16 %v340
    %v1039 = vunpack.c.h.b16 %v340
    %v1040 = vunpack.c.l.b16 %v341
    %v1041 = vunpack.c.h.b16 %v341
    %v1042 = vunpack.c.l.b16 %v342
    %v1043 = vunpack.c.h.b16 %v342
    %v1044 = vunpack.c.l.b16 %v343
    %v1045 = vunpack.c.h.b16 %v343
    %v1046 = vunpack.c.l.b16 %v344
    %v1047 = vunpack.c.h.b16 %v344
    %v1048 = vunpack.c.l.b16 %v345
    %v1049 = vunpack.c.h.b16 %v345
    %v1050 = vunpack.c.l.b16 %v346
    %v1051 = vunpack.c.h.b16 %v346
    %v1052 = vunpack.c.l.b16 %v347
    %v1053 = vunpack.c.h.b16 %v347
    %v1054 = vunpack.c.l.b16 %v348
    %v1055 = vunpack.c.h.b16 %v348
    %v1056 = vunpack.c.l.b16 %v349
    %v1057 = vunpack.c.h.b16 %v349
    %v1058 = vunpack.c.l.b16 %v350
    %v1059 = vunpack.c.h.b16 %v350
    %v1060 = vunpack.c.l.b16 %v351
    %v1061 = vunpack.c.h.b16 %v351
    %v1062 = vunpack.c.l.b16 %v352
    %v1063 = vunpack.c.h.b16 %v352
    %v1064 = vunpack.c.l.b16 %v353
    %v1065 = vunpack.c.h.b16 %v353
    %v1066 = vunpack.c.l.b16 %v354
    %v1067 = vunpack.c.h.b16 %v354
    %v1068 = vunpack.c.l.b16 %v355
    %v1069 = vunpack.c.h.b16 %v355
    %v1070 = vunpack.c.l.b16 %v356
    %v1071 = vunpack.c.h.b16 %v356
    %v1072 = vunpack.c.l.b16 %v357
    %v1073 = vunpack.c.h.b16 %v357
    %v1074 = vunpack.c.l.b16 %v358
    %v1075 = vunpack.c.h.b16 %v358
    %v1076 = vunpack.c.l.b16 %v359
    %v1077 = vunpack.c.h.b16 %v359
    %v1078 = vunpack.c.l.b16 %v360
    %v1079 = vunpack.c.h.b16 %v360
    %v1080 = vunpack.c.l.b16 %v361
    %v1081 = vunpack.c.h.b16 %v361
    %v1082 = vunpack.c.l.b16 %v362
    %v1083 = vunpack.c.h.b16 %v362
    %v1084 = vunpack.c.l.b16 %v363
    %v1085 = vunpack.c.h.b16 %v363
    %v1086 = vunpack.c.l.b16 %v364
    %v1087 = vunpack.c.h.b16 %v364
    %v1088 = vunpack.c.l.b16 %v365
    %v1089 = vunpack.c.h.b16 %v365
    %v1090 = vunpack.c.l.b16 %v366
    %v1091 = vunpack.c.h.b16 %v366
    %v1092 = vunpack.c.l.b16 %v367
    %v1093 = vunpack.c.h.b16 %v367
    %v1094 = vunpack.c.l.b16 %v368
    %v1095 = vunpack.c.h.b16 %v368
    %v1096 = vunpack.c.l.b16 %v369
    %v1097 = vunpack.c.h.b16 %v369
    %v1098 = vunpack.c.l.b16 %v370
    %v1099 = vunpack.c.h.b16 %v370
    %v1100 = vunpack.c.l.b16 %v371
    %v1101 = vunpack.c.h.b16 %v371
    %v1102 = vunpack.c.l.b16 %v372
    %v1103 = vunpack.c.h.b16 %v372
    %v1104 = vunpack.c.l.b16 %v373
    %v1105 = vunpack.c.h.b16 %v373
    %v1106 = vunpack.c.l.b16 %v374
    %v1107 = vunpack.c.h.b16 %v374
    %v1108 = vunpack.c.l.b16 %v375
    %v1109 = vunpack.c.h.b16 %v375
    %v1110 = vunpack.c.l.b16 %v376
    %v1111 = vunpack.c.h.b16 %v376
    %v1112 = vunpack.c.l.b16 %v377
    %v1113 = vunpack.c.h.b16 %v377
    %v1114 = vunpack.c.l.b16 %v378
    %v1115 = vunpack.c.h.b16 %v378
    %v1116 = vunpack.c.l.b16 %v379
    %v1117 = vunpack.c.h.b16 %v379
    %v1118 = vunpack.c.l.b16 %v380
    %v1119 = vunpack.c.h.b16 %v380
    %v1120 = vunpack.c.l.b16 %v381
    %v1121 = vunpack.c.h.b16 %v381
    %v1122 = vunpack.c.l.b16 %v382
    %v1123 = vunpack.c.h.b16 %v382
    %v1124 = vunpack.c.l.b16 %v383
    %v1125 = vunpack.c.h.b16 %v383
    %v1126 = vunpack.c.l.b16 %v384
    %v1127 = vunpack.c.h.b16 %v384
    %v1128 = vunpack.c.l.b16 %v385
    %v1129 = vunpack.c.h.b16 %v385
    %v1130 = vunpack.c.l.b16 %v386
    %v1131 = vunpack.c.h.b16 %v386
    %v1132 = vunpack.c.l.b16 %v387
    %v1133 = vunpack.c.h.b16 %v387
    %v1134 = vunpack.c.l.b16 %v388
    %v1135 = vunpack.c.h.b16 %v388
    %v1136 = vunpack.c.l.b16 %v389
    %v1137 = vunpack.c.h.b16 %v389
    %v1138 = vunpack.c.l.b16 %v390
    %v1139 = vunpack.c.h.b16 %v390
    %v1140 = vunpack.c.l.b16 %v391
    %v1141 = vunpack.c.h.b16 %v391
    %v1142 = vunpack.c.l.b16 %v392
    %v1143 = vunpack.c.h.b16 %v392
    %v1144 = vunpack.c.l.b16 %v393
    %v1145 = vunpack.c.h.b16 %v393
    %v1146 = vunpack.c.l.b16 %v394
    %v1147 = vunpack.c.h.b16 %v394
    %v1148 = vunpack.c.l.b16 %v395
    %v1149 = vunpack.c.h.b16 %v395
    %v1150 = vunpack.c.l.b16 %v396
    %v1151 = vunpack.c.h.b16 %v396
    %v1152 = vunpack.c.l.b16 %v397
    %v1153 = vunpack.c.h.b16 %v397
    %v1154 = vunpack.c.l.b16 %v398
    %v1155 = vunpack.c.h.b16 %v398
    %v1156 = vunpack.c.l.b16 %v399
    %v1157 = vunpack.c.h.b16 %v399
    %v1158 = vunpack.c.l.b16 %v400
    %v1159 = vunpack.c.h.b16 %v400
    %v1160 = vunpack.c.l.b16 %v401
    %v1161 = vunpack.c.h.b16 %v401
    %v1162 = vunpack.c.l.b16 %v402
    %v1163 = vunpack.c.h.b16 %v402
    %v1164 = vunpack.c.l.b16 %v403
    %v1165 = vunpack.c.h.b16 %v403
    %v1166 = vunpack.c.l.b16 %v404
    %v1167 = vunpack.c.h.b16 %v404
    %v1168 = vunpack.c.l.b16 %v405
    %v1169 = vunpack.c.h.b16 %v405
    %v1170 = vunpack.c.l.b16 %v406
    %v1171 = vunpack.c.h.b16 %v406
    %v1172 = vunpack.c.l.b16 %v407
    %v1173 = vunpack.c.h.b16 %v407
    %v1174 = vunpack.c.l.b16 %v408
    %v1175 = vunpack.c.h.b16 %v408
    %v1176 = vunpack.c.l.b16 %v409
    %v1177 = vunpack.c.h.b16 %v409
    %v1178 = vunpack.c.l.b16 %v410
    %v1179 = vunpack.c.h.b16 %v410
    %v1180 = vunpack.c.l.b16 %v411
    %v1181 = vunpack.c.h.b16 %v411
    %v1182 = vunpack.c.l.b16 %v412
    %v1183 = vunpack.c.h.b16 %v412
    %v1184 = vunpack.c.l.b16 %v413
    %v1185 = vunpack.c.h.b16 %v413
    %v1186 = vunpack.c.l.b16 %v414
    %v1187 = vunpack.c.h.b16 %v414
    %v1188 = vunpack.c.l.b16 %v415
    %v1189 = vunpack.c.h.b16 %v415
    %v1190 = vunpack.c.l.b16 %v416
    %v1191 = vunpack.c.h.b16 %v416
    %v1192 = vunpack.c.l.b16 %v417
    %v1193 = vunpack.c.h.b16 %v417
    %v1194 = vunpack.c.l.b16 %v418
    %v1195 = vunpack.c.h.b16 %v418
    %v1196 = vunpack.c.l.b16 %v419
    %v1197 = vunpack.c.h.b16 %v419
    %v1198 = vunpack.c.l.b16 %v420
    %v1199 = vunpack.c.h.b16 %v420
    %v1200 = vunpack.c.l.b16 %v421
    %v1201 = vunpack.c.h.b16 %v421
    %v1202 = vunpack.c.l.b16 %v422
    %v1203 = vunpack.c.h.b16 %v422
    %v1204 = vunpack.c.l.b16 %v423
    %v1205 = vunpack.c.h.b16 %v423
    %v1206 = vunpack.c.l.b16 %v424
    %v1207 = vunpack.c.h.b16 %v424
    %v1208 = vunpack.c.l.b16 %v425
    %v1209 = vunpack.c.h.b16 %v425
    %v1210 = vunpack.c.l.b16 %v426
    %v1211 = vunpack.c.h.b16 %v426
    %v1212 = vunpack.c.l.b16 %v427
    %v1213 = vunpack.c.h.b16 %v427
    %v1214 = vunpack.c.l.b16 %v428
    %v1215 = vunpack.c.h.b16 %v428
    %v1216 = vunpack.c.l.b16 %v429
    %v1217 = vunpack.c.h.b16 %v429
    %v1218 = vunpack.c.l.b16 %v430
    %v1219 = vunpack.c.h.b16 %v430
    %v1220 = vunpack.c.l.b16 %v431
    %v1221 = vunpack.c.h.b16 %v431
    %v1222 = vunpack.c.l.b16 %v432
    %v1223 = vunpack.c.h.b16 %v432
    %v1224 = vunpack.c.l.b16 %v433
    %v1225 = vunpack.c.h.b16 %v433
    %v1226 = vunpack.c.l.b16 %v434
    %v1227 = vunpack.c.h.b16 %v434
    %v1228 = vunpack.c.l.b16 %v435
    %v1229 = vunpack.c.h.b16 %v435
    %v1230 = vunpack.c.l.b16 %v436
    %v1231 = vunpack.c.h.b16 %v436
    %v1232 = vunpack.c.l.b16 %v437
    %v1233 = vunpack.c.h.b16 %v437
    %v1234 = vpack.c.b16 %v726, %v722
    %v1235 = vpack.c.b16 %v727, %v723
    %v1236 = vpack.c.b16 %v728, %v724
    %v1237 = vpack.c.b16 %v729, %v725
    %v1238 = vpack.c.b16 %v734, %v730
    %v1239 = vpack.c.b16 %v735, %v731
    %v1240 = vpack.c.b16 %v736, %v732
    %v1241 = vpack.c.b16 %v737, %v733
    %v1242 = vpack.c.b16 %v742, %v738
    %v1243 = vpack.c.b16 %v743, %v739
    %v1244 = vpack.c.b16 %v744, %v740
    %v1245 = vpack.c.b16 %v745, %v741
    %v1246 = vpack.c.b16 %v750, %v746
    %v1247 = vpack.c.b16 %v751, %v747
    %v1248 = vpack.c.b16 %v752, %v748
    %v1249 = vpack.c.b16 %v753, %v749
    %v1250 = vpack.c.b16 %v758, %v754
    %v1251 = vpack.c.b16 %v759, %v755
    %v1252 = vpack.c.b16 %v760, %v756
    %v1253 = vpack.c.b16 %v761, %v757
    %v1254 = vpack.c.b16 %v766, %v762
    %v1255 = vpack.c.b16 %v767, %v763
    %v1256 = vpack.c.b16 %v768, %v764
    %v1257 = vpack.c.b16 %v769, %v765
    %v1258 = vpack.c.b16 %v774, %v770
    %v1259 = vpack.c.b16 %v775, %v771
    %v1260 = vpack.c.b16 %v776, %v772
    %v1261 = vpack.c.b16 %v777, %v773
    %v1262 = vpack.c.b16 %v782, %v778
    %v1263 = vpack.c.b16 %v783, %v779
    %v1264 = vpack.c.b16 %v784, %v780
    %v1265 = vpack.c.b16 %v785, %v781
    %v1266 = vpack.c.b16 %v790, %v786
    %v1267 = vpack.c.b16 %v791, %v787
    %v1268 = vpack.c.b16 %v792, %v788
    %v1269 = vpack.c.b16 %v793, %v789
    %v1270 = vpack.c.b16 %v798, %v794
    %v1271 = vpack.c.b16 %v799, %v795
    %v1272 = vpack.c.b16 %v800, %v796
    %v1273 = vpack.c.b16 %v801, %v797
    %v1274 = vpack.c.b16 %v806, %v802
    %v1275 = vpack.c.b16 %v807, %v803
    %v1276 = vpack.c.b16 %v808, %v804
    %v1277 = vpack.c.b16 %v809, %v805
    %v1278 = vpack.c.b16 %v814, %v810
    %v1279 = vpack.c.b16 %v815, %v811
    %v1280 = vpack.c.b16 %v816, %v812
    %v1281 = vpack.c.b16 %v817, %v813
    %v1282 = vpack.c.b16 %v822, %v818
    %v1283 = vpack.c.b16 %v823, %v819
    %v1284 = vpack.c.b16 %v824, %v820
    %v1285 = vpack.c.b16 %v825, %v821
    %v1286 = vpack.c.b16 %v830, %v826
    %v1287 = vpack.c.b16 %v831, %v827
    %v1288 = vpack.c.b16 %v832, %v828
    %v1289 = vpack.c.b16 %v833, %v829
    %v1290 = vpack.c.b16 %v838, %v834
    %v1291 = vpack.c.b16 %v839, %v835
    %v1292 = vpack.c.b16 %v840, %v836
    %v1293 = vpack.c.b16 %v841, %v837
    %v1294 = vpack.c.b16 %v846, %v842
    %v1295 = vpack.c.b16 %v847, %v843
    %v1296 = vpack.c.b16 %v848, %v844
    %v1297 = vpack.c.b16 %v849, %v845
    %v1298 = vpack.c.b16 %v854, %v850
    %v1299 = vpack.c.b16 %v855, %v851
    %v1300 = vpack.c.b16 %v856, %v852
    %v1301 = vpack.c.b16 %v857, %v853
    %v1302 = vpack.c.b16 %v862, %v858
    %v1303 = vpack.c.b16 %v863, %v859
    %v1304 = vpack.c.b16 %v864, %v860
    %v1305 = vpack.c.b16 %v865, %v861
    %v1306 = vpack.c.b16 %v870, %v866
    %v1307 = vpack.c.b16 %v871, %v867
    %v1308 = vpack.c.b16 %v872, %v868
    %v1309 = vpack.c.b16 %v873, %v869
    %v1310 = vpack.c.b16 %v878, %v874
    %v1311 = vpack.c.b16 %v879, %v875
    %v1312 = vpack.c.b16 %v880, %v876
    %v1313 = vpack.c.b16 %v881, %v877
    %v1314 = vpack.c.b16 %v886, %v882
    %v1315 = vpack.c.b16 %v887, %v883
    %v1316 = vpack.c.b16 %v888, %v884
    %v1317 = vpack.c.b16 %v889, %v885
    %v1318 = vpack.c.b16 %v894, %v890
    %v1319 = vpack.c.b16 %v895, %v891
    %v1320 = vpack.c.b16 %v896, %v892
    %v1321 = vpack.c.b16 %v897, %v893
    %v1322 = vpack.c.b16 %v902, %v898
    %v1323 = vpack.c.b16 %v903, %v899
    %v1324 = vpack.c.b16 %v904, %v900
    %v1325 = vpack.c.b16 %v905, %v901
    %v1326 = vpack.c.b16 %v910, %v906
    %v1327 = vpack.c.b16 %v911, %v907
    %v1328 = vpack.c.b16 %v912, %v908
    %v1329 = vpack.c.b16 %v913, %v909
    %v1330 = vpack.c.b16 %v918, %v914
    %v1331 = vpack.c.b16 %v919, %v915
    %v1332 = vpack.c.b16 %v920, %v916
    %v1333 = vpack.c.b16 %v921, %v917
    %v1334 = vpack.c.b16 %v926, %v922
    %v1335 = vpack.c.b16 %v927, %v923
    %v1336 = vpack.c.b16 %v928, %v924
    %v1337 = vpack.c.b16 %v929, %v925
    %v1338 = vpack.c.b16 %v934, %v930
    %v1339 = vpack.c.b16 %v935, %v931
    %v1340 = vpack.c.b16 %v936, %v932
    %v1341 = vpack.c.b16 %v937, %v933
    %v1342 = vpack.c.b16 %v942, %v938
    %v1343 = vpack.c.b16 %v943, %v939
    %v1344 = vpack.c.b16 %v944, %v940
    %v1345 = vpack.c.b16 %v945, %v941
    %v1346 = vpack.c.b16 %v950, %v946
    %v1347 = vpack.c.b16 %v951, %v947
    %v1348 = vpack.c.b16 %v952, %v948
    %v1349 = vpack.c.b16 %v953, %v949
    %v1350 = vpack.c.b16 %v958, %v954
    %v1351 = vpack.c.b16 %v959, %v955
    %v1352 = vpack.c.b16 %v960, %v956
    %v1353 = vpack.c.b16 %v961, %v957
    %v1354 = vpack.c.b16 %v966, %v962
    %v1355 = vpack.c.b16 %v967, %v963
    %v1356 = vpack.c.b16 %v968, %v964
    %v1357 = vpack.c.b16 %v969, %v965
    %v1358 = vpack.c.b16 %v974, %v970
    %v1359 = vpack.c.b16 %v975, %v971
    %v1360 = vpack.c.b16 %v976, %v972
    %v1361 = vpack.c.b16 %v977, %v973
    %v1362 = vpack.c.b16 %v982, %v978
    %v1363 = vpack.c.b16 %v983, %v979
    %v1364 = vpack.c.b16 %v984, %v980
    %v1365 = vpack.c.b16 %v985, %v981
    %v1366 = vpack.c.b16 %v990, %v986
    %v1367 = vpack.c.b16 %v991, %v987
    %v1368 = vpack.c.b16 %v992, %v988
    %v1369 = vpack.c.b16 %v993, %v989
    %v1370 = vpack.c.b16 %v998, %v994
    %v1371 = vpack.c.b16 %v999, %v995
    %v1372 = vpack.c.b16 %v1000, %v996
    %v1373 = vpack.c.b16 %v1001, %v997
    %v1374 = vpack.c.b16 %v1006, %v1002
    %v1375 = vpack.c.b16 %v1007, %v1003
    %v1376 = vpack.c.b16 %v1008, %v1004
    %v1377 = vpack.c.b16 %v1009, %v1005
    %v1378 = vpack.c.b16 %v1014, %v1010
    %v1379 = vpack.c.b16 %v1015, %v1011
    %v1380 = vpack.c.b16 %v1016, %v1012
    %v1381 = vpack.c.b16 %v1017, %v1013
    %v1382 = vpack.c.b16 %v1022, %v1018
    %v1383 = vpack.c.b16 %v1023, %v1019
    %v1384 = vpack.c.b16 %v1024, %v1020
    %v1385 = vpack.c.b16 %v1025, %v1021
    %v1386 = vpack.c.b16 %v1030, %v1026
    %v1387 = vpack.c.b16 %v1031, %v1027
    %v1388 = vpack.c.b16 %v1032, %v1028
    %v1389 = vpack.c.b16 %v1033, %v1029
    %v1390 = vpack.c.b16 %v1038, %v1034
    %v1391 = vpack.c.b16 %v1039, %v1035
    %v1392 = vpack.c.b16 %v1040, %v1036
    %v1393 = vpack.c.b16 %v1041, %v1037
    %v1394 = vpack.c.b16 %v1046, %v1042
    %v1395 = vpack.c.b16 %v1047, %v1043
    %v1396 = vpack.c.b16 %v1048, %v1044
    %v1397 = vpack.c.b16 %v1049, %v1045
    %v1398 = vpack.c.b16 %v1054, %v1050
    %v1399 = vpack.c.b16 %v1055, %v1051
    %v1400 = vpack.c.b16 %v1056, %v1052
    %v1401 = vpack.c.b16 %v1057, %v1053
    %v1402 = vpack.c.b16 %v1062, %v1058
    %v1403 = vpack.c.b16 %v1063, %v1059
    %v1404 = vpack.c.b16 %v1064, %v1060
    %v1405 = vpack.c.b16 %v1065, %v1061
    %v1406 = vpack.c.b16 %v1070, %v1066
    %v1407 = vpack.c.b16 %v1071, %v1067
    %v1408 = vpack.c.b16 %v1072, %v1068
    %v1409 = vpack.c.b16 %v1073, %v1069
    %v1410 = vpack.c.b16 %v1078, %v1074
    %v1411 = vpack.c.b16 %v1079, %v1075
    %v1412 = vpack.c.b16 %v1080, %v1076
    %v1413 = vpack.c.b16 %v1081, %v1077
    %v1414 = vpack.c.b16 %v1086, %v1082
    %v1415 = vpack.c.b16 %v1087, %v1083
    %v1416 = vpack.c.b16 %v1088, %v1084
    %v1417 = vpack.c.b16 %v1089, %v1085
    %v1418 = vpack.c.b16 %v1094, %v1090
    %v1419 = vpack.c.b16 %v1095, %v1091
    %v1420 = vpack.c.b16 %v1096, %v1092
    %v1421 = vpack.c.b16 %v1097, %v1093
    %v1422 = vpack.c.b16 %v1102, %v1098
    %v1423 = vpack.c.b16 %v1103, %v1099
    %v1424 = vpack.c.b16 %v1104, %v1100
    %v1425 = vpack.c.b16 %v1105, %v1101
    %v1426 = vpack.c.b16 %v1110, %v1106
    %v1427 = vpack.c.b16 %v1111, %v1107
    %v1428 = vpack.c.b16 %v1112, %v1108
    %v1429 = vpack.c.b16 %v1113, %v1109
    %v1430 = vpack.c.b16 %v1118, %v1114
    %v1431 = vpack.c.b16 %v1119, %v1115
    %v1432 = vpack.c.b16 %v1120, %v1116
    %v1433 = vpack.c.b16 %v1121, %v1117
    %v1434 = vpack.c.b16 %v1126, %v1122
    %v1435 = vpack.c.b16 %v1127, %v1123
    %v1436 = vpack.c.b16 %v1128, %v1124
    %v1437 = vpack.c.b16 %v1129, %v1125
    %v1438 = vpack.c.b16 %v1134, %v1130
    %v1439 = vpack.c.b16 %v1135, %v1131
    %v1440 = vpack.c.b16 %v1136, %v1132
    %v1441 = vpack.c.b16 %v1137, %v1133
    %v1442 = vpack.c.b16 %v1142, %v1138
    %v1443 = vpack.c.b16 %v1143, %v1139
    %v1444 = vpack.c.b16 %v1144, %v1140
    %v1445 = vpack.c.b16 %v1145, %v1141
    %v1446 = vpack.c.b16 %v1150, %v1146
    %v1447 = vpack.c.b16 %v1151, %v1147
    %v1448 = vpack.c.b16 %v1152, %v1148
    %v1449 = vpack.c.b16 %v1153, %v1149
    %v1450 = vpack.c.b16 %v1158, %v1154
    %v1451 = vpack.c.b16 %v1159, %v1155
    %v1452 = vpack.c.b16 %v1160, %v1156
    %v1453 = vpack.c.b16 %v1161, %v1157
    %v1454 = vpack.c.b16 %v1166, %v1162
    %v1455 = vpack.c.b16 %v1167, %v1163
    %v1456 = vpack.c.b16 %v1168, %v1164
    %v1457 = vpack.c.b16 %v1169, %v1165
    %v1458 = vpack.c.b16 %v1174, %v1170
    %v1459 = vpack.c.b16 %v1175, %v1171
    %v1460 = vpack.c.b16 %v1176, %v1172
    %v1461 = vpack.c.b16 %v1177, %v1173
    %v1462 = vpack.c.b16 %v1182, %v1178
    %v1463 = vpack.c.b16 %v1183, %v1179
    %v1464 = vpack.c.b16 %v1184, %v1180
    %v1465 = vpack.c.b16 %v1185, %v1181
    %v1466 = vpack.c.b16 %v1190, %v1186
    %v1467 = vpack.c.b16 %v1191, %v1187
    %v1468 = vpack.c.b16 %v1192, %v1188
    %v1469 = vpack.c.b16 %v1193, %v1189
    %v1470 = vpack.c.b16 %v1198, %v1194
    %v1471 = vpack.c.b16 %v1199, %v1195
    %v1472 = vpack.c.b16 %v1200, %v1196
    %v1473 = vpack.c.b16 %v1201, %v1197
    %v1474 = vpack.c.b16 %v1206, %v1202
    %v1475 = vpack.c.b16 %v1207, %v1203
    %v1476 = vpack.c.b16 %v1208, %v1204
    %v1477 = vpack.c.b16 %v1209, %v1205
    %v1478 = vpack.c.b16 %v1214, %v1210
    %v1479 = vpack.c.b16 %v1215, %v1211
    %v1480 = vpack.c.b16 %v1216, %v1212
    %v1481 = vpack.c.b16 %v1217, %v1213
    %v1482 = vpack.c.b16 %v1222, %v1218
    %v1483 = vpack.c.b16 %v1223, %v1219
    %v1484 = vpack.c.b16 %v1224, %v1220
    %v1485 = vpack.c.b16 %v1225, %v1221
    %v1486 = vpack.c.b16 %v1230, %v1226
    %v1487 = vpack.c.b16 %v1231, %v1227
    %v1488 = vpack.c.b16 %v1232, %v1228
    %v1489 = vpack.c.b16 %v1233, %v1229
    %1746 = vmatpush.bf16.msra.mxu0 %v1262
    %1747 = vmatpush.bf16.msra.mxu0 %v1258
    %1748 = vmatpush.bf16.msra.mxu0 %v1254
    %1749 = vmatpush.bf16.msra.mxu0 %v1250
    %1750 = vmatpush.bf16.msra.mxu0 %v1246
    %1751 = vmatpush.bf16.msra.mxu0 %v1242
    %1752 = vmatpush.bf16.msra.mxu0 %v1238
    %1753 = vmatpush.bf16.msra.mxu0 %v1234
    %1754 = vmatmul.bf16.gmra.mxu0 %v450
    %v1755 = vpop.f32.mrf.mxu0
    %v1756 = vadd.f32 %v440, %v1755
    %v1757 = vpop.f32.mrf.mxu0
    %1758 = vdwg.mxu0
    %1759 = vmatpush.bf16.msra.mxu0 %v1294
    %1760 = vmatpush.bf16.msra.mxu0 %v1290
    %1761 = vmatpush.bf16.msra.mxu0 %v1286
    %1762 = vmatpush.bf16.msra.mxu0 %v1282
    %1763 = vmatpush.bf16.msra.mxu0 %v1278
    %1764 = vmatpush.bf16.msra.mxu0 %v1274
    %1765 = vmatpush.bf16.msra.mxu0 %v1270
    %1766 = vmatpush.bf16.msra.mxu0 %v1266
    %1767 = vmatmul.bf16.gmra.mxu0 %v451
    %v1768 = vpop.f32.mrf.mxu0
    %v1769 = vadd.f32 %v1756, %v1768
    %v1770 = vpop.f32.mrf.mxu0
    %1771 = vdwg.mxu0
    %1772 = vmatpush.bf16.msra.mxu0 %v1326
    %1773 = vmatpush.bf16.msra.mxu0 %v1322
    %1774 = vmatpush.bf16.msra.mxu0 %v1318
    %1775 = vmatpush.bf16.msra.mxu0 %v1314
    %1776 = vmatpush.bf16.msra.mxu0 %v1310
    %1777 = vmatpush.bf16.msra.mxu0 %v1306
    %1778 = vmatpush.bf16.msra.mxu0 %v1302
    %1779 = vmatpush.bf16.msra.mxu0 %v1298
    %1780 = vmatmul.bf16.gmra.mxu0 %v452
    %v1781 = vpop.f32.mrf.mxu0
    %v1782 = vadd.f32 %v1769, %v1781
    %v1783 = vpop.f32.mrf.mxu0
    %1784 = vdwg.mxu0
    %1785 = vmatpush.bf16.msra.mxu0 %v1358
    %1786 = vmatpush.bf16.msra.mxu0 %v1354
    %1787 = vmatpush.bf16.msra.mxu0 %v1350
    %1788 = vmatpush.bf16.msra.mxu0 %v1346
    %1789 = vmatpush.bf16.msra.mxu0 %v1342
    %1790 = vmatpush.bf16.msra.mxu0 %v1338
    %1791 = vmatpush.bf16.msra.mxu0 %v1334
    %1792 = vmatpush.bf16.msra.mxu0 %v1330
    %1793 = vmatmul.bf16.gmra.mxu0 %v453
    %v1794 = vpop.f32.mrf.mxu0
    %v1795 = vadd.f32 %v1782, %v1794
    %v1796 = vpop.f32.mrf.mxu0
    %1797 = vdwg.mxu0
    %1798 = vmatpush.bf16.msra.mxu0 %v1390
    %1799 = vmatpush.bf16.msra.mxu0 %v1386
    %1800 = vmatpush.bf16.msra.mxu0 %v1382
    %1801 = vmatpush.bf16.msra.mxu0 %v1378
    %1802 = vmatpush.bf16.msra.mxu0 %v1374
    %1803 = vmatpush.bf16.msra.mxu0 %v1370
    %1804 = vmatpush.bf16.msra.mxu0 %v1366
    %1805 = vmatpush.bf16.msra.mxu0 %v1362
    %1806 = vmatmul.bf16.gmra.mxu0 %v454
    %v1807 = vpop.f32.mrf.mxu0
    %v1808 = vadd.f32 %v1795, %v1807
    %v1809 = vpop.f32.mrf.mxu0
    %1810 = vdwg.mxu0
    %1811 = vmatpush.bf16.msra.mxu0 %v1422
    %1812 = vmatpush.bf16.msra.mxu0 %v1418
    %1813 = vmatpush.bf16.msra.mxu0 %v1414
    %1814 = vmatpush.bf16.msra.mxu0 %v1410
    %1815 = vmatpush.bf16.msra.mxu0 %v1406
    %1816 = vmatpush.bf16.msra.mxu0 %v1402
    %1817 = vmatpush.bf16.msra.mxu0 %v1398
    %1818 = vmatpush.bf16.msra.mxu0 %v1394
    %1819 = vmatmul.bf16.gmra.mxu0 %v455
    %v1820 = vpop.f32.mrf.mxu0
    %v1821 = vadd.f32 %v1808, %v1820
    %v1822 = vpop.f32.mrf.mxu0
    %1823 = vdwg.mxu0
    %1824 = vmatpush.bf16.msra.mxu0 %v1454
    %1825 = vmatpush.bf16.msra.mxu0 %v1450
    %1826 = vmatpush.bf16.msra.mxu0 %v1446
    %1827 = vmatpush.bf16.msra.mxu0 %v1442
    %1828 = vmatpush.bf16.msra.mxu0 %v1438
    %1829 = vmatpush.bf16.msra.mxu0 %v1434
    %1830 = vmatpush.bf16.msra.mxu0 %v1430
    %1831 = vmatpush.bf16.msra.mxu0 %v1426
    %1832 = vmatmul.bf16.gmra.mxu0 %v456
    %v1833 = vpop.f32.mrf.mxu0
    %v1834 = vadd.f32 %v1821, %v1833
    %v1835 = vpop.f32.mrf.mxu0
    %1836 = vdwg.mxu0
    %1837 = vmatpush.bf16.msra.mxu0 %v1486
    %1838 = vmatpush.bf16.msra.mxu0 %v1482
    %1839 = vmatpush.bf16.msra.mxu0 %v1478
    %1840 = vmatpush.bf16.msra.mxu0 %v1474
    %1841 = vmatpush.bf16.msra.mxu0 %v1470
    %1842 = vmatpush.bf16.msra.mxu0 %v1466
    %1843 = vmatpush.bf16.msra.mxu0 %v1462
    %1844 = vmatpush.bf16.msra.mxu0 %v1458
    %1845 = vmatmul.bf16.gmra.mxu0 %v457
    %v1846 = vpop.f32.mrf.mxu0
    %v1847 = vadd.f32 %v1834, %v1846
    %v1848 = vpop.f32.mrf.mxu0
    %1849 = vdwg.mxu0
    %1850 = vmatpush.bf16.msra.mxu0 %v1263
    %1851 = vmatpush.bf16.msra.mxu0 %v1259
    %1852 = vmatpush.bf16.msra.mxu0 %v1255
    %1853 = vmatpush.bf16.msra.mxu0 %v1251
    %1854 = vmatpush.bf16.msra.mxu0 %v1247
    %1855 = vmatpush.bf16.msra.mxu0 %v1243
    %1856 = vmatpush.bf16.msra.mxu0 %v1239
    %1857 = vmatpush.bf16.msra.mxu0 %v1235
    %1858 = vmatmul.bf16.gmra.mxu0 %v450
    %v1859 = vpop.f32.mrf.mxu0
    %v1860 = vadd.f32 %v441, %v1859
    %v1861 = vpop.f32.mrf.mxu0
    %1862 = vdwg.mxu0
    %1863 = vmatpush.bf16.msra.mxu0 %v1295
    %1864 = vmatpush.bf16.msra.mxu0 %v1291
    %1865 = vmatpush.bf16.msra.mxu0 %v1287
    %1866 = vmatpush.bf16.msra.mxu0 %v1283
    %1867 = vmatpush.bf16.msra.mxu0 %v1279
    %1868 = vmatpush.bf16.msra.mxu0 %v1275
    %1869 = vmatpush.bf16.msra.mxu0 %v1271
    %1870 = vmatpush.bf16.msra.mxu0 %v1267
    %1871 = vmatmul.bf16.gmra.mxu0 %v451
    %v1872 = vpop.f32.mrf.mxu0
    %v1873 = vadd.f32 %v1860, %v1872
    %v1874 = vpop.f32.mrf.mxu0
    %1875 = vdwg.mxu0
    %1876 = vmatpush.bf16.msra.mxu0 %v1327
    %1877 = vmatpush.bf16.msra.mxu0 %v1323
    %1878 = vmatpush.bf16.msra.mxu0 %v1319
    %1879 = vmatpush.bf16.msra.mxu0 %v1315
    %1880 = vmatpush.bf16.msra.mxu0 %v1311
    %1881 = vmatpush.bf16.msra.mxu0 %v1307
    %1882 = vmatpush.bf16.msra.mxu0 %v1303
    %1883 = vmatpush.bf16.msra.mxu0 %v1299
    %1884 = vmatmul.bf16.gmra.mxu0 %v452
    %v1885 = vpop.f32.mrf.mxu0
    %v1886 = vadd.f32 %v1873, %v1885
    %v1887 = vpop.f32.mrf.mxu0
    %1888 = vdwg.mxu0
    %1889 = vmatpush.bf16.msra.mxu0 %v1359
    %1890 = vmatpush.bf16.msra.mxu0 %v1355
    %1891 = vmatpush.bf16.msra.mxu0 %v1351
    %1892 = vmatpush.bf16.msra.mxu0 %v1347
    %1893 = vmatpush.bf16.msra.mxu0 %v1343
    %1894 = vmatpush.bf16.msra.mxu0 %v1339
    %1895 = vmatpush.bf16.msra.mxu0 %v1335
    %1896 = vmatpush.bf16.msra.mxu0 %v1331
    %1897 = vmatmul.bf16.gmra.mxu0 %v453
    %v1898 = vpop.f32.mrf.mxu0
    %v1899 = vadd.f32 %v1886, %v1898
    %v1900 = vpop.f32.mrf.mxu0
    %1901 = vdwg.mxu0
    %1902 = vmatpush.bf16.msra.mxu0 %v1391
    %1903 = vmatpush.bf16.msra.mxu0 %v1387
    %1904 = vmatpush.bf16.msra.mxu0 %v1383
    %1905 = vmatpush.bf16.msra.mxu0 %v1379
    %1906 = vmatpush.bf16.msra.mxu0 %v1375
    %1907 = vmatpush.bf16.msra.mxu0 %v1371
    %1908 = vmatpush.bf16.msra.mxu0 %v1367
    %1909 = vmatpush.bf16.msra.mxu0 %v1363
    %1910 = vmatmul.bf16.gmra.mxu0 %v454
    %v1911 = vpop.f32.mrf.mxu0
    %v1912 = vadd.f32 %v1899, %v1911
    %v1913 = vpop.f32.mrf.mxu0
    %1914 = vdwg.mxu0
    %1915 = vmatpush.bf16.msra.mxu0 %v1423
    %1916 = vmatpush.bf16.msra.mxu0 %v1419
    %1917 = vmatpush.bf16.msra.mxu0 %v1415
    %1918 = vmatpush.bf16.msra.mxu0 %v1411
    %1919 = vmatpush.bf16.msra.mxu0 %v1407
    %1920 = vmatpush.bf16.msra.mxu0 %v1403
    %1921 = vmatpush.bf16.msra.mxu0 %v1399
    %1922 = vmatpush.bf16.msra.mxu0 %v1395
    %1923 = vmatmul.bf16.gmra.mxu0 %v455
    %v1924 = vpop.f32.mrf.mxu0
    %v1925 = vadd.f32 %v1912, %v1924
    %v1926 = vpop.f32.mrf.mxu0
    %1927 = vdwg.mxu0
    %1928 = vmatpush.bf16.msra.mxu0 %v1455
    %1929 = vmatpush.bf16.msra.mxu0 %v1451
    %1930 = vmatpush.bf16.msra.mxu0 %v1447
    %1931 = vmatpush.bf16.msra.mxu0 %v1443
    %1932 = vmatpush.bf16.msra.mxu0 %v1439
    %1933 = vmatpush.bf16.msra.mxu0 %v1435
    %1934 = vmatpush.bf16.msra.mxu0 %v1431
    %1935 = vmatpush.bf16.msra.mxu0 %v1427
    %1936 = vmatmul.bf16.gmra.mxu0 %v456
    %v1937 = vpop.f32.mrf.mxu0
    %v1938 = vadd.f32 %v1925, %v1937
    %v1939 = vpop.f32.mrf.mxu0
    %1940 = vdwg.mxu0
    %1941 = vmatpush.bf16.msra.mxu0 %v1487
    %1942 = vmatpush.bf16.msra.mxu0 %v1483
    %1943 = vmatpush.bf16.msra.mxu0 %v1479
    %1944 = vmatpush.bf16.msra.mxu0 %v1475
    %1945 = vmatpush.bf16.msra.mxu0 %v1471
    %1946 = vmatpush.bf16.msra.mxu0 %v1467
    %1947 = vmatpush.bf16.msra.mxu0 %v1463
    %1948 = vmatpush.bf16.msra.mxu0 %v1459
    %1949 = vmatmul.bf16.gmra.mxu0 %v457
    %v1950 = vpop.f32.mrf.mxu0
    %v1951 = vadd.f32 %v1938, %v1950
    %v1952 = vpop.f32.mrf.mxu0
    %1953 = vdwg.mxu0
    %1954 = vmatpush.bf16.msra.mxu0 %v1264
    %1955 = vmatpush.bf16.msra.mxu0 %v1260
    %1956 = vmatpush.bf16.msra.mxu0 %v1256
    %1957 = vmatpush.bf16.msra.mxu0 %v1252
    %1958 = vmatpush.bf16.msra.mxu0 %v1248
    %1959 = vmatpush.bf16.msra.mxu0 %v1244
    %1960 = vmatpush.bf16.msra.mxu0 %v1240
    %1961 = vmatpush.bf16.msra.mxu0 %v1236
    %1962 = vmatmul.bf16.gmra.mxu0 %v450
    %v1963 = vpop.f32.mrf.mxu0
    %v1964 = vadd.f32 %v442, %v1963
    %v1965 = vpop.f32.mrf.mxu0
    %1966 = vdwg.mxu0
    %1967 = vmatpush.bf16.msra.mxu0 %v1296
    %1968 = vmatpush.bf16.msra.mxu0 %v1292
    %1969 = vmatpush.bf16.msra.mxu0 %v1288
    %1970 = vmatpush.bf16.msra.mxu0 %v1284
    %1971 = vmatpush.bf16.msra.mxu0 %v1280
    %1972 = vmatpush.bf16.msra.mxu0 %v1276
    %1973 = vmatpush.bf16.msra.mxu0 %v1272
    %1974 = vmatpush.bf16.msra.mxu0 %v1268
    %1975 = vmatmul.bf16.gmra.mxu0 %v451
    %v1976 = vpop.f32.mrf.mxu0
    %v1977 = vadd.f32 %v1964, %v1976
    %v1978 = vpop.f32.mrf.mxu0
    %1979 = vdwg.mxu0
    %1980 = vmatpush.bf16.msra.mxu0 %v1328
    %1981 = vmatpush.bf16.msra.mxu0 %v1324
    %1982 = vmatpush.bf16.msra.mxu0 %v1320
    %1983 = vmatpush.bf16.msra.mxu0 %v1316
    %1984 = vmatpush.bf16.msra.mxu0 %v1312
    %1985 = vmatpush.bf16.msra.mxu0 %v1308
    %1986 = vmatpush.bf16.msra.mxu0 %v1304
    %1987 = vmatpush.bf16.msra.mxu0 %v1300
    %1988 = vmatmul.bf16.gmra.mxu0 %v452
    %v1989 = vpop.f32.mrf.mxu0
    %v1990 = vadd.f32 %v1977, %v1989
    %v1991 = vpop.f32.mrf.mxu0
    %1992 = vdwg.mxu0
    %1993 = vmatpush.bf16.msra.mxu0 %v1360
    %1994 = vmatpush.bf16.msra.mxu0 %v1356
    %1995 = vmatpush.bf16.msra.mxu0 %v1352
    %1996 = vmatpush.bf16.msra.mxu0 %v1348
    %1997 = vmatpush.bf16.msra.mxu0 %v1344
    %1998 = vmatpush.bf16.msra.mxu0 %v1340
    %1999 = vmatpush.bf16.msra.mxu0 %v1336
    %2000 = vmatpush.bf16.msra.mxu0 %v1332
    %2001 = vmatmul.bf16.gmra.mxu0 %v453
    %v2002 = vpop.f32.mrf.mxu0
    %v2003 = vadd.f32 %v1990, %v2002
    %v2004 = vpop.f32.mrf.mxu0
    %2005 = vdwg.mxu0
    %2006 = vmatpush.bf16.msra.mxu0 %v1392
    %2007 = vmatpush.bf16.msra.mxu0 %v1388
    %2008 = vmatpush.bf16.msra.mxu0 %v1384
    %2009 = vmatpush.bf16.msra.mxu0 %v1380
    %2010 = vmatpush.bf16.msra.mxu0 %v1376
    %2011 = vmatpush.bf16.msra.mxu0 %v1372
    %2012 = vmatpush.bf16.msra.mxu0 %v1368
    %2013 = vmatpush.bf16.msra.mxu0 %v1364
    %2014 = vmatmul.bf16.gmra.mxu0 %v454
    %v2015 = vpop.f32.mrf.mxu0
    %v2016 = vadd.f32 %v2003, %v2015
    %v2017 = vpop.f32.mrf.mxu0
    %2018 = vdwg.mxu0
    %2019 = vmatpush.bf16.msra.mxu0 %v1424
    %2020 = vmatpush.bf16.msra.mxu0 %v1420
    %2021 = vmatpush.bf16.msra.mxu0 %v1416
    %2022 = vmatpush.bf16.msra.mxu0 %v1412
    %2023 = vmatpush.bf16.msra.mxu0 %v1408
    %2024 = vmatpush.bf16.msra.mxu0 %v1404
    %2025 = vmatpush.bf16.msra.mxu0 %v1400
    %2026 = vmatpush.bf16.msra.mxu0 %v1396
    %2027 = vmatmul.bf16.gmra.mxu0 %v455
    %v2028 = vpop.f32.mrf.mxu0
    %v2029 = vadd.f32 %v2016, %v2028
    %v2030 = vpop.f32.mrf.mxu0
    %2031 = vdwg.mxu0
    %2032 = vmatpush.bf16.msra.mxu0 %v1456
    %2033 = vmatpush.bf16.msra.mxu0 %v1452
    %2034 = vmatpush.bf16.msra.mxu0 %v1448
    %2035 = vmatpush.bf16.msra.mxu0 %v1444
    %2036 = vmatpush.bf16.msra.mxu0 %v1440
    %2037 = vmatpush.bf16.msra.mxu0 %v1436
    %2038 = vmatpush.bf16.msra.mxu0 %v1432
    %2039 = vmatpush.bf16.msra.mxu0 %v1428
    %2040 = vmatmul.bf16.gmra.mxu0 %v456
    %v2041 = vpop.f32.mrf.mxu0
    %v2042 = vadd.f32 %v2029, %v2041
    %v2043 = vpop.f32.mrf.mxu0
    %2044 = vdwg.mxu0
    %2045 = vmatpush.bf16.msra.mxu0 %v1488
    %2046 = vmatpush.bf16.msra.mxu0 %v1484
    %2047 = vmatpush.bf16.msra.mxu0 %v1480
    %2048 = vmatpush.bf16.msra.mxu0 %v1476
    %2049 = vmatpush.bf16.msra.mxu0 %v1472
    %2050 = vmatpush.bf16.msra.mxu0 %v1468
    %2051 = vmatpush.bf16.msra.mxu0 %v1464
    %2052 = vmatpush.bf16.msra.mxu0 %v1460
    %2053 = vmatmul.bf16.gmra.mxu0 %v457
    %v2054 = vpop.f32.mrf.mxu0
    %v2055 = vadd.f32 %v2042, %v2054
    %v2056 = vpop.f32.mrf.mxu0
    %2057 = vdwg.mxu0
    %2058 = vmatpush.bf16.msra.mxu0 %v1265
    %2059 = vmatpush.bf16.msra.mxu0 %v1261
    %2060 = vmatpush.bf16.msra.mxu0 %v1257
    %2061 = vmatpush.bf16.msra.mxu0 %v1253
    %2062 = vmatpush.bf16.msra.mxu0 %v1249
    %2063 = vmatpush.bf16.msra.mxu0 %v1245
    %2064 = vmatpush.bf16.msra.mxu0 %v1241
    %2065 = vmatpush.bf16.msra.mxu0 %v1237
    %2066 = vmatmul.bf16.gmra.mxu0 %v450
    %v2067 = vpop.f32.mrf.mxu0
    %v2068 = vadd.f32 %v443, %v2067
    %v2069 = vpop.f32.mrf.mxu0
    %2070 = vdwg.mxu0
    %2071 = vmatpush.bf16.msra.mxu0 %v1297
    %2072 = vmatpush.bf16.msra.mxu0 %v1293
    %2073 = vmatpush.bf16.msra.mxu0 %v1289
    %2074 = vmatpush.bf16.msra.mxu0 %v1285
    %2075 = vmatpush.bf16.msra.mxu0 %v1281
    %2076 = vmatpush.bf16.msra.mxu0 %v1277
    %2077 = vmatpush.bf16.msra.mxu0 %v1273
    %2078 = vmatpush.bf16.msra.mxu0 %v1269
    %2079 = vmatmul.bf16.gmra.mxu0 %v451
    %v2080 = vpop.f32.mrf.mxu0
    %v2081 = vadd.f32 %v2068, %v2080
    %v2082 = vpop.f32.mrf.mxu0
    %2083 = vdwg.mxu0
    %2084 = vmatpush.bf16.msra.mxu0 %v1329
    %2085 = vmatpush.bf16.msra.mxu0 %v1325
    %2086 = vmatpush.bf16.msra.mxu0 %v1321
    %2087 = vmatpush.bf16.msra.mxu0 %v1317
    %2088 = vmatpush.bf16.msra.mxu0 %v1313
    %2089 = vmatpush.bf16.msra.mxu0 %v1309
    %2090 = vmatpush.bf16.msra.mxu0 %v1305
    %2091 = vmatpush.bf16.msra.mxu0 %v1301
    %2092 = vmatmul.bf16.gmra.mxu0 %v452
    %v2093 = vpop.f32.mrf.mxu0
    %v2094 = vadd.f32 %v2081, %v2093
    %v2095 = vpop.f32.mrf.mxu0
    %2096 = vdwg.mxu0
    %2097 = vmatpush.bf16.msra.mxu0 %v1361
    %2098 = vmatpush.bf16.msra.mxu0 %v1357
    %2099 = vmatpush.bf16.msra.mxu0 %v1353
    %2100 = vmatpush.bf16.msra.mxu0 %v1349
    %2101 = vmatpush.bf16.msra.mxu0 %v1345
    %2102 = vmatpush.bf16.msra.mxu0 %v1341
    %2103 = vmatpush.bf16.msra.mxu0 %v1337
    %2104 = vmatpush.bf16.msra.mxu0 %v1333
    %2105 = vmatmul.bf16.gmra.mxu0 %v453
    %v2106 = vpop.f32.mrf.mxu0
    %v2107 = vadd.f32 %v2094, %v2106
    %v2108 = vpop.f32.mrf.mxu0
    %2109 = vdwg.mxu0
    %2110 = vmatpush.bf16.msra.mxu0 %v1393
    %2111 = vmatpush.bf16.msra.mxu0 %v1389
    %2112 = vmatpush.bf16.msra.mxu0 %v1385
    %2113 = vmatpush.bf16.msra.mxu0 %v1381
    %2114 = vmatpush.bf16.msra.mxu0 %v1377
    %2115 = vmatpush.bf16.msra.mxu0 %v1373
    %2116 = vmatpush.bf16.msra.mxu0 %v1369
    %2117 = vmatpush.bf16.msra.mxu0 %v1365
    %2118 = vmatmul.bf16.gmra.mxu0 %v454
    %v2119 = vpop.f32.mrf.mxu0
    %v2120 = vadd.f32 %v2107, %v2119
    %v2121 = vpop.f32.mrf.mxu0
    %2122 = vdwg.mxu0
    %2123 = vmatpush.bf16.msra.mxu0 %v1425
    %2124 = vmatpush.bf16.msra.mxu0 %v1421
    %2125 = vmatpush.bf16.msra.mxu0 %v1417
    %2126 = vmatpush.bf16.msra.mxu0 %v1413
    %2127 = vmatpush.bf16.msra.mxu0 %v1409
    %2128 = vmatpush.bf16.msra.mxu0 %v1405
    %2129 = vmatpush.bf16.msra.mxu0 %v1401
    %2130 = vmatpush.bf16.msra.mxu0 %v1397
    %2131 = vmatmul.bf16.gmra.mxu0 %v455
    %v2132 = vpop.f32.mrf.mxu0
    %v2133 = vadd.f32 %v2120, %v2132
    %v2134 = vpop.f32.mrf.mxu0
    %2135 = vdwg.mxu0
    %2136 = vmatpush.bf16.msra.mxu0 %v1457
    %2137 = vmatpush.bf16.msra.mxu0 %v1453
    %2138 = vmatpush.bf16.msra.mxu0 %v1449
    %2139 = vmatpush.bf16.msra.mxu0 %v1445
    %2140 = vmatpush.bf16.msra.mxu0 %v1441
    %2141 = vmatpush.bf16.msra.mxu0 %v1437
    %2142 = vmatpush.bf16.msra.mxu0 %v1433
    %2143 = vmatpush.bf16.msra.mxu0 %v1429
    %2144 = vmatmul.bf16.gmra.mxu0 %v456
    %v2145 = vpop.f32.mrf.mxu0
    %v2146 = vadd.f32 %v2133, %v2145
    %v2147 = vpop.f32.mrf.mxu0
    %2148 = vdwg.mxu0
    %2149 = vmatpush.bf16.msra.mxu0 %v1489
    %2150 = vmatpush.bf16.msra.mxu0 %v1485
    %2151 = vmatpush.bf16.msra.mxu0 %v1481
    %2152 = vmatpush.bf16.msra.mxu0 %v1477
    %2153 = vmatpush.bf16.msra.mxu0 %v1473
    %2154 = vmatpush.bf16.msra.mxu0 %v1469
    %2155 = vmatpush.bf16.msra.mxu0 %v1465
    %2156 = vmatpush.bf16.msra.mxu0 %v1461
    %2157 = vmatmul.bf16.gmra.mxu0 %v457
    %v2158 = vpop.f32.mrf.mxu0
    %v2159 = vadd.f32 %v2146, %v2158
    %v2160 = vpop.f32.mrf.mxu0
    %2161 = vdwg.mxu0
    %v2162 = vmax.f32 %v1847, 0.0
    %v2163 = vmax.f32 %v1951, 0.0
    %v2164 = vmax.f32 %v2055, 0.0
    %v2165 = vmax.f32 %v2159, 0.0
    %v2166 = vld [vmem:[#allocation7] sm:$0xf]
    %v2168 = vperm.slane %v2166, 0
    %v2169 = vperm.slane %v2166, 1
    %v2170 = vperm.slane %v2166, 2
    %v2171 = vperm.slane %v2166, 3
    %v2176 = vmul.f32 %v2162, %v2168
    %v2177 = vmul.f32 %v2163, %v2169
    %v2178 = vmul.f32 %v2164, %v2170
    %v2179 = vmul.f32 %v2165, %v2171
    %v2180 = vld [vmem:[#allocation8] sm:$0xf]
    %v2182 = vperm.slane %v2180, 0
    %v2183 = vperm.slane %v2180, 1
    %v2184 = vperm.slane %v2180, 2
    %v2185 = vperm.slane %v2180, 3
    %v2190 = vadd.f32 %v2176, %v2182
    %v2191 = vadd.f32 %v2177, %v2183
    %v2192 = vadd.f32 %v2178, %v2184
    %v2193 = vadd.f32 %v2179, %v2185
    %v2194 = vpack.c.bf16 %v2190, %v2190
    %v2195 = vpack.c.bf16 %v2191, %v2191
    %v2196 = vpack.c.bf16 %v2192, %v2192
    %v2197 = vpack.c.bf16 %v2193, %v2193
    %v2198 = vld [vmem:[#allocation10] sm:$0xff]
    %v2199 = vld [vmem:[#allocation10 + $0x8] sm:$0xff]
    %v2200 = vld [vmem:[#allocation10 + $0x10] sm:$0xff]
    %v2201 = vld [vmem:[#allocation10 + $0x18] sm:$0xff]
    %v2202 = vld [vmem:[#allocation10 + $0x20] sm:$0xff]
    %v2203 = vld [vmem:[#allocation10 + $0x28] sm:$0xff]
    %v2204 = vld [vmem:[#allocation10 + $0x30] sm:$0xff]
    %v2205 = vld [vmem:[#allocation10 + $0x38] sm:$0xff]
    %v2206 = vld [vmem:[#allocation10 + $0x40] sm:$0xff]
    %v2207 = vld [vmem:[#allocation10 + $0x48] sm:$0xff]
    %v2208 = vld [vmem:[#allocation10 + $0x50] sm:$0xff]
    %v2209 = vld [vmem:[#allocation10 + $0x58] sm:$0xff]
    %v2210 = vld [vmem:[#allocation10 + $0x60] sm:$0xff]
    %v2211 = vld [vmem:[#allocation10 + $0x68] sm:$0xff]
    %v2212 = vld [vmem:[#allocation10 + $0x70] sm:$0xff]
    %v2213 = vld [vmem:[#allocation10 + $0x78] sm:$0xff]
    %v2214 = vld [vmem:[#allocation10 + $0x80] sm:$0xff]
    %v2215 = vld [vmem:[#allocation10 + $0x88] sm:$0xff]
    %v2216 = vld [vmem:[#allocation10 + $0x90] sm:$0xff]
    %v2217 = vld [vmem:[#allocation10 + $0x98] sm:$0xff]
    %v2218 = vld [vmem:[#allocation10 + $0xa0] sm:$0xff]
    %v2219 = vld [vmem:[#allocation10 + $0xa8] sm:$0xff]
    %v2220 = vld [vmem:[#allocation10 + $0xb0] sm:$0xff]
    %v2221 = vld [vmem:[#allocation10 + $0xb8] sm:$0xff]
    %v2222 = vld [vmem:[#allocation10 + $0xc0] sm:$0xff]
    %v2223 = vld [vmem:[#allocation10 + $0xc8] sm:$0xff]
    %v2224 = vld [vmem:[#allocation10 + $0xd0] sm:$0xff]
    %v2225 = vld [vmem:[#allocation10 + $0xd8] sm:$0xff]
    %v2226 = vld [vmem:[#allocation10 + $0xe0] sm:$0xff]
    %v2227 = vld [vmem:[#allocation10 + $0xe8] sm:$0xff]
    %v2228 = vld [vmem:[#allocation10 + $0xf0] sm:$0xff]
    %v2229 = vld [vmem:[#allocation10 + $0xf8] sm:$0xff]
    %v2230 = vld [vmem:[#allocation10 + $0x100] sm:$0xff]
    %v2231 = vld [vmem:[#allocation10 + $0x108] sm:$0xff]
    %v2232 = vld [vmem:[#allocation10 + $0x110] sm:$0xff]
    %v2233 = vld [vmem:[#allocation10 + $0x118] sm:$0xff]
    %v2234 = vld [vmem:[#allocation10 + $0x120] sm:$0xff]
    %v2235 = vld [vmem:[#allocation10 + $0x128] sm:$0xff]
    %v2236 = vld [vmem:[#allocation10 + $0x130] sm:$0xff]
    %v2237 = vld [vmem:[#allocation10 + $0x138] sm:$0xff]
    %v2238 = vld [vmem:[#allocation10 + $0x140] sm:$0xff]
    %v2239 = vld [vmem:[#allocation10 + $0x148] sm:$0xff]
    %v2240 = vld [vmem:[#allocation10 + $0x150] sm:$0xff]
    %v2241 = vld [vmem:[#allocation10 + $0x158] sm:$0xff]
    %v2242 = vld [vmem:[#allocation10 + $0x160] sm:$0xff]
    %v2243 = vld [vmem:[#allocation10 + $0x168] sm:$0xff]
    %v2244 = vld [vmem:[#allocation10 + $0x170] sm:$0xff]
    %v2245 = vld [vmem:[#allocation10 + $0x178] sm:$0xff]
    %v2246 = vld [vmem:[#allocation10 + $0x180] sm:$0xff]
    %v2247 = vld [vmem:[#allocation10 + $0x188] sm:$0xff]
    %v2248 = vld [vmem:[#allocation10 + $0x190] sm:$0xff]
    %v2249 = vld [vmem:[#allocation10 + $0x198] sm:$0xff]
    %v2250 = vld [vmem:[#allocation10 + $0x1a0] sm:$0xff]
    %v2251 = vld [vmem:[#allocation10 + $0x1a8] sm:$0xff]
    %v2252 = vld [vmem:[#allocation10 + $0x1b0] sm:$0xff]
    %v2253 = vld [vmem:[#allocation10 + $0x1b8] sm:$0xff]
    %v2254 = vld [vmem:[#allocation10 + $0x1c0] sm:$0xff]
    %v2255 = vld [vmem:[#allocation10 + $0x1c8] sm:$0xff]
    %v2256 = vld [vmem:[#allocation10 + $0x1d0] sm:$0xff]
    %v2257 = vld [vmem:[#allocation10 + $0x1d8] sm:$0xff]
    %v2258 = vld [vmem:[#allocation10 + $0x1e0] sm:$0xff]
    %v2259 = vld [vmem:[#allocation10 + $0x1e8] sm:$0xff]
    %v2260 = vld [vmem:[#allocation10 + $0x1f0] sm:$0xff]
    %v2261 = vld [vmem:[#allocation10 + $0x1f8] sm:$0xff]
    %v2262 = vld [vmem:[#allocation11] sm:$0x3]
    %v2264 = vperm.slane %v2262, 0
    %v2265 = vperm.slane %v2262, 1
    %v2332 = vunpack.c.l.b16 %v2198
    %v2333 = vunpack.c.h.b16 %v2198
    %v2334 = vunpack.c.l.b16 %v2199
    %v2335 = vunpack.c.h.b16 %v2199
    %v2336 = vunpack.c.l.b16 %v2200
    %v2337 = vunpack.c.h.b16 %v2200
    %v2338 = vunpack.c.l.b16 %v2201
    %v2339 = vunpack.c.h.b16 %v2201
    %v2340 = vunpack.c.l.b16 %v2202
    %v2341 = vunpack.c.h.b16 %v2202
    %v2342 = vunpack.c.l.b16 %v2203
    %v2343 = vunpack.c.h.b16 %v2203
    %v2344 = vunpack.c.l.b16 %v2204
    %v2345 = vunpack.c.h.b16 %v2204
    %v2346 = vunpack.c.l.b16 %v2205
    %v2347 = vunpack.c.h.b16 %v2205
    %v2348 = vunpack.c.l.b16 %v2206
    %v2349 = vunpack.c.h.b16 %v2206
    %v2350 = vunpack.c.l.b16 %v2207
    %v2351 = vunpack.c.h.b16 %v2207
    %v2352 = vunpack.c.l.b16 %v2208
    %v2353 = vunpack.c.h.b16 %v2208
    %v2354 = vunpack.c.l.b16 %v2209
    %v2355 = vunpack.c.h.b16 %v2209
    %v2356 = vunpack.c.l.b16 %v2210
    %v2357 = vunpack.c.h.b16 %v2210
    %v2358 = vunpack.c.l.b16 %v2211
    %v2359 = vunpack.c.h.b16 %v2211
    %v2360 = vunpack.c.l.b16 %v2212
    %v2361 = vunpack.c.h.b16 %v2212
    %v2362 = vunpack.c.l.b16 %v2213
    %v2363 = vunpack.c.h.b16 %v2213
    %v2364 = vunpack.c.l.b16 %v2214
    %v2365 = vunpack.c.h.b16 %v2214
    %v2366 = vunpack.c.l.b16 %v2215
    %v2367 = vunpack.c.h.b16 %v2215
    %v2368 = vunpack.c.l.b16 %v2216
    %v2369 = vunpack.c.h.b16 %v2216
    %v2370 = vunpack.c.l.b16 %v2217
    %v2371 = vunpack.c.h.b16 %v2217
    %v2372 = vunpack.c.l.b16 %v2218
    %v2373 = vunpack.c.h.b16 %v2218
    %v2374 = vunpack.c.l.b16 %v2219
    %v2375 = vunpack.c.h.b16 %v2219
    %v2376 = vunpack.c.l.b16 %v2220
    %v2377 = vunpack.c.h.b16 %v2220
    %v2378 = vunpack.c.l.b16 %v2221
    %v2379 = vunpack.c.h.b16 %v2221
    %v2380 = vunpack.c.l.b16 %v2222
    %v2381 = vunpack.c.h.b16 %v2222
    %v2382 = vunpack.c.l.b16 %v2223
    %v2383 = vunpack.c.h.b16 %v2223
    %v2384 = vunpack.c.l.b16 %v2224
    %v2385 = vunpack.c.h.b16 %v2224
    %v2386 = vunpack.c.l.b16 %v2225
    %v2387 = vunpack.c.h.b16 %v2225
    %v2388 = vunpack.c.l.b16 %v2226
    %v2389 = vunpack.c.h.b16 %v2226
    %v2390 = vunpack.c.l.b16 %v2227
    %v2391 = vunpack.c.h.b16 %v2227
    %v2392 = vunpack.c.l.b16 %v2228
    %v2393 = vunpack.c.h.b16 %v2228
    %v2394 = vunpack.c.l.b16 %v2229
    %v2395 = vunpack.c.h.b16 %v2229
    %v2396 = vunpack.c.l.b16 %v2230
    %v2397 = vunpack.c.h.b16 %v2230
    %v2398 = vunpack.c.l.b16 %v2231
    %v2399 = vunpack.c.h.b16 %v2231
    %v2400 = vunpack.c.l.b16 %v2232
    %v2401 = vunpack.c.h.b16 %v2232
    %v2402 = vunpack.c.l.b16 %v2233
    %v2403 = vunpack.c.h.b16 %v2233
    %v2404 = vunpack.c.l.b16 %v2234
    %v2405 = vunpack.c.h.b16 %v2234
    %v2406 = vunpack.c.l.b16 %v2235
    %v2407 = vunpack.c.h.b16 %v2235
    %v2408 = vunpack.c.l.b16 %v2236
    %v2409 = vunpack.c.h.b16 %v2236
    %v2410 = vunpack.c.l.b16 %v2237
    %v2411 = vunpack.c.h.b16 %v2237
    %v2412 = vunpack.c.l.b16 %v2238
    %v2413 = vunpack.c.h.b16 %v2238
    %v2414 = vunpack.c.l.b16 %v2239
    %v2415 = vunpack.c.h.b16 %v2239
    %v2416 = vunpack.c.l.b16 %v2240
    %v2417 = vunpack.c.h.b16 %v2240
    %v2418 = vunpack.c.l.b16 %v2241
    %v2419 = vunpack.c.h.b16 %v2241
    %v2420 = vunpack.c.l.b16 %v2242
    %v2421 = vunpack.c.h.b16 %v2242
    %v2422 = vunpack.c.l.b16 %v2243
    %v2423 = vunpack.c.h.b16 %v2243
    %v2424 = vunpack.c.l.b16 %v2244
    %v2425 = vunpack.c.h.b16 %v2244
    %v2426 = vunpack.c.l.b16 %v2245
    %v2427 = vunpack.c.h.b16 %v2245
    %v2428 = vunpack.c.l.b16 %v2246
    %v2429 = vunpack.c.h.b16 %v2246
    %v2430 = vunpack.c.l.b16 %v2247
    %v2431 = vunpack.c.h.b16 %v2247
    %v2432 = vunpack.c.l.b16 %v2248
    %v2433 = vunpack.c.h.b16 %v2248
    %v2434 = vunpack.c.l.b16 %v2249
    %v2435 = vunpack.c.h.b16 %v2249
    %v2436 = vunpack.c.l.b16 %v2250
    %v2437 = vunpack.c.h.b16 %v2250
    %v2438 = vunpack.c.l.b16 %v2251
    %v2439 = vunpack.c.h.b16 %v2251
    %v2440 = vunpack.c.l.b16 %v2252
    %v2441 = vunpack.c.h.b16 %v2252
    %v2442 = vunpack.c.l.b16 %v2253
    %v2443 = vunpack.c.h.b16 %v2253
    %v2444 = vunpack.c.l.b16 %v2254
    %v2445 = vunpack.c.h.b16 %v2254
    %v2446 = vunpack.c.l.b16 %v2255
    %v2447 = vunpack.c.h.b16 %v2255
    %v2448 = vunpack.c.l.b16 %v2256
    %v2449 = vunpack.c.h.b16 %v2256
    %v2450 = vunpack.c.l.b16 %v2257
    %v2451 = vunpack.c.h.b16 %v2257
    %v2452 = vunpack.c.l.b16 %v2258
    %v2453 = vunpack.c.h.b16 %v2258
    %v2454 = vunpack.c.l.b16 %v2259
    %v2455 = vunpack.c.h.b16 %v2259
    %v2456 = vunpack.c.l.b16 %v2260
    %v2457 = vunpack.c.h.b16 %v2260
    %v2458 = vunpack.c.l.b16 %v2261
    %v2459 = vunpack.c.h.b16 %v2261
    %v2460 = vpack.c.b16 %v2334, %v2332
    %v2461 = vpack.c.b16 %v2335, %v2333
    %v2462 = vpack.c.b16 %v2338, %v2336
    %v2463 = vpack.c.b16 %v2339, %v2337
    %v2464 = vpack.c.b16 %v2342, %v2340
    %v2465 = vpack.c.b16 %v2343, %v2341
    %v2466 = vpack.c.b16 %v2346, %v2344
    %v2467 = vpack.c.b16 %v2347, %v2345
    %v2468 = vpack.c.b16 %v2350, %v2348
    %v2469 = vpack.c.b16 %v2351, %v2349
    %v2470 = vpack.c.b16 %v2354, %v2352
    %v2471 = vpack.c.b16 %v2355, %v2353
    %v2472 = vpack.c.b16 %v2358, %v2356
    %v2473 = vpack.c.b16 %v2359, %v2357
    %v2474 = vpack.c.b16 %v2362, %v2360
    %v2475 = vpack.c.b16 %v2363, %v2361
    %v2476 = vpack.c.b16 %v2366, %v2364
    %v2477 = vpack.c.b16 %v2367, %v2365
    %v2478 = vpack.c.b16 %v2370, %v2368
    %v2479 = vpack.c.b16 %v2371, %v2369
    %v2480 = vpack.c.b16 %v2374, %v2372
    %v2481 = vpack.c.b16 %v2375, %v2373
    %v2482 = vpack.c.b16 %v2378, %v2376
    %v2483 = vpack.c.b16 %v2379, %v2377
    %v2484 = vpack.c.b16 %v2382, %v2380
    %v2485 = vpack.c.b16 %v2383, %v2381
    %v2486 = vpack.c.b16 %v2386, %v2384
    %v2487 = vpack.c.b16 %v2387, %v2385
    %v2488 = vpack.c.b16 %v2390, %v2388
    %v2489 = vpack.c.b16 %v2391, %v2389
    %v2490 = vpack.c.b16 %v2394, %v2392
    %v2491 = vpack.c.b16 %v2395, %v2393
    %v2492 = vpack.c.b16 %v2398, %v2396
    %v2493 = vpack.c.b16 %v2399, %v2397
    %v2494 = vpack.c.b16 %v2402, %v2400
    %v2495 = vpack.c.b16 %v2403, %v2401
    %v2496 = vpack.c.b16 %v2406, %v2404
    %v2497 = vpack.c.b16 %v2407, %v2405
    %v2498 = vpack.c.b16 %v2410, %v2408
    %v2499 = vpack.c.b16 %v2411, %v2409
    %v2500 = vpack.c.b16 %v2414, %v2412
    %v2501 = vpack.c.b16 %v2415, %v2413
    %v2502 = vpack.c.b16 %v2418, %v2416
    %v2503 = vpack.c.b16 %v2419, %v2417
    %v2504 = vpack.c.b16 %v2422, %v2420
    %v2505 = vpack.c.b16 %v2423, %v2421
    %v2506 = vpack.c.b16 %v2426, %v2424
    %v2507 = vpack.c.b16 %v2427, %v2425
    %v2508 = vpack.c.b16 %v2430, %v2428
    %v2509 = vpack.c.b16 %v2431, %v2429
    %v2510 = vpack.c.b16 %v2434, %v2432
    %v2511 = vpack.c.b16 %v2435, %v2433
    %v2512 = vpack.c.b16 %v2438, %v2436
    %v2513 = vpack.c.b16 %v2439, %v2437
    %v2514 = vpack.c.b16 %v2442, %v2440
    %v2515 = vpack.c.b16 %v2443, %v2441
    %v2516 = vpack.c.b16 %v2446, %v2444
    %v2517 = vpack.c.b16 %v2447, %v2445
    %v2518 = vpack.c.b16 %v2450, %v2448
    %v2519 = vpack.c.b16 %v2451, %v2449
    %v2520 = vpack.c.b16 %v2454, %v2452
    %v2521 = vpack.c.b16 %v2455, %v2453
    %v2522 = vpack.c.b16 %v2458, %v2456
    %v2523 = vpack.c.b16 %v2459, %v2457
    %2588 = vmatpush.bf16.msra.mxu0 %v2474
    %2589 = vmatpush.bf16.msra.mxu0 %v2472
    %2590 = vmatpush.bf16.msra.mxu0 %v2470
    %2591 = vmatpush.bf16.msra.mxu0 %v2468
    %2592 = vmatpush.bf16.msra.mxu0 %v2466
    %2593 = vmatpush.bf16.msra.mxu0 %v2464
    %2594 = vmatpush.bf16.msra.mxu0 %v2462
    %2595 = vmatpush.bf16.msra.mxu0 %v2460
    %2596 = vmatmul.bf16.gmra.mxu0 %v2194
    %v2597 = vpop.f32.mrf.mxu0
    %v2598 = vadd.f32 %v2264, %v2597
    %v2599 = vpop.f32.mrf.mxu0
    %2600 = vdwg.mxu0
    %2601 = vmatpush.bf16.msra.mxu0 %v2490
    %2602 = vmatpush.bf16.msra.mxu0 %v2488
    %2603 = vmatpush.bf16.msra.mxu0 %v2486
    %2604 = vmatpush.bf16.msra.mxu0 %v2484
    %2605 = vmatpush.bf16.msra.mxu0 %v2482
    %2606 = vmatpush.bf16.msra.mxu0 %v2480
    %2607 = vmatpush.bf16.msra.mxu0 %v2478
    %2608 = vmatpush.bf16.msra.mxu0 %v2476
    %2609 = vmatmul.bf16.gmra.mxu0 %v2195
    %v2610 = vpop.f32.mrf.mxu0
    %v2611 = vadd.f32 %v2598, %v2610
    %v2612 = vpop.f32.mrf.mxu0
    %2613 = vdwg.mxu0
    %2614 = vmatpush.bf16.msra.mxu0 %v2506
    %2615 = vmatpush.bf16.msra.mxu0 %v2504
    %2616 = vmatpush.bf16.msra.mxu0 %v2502
    %2617 = vmatpush.bf16.msra.mxu0 %v2500
    %2618 = vmatpush.bf16.msra.mxu0 %v2498
    %2619 = vmatpush.bf16.msra.mxu0 %v2496
    %2620 = vmatpush.bf16.msra.mxu0 %v2494
    %2621 = vmatpush.bf16.msra.mxu0 %v2492
    %2622 = vmatmul.bf16.gmra.mxu0 %v2196
    %v2623 = vpop.f32.mrf.mxu0
    %v2624 = vadd.f32 %v2611, %v2623
    %v2625 = vpop.f32.mrf.mxu0
    %2626 = vdwg.mxu0
    %2627 = vmatpush.bf16.msra.mxu0 %v2522
    %2628 = vmatpush.bf16.msra.mxu0 %v2520
    %2629 = vmatpush.bf16.msra.mxu0 %v2518
    %2630 = vmatpush.bf16.msra.mxu0 %v2516
    %2631 = vmatpush.bf16.msra.mxu0 %v2514
    %2632 = vmatpush.bf16.msra.mxu0 %v2512
    %2633 = vmatpush.bf16.msra.mxu0 %v2510
    %2634 = vmatpush.bf16.msra.mxu0 %v2508
    %2635 = vmatmul.bf16.gmra.mxu0 %v2197
    %v2636 = vpop.f32.mrf.mxu0
    %v2637 = vadd.f32 %v2624, %v2636
    %v2638 = vpop.f32.mrf.mxu0
    %2639 = vdwg.mxu0
    %2640 = vmatpush.bf16.msra.mxu0 %v2475
    %2641 = vmatpush.bf16.msra.mxu0 %v2473
    %2642 = vmatpush.bf16.msra.mxu0 %v2471
    %2643 = vmatpush.bf16.msra.mxu0 %v2469
    %2644 = vmatpush.bf16.msra.mxu0 %v2467
    %2645 = vmatpush.bf16.msra.mxu0 %v2465
    %2646 = vmatpush.bf16.msra.mxu0 %v2463
    %2647 = vmatpush.bf16.msra.mxu0 %v2461
    %2648 = vmatmul.bf16.gmra.mxu0 %v2194
    %v2649 = vpop.f32.mrf.mxu0
    %v2650 = vadd.f32 %v2265, %v2649
    %v2651 = vpop.f32.mrf.mxu0
    %2652 = vdwg.mxu0
    %2653 = vmatpush.bf16.msra.mxu0 %v2491
    %2654 = vmatpush.bf16.msra.mxu0 %v2489
    %2655 = vmatpush.bf16.msra.mxu0 %v2487
    %2656 = vmatpush.bf16.msra.mxu0 %v2485
    %2657 = vmatpush.bf16.msra.mxu0 %v2483
    %2658 = vmatpush.bf16.msra.mxu0 %v2481
    %2659 = vmatpush.bf16.msra.mxu0 %v2479
    %2660 = vmatpush.bf16.msra.mxu0 %v2477
    %2661 = vmatmul.bf16.gmra.mxu0 %v2195
    %v2662 = vpop.f32.mrf.mxu0
    %v2663 = vadd.f32 %v2650, %v2662
    %v2664 = vpop.f32.mrf.mxu0
    %2665 = vdwg.mxu0
    %2666 = vmatpush.bf16.msra.mxu0 %v2507
    %2667 = vmatpush.bf16.msra.mxu0 %v2505
    %2668 = vmatpush.bf16.msra.mxu0 %v2503
    %2669 = vmatpush.bf16.msra.mxu0 %v2501
    %2670 = vmatpush.bf16.msra.mxu0 %v2499
    %2671 = vmatpush.bf16.msra.mxu0 %v2497
    %2672 = vmatpush.bf16.msra.mxu0 %v2495
    %2673 = vmatpush.bf16.msra.mxu0 %v2493
    %2674 = vmatmul.bf16.gmra.mxu0 %v2196
    %v2675 = vpop.f32.mrf.mxu0
    %v2676 = vadd.f32 %v2663, %v2675
    %v2677 = vpop.f32.mrf.mxu0
    %2678 = vdwg.mxu0
    %2679 = vmatpush.bf16.msra.mxu0 %v2523
    %2680 = vmatpush.bf16.msra.mxu0 %v2521
    %2681 = vmatpush.bf16.msra.mxu0 %v2519
    %2682 = vmatpush.bf16.msra.mxu0 %v2517
    %2683 = vmatpush.bf16.msra.mxu0 %v2515
    %2684 = vmatpush.bf16.msra.mxu0 %v2513
    %2685 = vmatpush.bf16.msra.mxu0 %v2511
    %2686 = vmatpush.bf16.msra.mxu0 %v2509
    %2687 = vmatmul.bf16.gmra.mxu0 %v2197
    %v2688 = vpop.f32.mrf.mxu0
    %v2689 = vadd.f32 %v2676, %v2688
    %v2690 = vpop.f32.mrf.mxu0
    %2691 = vdwg.mxu0
    %v2692 = vmax.f32 %v2637, 0.0
    %v2693 = vmax.f32 %v2689, 0.0
    %v2694 = vld [vmem:[#allocation13] sm:$0x3]
    %v2696 = vperm.slane %v2694, 0
    %v2697 = vperm.slane %v2694, 1
    %v2700 = vmul.f32 %v2692, %v2696
    %v2701 = vmul.f32 %v2693, %v2697
    %v2702 = vld [vmem:[#allocation14] sm:$0x3]
    %v2704 = vperm.slane %v2702, 0
    %v2705 = vperm.slane %v2702, 1
    %v2708 = vadd.f32 %v2700, %v2704
    %v2709 = vadd.f32 %v2701, %v2705
    %v2710 = vpack.c.bf16 %v2708, %v2708
    %v2711 = vpack.c.bf16 %v2709, %v2709
    %v2712 = vld [vmem:[#allocation16] sm:$0xf]
    %v2713 = vld [vmem:[#allocation16 + $0x4] sm:$0xf]
    %v2714 = vld [vmem:[#allocation16 + $0x8] sm:$0xf]
    %v2715 = vld [vmem:[#allocation16 + $0xc] sm:$0xf]
    %v2716 = vld [vmem:[#allocation16 + $0x10] sm:$0xf]
    %v2717 = vld [vmem:[#allocation16 + $0x14] sm:$0xf]
    %v2718 = vld [vmem:[#allocation16 + $0x18] sm:$0xf]
    %v2719 = vld [vmem:[#allocation16 + $0x1c] sm:$0xf]
    %v2720 = vld [vmem:[#allocation16 + $0x20] sm:$0xf]
    %v2721 = vld [vmem:[#allocation16 + $0x24] sm:$0xf]
    %v2722 = vld [vmem:[#allocation16 + $0x28] sm:$0xf]
    %v2723 = vld [vmem:[#allocation16 + $0x2c] sm:$0xf]
    %v2724 = vld [vmem:[#allocation16 + $0x30] sm:$0xf]
    %v2725 = vld [vmem:[#allocation16 + $0x34] sm:$0xf]
    %v2726 = vld [vmem:[#allocation16 + $0x38] sm:$0xf]
    %v2727 = vld [vmem:[#allocation16 + $0x3c] sm:$0xf]
    %v2728 = vld [vmem:[#allocation16 + $0x40] sm:$0xf]
    %v2729 = vld [vmem:[#allocation16 + $0x44] sm:$0xf]
    %v2730 = vld [vmem:[#allocation16 + $0x48] sm:$0xf]
    %v2731 = vld [vmem:[#allocation16 + $0x4c] sm:$0xf]
    %v2732 = vld [vmem:[#allocation16 + $0x50] sm:$0xf]
    %v2733 = vld [vmem:[#allocation16 + $0x54] sm:$0xf]
    %v2734 = vld [vmem:[#allocation16 + $0x58] sm:$0xf]
    %v2735 = vld [vmem:[#allocation16 + $0x5c] sm:$0xf]
    %v2736 = vld [vmem:[#allocation16 + $0x60] sm:$0xf]
    %v2737 = vld [vmem:[#allocation16 + $0x64] sm:$0xf]
    %v2738 = vld [vmem:[#allocation16 + $0x68] sm:$0xf]
    %v2739 = vld [vmem:[#allocation16 + $0x6c] sm:$0xf]
    %v2740 = vld [vmem:[#allocation16 + $0x70] sm:$0xf]
    %v2741 = vld [vmem:[#allocation16 + $0x74] sm:$0xf]
    %v2742 = vld [vmem:[#allocation16 + $0x78] sm:$0xf]
    %v2743 = vld [vmem:[#allocation16 + $0x7c] sm:$0xf]
    %v2744 = vld [vmem:[#allocation17] sm:$0x1]
    %v2746 = vperm.slane %v2744, 0
    %v2780 = vunpack.c.l.b16 %v2712
    %v2781 = vunpack.c.l.b16 %v2713
    %v2782 = vunpack.c.l.b16 %v2714
    %v2783 = vunpack.c.l.b16 %v2715
    %v2784 = vunpack.c.l.b16 %v2716
    %v2785 = vunpack.c.l.b16 %v2717
    %v2786 = vunpack.c.l.b16 %v2718
    %v2787 = vunpack.c.l.b16 %v2719
    %v2788 = vunpack.c.l.b16 %v2720
    %v2789 = vunpack.c.l.b16 %v2721
    %v2790 = vunpack.c.l.b16 %v2722
    %v2791 = vunpack.c.l.b16 %v2723
    %v2792 = vunpack.c.l.b16 %v2724
    %v2793 = vunpack.c.l.b16 %v2725
    %v2794 = vunpack.c.l.b16 %v2726
    %v2795 = vunpack.c.l.b16 %v2727
    %v2796 = vunpack.c.l.b16 %v2728
    %v2797 = vunpack.c.l.b16 %v2729
    %v2798 = vunpack.c.l.b16 %v2730
    %v2799 = vunpack.c.l.b16 %v2731
    %v2800 = vunpack.c.l.b16 %v2732
    %v2801 = vunpack.c.l.b16 %v2733
    %v2802 = vunpack.c.l.b16 %v2734
    %v2803 = vunpack.c.l.b16 %v2735
    %v2804 = vunpack.c.l.b16 %v2736
    %v2805 = vunpack.c.l.b16 %v2737
    %v2806 = vunpack.c.l.b16 %v2738
    %v2807 = vunpack.c.l.b16 %v2739
    %v2808 = vunpack.c.l.b16 %v2740
    %v2809 = vunpack.c.l.b16 %v2741
    %v2810 = vunpack.c.l.b16 %v2742
    %v2811 = vunpack.c.l.b16 %v2743
    %v2812 = vpack.c.b16 %v2781, %v2780
    %v2813 = vpack.c.b16 %v2783, %v2782
    %v2814 = vpack.c.b16 %v2785, %v2784
    %v2815 = vpack.c.b16 %v2787, %v2786
    %v2816 = vpack.c.b16 %v2789, %v2788
    %v2817 = vpack.c.b16 %v2791, %v2790
    %v2818 = vpack.c.b16 %v2793, %v2792
    %v2819 = vpack.c.b16 %v2795, %v2794
    %v2820 = vpack.c.b16 %v2797, %v2796
    %v2821 = vpack.c.b16 %v2799, %v2798
    %v2822 = vpack.c.b16 %v2801, %v2800
    %v2823 = vpack.c.b16 %v2803, %v2802
    %v2824 = vpack.c.b16 %v2805, %v2804
    %v2825 = vpack.c.b16 %v2807, %v2806
    %v2826 = vpack.c.b16 %v2809, %v2808
    %v2827 = vpack.c.b16 %v2811, %v2810
    %2844 = vmatpush.bf16.msra.mxu0 %v2819
    %2845 = vmatpush.bf16.msra.mxu0 %v2818
    %2846 = vmatpush.bf16.msra.mxu0 %v2817
    %2847 = vmatpush.bf16.msra.mxu0 %v2816
    %2848 = vmatpush.bf16.msra.mxu0 %v2815
    %2849 = vmatpush.bf16.msra.mxu0 %v2814
    %2850 = vmatpush.bf16.msra.mxu0 %v2813
    %2851 = vmatpush.bf16.msra.mxu0 %v2812
    %2852 = vmatmul.bf16.gmra.mxu0 %v2710
    %v2853 = vpop.f32.mrf.mxu0
    %v2854 = vadd.f32 %v2746, %v2853
    %v2855 = vpop.f32.mrf.mxu0
    %2856 = vdwg.mxu0
    %2857 = vmatpush.bf16.msra.mxu0 %v2827
    %2858 = vmatpush.bf16.msra.mxu0 %v2826
    %2859 = vmatpush.bf16.msra.mxu0 %v2825
    %2860 = vmatpush.bf16.msra.mxu0 %v2824
    %2861 = vmatpush.bf16.msra.mxu0 %v2823
    %2862 = vmatpush.bf16.msra.mxu0 %v2822
    %2863 = vmatpush.bf16.msra.mxu0 %v2821
    %2864 = vmatpush.bf16.msra.mxu0 %v2820
    %2865 = vmatmul.bf16.gmra.mxu0 %v2711
    %v2866 = vpop.f32.mrf.mxu0
    %v2867 = vadd.f32 %v2854, %v2866
    %v2868 = vpop.f32.mrf.mxu0
    %2869 = vdwg.mxu0
    %2870 = vst [vmem:[#allocation19] sm:$0x3] %v2867
    // Predicated region
    $region86: #{multiscale_forward.7} parent=1 // pred_check
      _
    $region87: #{multiscale_forward.7} parent=1 // pred_check_branch
      %2872 = sbr.rel (0) target = $region89
    $region88: #{multiscale_forward.7} parent=1 // pred_region
      %2874 = vsyncadd [#allocation4], 0
      %s2876 = sshll.u32 [#allocation19], 4
      %s2877 = int_to_ptr.vmem [resolvable:$true] %s2876
      %s2878 = sshll.u32 %s11, 4
      %s2879 = int_to_ptr.hbm [resolvable:$true] %s2878
      %2881 = dma.vmem_to_hbm [thread:$0]  %s2877, 32, %s2879, [#allocation4]
    $region89: #{multiscale_forward.7} parent=1 // pred_fallthru
      _
    // Predicated region
    $region90: #{multiscale_forward.7} parent=1 // pred_check
      _
    $region91: #{multiscale_forward.7} parent=1 // pred_check_branch
      %2883 = sbr.rel (0) target = $region93
    $region92: #{multiscale_forward.7} parent=1 // pred_region
      %2885 = dma.done [#allocation4], 32
    $region93: #{multiscale_forward.7} parent=1 // pred_fallthru
      _
    %2886 = vsyncpa [#allocation3], 1
    %2887 = vsyncpa [#allocation6], 1
    %2888 = vsyncpa [#allocation9], 1
    %2889 = vsyncpa [#allocation12], 1
    %2890 = vsyncpa [#allocation15], 1
    %2891 = vsyncpa [#allocation18], 1
    %2892 = vsyncpa [#allocation4], 1

// kernel: multiscale_forward.6
$region0: #{multiscale_forward.6}
  #allocation0 [shape = 'u32[]', space=smem, size = 0x4, offset = 0x4, fixed_abs, tag = 'smem constant byte address 0x4 - core index']
  #allocation1 [shape = 'u32[72,128]{1,0:T(1,128)}', space=vmem, size = 0x9000, scoped, tag = 'internal scratch']
  %s0 = inlined_call_operand.vmem [shape: bf16[2,6144], index: 0, kind: input, shape index: {}]
  %s1 = inlined_call_operand.hbm [shape: bf16[6144,1024], index: 1, kind: input, shape index: {}]
  %s2 = inlined_call_operand.hbm [shape: f32[1,1024], index: 2, kind: input, shape index: {}]
  %s3 = inlined_call_operand.hbm [shape: f32[1,1024], index: 3, kind: input, shape index: {}]
  %s4 = inlined_call_operand.hbm [shape: f32[1,1024], index: 4, kind: input, shape index: {}]
  %s5 = inlined_call_operand.vmem [shape: f32[2,1024], index: 5, kind: output, shape index: {}]
  %s6 = sld [smem:[#allocation0]]
  $region77: #{multiscale_forward.6} parent=0
    _
  %s8 = ssub.s32 1, %s6
  %s9 = scalar_select 0, %s8, %s6
  $region1: #{multiscale_forward.6} parent=0
    #allocation2 [shape = 'u8[6291456]{0}', space=vmem, size = 0x600000, scoped, tag = 'input window, operand 1']
    #allocation3 [shape = 's32[2]{0}', space=sflag, size = 0x8, scoped, tag = 'scoped memory for multiscale_forward.6']
    #allocation4 [shape = 'u8[4096]{0}', space=vmem, size = 0x1000, scoped, tag = 'input window, operand 2']
    #allocation5 [shape = 's32[2]{0}', space=sflag, size = 0x8, scoped, tag = 'scoped memory for multiscale_forward.6']
    #allocation6 [shape = 'u8[4096]{0}', space=vmem, size = 0x1000, scoped, tag = 'input window, operand 3']
    #allocation7 [shape = 'u8[4096]{0}', space=vmem, size = 0x1000, scoped, tag = 'input window, operand 4']
    #allocation8 [shape = 's32[2]{0}', space=sflag, size = 0x8, scoped, tag = 'scoped memory for multiscale_forward.6']
    %10 = vsyncpa [#allocation3], 0
    %s11 = scalar_lea.sflag [#allocation3], 1
    %12 = vsyncpa %s11, 0
    %13 = vsyncpa [#allocation5], 0
    %s14 = scalar_lea.sflag [#allocation5], 1
    %15 = vsyncpa %s14, 0
    %16 = vsyncpa [#allocation8], 0
    %s17 = scalar_lea.sflag [#allocation8], 1
    %18 = vsyncpa %s17, 0
    loop: start=0, step=1, limit=6
    $region2: #{multiscale_forward.6} parent=1 // loop_pre_header
      _
    $region3: #{multiscale_forward.6} parent=1 // loop_header
      %s20 = sphi 0, %s24
      %p21 = scmp.ge.s32.totalorder %s20, 6
      %s27 = sphi 0, %s39
      %s28 = sphi 0, %s35
      %s29 = sphi 0, %s27
      %s30 = sphi 0, %s28
      %s31 = sphi 0, %s29
      %s32 = sphi 0, %s30
      %s42 = sphi 0, %s44
      %s45 = sphi 0, %s42
      %s46 = sphi 0, %s45
      %s62 = sphi 0, %s46
      %s70 = sphi 0, %s72
      %s73 = sphi 0, %s70
      %s74 = sphi 0, %s73
      %s90 = sphi 0, %s74
      %s96 = sphi 0, %s98
      %s99 = sphi 0, %s96
      %s100 = sphi 0, %s99
      %s116 = sphi 0, %s100
      %s122 = sphi 0, %s124
      %s125 = sphi 0, %s122
      %s126 = sphi 0, %s125
      %s142 = sphi 0, %s126
      %s148 = sphi 0, %s150
      %s151 = sphi 0, %s148
      %s152 = sphi 0, %s151
      %s168 = sphi 0, %s152
      %s174 = sphi 0, %s176
      %s177 = sphi 0, %s174
      %s178 = sphi 0, %s177
      %s194 = sphi 0, %s178
    $region4: #{multiscale_forward.6} parent=1 // loop_header_branch
      %23 = sbr.rel (%p21) target = $region8
    $region5: #{multiscale_forward.6} parent=1 // loop_body
      %s25 = ssub.s32 %s20, 1
      %s26 = ssub.s32 %s20, 2
      %s33 = sadd.s32 1, %s28
      %p34 = scmp.ge.s32.totalorder %s33, 2
      %s35 = scalar_select %p34, 0, %s33
      %s36 = sadd.s32 1, %s27
      %s37 = scalar_select %p34, %s36, %s27
      %p38 = scmp.ge.s32.totalorder %s37, 2
      %s39 = scalar_select %p38, 0, %s37
      %s40 = ssub.s32 %s28, %s35
      %p41 = scmp.eq.s32.totalorder %s40, 0
      %s43 = sadd.s32 %s42, 1
      %s44 = scalar_select %p41, %s42, %s43
      %p47 = pneg %p41
      %p48 = scmp.eq.s32.totalorder %s20, 3
      %p49 = por %p47, %p48
      %p50 = scmp.ne.s32.totalorder %s42, %s45
      %p51 = scmp.eq.s32.totalorder %s20, 0
      %p52 = por %p50, %p51
      %p53 = scmp.ne.s32.totalorder %s42, %s45
      %p54 = scmp.eq.s32.totalorder %s25, 3
      %p55 = por %p53, %p54
      %p56 = scmp.ne.s32.totalorder %s45, %s46
      %p57 = scmp.eq.s32.totalorder %s25, 0
      %p58 = por %p56, %p57
      %p59 = scmp.ne.s32.totalorder %s45, %s46
      %p60 = scmp.eq.s32.totalorder %s26, 3
      %p61 = por %p59, %p60
      %p63 = scmp.ne.s32.totalorder %s46, %s62
      %p64 = scmp.eq.s32.totalorder %s26, 0
      %p65 = por %p63, %p64
      %s66 = ssub.s32 %s28, %s35
      %s67 = ssub.s32 %s27, %s39
      %s68 = sor.u32 %s66, %s67
      %p69 = scmp.eq.s32.totalorder %s68, 0
      %s71 = sadd.s32 %s70, 1
      %s72 = scalar_select %p69, %s70, %s71
      %p75 = pneg %p69
      %p76 = scmp.eq.s32.totalorder %s20, 3
      %p77 = por %p75, %p76
      %p78 = scmp.ne.s32.totalorder %s70, %s73
      %p79 = scmp.eq.s32.totalorder %s20, 0
      %p80 = por %p78, %p79
      %p81 = scmp.ne.s32.totalorder %s70, %s73
      %p82 = scmp.eq.s32.totalorder %s25, 3
      %p83 = por %p81, %p82
      %p84 = scmp.ne.s32.totalorder %s73, %s74
      %p85 = scmp.eq.s32.totalorder %s25, 0
      %p86 = por %p84, %p85
      %p87 = scmp.ne.s32.totalorder %s73, %s74
      %p88 = scmp.eq.s32.totalorder %s26, 3
      %p89 = por %p87, %p88
      %p91 = scmp.ne.s32.totalorder %s74, %s90
      %p92 = scmp.eq.s32.totalorder %s26, 0
      %p93 = por %p91, %p92
      %s94 = ssub.s32 %s27, %s39
      %p95 = scmp.eq.s32.totalorder %s94, 0
      %s97 = sadd.s32 %s96, 1
      %s98 = scalar_select %p95, %s96, %s97
      %p101 = pneg %p95
      %p102 = scmp.eq.s32.totalorder %s20, 3
      %p103 = por %p101, %p102
      %p104 = scmp.ne.s32.totalorder %s96, %s99
      %p105 = scmp.eq.s32.totalorder %s20, 0
      %p106 = por %p104, %p105
      %p107 = scmp.ne.s32.totalorder %s96, %s99
      %p108 = scmp.eq.s32.totalorder %s25, 3
      %p109 = por %p107, %p108
      %p110 = scmp.ne.s32.totalorder %s99, %s100
      %p111 = scmp.eq.s32.totalorder %s25, 0
      %p112 = por %p110, %p111
      %p113 = scmp.ne.s32.totalorder %s99, %s100
      %p114 = scmp.eq.s32.totalorder %s26, 3
      %p115 = por %p113, %p114
      %p117 = scmp.ne.s32.totalorder %s100, %s116
      %p118 = scmp.eq.s32.totalorder %s26, 0
      %p119 = por %p117, %p118
      %s120 = ssub.s32 %s27, %s39
      %p121 = scmp.eq.s32.totalorder %s120, 0
      %s123 = sadd.s32 %s122, 1
      %s124 = scalar_select %p121, %s122, %s123
      %p127 = pneg %p121
      %p128 = scmp.eq.s32.totalorder %s20, 3
      %p129 = por %p127, %p128
      %p130 = scmp.ne.s32.totalorder %s122, %s125
      %p131 = scmp.eq.s32.totalorder %s20, 0
      %p132 = por %p130, %p131
      %p133 = scmp.ne.s32.totalorder %s122, %s125
      %p134 = scmp.eq.s32.totalorder %s25, 3
      %p135 = por %p133, %p134
      %p136 = scmp.ne.s32.totalorder %s125, %s126
      %p137 = scmp.eq.s32.totalorder %s25, 0
      %p138 = por %p136, %p137
      %p139 = scmp.ne.s32.totalorder %s125, %s126
      %p140 = scmp.eq.s32.totalorder %s26, 3
      %p141 = por %p139, %p140
      %p143 = scmp.ne.s32.totalorder %s126, %s142
      %p144 = scmp.eq.s32.totalorder %s26, 0
      %p145 = por %p143, %p144
      %s146 = ssub.s32 %s27, %s39
      %p147 = scmp.eq.s32.totalorder %s146, 0
      %s149 = sadd.s32 %s148, 1
      %s150 = scalar_select %p147, %s148, %s149
      %p153 = pneg %p147
      %p154 = scmp.eq.s32.totalorder %s20, 3
      %p155 = por %p153, %p154
      %p156 = scmp.ne.s32.totalorder %s148, %s151
      %p157 = scmp.eq.s32.totalorder %s20, 0
      %p158 = por %p156, %p157
      %p159 = scmp.ne.s32.totalorder %s148, %s151
      %p160 = scmp.eq.s32.totalorder %s25, 3
      %p161 = por %p159, %p160
      %p162 = scmp.ne.s32.totalorder %s151, %s152
      %p163 = scmp.eq.s32.totalorder %s25, 0
      %p164 = por %p162, %p163
      %p165 = scmp.ne.s32.totalorder %s151, %s152
      %p166 = scmp.eq.s32.totalorder %s26, 3
      %p167 = por %p165, %p166
      %p169 = scmp.ne.s32.totalorder %s152, %s168
      %p170 = scmp.eq.s32.totalorder %s26, 0
      %p171 = por %p169, %p170
      %s172 = ssub.s32 %s27, %s39
      %p173 = scmp.eq.s32.totalorder %s172, 0
      %s175 = sadd.s32 %s174, 1
      %s176 = scalar_select %p173, %s174, %s175
      %p179 = pneg %p173
      %p180 = scmp.eq.s32.totalorder %s20, 3
      %p181 = por %p179, %p180
      %p182 = scmp.ne.s32.totalorder %s174, %s177
      %p183 = scmp.eq.s32.totalorder %s20, 0
      %p184 = por %p182, %p183
      %p185 = scmp.ne.s32.totalorder %s174, %s177
      %p186 = scmp.eq.s32.totalorder %s25, 3
      %p187 = por %p185, %p186
      %p188 = scmp.ne.s32.totalorder %s177, %s178
      %p189 = scmp.eq.s32.totalorder %s25, 0
      %p190 = por %p188, %p189
      %p191 = scmp.ne.s32.totalorder %s177, %s178
      %p192 = scmp.eq.s32.totalorder %s26, 3
      %p193 = por %p191, %p192
      %p195 = scmp.ne.s32.totalorder %s178, %s194
      %p196 = scmp.eq.s32.totalorder %s26, 0
      %p197 = por %p195, %p196
      %p198 = scmp.le.s32.totalorder 1, %s20
      %p199 = scmp.lt.s32.totalorder %s20, 5
      %p200 = pnand %p198, %p199
      %p201 = pneg %p200
      // Predicated region
      $region9: #{multiscale_forward.6} parent=5 // pred_check
        _
      $region10: #{multiscale_forward.6} parent=5 // pred_check_branch
        %203 = sbr.rel (%p200) target = $region12
      $region11: #{multiscale_forward.6} parent=5 // pred_region
        %s204 = ssub.s32 %s20, 1
      $region12: #{multiscale_forward.6} parent=5 // pred_fallthru
        _
      %p205 = scmp.lt.s32.totalorder %s20, 4
      // Predicated region
      $region13: #{multiscale_forward.6} parent=5 // pred_check
        %p206 = pneg %p205
      $region14: #{multiscale_forward.6} parent=5 // pred_check_branch
        %208 = sbr.rel (%p206) target = $region16
      $region15: #{multiscale_forward.6} parent=5 // pred_region
        // Predicated region
        $region17: #{multiscale_forward.6} parent=15 // pred_check
          %p209 = pneg %p52
        $region18: #{multiscale_forward.6} parent=15 // pred_check_branch
          %211 = sbr.rel (%p209) target = $region20
        $region19: #{multiscale_forward.6} parent=15 // pred_region
          %s212 = smul.u32 24, %s28
          %p213 = scmp.lt.s32.totalorder %s212, 47
          %s214 = scalar_select %p213, %s212, 47
          %s215 = scalar_lea.vmem %s0, %s214
          %s216 = smul.u32 24, %s28
        $region20: #{multiscale_forward.6} parent=15 // pred_fallthru
          _
        // Predicated region
        $region21: #{multiscale_forward.6} parent=15 // pred_check
          %p217 = pneg %p80
        $region22: #{multiscale_forward.6} parent=15 // pred_check_branch
          %219 = sbr.rel (%p217) target = $region24
        $region23: #{multiscale_forward.6} parent=15 // pred_region
          %s220 = sand.u32 %s70, 1
          %s221 = scalar_lea.sflag [#allocation3], %s220
          %s222 = sand.u32 %s70, 1
          %s223 = smul.addr %s222, 6144
          %s224 = scalar_lea.vmem [#allocation2], %s223
          %s225 = smul.u32 384, %s28
          %s226 = smul.u32 4, %s27
          %228 = vsyncadd %s221, 0
          %s229 = smul.addr %s225, 8
          %s230 = sadd.s32 %s226, %s229
          %s231 = smul.addr %s230, 4
          %s232 = scalar_lea.hbm %s1, %s231
          %s233 = sshll.u32 %s232, 4
          %s234 = int_to_ptr.hbm [resolvable:$true] %s233
          %s235 = sshll.u32 %s224, 4
          %s236 = int_to_ptr.vmem [resolvable:$true] %s235
          %241 = dma.hbm_to_vmem [thread:$0]  %s234, 98304, %s236, %s221, 512, 256, 16
        $region24: #{multiscale_forward.6} parent=15 // pred_fallthru
          _
        // Predicated region
        $region25: #{multiscale_forward.6} parent=15 // pred_check
          %p242 = pneg %p106
        $region26: #{multiscale_forward.6} parent=15 // pred_check_branch
          %244 = sbr.rel (%p242) target = $region28
        $region27: #{multiscale_forward.6} parent=15 // pred_region
          %s245 = sand.u32 %s20, 1
          %s246 = scalar_lea.sflag [#allocation5], %s245
          %s247 = sand.u32 %s96, 1
          %s248 = smul.addr %s247, 4
          %s249 = scalar_lea.vmem [#allocation4], %s248
          %s250 = smul.u32 4, %s27
          %252 = vsyncadd %s246, 0
          %s253 = scalar_lea.hbm %s2, %s250
          %s255 = sshll.u32 %s253, 4
          %s256 = int_to_ptr.hbm [resolvable:$true] %s255
          %s257 = sshll.u32 %s249, 4
          %s258 = int_to_ptr.vmem [resolvable:$true] %s257
          %260 = dma.hbm_to_vmem [thread:$0]  %s256, 64, %s258, %s246
        $region28: #{multiscale_forward.6} parent=15 // pred_fallthru
          _
        // Predicated region
        $region29: #{multiscale_forward.6} parent=15 // pred_check
          %p261 = pneg %p132
        $region30: #{multiscale_forward.6} parent=15 // pred_check_branch
          %263 = sbr.rel (%p261) target = $region32
        $region31: #{multiscale_forward.6} parent=15 // pred_region
          %s264 = sand.u32 %s20, 1
          %s265 = scalar_lea.sflag [#allocation5], %s264
          %s266 = sand.u32 %s122, 1
          %s267 = smul.addr %s266, 4
          %s268 = scalar_lea.vmem [#allocation6], %s267
          %s269 = smul.u32 4, %s27
          %271 = vsyncadd %s265, 0
          %s272 = scalar_lea.hbm %s3, %s269
          %s274 = sshll.u32 %s272, 4
          %s275 = int_to_ptr.hbm [resolvable:$true] %s274
          %s276 = sshll.u32 %s268, 4
          %s277 = int_to_ptr.vmem [resolvable:$true] %s276
          %279 = dma.hbm_to_vmem [thread:$0]  %s275, 64, %s277, %s265
        $region32: #{multiscale_forward.6} parent=15 // pred_fallthru
          _
        // Predicated region
        $region33: #{multiscale_forward.6} parent=15 // pred_check
          %p280 = pneg %p158
        $region34: #{multiscale_forward.6} parent=15 // pred_check_branch
          %282 = sbr.rel (%p280) target = $region36
        $region35: #{multiscale_forward.6} parent=15 // pred_region
          %s283 = sand.u32 %s148, 1
          %s284 = scalar_lea.sflag [#allocation8], %s283
          %s285 = sand.u32 %s148, 1
          %s286 = smul.addr %s285, 4
          %s287 = scalar_lea.vmem [#allocation7], %s286
          %s288 = smul.u32 4, %s27
          %290 = vsyncadd %s284, 0
          %s291 = scalar_lea.hbm %s4, %s288
          %s293 = sshll.u32 %s291, 4
          %s294 = int_to_ptr.hbm [resolvable:$true] %s293
          %s295 = sshll.u32 %s287, 4
          %s296 = int_to_ptr.vmem [resolvable:$true] %s295
          %298 = dma.hbm_to_vmem [thread:$0]  %s294, 64, %s296, %s284
        $region36: #{multiscale_forward.6} parent=15 // pred_fallthru
          _
      $region16: #{multiscale_forward.6} parent=5 // pred_fallthru
        _
      %p299 = scmp.le.s32.totalorder 1, %s20
      %p300 = scmp.lt.s32.totalorder %s20, 5
      %p301 = pnand %p299, %p300
      %p302 = pneg %p301
      // Predicated region
      $region37: #{multiscale_forward.6} parent=5 // pred_check
        _
      $region38: #{multiscale_forward.6} parent=5 // pred_check_branch
        %304 = sbr.rel (%p301) target = $region40
      $region39: #{multiscale_forward.6} parent=5 // pred_region
        %s305 = ssub.s32 %s20, 1
        %s306 = sand.u32 %s73, 1
        %s307 = scalar_lea.sflag [#allocation3], %s306
        %s308 = sand.u32 %s73, 1
        %s309 = smul.addr %s308, 6144
        %s310 = scalar_lea.vmem [#allocation2], %s309
        // Predicated region
        $region41: #{multiscale_forward.6} parent=39 // pred_check
          %p311 = pneg %p86
        $region42: #{multiscale_forward.6} parent=39 // pred_check_branch
          %313 = sbr.rel (%p311) target = $region44
        $region43: #{multiscale_forward.6} parent=39 // pred_region
          %315 = dma.done %s307, 98304
        $region44: #{multiscale_forward.6} parent=39 // pred_fallthru
          _
        %s316 = sand.u32 %s25, 1
        %s317 = scalar_lea.sflag [#allocation5], %s316
        %s318 = sand.u32 %s99, 1
        %s319 = smul.addr %s318, 4
        %s320 = scalar_lea.vmem [#allocation4], %s319
        // Predicated region
        $region45: #{multiscale_forward.6} parent=39 // pred_check
          %p321 = pneg %p112
        $region46: #{multiscale_forward.6} parent=39 // pred_check_branch
          %323 = sbr.rel (%p321) target = $region48
        $region47: #{multiscale_forward.6} parent=39 // pred_region
          %325 = dma.done %s317, 64
        $region48: #{multiscale_forward.6} parent=39 // pred_fallthru
          _
        %s326 = sand.u32 %s25, 1
        %s327 = scalar_lea.sflag [#allocation5], %s326
        %s328 = sand.u32 %s125, 1
        %s329 = smul.addr %s328, 4
        %s330 = scalar_lea.vmem [#allocation6], %s329
        // Predicated region
        $region49: #{multiscale_forward.6} parent=39 // pred_check
          %p331 = pneg %p138
        $region50: #{multiscale_forward.6} parent=39 // pred_check_branch
          %333 = sbr.rel (%p331) target = $region52
        $region51: #{multiscale_forward.6} parent=39 // pred_region
          %335 = dma.done %s327, 64
        $region52: #{multiscale_forward.6} parent=39 // pred_fallthru
          _
        %s336 = sand.u32 %s151, 1
        %s337 = scalar_lea.sflag [#allocation8], %s336
        %s338 = sand.u32 %s151, 1
        %s339 = smul.addr %s338, 4
        %s340 = scalar_lea.vmem [#allocation7], %s339
        // Predicated region
        $region53: #{multiscale_forward.6} parent=39 // pred_check
          %p341 = pneg %p164
        $region54: #{multiscale_forward.6} parent=39 // pred_check_branch
          %343 = sbr.rel (%p341) target = $region56
        $region55: #{multiscale_forward.6} parent=39 // pred_region
          %345 = dma.done %s337, 64
        $region56: #{multiscale_forward.6} parent=39 // pred_fallthru
          _
        %s346 = smul.u32 24, %s30
        %p347 = scmp.lt.s32.totalorder %s346, 47
        %s348 = scalar_select %p347, %s346, 47
        %s349 = scalar_lea.vmem %s0, %s348
        %p350 = pneg %p58
        %p351 = pneg %p55
        %s352 = sand.u32 %s73, 1
        %s353 = scalar_lea.sflag [#allocation3], %s352
        %s354 = sand.u32 %s73, 1
        %s355 = smul.addr %s354, 6144
        %s356 = scalar_lea.vmem [#allocation2], %s355
        %p357 = pneg %p86
        %p358 = pneg %p83
        %s359 = sand.u32 %s25, 1
        %s360 = scalar_lea.sflag [#allocation5], %s359
        %s361 = sand.u32 %s99, 1
        %s362 = smul.addr %s361, 4
        %s363 = scalar_lea.vmem [#allocation4], %s362
        %p364 = pneg %p112
        %p365 = pneg %p109
        %s366 = sand.u32 %s25, 1
        %s367 = scalar_lea.sflag [#allocation5], %s366
        %s368 = sand.u32 %s125, 1
        %s369 = smul.addr %s368, 4
        %s370 = scalar_lea.vmem [#allocation6], %s369
        %p371 = pneg %p138
        %p372 = pneg %p135
        %s373 = sand.u32 %s151, 1
        %s374 = scalar_lea.sflag [#allocation8], %s373
        %s375 = sand.u32 %s151, 1
        %s376 = smul.addr %s375, 4
        %s377 = scalar_lea.vmem [#allocation7], %s376
        %p378 = pneg %p164
        %p379 = pneg %p161
        %p380 = pneg %p190
        %p381 = pneg %p187
        %s382 = smul.u32 4, %s29
        %p383 = scmp.lt.s32.totalorder %s382, 7
        %s384 = scalar_select %p383, %s382, 7
        %s385 = smul.addr %s384, 2
        %s386 = scalar_lea.vmem %s5, %s385
        %s387 = smul.u32 24, %s30
        %p388 = scmp.lt.s32.totalorder %s387, 47
        %s389 = scalar_select %p388, %s387, 47
        %s390 = scalar_lea.vmem %s0, %s389
        %s391 = smul.u32 24, %s30
        %s392 = smul.u32 384, %s30
        %s393 = smul.u32 4, %s29
        %s394 = smul.u32 4, %s29
        %s395 = smul.u32 4, %s29
        %s396 = smul.u32 4, %s29
        %s397 = smul.u32 4, %s29
        %p398 = scmp.lt.s32.totalorder %s397, 7
        %s399 = scalar_select %p398, %s397, 7
        %s400 = smul.addr %s399, 2
        %s401 = scalar_lea.vmem %s5, %s400
        %s402 = smul.u32 4, %s29
        %p403 = scmp.eq.s32.totalorder %s30, 0
        // Predicated region
        $region57: #{multiscale_forward.6} parent=39 // pred_check
          %p404 = pneg %p403
        $region58: #{multiscale_forward.6} parent=39 // pred_check_branch
          %406 = sbr.rel (%p404) target = $region60
        $region59: #{multiscale_forward.6} parent=39 // pred_region
          %407 = vst [vmem:[%s401] sm:$0xff] 0.0
        $region60: #{multiscale_forward.6} parent=39 // pred_fallthru
          _
        %v408 = vld [vmem:[%s401] sm:$0xff]
        %v409 = vld [vmem:[%s390] sm:$0xff]
        %v410 = vld [vmem:[%s390 + $0x8] sm:$0xff]
        %v411 = vld [vmem:[%s390 + $0x10] sm:$0xff]
        %v412 = vld [vmem:[%s310] sm:$0xff]
        %v413 = vld [vmem:[%s310 + $0x8] sm:$0xff]
        %v414 = vld [vmem:[%s310 + $0x10] sm:$0xff]
        %v415 = vld [vmem:[%s310 + $0x18] sm:$0xff]
        %v416 = vld [vmem:[%s310 + $0x20] sm:$0xff]
        %v417 = vld [vmem:[%s310 + $0x28] sm:$0xff]
        %v418 = vld [vmem:[%s310 + $0x30] sm:$0xff]
        %v419 = vld [vmem:[%s310 + $0x38] sm:$0xff]
        %v420 = vld [vmem:[%s310 + $0x40] sm:$0xff]
        %v421 = vld [vmem:[%s310 + $0x48] sm:$0xff]
        %v422 = vld [vmem:[%s310 + $0x50] sm:$0xff]
        %v423 = vld [vmem:[%s310 + $0x58] sm:$0xff]
        %v424 = vld [vmem:[%s310 + $0x60] sm:$0xff]
        %v425 = vld [vmem:[%s310 + $0x68] sm:$0xff]
        %v426 = vld [vmem:[%s310 + $0x70] sm:$0xff]
        %v427 = vld [vmem:[%s310 + $0x78] sm:$0xff]
        %v428 = vld [vmem:[%s310 + $0x80] sm:$0xff]
        %v429 = vld [vmem:[%s310 + $0x88] sm:$0xff]
        %v430 = vld [vmem:[%s310 + $0x90] sm:$0xff]
        %v431 = vld [vmem:[%s310 + $0x98] sm:$0xff]
        %v432 = vld [vmem:[%s310 + $0xa0] sm:$0xff]
        %v433 = vld [vmem:[%s310 + $0xa8] sm:$0xff]
        %v434 = vld [vmem:[%s310 + $0xb0] sm:$0xff]
        %v435 = vld [vmem:[%s310 + $0xb8] sm:$0xff]
        %v436 = vld [vmem:[%s310 + $0xc0] sm:$0xff]
        %v437 = vld [vmem:[%s310 + $0xc8] sm:$0xff]
        %v438 = vld [vmem:[%s310 + $0xd0] sm:$0xff]
        %v439 = vld [vmem:[%s310 + $0xd8] sm:$0xff]
        %v440 = vld [vmem:[%s310 + $0xe0] sm:$0xff]
        %v441 = vld [vmem:[%s310 + $0xe8] sm:$0xff]
        %v442 = vld [vmem:[%s310 + $0xf0] sm:$0xff]
        %v443 = vld [vmem:[%s310 + $0xf8] sm:$0xff]
        %v444 = vld [vmem:[%s310 + $0x100] sm:$0xff]
        %v445 = vld [vmem:[%s310 + $0x108] sm:$0xff]
        %v446 = vld [vmem:[%s310 + $0x110] sm:$0xff]
        %v447 = vld [vmem:[%s310 + $0x118] sm:$0xff]
        %v448 = vld [vmem:[%s310 + $0x120] sm:$0xff]
        %v449 = vld [vmem:[%s310 + $0x128] sm:$0xff]
        %v450 = vld [vmem:[%s310 + $0x130] sm:$0xff]
        %v451 = vld [vmem:[%s310 + $0x138] sm:$0xff]
        %v452 = vld [vmem:[%s310 + $0x140] sm:$0xff]
        %v453 = vld [vmem:[%s310 + $0x148] sm:$0xff]
        %v454 = vld [vmem:[%s310 + $0x150] sm:$0xff]
        %v455 = vld [vmem:[%s310 + $0x158] sm:$0xff]
        %v456 = vld [vmem:[%s310 + $0x160] sm:$0xff]
        %v457 = vld [vmem:[%s310 + $0x168] sm:$0xff]
        %v458 = vld [vmem:[%s310 + $0x170] sm:$0xff]
        %v459 = vld [vmem:[%s310 + $0x178] sm:$0xff]
        %v460 = vld [vmem:[%s310 + $0x180] sm:$0xff]
        %v461 = vld [vmem:[%s310 + $0x188] sm:$0xff]
        %v462 = vld [vmem:[%s310 + $0x190] sm:$0xff]
        %v463 = vld [vmem:[%s310 + $0x198] sm:$0xff]
        %v464 = vld [vmem:[%s310 + $0x1a0] sm:$0xff]
        %v465 = vld [vmem:[%s310 + $0x1a8] sm:$0xff]
        %v466 = vld [vmem:[%s310 + $0x1b0] sm:$0xff]
        %v467 = vld [vmem:[%s310 + $0x1b8] sm:$0xff]
        %v468 = vld [vmem:[%s310 + $0x1c0] sm:$0xff]
        %v469 = vld [vmem:[%s310 + $0x1c8] sm:$0xff]
        %v470 = vld [vmem:[%s310 + $0x1d0] sm:$0xff]
        %v471 = vld [vmem:[%s310 + $0x1d8] sm:$0xff]
        %v472 = vld [vmem:[%s310 + $0x1e0] sm:$0xff]
        %v473 = vld [vmem:[%s310 + $0x1e8] sm:$0xff]
        %v474 = vld [vmem:[%s310 + $0x1f0] sm:$0xff]
        %v475 = vld [vmem:[%s310 + $0x1f8] sm:$0xff]
        %v476 = vld [vmem:[%s310 + $0x200] sm:$0xff]
        %v477 = vld [vmem:[%s310 + $0x208] sm:$0xff]
        %v478 = vld [vmem:[%s310 + $0x210] sm:$0xff]
        %v479 = vld [vmem:[%s310 + $0x218] sm:$0xff]
        %v480 = vld [vmem:[%s310 + $0x220] sm:$0xff]
        %v481 = vld [vmem:[%s310 + $0x228] sm:$0xff]
        %v482 = vld [vmem:[%s310 + $0x230] sm:$0xff]
        %v483 = vld [vmem:[%s310 + $0x238] sm:$0xff]
        %v484 = vld [vmem:[%s310 + $0x240] sm:$0xff]
        %v485 = vld [vmem:[%s310 + $0x248] sm:$0xff]
        %v486 = vld [vmem:[%s310 + $0x250] sm:$0xff]
        %v487 = vld [vmem:[%s310 + $0x258] sm:$0xff]
        %v488 = vld [vmem:[%s310 + $0x260] sm:$0xff]
        %v489 = vld [vmem:[%s310 + $0x268] sm:$0xff]
        %v490 = vld [vmem:[%s310 + $0x270] sm:$0xff]
        %v491 = vld [vmem:[%s310 + $0x278] sm:$0xff]
        %v492 = vld [vmem:[%s310 + $0x280] sm:$0xff]
        %v493 = vld [vmem:[%s310 + $0x288] sm:$0xff]
        %v494 = vld [vmem:[%s310 + $0x290] sm:$0xff]
        %v495 = vld [vmem:[%s310 + $0x298] sm:$0xff]
        %v496 = vld [vmem:[%s310 + $0x2a0] sm:$0xff]
        %v497 = vld [vmem:[%s310 + $0x2a8] sm:$0xff]
        %v498 = vld [vmem:[%s310 + $0x2b0] sm:$0xff]
        %v499 = vld [vmem:[%s310 + $0x2b8] sm:$0xff]
        %v500 = vld [vmem:[%s310 + $0x2c0] sm:$0xff]
        %v501 = vld [vmem:[%s310 + $0x2c8] sm:$0xff]
        %v502 = vld [vmem:[%s310 + $0x2d0] sm:$0xff]
        %v503 = vld [vmem:[%s310 + $0x2d8] sm:$0xff]
        %v504 = vld [vmem:[%s310 + $0x2e0] sm:$0xff]
        %v505 = vld [vmem:[%s310 + $0x2e8] sm:$0xff]
        %v506 = vld [vmem:[%s310 + $0x2f0] sm:$0xff]
        %v507 = vld [vmem:[%s310 + $0x2f8] sm:$0xff]
        %v508 = vld [vmem:[%s310 + $0x300] sm:$0xff]
        %v509 = vld [vmem:[%s310 + $0x308] sm:$0xff]
        %v510 = vld [vmem:[%s310 + $0x310] sm:$0xff]
        %v511 = vld [vmem:[%s310 + $0x318] sm:$0xff]
        %v512 = vld [vmem:[%s310 + $0x320] sm:$0xff]
        %v513 = vld [vmem:[%s310 + $0x328] sm:$0xff]
        %v514 = vld [vmem:[%s310 + $0x330] sm:$0xff]
        %v515 = vld [vmem:[%s310 + $0x338] sm:$0xff]
        %v516 = vld [vmem:[%s310 + $0x340] sm:$0xff]
        %v517 = vld [vmem:[%s310 + $0x348] sm:$0xff]
        %v518 = vld [vmem:[%s310 + $0x350] sm:$0xff]
        %v519 = vld [vmem:[%s310 + $0x358] sm:$0xff]
        %v520 = vld [vmem:[%s310 + $0x360] sm:$0xff]
        %v521 = vld [vmem:[%s310 + $0x368] sm:$0xff]
        %v522 = vld [vmem:[%s310 + $0x370] sm:$0xff]
        %v523 = vld [vmem:[%s310 + $0x378] sm:$0xff]
        %v524 = vld [vmem:[%s310 + $0x380] sm:$0xff]
        %v525 = vld [vmem:[%s310 + $0x388] sm:$0xff]
        %v526 = vld [vmem:[%s310 + $0x390] sm:$0xff]
        %v527 = vld [vmem:[%s310 + $0x398] sm:$0xff]
        %v528 = vld [vmem:[%s310 + $0x3a0] sm:$0xff]
        %v529 = vld [vmem:[%s310 + $0x3a8] sm:$0xff]
        %v530 = vld [vmem:[%s310 + $0x3b0] sm:$0xff]
        %v531 = vld [vmem:[%s310 + $0x3b8] sm:$0xff]
        %v532 = vld [vmem:[%s310 + $0x3c0] sm:$0xff]
        %v533 = vld [vmem:[%s310 + $0x3c8] sm:$0xff]
        %v534 = vld [vmem:[%s310 + $0x3d0] sm:$0xff]
        %v535 = vld [vmem:[%s310 + $0x3d8] sm:$0xff]
        %v536 = vld [vmem:[%s310 + $0x3e0] sm:$0xff]
        %v537 = vld [vmem:[%s310 + $0x3e8] sm:$0xff]
        %v538 = vld [vmem:[%s310 + $0x3f0] sm:$0xff]
        %v539 = vld [vmem:[%s310 + $0x3f8] sm:$0xff]
        %v540 = vld [vmem:[%s310 + $0x400] sm:$0xff]
        %v541 = vld [vmem:[%s310 + $0x408] sm:$0xff]
        %v542 = vld [vmem:[%s310 + $0x410] sm:$0xff]
        %v543 = vld [vmem:[%s310 + $0x418] sm:$0xff]
        %v544 = vld [vmem:[%s310 + $0x420] sm:$0xff]
        %v545 = vld [vmem:[%s310 + $0x428] sm:$0xff]
        %v546 = vld [vmem:[%s310 + $0x430] sm:$0xff]
        %v547 = vld [vmem:[%s310 + $0x438] sm:$0xff]
        %v548 = vld [vmem:[%s310 + $0x440] sm:$0xff]
        %v549 = vld [vmem:[%s310 + $0x448] sm:$0xff]
        %v550 = vld [vmem:[%s310 + $0x450] sm:$0xff]
        %v551 = vld [vmem:[%s310 + $0x458] sm:$0xff]
        %v552 = vld [vmem:[%s310 + $0x460] sm:$0xff]
        %v553 = vld [vmem:[%s310 + $0x468] sm:$0xff]
        %v554 = vld [vmem:[%s310 + $0x470] sm:$0xff]
        %v555 = vld [vmem:[%s310 + $0x478] sm:$0xff]
        %v556 = vld [vmem:[%s310 + $0x480] sm:$0xff]
        %v557 = vld [vmem:[%s310 + $0x488] sm:$0xff]
        %v558 = vld [vmem:[%s310 + $0x490] sm:$0xff]
        %v559 = vld [vmem:[%s310 + $0x498] sm:$0xff]
        %v560 = vld [vmem:[%s310 + $0x4a0] sm:$0xff]
        %v561 = vld [vmem:[%s310 + $0x4a8] sm:$0xff]
        %v562 = vld [vmem:[%s310 + $0x4b0] sm:$0xff]
        %v563 = vld [vmem:[%s310 + $0x4b8] sm:$0xff]
        %v564 = vld [vmem:[%s310 + $0x4c0] sm:$0xff]
        %v565 = vld [vmem:[%s310 + $0x4c8] sm:$0xff]
        %v566 = vld [vmem:[%s310 + $0x4d0] sm:$0xff]
        %v567 = vld [vmem:[%s310 + $0x4d8] sm:$0xff]
        %v568 = vld [vmem:[%s310 + $0x4e0] sm:$0xff]
        %v569 = vld [vmem:[%s310 + $0x4e8] sm:$0xff]
        %v570 = vld [vmem:[%s310 + $0x4f0] sm:$0xff]
        %v571 = vld [vmem:[%s310 + $0x4f8] sm:$0xff]
        %v572 = vld [vmem:[%s310 + $0x500] sm:$0xff]
        %v573 = vld [vmem:[%s310 + $0x508] sm:$0xff]
        %v574 = vld [vmem:[%s310 + $0x510] sm:$0xff]
        %v575 = vld [vmem:[%s310 + $0x518] sm:$0xff]
        %v576 = vld [vmem:[%s310 + $0x520] sm:$0xff]
        %v577 = vld [vmem:[%s310 + $0x528] sm:$0xff]
        %v578 = vld [vmem:[%s310 + $0x530] sm:$0xff]
        %v579 = vld [vmem:[%s310 + $0x538] sm:$0xff]
        %v580 = vld [vmem:[%s310 + $0x540] sm:$0xff]
        %v581 = vld [vmem:[%s310 + $0x548] sm:$0xff]
        %v582 = vld [vmem:[%s310 + $0x550] sm:$0xff]
        %v583 = vld [vmem:[%s310 + $0x558] sm:$0xff]
        %v584 = vld [vmem:[%s310 + $0x560] sm:$0xff]
        %v585 = vld [vmem:[%s310 + $0x568] sm:$0xff]
        %v586 = vld [vmem:[%s310 + $0x570] sm:$0xff]
        %v587 = vld [vmem:[%s310 + $0x578] sm:$0xff]
        %v588 = vld [vmem:[%s310 + $0x580] sm:$0xff]
        %v589 = vld [vmem:[%s310 + $0x588] sm:$0xff]
        %v590 = vld [vmem:[%s310 + $0x590] sm:$0xff]
        %v591 = vld [vmem:[%s310 + $0x598] sm:$0xff]
        %v592 = vld [vmem:[%s310 + $0x5a0] sm:$0xff]
        %v593 = vld [vmem:[%s310 + $0x5a8] sm:$0xff]
        %v594 = vld [vmem:[%s310 + $0x5b0] sm:$0xff]
        %v595 = vld [vmem:[%s310 + $0x5b8] sm:$0xff]
        %v596 = vld [vmem:[%s310 + $0x5c0] sm:$0xff]
        %v597 = vld [vmem:[%s310 + $0x5c8] sm:$0xff]
        %v598 = vld [vmem:[%s310 + $0x5d0] sm:$0xff]
        %v599 = vld [vmem:[%s310 + $0x5d8] sm:$0xff]
        %v600 = vld [vmem:[%s310 + $0x5e0] sm:$0xff]
        %v601 = vld [vmem:[%s310 + $0x5e8] sm:$0xff]
        %v602 = vld [vmem:[%s310 + $0x5f0] sm:$0xff]
        %v603 = vld [vmem:[%s310 + $0x5f8] sm:$0xff]
        %v604 = vld [vmem:[%s310 + $0x600] sm:$0xff]
        %v605 = vld [vmem:[%s310 + $0x608] sm:$0xff]
        %v606 = vld [vmem:[%s310 + $0x610] sm:$0xff]
        %v607 = vld [vmem:[%s310 + $0x618] sm:$0xff]
        %v608 = vld [vmem:[%s310 + $0x620] sm:$0xff]
        %v609 = vld [vmem:[%s310 + $0x628] sm:$0xff]
        %v610 = vld [vmem:[%s310 + $0x630] sm:$0xff]
        %v611 = vld [vmem:[%s310 + $0x638] sm:$0xff]
        %v612 = vld [vmem:[%s310 + $0x640] sm:$0xff]
        %v613 = vld [vmem:[%s310 + $0x648] sm:$0xff]
        %v614 = vld [vmem:[%s310 + $0x650] sm:$0xff]
        %v615 = vld [vmem:[%s310 + $0x658] sm:$0xff]
        %v616 = vld [vmem:[%s310 + $0x660] sm:$0xff]
        %v617 = vld [vmem:[%s310 + $0x668] sm:$0xff]
        %v618 = vld [vmem:[%s310 + $0x670] sm:$0xff]
        %v619 = vld [vmem:[%s310 + $0x678] sm:$0xff]
        %v620 = vld [vmem:[%s310 + $0x680] sm:$0xff]
        %v621 = vld [vmem:[%s310 + $0x688] sm:$0xff]
        %v622 = vld [vmem:[%s310 + $0x690] sm:$0xff]
        %v623 = vld [vmem:[%s310 + $0x698] sm:$0xff]
        %v624 = vld [vmem:[%s310 + $0x6a0] sm:$0xff]
        %v625 = vld [vmem:[%s310 + $0x6a8] sm:$0xff]
        %v626 = vld [vmem:[%s310 + $0x6b0] sm:$0xff]
        %v627 = vld [vmem:[%s310 + $0x6b8] sm:$0xff]
        %v628 = vld [vmem:[%s310 + $0x6c0] sm:$0xff]
        %v629 = vld [vmem:[%s310 + $0x6c8] sm:$0xff]
        %v630 = vld [vmem:[%s310 + $0x6d0] sm:$0xff]
        %v631 = vld [vmem:[%s310 + $0x6d8] sm:$0xff]
        %v632 = vld [vmem:[%s310 + $0x6e0] sm:$0xff]
        %v633 = vld [vmem:[%s310 + $0x6e8] sm:$0xff]
        %v634 = vld [vmem:[%s310 + $0x6f0] sm:$0xff]
        %v635 = vld [vmem:[%s310 + $0x6f8] sm:$0xff]
        %v636 = vld [vmem:[%s310 + $0x700] sm:$0xff]
        %v637 = vld [vmem:[%s310 + $0x708] sm:$0xff]
        %v638 = vld [vmem:[%s310 + $0x710] sm:$0xff]
        %v639 = vld [vmem:[%s310 + $0x718] sm:$0xff]
        %v640 = vld [vmem:[%s310 + $0x720] sm:$0xff]
        %v641 = vld [vmem:[%s310 + $0x728] sm:$0xff]
        %v642 = vld [vmem:[%s310 + $0x730] sm:$0xff]
        %v643 = vld [vmem:[%s310 + $0x738] sm:$0xff]
        %v644 = vld [vmem:[%s310 + $0x740] sm:$0xff]
        %v645 = vld [vmem:[%s310 + $0x748] sm:$0xff]
        %v646 = vld [vmem:[%s310 + $0x750] sm:$0xff]
        %v647 = vld [vmem:[%s310 + $0x758] sm:$0xff]
        %v648 = vld [vmem:[%s310 + $0x760] sm:$0xff]
        %v649 = vld [vmem:[%s310 + $0x768] sm:$0xff]
        %v650 = vld [vmem:[%s310 + $0x770] sm:$0xff]
        %v651 = vld [vmem:[%s310 + $0x778] sm:$0xff]
        %v652 = vld [vmem:[%s310 + $0x780] sm:$0xff]
        %v653 = vld [vmem:[%s310 + $0x788] sm:$0xff]
        %v654 = vld [vmem:[%s310 + $0x790] sm:$0xff]
        %v655 = vld [vmem:[%s310 + $0x798] sm:$0xff]
        %v656 = vld [vmem:[%s310 + $0x7a0] sm:$0xff]
        %v657 = vld [vmem:[%s310 + $0x7a8] sm:$0xff]
        %v658 = vld [vmem:[%s310 + $0x7b0] sm:$0xff]
        %v659 = vld [vmem:[%s310 + $0x7b8] sm:$0xff]
        %v660 = vld [vmem:[%s310 + $0x7c0] sm:$0xff]
        %v661 = vld [vmem:[%s310 + $0x7c8] sm:$0xff]
        %v662 = vld [vmem:[%s310 + $0x7d0] sm:$0xff]
        %v663 = vld [vmem:[%s310 + $0x7d8] sm:$0xff]
        %v664 = vld [vmem:[%s310 + $0x7e0] sm:$0xff]
        %v665 = vld [vmem:[%s310 + $0x7e8] sm:$0xff]
        %v666 = vld [vmem:[%s310 + $0x7f0] sm:$0xff]
        %v667 = vld [vmem:[%s310 + $0x7f8] sm:$0xff]
        %v668 = vld [vmem:[%s310 + $0x800] sm:$0xff]
        %v669 = vld [vmem:[%s310 + $0x808] sm:$0xff]
        %v670 = vld [vmem:[%s310 + $0x810] sm:$0xff]
        %v671 = vld [vmem:[%s310 + $0x818] sm:$0xff]
        %v672 = vld [vmem:[%s310 + $0x820] sm:$0xff]
        %v673 = vld [vmem:[%s310 + $0x828] sm:$0xff]
        %v674 = vld [vmem:[%s310 + $0x830] sm:$0xff]
        %v675 = vld [vmem:[%s310 + $0x838] sm:$0xff]
        %v676 = vld [vmem:[%s310 + $0x840] sm:$0xff]
        %v677 = vld [vmem:[%s310 + $0x848] sm:$0xff]
        %v678 = vld [vmem:[%s310 + $0x850] sm:$0xff]
        %v679 = vld [vmem:[%s310 + $0x858] sm:$0xff]
        %v680 = vld [vmem:[%s310 + $0x860] sm:$0xff]
        %v681 = vld [vmem:[%s310 + $0x868] sm:$0xff]
        %v682 = vld [vmem:[%s310 + $0x870] sm:$0xff]
        %v683 = vld [vmem:[%s310 + $0x878] sm:$0xff]
        %v684 = vld [vmem:[%s310 + $0x880] sm:$0xff]
        %v685 = vld [vmem:[%s310 + $0x888] sm:$0xff]
        %v686 = vld [vmem:[%s310 + $0x890] sm:$0xff]
        %v687 = vld [vmem:[%s310 + $0x898] sm:$0xff]
        %v688 = vld [vmem:[%s310 + $0x8a0] sm:$0xff]
        %v689 = vld [vmem:[%s310 + $0x8a8] sm:$0xff]
        %v690 = vld [vmem:[%s310 + $0x8b0] sm:$0xff]
        %v691 = vld [vmem:[%s310 + $0x8b8] sm:$0xff]
        %v692 = vld [vmem:[%s310 + $0x8c0] sm:$0xff]
        %v693 = vld [vmem:[%s310 + $0x8c8] sm:$0xff]
        %v694 = vld [vmem:[%s310 + $0x8d0] sm:$0xff]
        %v695 = vld [vmem:[%s310 + $0x8d8] sm:$0xff]
        %v696 = vld [vmem:[%s310 + $0x8e0] sm:$0xff]
        %v697 = vld [vmem:[%s310 + $0x8e8] sm:$0xff]
        %v698 = vld [vmem:[%s310 + $0x8f0] sm:$0xff]
        %v699 = vld [vmem:[%s310 + $0x8f8] sm:$0xff]
        %v700 = vld [vmem:[%s310 + $0x900] sm:$0xff]
        %v701 = vld [vmem:[%s310 + $0x908] sm:$0xff]
        %v702 = vld [vmem:[%s310 + $0x910] sm:$0xff]
        %v703 = vld [vmem:[%s310 + $0x918] sm:$0xff]
        %v704 = vld [vmem:[%s310 + $0x920] sm:$0xff]
        %v705 = vld [vmem:[%s310 + $0x928] sm:$0xff]
        %v706 = vld [vmem:[%s310 + $0x930] sm:$0xff]
        %v707 = vld [vmem:[%s310 + $0x938] sm:$0xff]
        %v708 = vld [vmem:[%s310 + $0x940] sm:$0xff]
        %v709 = vld [vmem:[%s310 + $0x948] sm:$0xff]
        %v710 = vld [vmem:[%s310 + $0x950] sm:$0xff]
        %v711 = vld [vmem:[%s310 + $0x958] sm:$0xff]
        %v712 = vld [vmem:[%s310 + $0x960] sm:$0xff]
        %v713 = vld [vmem:[%s310 + $0x968] sm:$0xff]
        %v714 = vld [vmem:[%s310 + $0x970] sm:$0xff]
        %v715 = vld [vmem:[%s310 + $0x978] sm:$0xff]
        %v716 = vld [vmem:[%s310 + $0x980] sm:$0xff]
        %v717 = vld [vmem:[%s310 + $0x988] sm:$0xff]
        %v718 = vld [vmem:[%s310 + $0x990] sm:$0xff]
        %v719 = vld [vmem:[%s310 + $0x998] sm:$0xff]
        %v720 = vld [vmem:[%s310 + $0x9a0] sm:$0xff]
        %v721 = vld [vmem:[%s310 + $0x9a8] sm:$0xff]
        %v722 = vld [vmem:[%s310 + $0x9b0] sm:$0xff]
        %v723 = vld [vmem:[%s310 + $0x9b8] sm:$0xff]
        %v724 = vld [vmem:[%s310 + $0x9c0] sm:$0xff]
        %v725 = vld [vmem:[%s310 + $0x9c8] sm:$0xff]
        %v726 = vld [vmem:[%s310 + $0x9d0] sm:$0xff]
        %v727 = vld [vmem:[%s310 + $0x9d8] sm:$0xff]
        %v728 = vld [vmem:[%s310 + $0x9e0] sm:$0xff]
        %v729 = vld [vmem:[%s310 + $0x9e8] sm:$0xff]
        %v730 = vld [vmem:[%s310 + $0x9f0] sm:$0xff]
        %v731 = vld [vmem:[%s310 + $0x9f8] sm:$0xff]
        %v732 = vld [vmem:[%s310 + $0xa00] sm:$0xff]
        %v733 = vld [vmem:[%s310 + $0xa08] sm:$0xff]
        %v734 = vld [vmem:[%s310 + $0xa10] sm:$0xff]
        %v735 = vld [vmem:[%s310 + $0xa18] sm:$0xff]
        %v736 = vld [vmem:[%s310 + $0xa20] sm:$0xff]
        %v737 = vld [vmem:[%s310 + $0xa28] sm:$0xff]
        %v738 = vld [vmem:[%s310 + $0xa30] sm:$0xff]
        %v739 = vld [vmem:[%s310 + $0xa38] sm:$0xff]
        %v740 = vld [vmem:[%s310 + $0xa40] sm:$0xff]
        %v741 = vld [vmem:[%s310 + $0xa48] sm:$0xff]
        %v742 = vld [vmem:[%s310 + $0xa50] sm:$0xff]
        %v743 = vld [vmem:[%s310 + $0xa58] sm:$0xff]
        %v744 = vld [vmem:[%s310 + $0xa60] sm:$0xff]
        %v745 = vld [vmem:[%s310 + $0xa68] sm:$0xff]
        %v746 = vld [vmem:[%s310 + $0xa70] sm:$0xff]
        %v747 = vld [vmem:[%s310 + $0xa78] sm:$0xff]
        %v748 = vld [vmem:[%s310 + $0xa80] sm:$0xff]
        %v749 = vld [vmem:[%s310 + $0xa88] sm:$0xff]
        %v750 = vld [vmem:[%s310 + $0xa90] sm:$0xff]
        %v751 = vld [vmem:[%s310 + $0xa98] sm:$0xff]
        %v752 = vld [vmem:[%s310 + $0xaa0] sm:$0xff]
        %v753 = vld [vmem:[%s310 + $0xaa8] sm:$0xff]
        %v754 = vld [vmem:[%s310 + $0xab0] sm:$0xff]
        %v755 = vld [vmem:[%s310 + $0xab8] sm:$0xff]
        %v756 = vld [vmem:[%s310 + $0xac0] sm:$0xff]
        %v757 = vld [vmem:[%s310 + $0xac8] sm:$0xff]
        %v758 = vld [vmem:[%s310 + $0xad0] sm:$0xff]
        %v759 = vld [vmem:[%s310 + $0xad8] sm:$0xff]
        %v760 = vld [vmem:[%s310 + $0xae0] sm:$0xff]
        %v761 = vld [vmem:[%s310 + $0xae8] sm:$0xff]
        %v762 = vld [vmem:[%s310 + $0xaf0] sm:$0xff]
        %v763 = vld [vmem:[%s310 + $0xaf8] sm:$0xff]
        %v764 = vld [vmem:[%s310 + $0xb00] sm:$0xff]
        %v765 = vld [vmem:[%s310 + $0xb08] sm:$0xff]
        %v766 = vld [vmem:[%s310 + $0xb10] sm:$0xff]
        %v767 = vld [vmem:[%s310 + $0xb18] sm:$0xff]
        %v768 = vld [vmem:[%s310 + $0xb20] sm:$0xff]
        %v769 = vld [vmem:[%s310 + $0xb28] sm:$0xff]
        %v770 = vld [vmem:[%s310 + $0xb30] sm:$0xff]
        %v771 = vld [vmem:[%s310 + $0xb38] sm:$0xff]
        %v772 = vld [vmem:[%s310 + $0xb40] sm:$0xff]
        %v773 = vld [vmem:[%s310 + $0xb48] sm:$0xff]
        %v774 = vld [vmem:[%s310 + $0xb50] sm:$0xff]
        %v775 = vld [vmem:[%s310 + $0xb58] sm:$0xff]
        %v776 = vld [vmem:[%s310 + $0xb60] sm:$0xff]
        %v777 = vld [vmem:[%s310 + $0xb68] sm:$0xff]
        %v778 = vld [vmem:[%s310 + $0xb70] sm:$0xff]
        %v779 = vld [vmem:[%s310 + $0xb78] sm:$0xff]
        %v780 = vld [vmem:[%s310 + $0xb80] sm:$0xff]
        %v781 = vld [vmem:[%s310 + $0xb88] sm:$0xff]
        %v782 = vld [vmem:[%s310 + $0xb90] sm:$0xff]
        %v783 = vld [vmem:[%s310 + $0xb98] sm:$0xff]
        %v784 = vld [vmem:[%s310 + $0xba0] sm:$0xff]
        %v785 = vld [vmem:[%s310 + $0xba8] sm:$0xff]
        %v786 = vld [vmem:[%s310 + $0xbb0] sm:$0xff]
        %v787 = vld [vmem:[%s310 + $0xbb8] sm:$0xff]
        %v788 = vld [vmem:[%s310 + $0xbc0] sm:$0xff]
        %v789 = vld [vmem:[%s310 + $0xbc8] sm:$0xff]
        %v790 = vld [vmem:[%s310 + $0xbd0] sm:$0xff]
        %v791 = vld [vmem:[%s310 + $0xbd8] sm:$0xff]
        %v792 = vld [vmem:[%s310 + $0xbe0] sm:$0xff]
        %v793 = vld [vmem:[%s310 + $0xbe8] sm:$0xff]
        %v794 = vld [vmem:[%s310 + $0xbf0] sm:$0xff]
        %v795 = vld [vmem:[%s310 + $0xbf8] sm:$0xff]
        %v796 = vld [vmem:[%s310 + $0xc00] sm:$0xff]
        %v797 = vld [vmem:[%s310 + $0xc08] sm:$0xff]
        %v798 = vld [vmem:[%s310 + $0xc10] sm:$0xff]
        %v799 = vld [vmem:[%s310 + $0xc18] sm:$0xff]
        %v800 = vld [vmem:[%s310 + $0xc20] sm:$0xff]
        %v801 = vld [vmem:[%s310 + $0xc28] sm:$0xff]
        %v802 = vld [vmem:[%s310 + $0xc30] sm:$0xff]
        %v803 = vld [vmem:[%s310 + $0xc38] sm:$0xff]
        %v804 = vld [vmem:[%s310 + $0xc40] sm:$0xff]
        %v805 = vld [vmem:[%s310 + $0xc48] sm:$0xff]
        %v806 = vld [vmem:[%s310 + $0xc50] sm:$0xff]
        %v807 = vld [vmem:[%s310 + $0xc58] sm:$0xff]
        %v808 = vld [vmem:[%s310 + $0xc60] sm:$0xff]
        %v809 = vld [vmem:[%s310 + $0xc68] sm:$0xff]
        %v810 = vld [vmem:[%s310 + $0xc70] sm:$0xff]
        %v811 = vld [vmem:[%s310 + $0xc78] sm:$0xff]
        %v812 = vld [vmem:[%s310 + $0xc80] sm:$0xff]
        %v813 = vld [vmem:[%s310 + $0xc88] sm:$0xff]
        %v814 = vld [vmem:[%s310 + $0xc90] sm:$0xff]
        %v815 = vld [vmem:[%s310 + $0xc98] sm:$0xff]
        %v816 = vld [vmem:[%s310 + $0xca0] sm:$0xff]
        %v817 = vld [vmem:[%s310 + $0xca8] sm:$0xff]
        %v818 = vld [vmem:[%s310 + $0xcb0] sm:$0xff]
        %v819 = vld [vmem:[%s310 + $0xcb8] sm:$0xff]
        %v820 = vld [vmem:[%s310 + $0xcc0] sm:$0xff]
        %v821 = vld [vmem:[%s310 + $0xcc8] sm:$0xff]
        %v822 = vld [vmem:[%s310 + $0xcd0] sm:$0xff]
        %v823 = vld [vmem:[%s310 + $0xcd8] sm:$0xff]
        %v824 = vld [vmem:[%s310 + $0xce0] sm:$0xff]
        %v825 = vld [vmem:[%s310 + $0xce8] sm:$0xff]
        %v826 = vld [vmem:[%s310 + $0xcf0] sm:$0xff]
        %v827 = vld [vmem:[%s310 + $0xcf8] sm:$0xff]
        %v828 = vld [vmem:[%s310 + $0xd00] sm:$0xff]
        %v829 = vld [vmem:[%s310 + $0xd08] sm:$0xff]
        %v830 = vld [vmem:[%s310 + $0xd10] sm:$0xff]
        %v831 = vld [vmem:[%s310 + $0xd18] sm:$0xff]
        %v832 = vld [vmem:[%s310 + $0xd20] sm:$0xff]
        %v833 = vld [vmem:[%s310 + $0xd28] sm:$0xff]
        %v834 = vld [vmem:[%s310 + $0xd30] sm:$0xff]
        %v835 = vld [vmem:[%s310 + $0xd38] sm:$0xff]
        %v836 = vld [vmem:[%s310 + $0xd40] sm:$0xff]
        %v837 = vld [vmem:[%s310 + $0xd48] sm:$0xff]
        %v838 = vld [vmem:[%s310 + $0xd50] sm:$0xff]
        %v839 = vld [vmem:[%s310 + $0xd58] sm:$0xff]
        %v840 = vld [vmem:[%s310 + $0xd60] sm:$0xff]
        %v841 = vld [vmem:[%s310 + $0xd68] sm:$0xff]
        %v842 = vld [vmem:[%s310 + $0xd70] sm:$0xff]
        %v843 = vld [vmem:[%s310 + $0xd78] sm:$0xff]
        %v844 = vld [vmem:[%s310 + $0xd80] sm:$0xff]
        %v845 = vld [vmem:[%s310 + $0xd88] sm:$0xff]
        %v846 = vld [vmem:[%s310 + $0xd90] sm:$0xff]
        %v847 = vld [vmem:[%s310 + $0xd98] sm:$0xff]
        %v848 = vld [vmem:[%s310 + $0xda0] sm:$0xff]
        %v849 = vld [vmem:[%s310 + $0xda8] sm:$0xff]
        %v850 = vld [vmem:[%s310 + $0xdb0] sm:$0xff]
        %v851 = vld [vmem:[%s310 + $0xdb8] sm:$0xff]
        %v852 = vld [vmem:[%s310 + $0xdc0] sm:$0xff]
        %v853 = vld [vmem:[%s310 + $0xdc8] sm:$0xff]
        %v854 = vld [vmem:[%s310 + $0xdd0] sm:$0xff]
        %v855 = vld [vmem:[%s310 + $0xdd8] sm:$0xff]
        %v856 = vld [vmem:[%s310 + $0xde0] sm:$0xff]
        %v857 = vld [vmem:[%s310 + $0xde8] sm:$0xff]
        %v858 = vld [vmem:[%s310 + $0xdf0] sm:$0xff]
        %v859 = vld [vmem:[%s310 + $0xdf8] sm:$0xff]
        %v860 = vld [vmem:[%s310 + $0xe00] sm:$0xff]
        %v861 = vld [vmem:[%s310 + $0xe08] sm:$0xff]
        %v862 = vld [vmem:[%s310 + $0xe10] sm:$0xff]
        %v863 = vld [vmem:[%s310 + $0xe18] sm:$0xff]
        %v864 = vld [vmem:[%s310 + $0xe20] sm:$0xff]
        %v865 = vld [vmem:[%s310 + $0xe28] sm:$0xff]
        %v866 = vld [vmem:[%s310 + $0xe30] sm:$0xff]
        %v867 = vld [vmem:[%s310 + $0xe38] sm:$0xff]
        %v868 = vld [vmem:[%s310 + $0xe40] sm:$0xff]
        %v869 = vld [vmem:[%s310 + $0xe48] sm:$0xff]
        %v870 = vld [vmem:[%s310 + $0xe50] sm:$0xff]
        %v871 = vld [vmem:[%s310 + $0xe58] sm:$0xff]
        %v872 = vld [vmem:[%s310 + $0xe60] sm:$0xff]
        %v873 = vld [vmem:[%s310 + $0xe68] sm:$0xff]
        %v874 = vld [vmem:[%s310 + $0xe70] sm:$0xff]
        %v875 = vld [vmem:[%s310 + $0xe78] sm:$0xff]
        %v876 = vld [vmem:[%s310 + $0xe80] sm:$0xff]
        %v877 = vld [vmem:[%s310 + $0xe88] sm:$0xff]
        %v878 = vld [vmem:[%s310 + $0xe90] sm:$0xff]
        %v879 = vld [vmem:[%s310 + $0xe98] sm:$0xff]
        %v880 = vld [vmem:[%s310 + $0xea0] sm:$0xff]
        %v881 = vld [vmem:[%s310 + $0xea8] sm:$0xff]
        %v882 = vld [vmem:[%s310 + $0xeb0] sm:$0xff]
        %v883 = vld [vmem:[%s310 + $0xeb8] sm:$0xff]
        %v884 = vld [vmem:[%s310 + $0xec0] sm:$0xff]
        %v885 = vld [vmem:[%s310 + $0xec8] sm:$0xff]
        %v886 = vld [vmem:[%s310 + $0xed0] sm:$0xff]
        %v887 = vld [vmem:[%s310 + $0xed8] sm:$0xff]
        %v888 = vld [vmem:[%s310 + $0xee0] sm:$0xff]
        %v889 = vld [vmem:[%s310 + $0xee8] sm:$0xff]
        %v890 = vld [vmem:[%s310 + $0xef0] sm:$0xff]
        %v891 = vld [vmem:[%s310 + $0xef8] sm:$0xff]
        %v892 = vld [vmem:[%s310 + $0xf00] sm:$0xff]
        %v893 = vld [vmem:[%s310 + $0xf08] sm:$0xff]
        %v894 = vld [vmem:[%s310 + $0xf10] sm:$0xff]
        %v895 = vld [vmem:[%s310 + $0xf18] sm:$0xff]
        %v896 = vld [vmem:[%s310 + $0xf20] sm:$0xff]
        %v897 = vld [vmem:[%s310 + $0xf28] sm:$0xff]
        %v898 = vld [vmem:[%s310 + $0xf30] sm:$0xff]
        %v899 = vld [vmem:[%s310 + $0xf38] sm:$0xff]
        %v900 = vld [vmem:[%s310 + $0xf40] sm:$0xff]
        %v901 = vld [vmem:[%s310 + $0xf48] sm:$0xff]
        %v902 = vld [vmem:[%s310 + $0xf50] sm:$0xff]
        %v903 = vld [vmem:[%s310 + $0xf58] sm:$0xff]
        %v904 = vld [vmem:[%s310 + $0xf60] sm:$0xff]
        %v905 = vld [vmem:[%s310 + $0xf68] sm:$0xff]
        %v906 = vld [vmem:[%s310 + $0xf70] sm:$0xff]
        %v907 = vld [vmem:[%s310 + $0xf78] sm:$0xff]
        %v908 = vld [vmem:[%s310 + $0xf80] sm:$0xff]
        %v909 = vld [vmem:[%s310 + $0xf88] sm:$0xff]
        %v910 = vld [vmem:[%s310 + $0xf90] sm:$0xff]
        %v911 = vld [vmem:[%s310 + $0xf98] sm:$0xff]
        %v912 = vld [vmem:[%s310 + $0xfa0] sm:$0xff]
        %v913 = vld [vmem:[%s310 + $0xfa8] sm:$0xff]
        %v914 = vld [vmem:[%s310 + $0xfb0] sm:$0xff]
        %v915 = vld [vmem:[%s310 + $0xfb8] sm:$0xff]
        %v916 = vld [vmem:[%s310 + $0xfc0] sm:$0xff]
        %v917 = vld [vmem:[%s310 + $0xfc8] sm:$0xff]
        %v918 = vld [vmem:[%s310 + $0xfd0] sm:$0xff]
        %v919 = vld [vmem:[%s310 + $0xfd8] sm:$0xff]
        %v920 = vld [vmem:[%s310 + $0xfe0] sm:$0xff]
        %v921 = vld [vmem:[%s310 + $0xfe8] sm:$0xff]
        %v922 = vld [vmem:[%s310 + $0xff0] sm:$0xff]
        %v923 = vld [vmem:[%s310 + $0xff8] sm:$0xff]
        %v924 = vld [vmem:[%s310 + $0x1000] sm:$0xff]
        %v925 = vld [vmem:[%s310 + $0x1008] sm:$0xff]
        %v926 = vld [vmem:[%s310 + $0x1010] sm:$0xff]
        %v927 = vld [vmem:[%s310 + $0x1018] sm:$0xff]
        %v928 = vld [vmem:[%s310 + $0x1020] sm:$0xff]
        %v929 = vld [vmem:[%s310 + $0x1028] sm:$0xff]
        %v930 = vld [vmem:[%s310 + $0x1030] sm:$0xff]
        %v931 = vld [vmem:[%s310 + $0x1038] sm:$0xff]
        %v932 = vld [vmem:[%s310 + $0x1040] sm:$0xff]
        %v933 = vld [vmem:[%s310 + $0x1048] sm:$0xff]
        %v934 = vld [vmem:[%s310 + $0x1050] sm:$0xff]
        %v935 = vld [vmem:[%s310 + $0x1058] sm:$0xff]
        %v936 = vld [vmem:[%s310 + $0x1060] sm:$0xff]
        %v937 = vld [vmem:[%s310 + $0x1068] sm:$0xff]
        %v938 = vld [vmem:[%s310 + $0x1070] sm:$0xff]
        %v939 = vld [vmem:[%s310 + $0x1078] sm:$0xff]
        %v940 = vld [vmem:[%s310 + $0x1080] sm:$0xff]
        %v941 = vld [vmem:[%s310 + $0x1088] sm:$0xff]
        %v942 = vld [vmem:[%s310 + $0x1090] sm:$0xff]
        %v943 = vld [vmem:[%s310 + $0x1098] sm:$0xff]
        %v944 = vld [vmem:[%s310 + $0x10a0] sm:$0xff]
        %v945 = vld [vmem:[%s310 + $0x10a8] sm:$0xff]
        %v946 = vld [vmem:[%s310 + $0x10b0] sm:$0xff]
        %v947 = vld [vmem:[%s310 + $0x10b8] sm:$0xff]
        %v948 = vld [vmem:[%s310 + $0x10c0] sm:$0xff]
        %v949 = vld [vmem:[%s310 + $0x10c8] sm:$0xff]
        %v950 = vld [vmem:[%s310 + $0x10d0] sm:$0xff]
        %v951 = vld [vmem:[%s310 + $0x10d8] sm:$0xff]
        %v952 = vld [vmem:[%s310 + $0x10e0] sm:$0xff]
        %v953 = vld [vmem:[%s310 + $0x10e8] sm:$0xff]
        %v954 = vld [vmem:[%s310 + $0x10f0] sm:$0xff]
        %v955 = vld [vmem:[%s310 + $0x10f8] sm:$0xff]
        %v956 = vld [vmem:[%s310 + $0x1100] sm:$0xff]
        %v957 = vld [vmem:[%s310 + $0x1108] sm:$0xff]
        %v958 = vld [vmem:[%s310 + $0x1110] sm:$0xff]
        %v959 = vld [vmem:[%s310 + $0x1118] sm:$0xff]
        %v960 = vld [vmem:[%s310 + $0x1120] sm:$0xff]
        %v961 = vld [vmem:[%s310 + $0x1128] sm:$0xff]
        %v962 = vld [vmem:[%s310 + $0x1130] sm:$0xff]
        %v963 = vld [vmem:[%s310 + $0x1138] sm:$0xff]
        %v964 = vld [vmem:[%s310 + $0x1140] sm:$0xff]
        %v965 = vld [vmem:[%s310 + $0x1148] sm:$0xff]
        %v966 = vld [vmem:[%s310 + $0x1150] sm:$0xff]
        %v967 = vld [vmem:[%s310 + $0x1158] sm:$0xff]
        %v968 = vld [vmem:[%s310 + $0x1160] sm:$0xff]
        %v969 = vld [vmem:[%s310 + $0x1168] sm:$0xff]
        %v970 = vld [vmem:[%s310 + $0x1170] sm:$0xff]
        %v971 = vld [vmem:[%s310 + $0x1178] sm:$0xff]
        %v972 = vld [vmem:[%s310 + $0x1180] sm:$0xff]
        %v973 = vld [vmem:[%s310 + $0x1188] sm:$0xff]
        %v974 = vld [vmem:[%s310 + $0x1190] sm:$0xff]
        %v975 = vld [vmem:[%s310 + $0x1198] sm:$0xff]
        %v976 = vld [vmem:[%s310 + $0x11a0] sm:$0xff]
        %v977 = vld [vmem:[%s310 + $0x11a8] sm:$0xff]
        %v978 = vld [vmem:[%s310 + $0x11b0] sm:$0xff]
        %v979 = vld [vmem:[%s310 + $0x11b8] sm:$0xff]
        %v980 = vld [vmem:[%s310 + $0x11c0] sm:$0xff]
        %v981 = vld [vmem:[%s310 + $0x11c8] sm:$0xff]
        %v982 = vld [vmem:[%s310 + $0x11d0] sm:$0xff]
        %v983 = vld [vmem:[%s310 + $0x11d8] sm:$0xff]
        %v984 = vld [vmem:[%s310 + $0x11e0] sm:$0xff]
        %v985 = vld [vmem:[%s310 + $0x11e8] sm:$0xff]
        %v986 = vld [vmem:[%s310 + $0x11f0] sm:$0xff]
        %v987 = vld [vmem:[%s310 + $0x11f8] sm:$0xff]
        %v988 = vld [vmem:[%s310 + $0x1200] sm:$0xff]
        %v989 = vld [vmem:[%s310 + $0x1208] sm:$0xff]
        %v990 = vld [vmem:[%s310 + $0x1210] sm:$0xff]
        %v991 = vld [vmem:[%s310 + $0x1218] sm:$0xff]
        %v992 = vld [vmem:[%s310 + $0x1220] sm:$0xff]
        %v993 = vld [vmem:[%s310 + $0x1228] sm:$0xff]
        %v994 = vld [vmem:[%s310 + $0x1230] sm:$0xff]
        %v995 = vld [vmem:[%s310 + $0x1238] sm:$0xff]
        %v996 = vld [vmem:[%s310 + $0x1240] sm:$0xff]
        %v997 = vld [vmem:[%s310 + $0x1248] sm:$0xff]
        %v998 = vld [vmem:[%s310 + $0x1250] sm:$0xff]
        %v999 = vld [vmem:[%s310 + $0x1258] sm:$0xff]
        %v1000 = vld [vmem:[%s310 + $0x1260] sm:$0xff]
        %v1001 = vld [vmem:[%s310 + $0x1268] sm:$0xff]
        %v1002 = vld [vmem:[%s310 + $0x1270] sm:$0xff]
        %v1003 = vld [vmem:[%s310 + $0x1278] sm:$0xff]
        %v1004 = vld [vmem:[%s310 + $0x1280] sm:$0xff]
        %v1005 = vld [vmem:[%s310 + $0x1288] sm:$0xff]
        %v1006 = vld [vmem:[%s310 + $0x1290] sm:$0xff]
        %v1007 = vld [vmem:[%s310 + $0x1298] sm:$0xff]
        %v1008 = vld [vmem:[%s310 + $0x12a0] sm:$0xff]
        %v1009 = vld [vmem:[%s310 + $0x12a8] sm:$0xff]
        %v1010 = vld [vmem:[%s310 + $0x12b0] sm:$0xff]
        %v1011 = vld [vmem:[%s310 + $0x12b8] sm:$0xff]
        %v1012 = vld [vmem:[%s310 + $0x12c0] sm:$0xff]
        %v1013 = vld [vmem:[%s310 + $0x12c8] sm:$0xff]
        %v1014 = vld [vmem:[%s310 + $0x12d0] sm:$0xff]
        %v1015 = vld [vmem:[%s310 + $0x12d8] sm:$0xff]
        %v1016 = vld [vmem:[%s310 + $0x12e0] sm:$0xff]
        %v1017 = vld [vmem:[%s310 + $0x12e8] sm:$0xff]
        %v1018 = vld [vmem:[%s310 + $0x12f0] sm:$0xff]
        %v1019 = vld [vmem:[%s310 + $0x12f8] sm:$0xff]
        %v1020 = vld [vmem:[%s310 + $0x1300] sm:$0xff]
        %v1021 = vld [vmem:[%s310 + $0x1308] sm:$0xff]
        %v1022 = vld [vmem:[%s310 + $0x1310] sm:$0xff]
        %v1023 = vld [vmem:[%s310 + $0x1318] sm:$0xff]
        %v1024 = vld [vmem:[%s310 + $0x1320] sm:$0xff]
        %v1025 = vld [vmem:[%s310 + $0x1328] sm:$0xff]
        %v1026 = vld [vmem:[%s310 + $0x1330] sm:$0xff]
        %v1027 = vld [vmem:[%s310 + $0x1338] sm:$0xff]
        %v1028 = vld [vmem:[%s310 + $0x1340] sm:$0xff]
        %v1029 = vld [vmem:[%s310 + $0x1348] sm:$0xff]
        %v1030 = vld [vmem:[%s310 + $0x1350] sm:$0xff]
        %v1031 = vld [vmem:[%s310 + $0x1358] sm:$0xff]
        %v1032 = vld [vmem:[%s310 + $0x1360] sm:$0xff]
        %v1033 = vld [vmem:[%s310 + $0x1368] sm:$0xff]
        %v1034 = vld [vmem:[%s310 + $0x1370] sm:$0xff]
        %v1035 = vld [vmem:[%s310 + $0x1378] sm:$0xff]
        %v1036 = vld [vmem:[%s310 + $0x1380] sm:$0xff]
        %v1037 = vld [vmem:[%s310 + $0x1388] sm:$0xff]
        %v1038 = vld [vmem:[%s310 + $0x1390] sm:$0xff]
        %v1039 = vld [vmem:[%s310 + $0x1398] sm:$0xff]
        %v1040 = vld [vmem:[%s310 + $0x13a0] sm:$0xff]
        %v1041 = vld [vmem:[%s310 + $0x13a8] sm:$0xff]
        %v1042 = vld [vmem:[%s310 + $0x13b0] sm:$0xff]
        %v1043 = vld [vmem:[%s310 + $0x13b8] sm:$0xff]
        %v1044 = vld [vmem:[%s310 + $0x13c0] sm:$0xff]
        %v1045 = vld [vmem:[%s310 + $0x13c8] sm:$0xff]
        %v1046 = vld [vmem:[%s310 + $0x13d0] sm:$0xff]
        %v1047 = vld [vmem:[%s310 + $0x13d8] sm:$0xff]
        %v1048 = vld [vmem:[%s310 + $0x13e0] sm:$0xff]
        %v1049 = vld [vmem:[%s310 + $0x13e8] sm:$0xff]
        %v1050 = vld [vmem:[%s310 + $0x13f0] sm:$0xff]
        %v1051 = vld [vmem:[%s310 + $0x13f8] sm:$0xff]
        %v1052 = vld [vmem:[%s310 + $0x1400] sm:$0xff]
        %v1053 = vld [vmem:[%s310 + $0x1408] sm:$0xff]
        %v1054 = vld [vmem:[%s310 + $0x1410] sm:$0xff]
        %v1055 = vld [vmem:[%s310 + $0x1418] sm:$0xff]
        %v1056 = vld [vmem:[%s310 + $0x1420] sm:$0xff]
        %v1057 = vld [vmem:[%s310 + $0x1428] sm:$0xff]
        %v1058 = vld [vmem:[%s310 + $0x1430] sm:$0xff]
        %v1059 = vld [vmem:[%s310 + $0x1438] sm:$0xff]
        %v1060 = vld [vmem:[%s310 + $0x1440] sm:$0xff]
        %v1061 = vld [vmem:[%s310 + $0x1448] sm:$0xff]
        %v1062 = vld [vmem:[%s310 + $0x1450] sm:$0xff]
        %v1063 = vld [vmem:[%s310 + $0x1458] sm:$0xff]
        %v1064 = vld [vmem:[%s310 + $0x1460] sm:$0xff]
        %v1065 = vld [vmem:[%s310 + $0x1468] sm:$0xff]
        %v1066 = vld [vmem:[%s310 + $0x1470] sm:$0xff]
        %v1067 = vld [vmem:[%s310 + $0x1478] sm:$0xff]
        %v1068 = vld [vmem:[%s310 + $0x1480] sm:$0xff]
        %v1069 = vld [vmem:[%s310 + $0x1488] sm:$0xff]
        %v1070 = vld [vmem:[%s310 + $0x1490] sm:$0xff]
        %v1071 = vld [vmem:[%s310 + $0x1498] sm:$0xff]
        %v1072 = vld [vmem:[%s310 + $0x14a0] sm:$0xff]
        %v1073 = vld [vmem:[%s310 + $0x14a8] sm:$0xff]
        %v1074 = vld [vmem:[%s310 + $0x14b0] sm:$0xff]
        %v1075 = vld [vmem:[%s310 + $0x14b8] sm:$0xff]
        %v1076 = vld [vmem:[%s310 + $0x14c0] sm:$0xff]
        %v1077 = vld [vmem:[%s310 + $0x14c8] sm:$0xff]
        %v1078 = vld [vmem:[%s310 + $0x14d0] sm:$0xff]
        %v1079 = vld [vmem:[%s310 + $0x14d8] sm:$0xff]
        %v1080 = vld [vmem:[%s310 + $0x14e0] sm:$0xff]
        %v1081 = vld [vmem:[%s310 + $0x14e8] sm:$0xff]
        %v1082 = vld [vmem:[%s310 + $0x14f0] sm:$0xff]
        %v1083 = vld [vmem:[%s310 + $0x14f8] sm:$0xff]
        %v1084 = vld [vmem:[%s310 + $0x1500] sm:$0xff]
        %v1085 = vld [vmem:[%s310 + $0x1508] sm:$0xff]
        %v1086 = vld [vmem:[%s310 + $0x1510] sm:$0xff]
        %v1087 = vld [vmem:[%s310 + $0x1518] sm:$0xff]
        %v1088 = vld [vmem:[%s310 + $0x1520] sm:$0xff]
        %v1089 = vld [vmem:[%s310 + $0x1528] sm:$0xff]
        %v1090 = vld [vmem:[%s310 + $0x1530] sm:$0xff]
        %v1091 = vld [vmem:[%s310 + $0x1538] sm:$0xff]
        %v1092 = vld [vmem:[%s310 + $0x1540] sm:$0xff]
        %v1093 = vld [vmem:[%s310 + $0x1548] sm:$0xff]
        %v1094 = vld [vmem:[%s310 + $0x1550] sm:$0xff]
        %v1095 = vld [vmem:[%s310 + $0x1558] sm:$0xff]
        %v1096 = vld [vmem:[%s310 + $0x1560] sm:$0xff]
        %v1097 = vld [vmem:[%s310 + $0x1568] sm:$0xff]
        %v1098 = vld [vmem:[%s310 + $0x1570] sm:$0xff]
        %v1099 = vld [vmem:[%s310 + $0x1578] sm:$0xff]
        %v1100 = vld [vmem:[%s310 + $0x1580] sm:$0xff]
        %v1101 = vld [vmem:[%s310 + $0x1588] sm:$0xff]
        %v1102 = vld [vmem:[%s310 + $0x1590] sm:$0xff]
        %v1103 = vld [vmem:[%s310 + $0x1598] sm:$0xff]
        %v1104 = vld [vmem:[%s310 + $0x15a0] sm:$0xff]
        %v1105 = vld [vmem:[%s310 + $0x15a8] sm:$0xff]
        %v1106 = vld [vmem:[%s310 + $0x15b0] sm:$0xff]
        %v1107 = vld [vmem:[%s310 + $0x15b8] sm:$0xff]
        %v1108 = vld [vmem:[%s310 + $0x15c0] sm:$0xff]
        %v1109 = vld [vmem:[%s310 + $0x15c8] sm:$0xff]
        %v1110 = vld [vmem:[%s310 + $0x15d0] sm:$0xff]
        %v1111 = vld [vmem:[%s310 + $0x15d8] sm:$0xff]
        %v1112 = vld [vmem:[%s310 + $0x15e0] sm:$0xff]
        %v1113 = vld [vmem:[%s310 + $0x15e8] sm:$0xff]
        %v1114 = vld [vmem:[%s310 + $0x15f0] sm:$0xff]
        %v1115 = vld [vmem:[%s310 + $0x15f8] sm:$0xff]
        %v1116 = vld [vmem:[%s310 + $0x1600] sm:$0xff]
        %v1117 = vld [vmem:[%s310 + $0x1608] sm:$0xff]
        %v1118 = vld [vmem:[%s310 + $0x1610] sm:$0xff]
        %v1119 = vld [vmem:[%s310 + $0x1618] sm:$0xff]
        %v1120 = vld [vmem:[%s310 + $0x1620] sm:$0xff]
        %v1121 = vld [vmem:[%s310 + $0x1628] sm:$0xff]
        %v1122 = vld [vmem:[%s310 + $0x1630] sm:$0xff]
        %v1123 = vld [vmem:[%s310 + $0x1638] sm:$0xff]
        %v1124 = vld [vmem:[%s310 + $0x1640] sm:$0xff]
        %v1125 = vld [vmem:[%s310 + $0x1648] sm:$0xff]
        %v1126 = vld [vmem:[%s310 + $0x1650] sm:$0xff]
        %v1127 = vld [vmem:[%s310 + $0x1658] sm:$0xff]
        %v1128 = vld [vmem:[%s310 + $0x1660] sm:$0xff]
        %v1129 = vld [vmem:[%s310 + $0x1668] sm:$0xff]
        %v1130 = vld [vmem:[%s310 + $0x1670] sm:$0xff]
        %v1131 = vld [vmem:[%s310 + $0x1678] sm:$0xff]
        %v1132 = vld [vmem:[%s310 + $0x1680] sm:$0xff]
        %v1133 = vld [vmem:[%s310 + $0x1688] sm:$0xff]
        %v1134 = vld [vmem:[%s310 + $0x1690] sm:$0xff]
        %v1135 = vld [vmem:[%s310 + $0x1698] sm:$0xff]
        %v1136 = vld [vmem:[%s310 + $0x16a0] sm:$0xff]
        %v1137 = vld [vmem:[%s310 + $0x16a8] sm:$0xff]
        %v1138 = vld [vmem:[%s310 + $0x16b0] sm:$0xff]
        %v1139 = vld [vmem:[%s310 + $0x16b8] sm:$0xff]
        %v1140 = vld [vmem:[%s310 + $0x16c0] sm:$0xff]
        %v1141 = vld [vmem:[%s310 + $0x16c8] sm:$0xff]
        %v1142 = vld [vmem:[%s310 + $0x16d0] sm:$0xff]
        %v1143 = vld [vmem:[%s310 + $0x16d8] sm:$0xff]
        %v1144 = vld [vmem:[%s310 + $0x16e0] sm:$0xff]
        %v1145 = vld [vmem:[%s310 + $0x16e8] sm:$0xff]
        %v1146 = vld [vmem:[%s310 + $0x16f0] sm:$0xff]
        %v1147 = vld [vmem:[%s310 + $0x16f8] sm:$0xff]
        %v1148 = vld [vmem:[%s310 + $0x1700] sm:$0xff]
        %v1149 = vld [vmem:[%s310 + $0x1708] sm:$0xff]
        %v1150 = vld [vmem:[%s310 + $0x1710] sm:$0xff]
        %v1151 = vld [vmem:[%s310 + $0x1718] sm:$0xff]
        %v1152 = vld [vmem:[%s310 + $0x1720] sm:$0xff]
        %v1153 = vld [vmem:[%s310 + $0x1728] sm:$0xff]
        %v1154 = vld [vmem:[%s310 + $0x1730] sm:$0xff]
        %v1155 = vld [vmem:[%s310 + $0x1738] sm:$0xff]
        %v1156 = vld [vmem:[%s310 + $0x1740] sm:$0xff]
        %v1157 = vld [vmem:[%s310 + $0x1748] sm:$0xff]
        %v1158 = vld [vmem:[%s310 + $0x1750] sm:$0xff]
        %v1159 = vld [vmem:[%s310 + $0x1758] sm:$0xff]
        %v1160 = vld [vmem:[%s310 + $0x1760] sm:$0xff]
        %v1161 = vld [vmem:[%s310 + $0x1768] sm:$0xff]
        %v1162 = vld [vmem:[%s310 + $0x1770] sm:$0xff]
        %v1163 = vld [vmem:[%s310 + $0x1778] sm:$0xff]
        %v1164 = vld [vmem:[%s310 + $0x1780] sm:$0xff]
        %v1165 = vld [vmem:[%s310 + $0x1788] sm:$0xff]
        %v1166 = vld [vmem:[%s310 + $0x1790] sm:$0xff]
        %v1167 = vld [vmem:[%s310 + $0x1798] sm:$0xff]
        %v1168 = vld [vmem:[%s310 + $0x17a0] sm:$0xff]
        %v1169 = vld [vmem:[%s310 + $0x17a8] sm:$0xff]
        %v1170 = vld [vmem:[%s310 + $0x17b0] sm:$0xff]
        %v1171 = vld [vmem:[%s310 + $0x17b8] sm:$0xff]
        %v1172 = vld [vmem:[%s310 + $0x17c0] sm:$0xff]
        %v1173 = vld [vmem:[%s310 + $0x17c8] sm:$0xff]
        %v1174 = vld [vmem:[%s310 + $0x17d0] sm:$0xff]
        %v1175 = vld [vmem:[%s310 + $0x17d8] sm:$0xff]
        %v1176 = vld [vmem:[%s310 + $0x17e0] sm:$0xff]
        %v1177 = vld [vmem:[%s310 + $0x17e8] sm:$0xff]
        %v1178 = vld [vmem:[%s310 + $0x17f0] sm:$0xff]
        %v1179 = vld [vmem:[%s310 + $0x17f8] sm:$0xff]
        %1181 = vst [vmem:[#allocation1] ss:$9 sm:$0xff] %v409
        %v1182 = vld [vmem:[#allocation1] sm:$0xff]
        %v1183 = vld [vmem:[#allocation1 + $0x9] sm:$0xff]
        %v1184 = vld [vmem:[#allocation1 + $0x12] sm:$0xff]
        %v1185 = vld [vmem:[#allocation1 + $0x1b] sm:$0xff]
        %v1186 = vld [vmem:[#allocation1 + $0x24] sm:$0xff]
        %v1187 = vld [vmem:[#allocation1 + $0x2d] sm:$0xff]
        %v1188 = vld [vmem:[#allocation1 + $0x36] sm:$0xff]
        %v1189 = vld [vmem:[#allocation1 + $0x3f] sm:$0xff]
        %1191 = vst [vmem:[#allocation1] ss:$9 sm:$0xff] %v410
        %v1192 = vld [vmem:[#allocation1] sm:$0xff]
        %v1193 = vld [vmem:[#allocation1 + $0x9] sm:$0xff]
        %v1194 = vld [vmem:[#allocation1 + $0x12] sm:$0xff]
        %v1195 = vld [vmem:[#allocation1 + $0x1b] sm:$0xff]
        %v1196 = vld [vmem:[#allocation1 + $0x24] sm:$0xff]
        %v1197 = vld [vmem:[#allocation1 + $0x2d] sm:$0xff]
        %v1198 = vld [vmem:[#allocation1 + $0x36] sm:$0xff]
        %v1199 = vld [vmem:[#allocation1 + $0x3f] sm:$0xff]
        %1201 = vst [vmem:[#allocation1] ss:$9 sm:$0xff] %v411
        %v1202 = vld [vmem:[#allocation1] sm:$0xff]
        %v1203 = vld [vmem:[#allocation1 + $0x9] sm:$0xff]
        %v1204 = vld [vmem:[#allocation1 + $0x12] sm:$0xff]
        %v1205 = vld [vmem:[#allocation1 + $0x1b] sm:$0xff]
        %v1206 = vld [vmem:[#allocation1 + $0x24] sm:$0xff]
        %v1207 = vld [vmem:[#allocation1 + $0x2d] sm:$0xff]
        %v1208 = vld [vmem:[#allocation1 + $0x36] sm:$0xff]
        %v1209 = vld [vmem:[#allocation1 + $0x3f] sm:$0xff]
        %v2002 = vunpack.c.l.b16 %v412
        %v2003 = vunpack.c.h.b16 %v412
        %v2004 = vunpack.c.l.b16 %v413
        %v2005 = vunpack.c.h.b16 %v413
        %v2006 = vunpack.c.l.b16 %v414
        %v2007 = vunpack.c.h.b16 %v414
        %v2008 = vunpack.c.l.b16 %v415
        %v2009 = vunpack.c.h.b16 %v415
        %v2010 = vunpack.c.l.b16 %v416
        %v2011 = vunpack.c.h.b16 %v416
        %v2012 = vunpack.c.l.b16 %v417
        %v2013 = vunpack.c.h.b16 %v417
        %v2014 = vunpack.c.l.b16 %v418
        %v2015 = vunpack.c.h.b16 %v418
        %v2016 = vunpack.c.l.b16 %v419
        %v2017 = vunpack.c.h.b16 %v419
        %v2018 = vunpack.c.l.b16 %v420
        %v2019 = vunpack.c.h.b16 %v420
        %v2020 = vunpack.c.l.b16 %v421
        %v2021 = vunpack.c.h.b16 %v421
        %v2022 = vunpack.c.l.b16 %v422
        %v2023 = vunpack.c.h.b16 %v422
        %v2024 = vunpack.c.l.b16 %v423
        %v2025 = vunpack.c.h.b16 %v423
        %v2026 = vunpack.c.l.b16 %v424
        %v2027 = vunpack.c.h.b16 %v424
        %v2028 = vunpack.c.l.b16 %v425
        %v2029 = vunpack.c.h.b16 %v425
        %v2030 = vunpack.c.l.b16 %v426
        %v2031 = vunpack.c.h.b16 %v426
        %v2032 = vunpack.c.l.b16 %v427
        %v2033 = vunpack.c.h.b16 %v427
        %v2034 = vunpack.c.l.b16 %v428
        %v2035 = vunpack.c.h.b16 %v428
        %v2036 = vunpack.c.l.b16 %v429
        %v2037 = vunpack.c.h.b16 %v429
        %v2038 = vunpack.c.l.b16 %v430
        %v2039 = vunpack.c.h.b16 %v430
        %v2040 = vunpack.c.l.b16 %v431
        %v2041 = vunpack.c.h.b16 %v431
        %v2042 = vunpack.c.l.b16 %v432
        %v2043 = vunpack.c.h.b16 %v432
        %v2044 = vunpack.c.l.b16 %v433
        %v2045 = vunpack.c.h.b16 %v433
        %v2046 = vunpack.c.l.b16 %v434
        %v2047 = vunpack.c.h.b16 %v434
        %v2048 = vunpack.c.l.b16 %v435
        %v2049 = vunpack.c.h.b16 %v435
        %v2050 = vunpack.c.l.b16 %v436
        %v2051 = vunpack.c.h.b16 %v436
        %v2052 = vunpack.c.l.b16 %v437
        %v2053 = vunpack.c.h.b16 %v437
        %v2054 = vunpack.c.l.b16 %v438
        %v2055 = vunpack.c.h.b16 %v438
        %v2056 = vunpack.c.l.b16 %v439
        %v2057 = vunpack.c.h.b16 %v439
        %v2058 = vunpack.c.l.b16 %v440
        %v2059 = vunpack.c.h.b16 %v440
        %v2060 = vunpack.c.l.b16 %v441
        %v2061 = vunpack.c.h.b16 %v441
        %v2062 = vunpack.c.l.b16 %v442
        %v2063 = vunpack.c.h.b16 %v442
        %v2064 = vunpack.c.l.b16 %v443
        %v2065 = vunpack.c.h.b16 %v443
        %v2066 = vunpack.c.l.b16 %v444
        %v2067 = vunpack.c.h.b16 %v444
        %v2068 = vunpack.c.l.b16 %v445
        %v2069 = vunpack.c.h.b16 %v445
        %v2070 = vunpack.c.l.b16 %v446
        %v2071 = vunpack.c.h.b16 %v446
        %v2072 = vunpack.c.l.b16 %v447
        %v2073 = vunpack.c.h.b16 %v447
        %v2074 = vunpack.c.l.b16 %v448
        %v2075 = vunpack.c.h.b16 %v448
        %v2076 = vunpack.c.l.b16 %v449
        %v2077 = vunpack.c.h.b16 %v449
        %v2078 = vunpack.c.l.b16 %v450
        %v2079 = vunpack.c.h.b16 %v450
        %v2080 = vunpack.c.l.b16 %v451
        %v2081 = vunpack.c.h.b16 %v451
        %v2082 = vunpack.c.l.b16 %v452
        %v2083 = vunpack.c.h.b16 %v452
        %v2084 = vunpack.c.l.b16 %v453
        %v2085 = vunpack.c.h.b16 %v453
        %v2086 = vunpack.c.l.b16 %v454
        %v2087 = vunpack.c.h.b16 %v454
        %v2088 = vunpack.c.l.b16 %v455
        %v2089 = vunpack.c.h.b16 %v455
        %v2090 = vunpack.c.l.b16 %v456
        %v2091 = vunpack.c.h.b16 %v456
        %v2092 = vunpack.c.l.b16 %v457
        %v2093 = vunpack.c.h.b16 %v457
        %v2094 = vunpack.c.l.b16 %v458
        %v2095 = vunpack.c.h.b16 %v458
        %v2096 = vunpack.c.l.b16 %v459
        %v2097 = vunpack.c.h.b16 %v459
        %v2098 = vunpack.c.l.b16 %v460
        %v2099 = vunpack.c.h.b16 %v460
        %v2100 = vunpack.c.l.b16 %v461
        %v2101 = vunpack.c.h.b16 %v461
        %v2102 = vunpack.c.l.b16 %v462
        %v2103 = vunpack.c.h.b16 %v462
        %v2104 = vunpack.c.l.b16 %v463
        %v2105 = vunpack.c.h.b16 %v463
        %v2106 = vunpack.c.l.b16 %v464
        %v2107 = vunpack.c.h.b16 %v464
        %v2108 = vunpack.c.l.b16 %v465
        %v2109 = vunpack.c.h.b16 %v465
        %v2110 = vunpack.c.l.b16 %v466
        %v2111 = vunpack.c.h.b16 %v466
        %v2112 = vunpack.c.l.b16 %v467
        %v2113 = vunpack.c.h.b16 %v467
        %v2114 = vunpack.c.l.b16 %v468
        %v2115 = vunpack.c.h.b16 %v468
        %v2116 = vunpack.c.l.b16 %v469
        %v2117 = vunpack.c.h.b16 %v469
        %v2118 = vunpack.c.l.b16 %v470
        %v2119 = vunpack.c.h.b16 %v470
        %v2120 = vunpack.c.l.b16 %v471
        %v2121 = vunpack.c.h.b16 %v471
        %v2122 = vunpack.c.l.b16 %v472
        %v2123 = vunpack.c.h.b16 %v472
        %v2124 = vunpack.c.l.b16 %v473
        %v2125 = vunpack.c.h.b16 %v473
        %v2126 = vunpack.c.l.b16 %v474
        %v2127 = vunpack.c.h.b16 %v474
        %v2128 = vunpack.c.l.b16 %v475
        %v2129 = vunpack.c.h.b16 %v475
        %v2130 = vunpack.c.l.b16 %v476
        %v2131 = vunpack.c.h.b16 %v476
        %v2132 = vunpack.c.l.b16 %v477
        %v2133 = vunpack.c.h.b16 %v477
        %v2134 = vunpack.c.l.b16 %v478
        %v2135 = vunpack.c.h.b16 %v478
        %v2136 = vunpack.c.l.b16 %v479
        %v2137 = vunpack.c.h.b16 %v479
        %v2138 = vunpack.c.l.b16 %v480
        %v2139 = vunpack.c.h.b16 %v480
        %v2140 = vunpack.c.l.b16 %v481
        %v2141 = vunpack.c.h.b16 %v481
        %v2142 = vunpack.c.l.b16 %v482
        %v2143 = vunpack.c.h.b16 %v482
        %v2144 = vunpack.c.l.b16 %v483
        %v2145 = vunpack.c.h.b16 %v483
        %v2146 = vunpack.c.l.b16 %v484
        %v2147 = vunpack.c.h.b16 %v484
        %v2148 = vunpack.c.l.b16 %v485
        %v2149 = vunpack.c.h.b16 %v485
        %v2150 = vunpack.c.l.b16 %v486
        %v2151 = vunpack.c.h.b16 %v486
        %v2152 = vunpack.c.l.b16 %v487
        %v2153 = vunpack.c.h.b16 %v487
        %v2154 = vunpack.c.l.b16 %v488
        %v2155 = vunpack.c.h.b16 %v488
        %v2156 = vunpack.c.l.b16 %v489
        %v2157 = vunpack.c.h.b16 %v489
        %v2158 = vunpack.c.l.b16 %v490
        %v2159 = vunpack.c.h.b16 %v490
        %v2160 = vunpack.c.l.b16 %v491
        %v2161 = vunpack.c.h.b16 %v491
        %v2162 = vunpack.c.l.b16 %v492
        %v2163 = vunpack.c.h.b16 %v492
        %v2164 = vunpack.c.l.b16 %v493
        %v2165 = vunpack.c.h.b16 %v493
        %v2166 = vunpack.c.l.b16 %v494
        %v2167 = vunpack.c.h.b16 %v494
        %v2168 = vunpack.c.l.b16 %v495
        %v2169 = vunpack.c.h.b16 %v495
        %v2170 = vunpack.c.l.b16 %v496
        %v2171 = vunpack.c.h.b16 %v496
        %v2172 = vunpack.c.l.b16 %v497
        %v2173 = vunpack.c.h.b16 %v497
        %v2174 = vunpack.c.l.b16 %v498
        %v2175 = vunpack.c.h.b16 %v498
        %v2176 = vunpack.c.l.b16 %v499
        %v2177 = vunpack.c.h.b16 %v499
        %v2178 = vunpack.c.l.b16 %v500
        %v2179 = vunpack.c.h.b16 %v500
        %v2180 = vunpack.c.l.b16 %v501
        %v2181 = vunpack.c.h.b16 %v501
        %v2182 = vunpack.c.l.b16 %v502
        %v2183 = vunpack.c.h.b16 %v502
        %v2184 = vunpack.c.l.b16 %v503
        %v2185 = vunpack.c.h.b16 %v503
        %v2186 = vunpack.c.l.b16 %v504
        %v2187 = vunpack.c.h.b16 %v504
        %v2188 = vunpack.c.l.b16 %v505
        %v2189 = vunpack.c.h.b16 %v505
        %v2190 = vunpack.c.l.b16 %v506
        %v2191 = vunpack.c.h.b16 %v506
        %v2192 = vunpack.c.l.b16 %v507
        %v2193 = vunpack.c.h.b16 %v507
        %v2194 = vunpack.c.l.b16 %v508
        %v2195 = vunpack.c.h.b16 %v508
        %v2196 = vunpack.c.l.b16 %v509
        %v2197 = vunpack.c.h.b16 %v509
        %v2198 = vunpack.c.l.b16 %v510
        %v2199 = vunpack.c.h.b16 %v510
        %v2200 = vunpack.c.l.b16 %v511
        %v2201 = vunpack.c.h.b16 %v511
        %v2202 = vunpack.c.l.b16 %v512
        %v2203 = vunpack.c.h.b16 %v512
        %v2204 = vunpack.c.l.b16 %v513
        %v2205 = vunpack.c.h.b16 %v513
        %v2206 = vunpack.c.l.b16 %v514
        %v2207 = vunpack.c.h.b16 %v514
        %v2208 = vunpack.c.l.b16 %v515
        %v2209 = vunpack.c.h.b16 %v515
        %v2210 = vunpack.c.l.b16 %v516
        %v2211 = vunpack.c.h.b16 %v516
        %v2212 = vunpack.c.l.b16 %v517
        %v2213 = vunpack.c.h.b16 %v517
        %v2214 = vunpack.c.l.b16 %v518
        %v2215 = vunpack.c.h.b16 %v518
        %v2216 = vunpack.c.l.b16 %v519
        %v2217 = vunpack.c.h.b16 %v519
        %v2218 = vunpack.c.l.b16 %v520
        %v2219 = vunpack.c.h.b16 %v520
        %v2220 = vunpack.c.l.b16 %v521
        %v2221 = vunpack.c.h.b16 %v521
        %v2222 = vunpack.c.l.b16 %v522
        %v2223 = vunpack.c.h.b16 %v522
        %v2224 = vunpack.c.l.b16 %v523
        %v2225 = vunpack.c.h.b16 %v523
        %v2226 = vunpack.c.l.b16 %v524
        %v2227 = vunpack.c.h.b16 %v524
        %v2228 = vunpack.c.l.b16 %v525
        %v2229 = vunpack.c.h.b16 %v525
        %v2230 = vunpack.c.l.b16 %v526
        %v2231 = vunpack.c.h.b16 %v526
        %v2232 = vunpack.c.l.b16 %v527
        %v2233 = vunpack.c.h.b16 %v527
        %v2234 = vunpack.c.l.b16 %v528
        %v2235 = vunpack.c.h.b16 %v528
        %v2236 = vunpack.c.l.b16 %v529
        %v2237 = vunpack.c.h.b16 %v529
        %v2238 = vunpack.c.l.b16 %v530
        %v2239 = vunpack.c.h.b16 %v530
        %v2240 = vunpack.c.l.b16 %v531
        %v2241 = vunpack.c.h.b16 %v531
        %v2242 = vunpack.c.l.b16 %v532
        %v2243 = vunpack.c.h.b16 %v532
        %v2244 = vunpack.c.l.b16 %v533
        %v2245 = vunpack.c.h.b16 %v533
        %v2246 = vunpack.c.l.b16 %v534
        %v2247 = vunpack.c.h.b16 %v534
        %v2248 = vunpack.c.l.b16 %v535
        %v2249 = vunpack.c.h.b16 %v535
        %v2250 = vunpack.c.l.b16 %v536
        %v2251 = vunpack.c.h.b16 %v536
        %v2252 = vunpack.c.l.b16 %v537
        %v2253 = vunpack.c.h.b16 %v537
        %v2254 = vunpack.c.l.b16 %v538
        %v2255 = vunpack.c.h.b16 %v538
        %v2256 = vunpack.c.l.b16 %v539
        %v2257 = vunpack.c.h.b16 %v539
        %v2258 = vunpack.c.l.b16 %v540
        %v2259 = vunpack.c.h.b16 %v540
        %v2260 = vunpack.c.l.b16 %v541
        %v2261 = vunpack.c.h.b16 %v541
        %v2262 = vunpack.c.l.b16 %v542
        %v2263 = vunpack.c.h.b16 %v542
        %v2264 = vunpack.c.l.b16 %v543
        %v2265 = vunpack.c.h.b16 %v543
        %v2266 = vunpack.c.l.b16 %v544
        %v2267 = vunpack.c.h.b16 %v544
        %v2268 = vunpack.c.l.b16 %v545
        %v2269 = vunpack.c.h.b16 %v545
        %v2270 = vunpack.c.l.b16 %v546
        %v2271 = vunpack.c.h.b16 %v546
        %v2272 = vunpack.c.l.b16 %v547
        %v2273 = vunpack.c.h.b16 %v547
        %v2274 = vunpack.c.l.b16 %v548
        %v2275 = vunpack.c.h.b16 %v548
        %v2276 = vunpack.c.l.b16 %v549
        %v2277 = vunpack.c.h.b16 %v549
        %v2278 = vunpack.c.l.b16 %v550
        %v2279 = vunpack.c.h.b16 %v550
        %v2280 = vunpack.c.l.b16 %v551
        %v2281 = vunpack.c.h.b16 %v551
        %v2282 = vunpack.c.l.b16 %v552
        %v2283 = vunpack.c.h.b16 %v552
        %v2284 = vunpack.c.l.b16 %v553
        %v2285 = vunpack.c.h.b16 %v553
        %v2286 = vunpack.c.l.b16 %v554
        %v2287 = vunpack.c.h.b16 %v554
        %v2288 = vunpack.c.l.b16 %v555
        %v2289 = vunpack.c.h.b16 %v555
        %v2290 = vunpack.c.l.b16 %v556
        %v2291 = vunpack.c.h.b16 %v556
        %v2292 = vunpack.c.l.b16 %v557
        %v2293 = vunpack.c.h.b16 %v557
        %v2294 = vunpack.c.l.b16 %v558
        %v2295 = vunpack.c.h.b16 %v558
        %v2296 = vunpack.c.l.b16 %v559
        %v2297 = vunpack.c.h.b16 %v559
        %v2298 = vunpack.c.l.b16 %v560
        %v2299 = vunpack.c.h.b16 %v560
        %v2300 = vunpack.c.l.b16 %v561
        %v2301 = vunpack.c.h.b16 %v561
        %v2302 = vunpack.c.l.b16 %v562
        %v2303 = vunpack.c.h.b16 %v562
        %v2304 = vunpack.c.l.b16 %v563
        %v2305 = vunpack.c.h.b16 %v563
        %v2306 = vunpack.c.l.b16 %v564
        %v2307 = vunpack.c.h.b16 %v564
        %v2308 = vunpack.c.l.b16 %v565
        %v2309 = vunpack.c.h.b16 %v565
        %v2310 = vunpack.c.l.b16 %v566
        %v2311 = vunpack.c.h.b16 %v566
        %v2312 = vunpack.c.l.b16 %v567
        %v2313 = vunpack.c.h.b16 %v567
        %v2314 = vunpack.c.l.b16 %v568
        %v2315 = vunpack.c.h.b16 %v568
        %v2316 = vunpack.c.l.b16 %v569
        %v2317 = vunpack.c.h.b16 %v569
        %v2318 = vunpack.c.l.b16 %v570
        %v2319 = vunpack.c.h.b16 %v570
        %v2320 = vunpack.c.l.b16 %v571
        %v2321 = vunpack.c.h.b16 %v571
        %v2322 = vunpack.c.l.b16 %v572
        %v2323 = vunpack.c.h.b16 %v572
        %v2324 = vunpack.c.l.b16 %v573
        %v2325 = vunpack.c.h.b16 %v573
        %v2326 = vunpack.c.l.b16 %v574
        %v2327 = vunpack.c.h.b16 %v574
        %v2328 = vunpack.c.l.b16 %v575
        %v2329 = vunpack.c.h.b16 %v575
        %v2330 = vunpack.c.l.b16 %v576
        %v2331 = vunpack.c.h.b16 %v576
        %v2332 = vunpack.c.l.b16 %v577
        %v2333 = vunpack.c.h.b16 %v577
        %v2334 = vunpack.c.l.b16 %v578
        %v2335 = vunpack.c.h.b16 %v578
        %v2336 = vunpack.c.l.b16 %v579
        %v2337 = vunpack.c.h.b16 %v579
        %v2338 = vunpack.c.l.b16 %v580
        %v2339 = vunpack.c.h.b16 %v580
        %v2340 = vunpack.c.l.b16 %v581
        %v2341 = vunpack.c.h.b16 %v581
        %v2342 = vunpack.c.l.b16 %v582
        %v2343 = vunpack.c.h.b16 %v582
        %v2344 = vunpack.c.l.b16 %v583
        %v2345 = vunpack.c.h.b16 %v583
        %v2346 = vunpack.c.l.b16 %v584
        %v2347 = vunpack.c.h.b16 %v584
        %v2348 = vunpack.c.l.b16 %v585
        %v2349 = vunpack.c.h.b16 %v585
        %v2350 = vunpack.c.l.b16 %v586
        %v2351 = vunpack.c.h.b16 %v586
        %v2352 = vunpack.c.l.b16 %v587
        %v2353 = vunpack.c.h.b16 %v587
        %v2354 = vunpack.c.l.b16 %v588
        %v2355 = vunpack.c.h.b16 %v588
        %v2356 = vunpack.c.l.b16 %v589
        %v2357 = vunpack.c.h.b16 %v589
        %v2358 = vunpack.c.l.b16 %v590
        %v2359 = vunpack.c.h.b16 %v590
        %v2360 = vunpack.c.l.b16 %v591
        %v2361 = vunpack.c.h.b16 %v591
        %v2362 = vunpack.c.l.b16 %v592
        %v2363 = vunpack.c.h.b16 %v592
        %v2364 = vunpack.c.l.b16 %v593
        %v2365 = vunpack.c.h.b16 %v593
        %v2366 = vunpack.c.l.b16 %v594
        %v2367 = vunpack.c.h.b16 %v594
        %v2368 = vunpack.c.l.b16 %v595
        %v2369 = vunpack.c.h.b16 %v595
        %v2370 = vunpack.c.l.b16 %v596
        %v2371 = vunpack.c.h.b16 %v596
        %v2372 = vunpack.c.l.b16 %v597
        %v2373 = vunpack.c.h.b16 %v597
        %v2374 = vunpack.c.l.b16 %v598
        %v2375 = vunpack.c.h.b16 %v598
        %v2376 = vunpack.c.l.b16 %v599
        %v2377 = vunpack.c.h.b16 %v599
        %v2378 = vunpack.c.l.b16 %v600
        %v2379 = vunpack.c.h.b16 %v600
        %v2380 = vunpack.c.l.b16 %v601
        %v2381 = vunpack.c.h.b16 %v601
        %v2382 = vunpack.c.l.b16 %v602
        %v2383 = vunpack.c.h.b16 %v602
        %v2384 = vunpack.c.l.b16 %v603
        %v2385 = vunpack.c.h.b16 %v603
        %v2386 = vunpack.c.l.b16 %v604
        %v2387 = vunpack.c.h.b16 %v604
        %v2388 = vunpack.c.l.b16 %v605
        %v2389 = vunpack.c.h.b16 %v605
        %v2390 = vunpack.c.l.b16 %v606
        %v2391 = vunpack.c.h.b16 %v606
        %v2392 = vunpack.c.l.b16 %v607
        %v2393 = vunpack.c.h.b16 %v607
        %v2394 = vunpack.c.l.b16 %v608
        %v2395 = vunpack.c.h.b16 %v608
        %v2396 = vunpack.c.l.b16 %v609
        %v2397 = vunpack.c.h.b16 %v609
        %v2398 = vunpack.c.l.b16 %v610
        %v2399 = vunpack.c.h.b16 %v610
        %v2400 = vunpack.c.l.b16 %v611
        %v2401 = vunpack.c.h.b16 %v611
        %v2402 = vunpack.c.l.b16 %v612
        %v2403 = vunpack.c.h.b16 %v612
        %v2404 = vunpack.c.l.b16 %v613
        %v2405 = vunpack.c.h.b16 %v613
        %v2406 = vunpack.c.l.b16 %v614
        %v2407 = vunpack.c.h.b16 %v614
        %v2408 = vunpack.c.l.b16 %v615
        %v2409 = vunpack.c.h.b16 %v615
        %v2410 = vunpack.c.l.b16 %v616
        %v2411 = vunpack.c.h.b16 %v616
        %v2412 = vunpack.c.l.b16 %v617
        %v2413 = vunpack.c.h.b16 %v617
        %v2414 = vunpack.c.l.b16 %v618
        %v2415 = vunpack.c.h.b16 %v618
        %v2416 = vunpack.c.l.b16 %v619
        %v2417 = vunpack.c.h.b16 %v619
        %v2418 = vunpack.c.l.b16 %v620
        %v2419 = vunpack.c.h.b16 %v620
        %v2420 = vunpack.c.l.b16 %v621
        %v2421 = vunpack.c.h.b16 %v621
        %v2422 = vunpack.c.l.b16 %v622
        %v2423 = vunpack.c.h.b16 %v622
        %v2424 = vunpack.c.l.b16 %v623
        %v2425 = vunpack.c.h.b16 %v623
        %v2426 = vunpack.c.l.b16 %v624
        %v2427 = vunpack.c.h.b16 %v624
        %v2428 = vunpack.c.l.b16 %v625
        %v2429 = vunpack.c.h.b16 %v625
        %v2430 = vunpack.c.l.b16 %v626
        %v2431 = vunpack.c.h.b16 %v626
        %v2432 = vunpack.c.l.b16 %v627
        %v2433 = vunpack.c.h.b16 %v627
        %v2434 = vunpack.c.l.b16 %v628
        %v2435 = vunpack.c.h.b16 %v628
        %v2436 = vunpack.c.l.b16 %v629
        %v2437 = vunpack.c.h.b16 %v629
        %v2438 = vunpack.c.l.b16 %v630
        %v2439 = vunpack.c.h.b16 %v630
        %v2440 = vunpack.c.l.b16 %v631
        %v2441 = vunpack.c.h.b16 %v631
        %v2442 = vunpack.c.l.b16 %v632
        %v2443 = vunpack.c.h.b16 %v632
        %v2444 = vunpack.c.l.b16 %v633
        %v2445 = vunpack.c.h.b16 %v633
        %v2446 = vunpack.c.l.b16 %v634
        %v2447 = vunpack.c.h.b16 %v634
        %v2448 = vunpack.c.l.b16 %v635
        %v2449 = vunpack.c.h.b16 %v635
        %v2450 = vunpack.c.l.b16 %v636
        %v2451 = vunpack.c.h.b16 %v636
        %v2452 = vunpack.c.l.b16 %v637
        %v2453 = vunpack.c.h.b16 %v637
        %v2454 = vunpack.c.l.b16 %v638
        %v2455 = vunpack.c.h.b16 %v638
        %v2456 = vunpack.c.l.b16 %v639
        %v2457 = vunpack.c.h.b16 %v639
        %v2458 = vunpack.c.l.b16 %v640
        %v2459 = vunpack.c.h.b16 %v640
        %v2460 = vunpack.c.l.b16 %v641
        %v2461 = vunpack.c.h.b16 %v641
        %v2462 = vunpack.c.l.b16 %v642
        %v2463 = vunpack.c.h.b16 %v642
        %v2464 = vunpack.c.l.b16 %v643
        %v2465 = vunpack.c.h.b16 %v643
        %v2466 = vunpack.c.l.b16 %v644
        %v2467 = vunpack.c.h.b16 %v644
        %v2468 = vunpack.c.l.b16 %v645
        %v2469 = vunpack.c.h.b16 %v645
        %v2470 = vunpack.c.l.b16 %v646
        %v2471 = vunpack.c.h.b16 %v646
        %v2472 = vunpack.c.l.b16 %v647
        %v2473 = vunpack.c.h.b16 %v647
        %v2474 = vunpack.c.l.b16 %v648
        %v2475 = vunpack.c.h.b16 %v648
        %v2476 = vunpack.c.l.b16 %v649
        %v2477 = vunpack.c.h.b16 %v649
        %v2478 = vunpack.c.l.b16 %v650
        %v2479 = vunpack.c.h.b16 %v650
        %v2480 = vunpack.c.l.b16 %v651
        %v2481 = vunpack.c.h.b16 %v651
        %v2482 = vunpack.c.l.b16 %v652
        %v2483 = vunpack.c.h.b16 %v652
        %v2484 = vunpack.c.l.b16 %v653
        %v2485 = vunpack.c.h.b16 %v653
        %v2486 = vunpack.c.l.b16 %v654
        %v2487 = vunpack.c.h.b16 %v654
        %v2488 = vunpack.c.l.b16 %v655
        %v2489 = vunpack.c.h.b16 %v655
        %v2490 = vunpack.c.l.b16 %v656
        %v2491 = vunpack.c.h.b16 %v656
        %v2492 = vunpack.c.l.b16 %v657
        %v2493 = vunpack.c.h.b16 %v657
        %v2494 = vunpack.c.l.b16 %v658
        %v2495 = vunpack.c.h.b16 %v658
        %v2496 = vunpack.c.l.b16 %v659
        %v2497 = vunpack.c.h.b16 %v659
        %v2498 = vunpack.c.l.b16 %v660
        %v2499 = vunpack.c.h.b16 %v660
        %v2500 = vunpack.c.l.b16 %v661
        %v2501 = vunpack.c.h.b16 %v661
        %v2502 = vunpack.c.l.b16 %v662
        %v2503 = vunpack.c.h.b16 %v662
        %v2504 = vunpack.c.l.b16 %v663
        %v2505 = vunpack.c.h.b16 %v663
        %v2506 = vunpack.c.l.b16 %v664
        %v2507 = vunpack.c.h.b16 %v664
        %v2508 = vunpack.c.l.b16 %v665
        %v2509 = vunpack.c.h.b16 %v665
        %v2510 = vunpack.c.l.b16 %v666
        %v2511 = vunpack.c.h.b16 %v666
        %v2512 = vunpack.c.l.b16 %v667
        %v2513 = vunpack.c.h.b16 %v667
        %v2514 = vunpack.c.l.b16 %v668
        %v2515 = vunpack.c.h.b16 %v668
        %v2516 = vunpack.c.l.b16 %v669
        %v2517 = vunpack.c.h.b16 %v669
        %v2518 = vunpack.c.l.b16 %v670
        %v2519 = vunpack.c.h.b16 %v670
        %v2520 = vunpack.c.l.b16 %v671
        %v2521 = vunpack.c.h.b16 %v671
        %v2522 = vunpack.c.l.b16 %v672
        %v2523 = vunpack.c.h.b16 %v672
        %v2524 = vunpack.c.l.b16 %v673
        %v2525 = vunpack.c.h.b16 %v673
        %v2526 = vunpack.c.l.b16 %v674
        %v2527 = vunpack.c.h.b16 %v674
        %v2528 = vunpack.c.l.b16 %v675
        %v2529 = vunpack.c.h.b16 %v675
        %v2530 = vunpack.c.l.b16 %v676
        %v2531 = vunpack.c.h.b16 %v676
        %v2532 = vunpack.c.l.b16 %v677
        %v2533 = vunpack.c.h.b16 %v677
        %v2534 = vunpack.c.l.b16 %v678
        %v2535 = vunpack.c.h.b16 %v678
        %v2536 = vunpack.c.l.b16 %v679
        %v2537 = vunpack.c.h.b16 %v679
        %v2538 = vunpack.c.l.b16 %v680
        %v2539 = vunpack.c.h.b16 %v680
        %v2540 = vunpack.c.l.b16 %v681
        %v2541 = vunpack.c.h.b16 %v681
        %v2542 = vunpack.c.l.b16 %v682
        %v2543 = vunpack.c.h.b16 %v682
        %v2544 = vunpack.c.l.b16 %v683
        %v2545 = vunpack.c.h.b16 %v683
        %v2546 = vunpack.c.l.b16 %v684
        %v2547 = vunpack.c.h.b16 %v684
        %v2548 = vunpack.c.l.b16 %v685
        %v2549 = vunpack.c.h.b16 %v685
        %v2550 = vunpack.c.l.b16 %v686
        %v2551 = vunpack.c.h.b16 %v686
        %v2552 = vunpack.c.l.b16 %v687
        %v2553 = vunpack.c.h.b16 %v687
        %v2554 = vunpack.c.l.b16 %v688
        %v2555 = vunpack.c.h.b16 %v688
        %v2556 = vunpack.c.l.b16 %v689
        %v2557 = vunpack.c.h.b16 %v689
        %v2558 = vunpack.c.l.b16 %v690
        %v2559 = vunpack.c.h.b16 %v690
        %v2560 = vunpack.c.l.b16 %v691
        %v2561 = vunpack.c.h.b16 %v691
        %v2562 = vunpack.c.l.b16 %v692
        %v2563 = vunpack.c.h.b16 %v692
        %v2564 = vunpack.c.l.b16 %v693
        %v2565 = vunpack.c.h.b16 %v693
        %v2566 = vunpack.c.l.b16 %v694
        %v2567 = vunpack.c.h.b16 %v694
        %v2568 = vunpack.c.l.b16 %v695
        %v2569 = vunpack.c.h.b16 %v695
        %v2570 = vunpack.c.l.b16 %v696
        %v2571 = vunpack.c.h.b16 %v696
        %v2572 = vunpack.c.l.b16 %v697
        %v2573 = vunpack.c.h.b16 %v697
        %v2574 = vunpack.c.l.b16 %v698
        %v2575 = vunpack.c.h.b16 %v698
        %v2576 = vunpack.c.l.b16 %v699
        %v2577 = vunpack.c.h.b16 %v699
        %v2578 = vunpack.c.l.b16 %v700
        %v2579 = vunpack.c.h.b16 %v700
        %v2580 = vunpack.c.l.b16 %v701
        %v2581 = vunpack.c.h.b16 %v701
        %v2582 = vunpack.c.l.b16 %v702
        %v2583 = vunpack.c.h.b16 %v702
        %v2584 = vunpack.c.l.b16 %v703
        %v2585 = vunpack.c.h.b16 %v703
        %v2586 = vunpack.c.l.b16 %v704
        %v2587 = vunpack.c.h.b16 %v704
        %v2588 = vunpack.c.l.b16 %v705
        %v2589 = vunpack.c.h.b16 %v705
        %v2590 = vunpack.c.l.b16 %v706
        %v2591 = vunpack.c.h.b16 %v706
        %v2592 = vunpack.c.l.b16 %v707
        %v2593 = vunpack.c.h.b16 %v707
        %v2594 = vunpack.c.l.b16 %v708
        %v2595 = vunpack.c.h.b16 %v708
        %v2596 = vunpack.c.l.b16 %v709
        %v2597 = vunpack.c.h.b16 %v709
        %v2598 = vunpack.c.l.b16 %v710
        %v2599 = vunpack.c.h.b16 %v710
        %v2600 = vunpack.c.l.b16 %v711
        %v2601 = vunpack.c.h.b16 %v711
        %v2602 = vunpack.c.l.b16 %v712
        %v2603 = vunpack.c.h.b16 %v712
        %v2604 = vunpack.c.l.b16 %v713
        %v2605 = vunpack.c.h.b16 %v713
        %v2606 = vunpack.c.l.b16 %v714
        %v2607 = vunpack.c.h.b16 %v714
        %v2608 = vunpack.c.l.b16 %v715
        %v2609 = vunpack.c.h.b16 %v715
        %v2610 = vunpack.c.l.b16 %v716
        %v2611 = vunpack.c.h.b16 %v716
        %v2612 = vunpack.c.l.b16 %v717
        %v2613 = vunpack.c.h.b16 %v717
        %v2614 = vunpack.c.l.b16 %v718
        %v2615 = vunpack.c.h.b16 %v718
        %v2616 = vunpack.c.l.b16 %v719
        %v2617 = vunpack.c.h.b16 %v719
        %v2618 = vunpack.c.l.b16 %v720
        %v2619 = vunpack.c.h.b16 %v720
        %v2620 = vunpack.c.l.b16 %v721
        %v2621 = vunpack.c.h.b16 %v721
        %v2622 = vunpack.c.l.b16 %v722
        %v2623 = vunpack.c.h.b16 %v722
        %v2624 = vunpack.c.l.b16 %v723
        %v2625 = vunpack.c.h.b16 %v723
        %v2626 = vunpack.c.l.b16 %v724
        %v2627 = vunpack.c.h.b16 %v724
        %v2628 = vunpack.c.l.b16 %v725
        %v2629 = vunpack.c.h.b16 %v725
        %v2630 = vunpack.c.l.b16 %v726
        %v2631 = vunpack.c.h.b16 %v726
        %v2632 = vunpack.c.l.b16 %v727
        %v2633 = vunpack.c.h.b16 %v727
        %v2634 = vunpack.c.l.b16 %v728
        %v2635 = vunpack.c.h.b16 %v728
        %v2636 = vunpack.c.l.b16 %v729
        %v2637 = vunpack.c.h.b16 %v729
        %v2638 = vunpack.c.l.b16 %v730
        %v2639 = vunpack.c.h.b16 %v730
        %v2640 = vunpack.c.l.b16 %v731
        %v2641 = vunpack.c.h.b16 %v731
        %v2642 = vunpack.c.l.b16 %v732
        %v2643 = vunpack.c.h.b16 %v732
        %v2644 = vunpack.c.l.b16 %v733
        %v2645 = vunpack.c.h.b16 %v733
        %v2646 = vunpack.c.l.b16 %v734
        %v2647 = vunpack.c.h.b16 %v734
        %v2648 = vunpack.c.l.b16 %v735
        %v2649 = vunpack.c.h.b16 %v735
        %v2650 = vunpack.c.l.b16 %v736
        %v2651 = vunpack.c.h.b16 %v736
        %v2652 = vunpack.c.l.b16 %v737
        %v2653 = vunpack.c.h.b16 %v737
        %v2654 = vunpack.c.l.b16 %v738
        %v2655 = vunpack.c.h.b16 %v738
        %v2656 = vunpack.c.l.b16 %v739
        %v2657 = vunpack.c.h.b16 %v739
        %v2658 = vunpack.c.l.b16 %v740
        %v2659 = vunpack.c.h.b16 %v740
        %v2660 = vunpack.c.l.b16 %v741
        %v2661 = vunpack.c.h.b16 %v741
        %v2662 = vunpack.c.l.b16 %v742
        %v2663 = vunpack.c.h.b16 %v742
        %v2664 = vunpack.c.l.b16 %v743
        %v2665 = vunpack.c.h.b16 %v743
        %v2666 = vunpack.c.l.b16 %v744
        %v2667 = vunpack.c.h.b16 %v744
        %v2668 = vunpack.c.l.b16 %v745
        %v2669 = vunpack.c.h.b16 %v745
        %v2670 = vunpack.c.l.b16 %v746
        %v2671 = vunpack.c.h.b16 %v746
        %v2672 = vunpack.c.l.b16 %v747
        %v2673 = vunpack.c.h.b16 %v747
        %v2674 = vunpack.c.l.b16 %v748
        %v2675 = vunpack.c.h.b16 %v748
        %v2676 = vunpack.c.l.b16 %v749
        %v2677 = vunpack.c.h.b16 %v749
        %v2678 = vunpack.c.l.b16 %v750
        %v2679 = vunpack.c.h.b16 %v750
        %v2680 = vunpack.c.l.b16 %v751
        %v2681 = vunpack.c.h.b16 %v751
        %v2682 = vunpack.c.l.b16 %v752
        %v2683 = vunpack.c.h.b16 %v752
        %v2684 = vunpack.c.l.b16 %v753
        %v2685 = vunpack.c.h.b16 %v753
        %v2686 = vunpack.c.l.b16 %v754
        %v2687 = vunpack.c.h.b16 %v754
        %v2688 = vunpack.c.l.b16 %v755
        %v2689 = vunpack.c.h.b16 %v755
        %v2690 = vunpack.c.l.b16 %v756
        %v2691 = vunpack.c.h.b16 %v756
        %v2692 = vunpack.c.l.b16 %v757
        %v2693 = vunpack.c.h.b16 %v757
        %v2694 = vunpack.c.l.b16 %v758
        %v2695 = vunpack.c.h.b16 %v758
        %v2696 = vunpack.c.l.b16 %v759
        %v2697 = vunpack.c.h.b16 %v759
        %v2698 = vunpack.c.l.b16 %v760
        %v2699 = vunpack.c.h.b16 %v760
        %v2700 = vunpack.c.l.b16 %v761
        %v2701 = vunpack.c.h.b16 %v761
        %v2702 = vunpack.c.l.b16 %v762
        %v2703 = vunpack.c.h.b16 %v762
        %v2704 = vunpack.c.l.b16 %v763
        %v2705 = vunpack.c.h.b16 %v763
        %v2706 = vunpack.c.l.b16 %v764
        %v2707 = vunpack.c.h.b16 %v764
        %v2708 = vunpack.c.l.b16 %v765
        %v2709 = vunpack.c.h.b16 %v765
        %v2710 = vunpack.c.l.b16 %v766
        %v2711 = vunpack.c.h.b16 %v766
        %v2712 = vunpack.c.l.b16 %v767
        %v2713 = vunpack.c.h.b16 %v767
        %v2714 = vunpack.c.l.b16 %v768
        %v2715 = vunpack.c.h.b16 %v768
        %v2716 = vunpack.c.l.b16 %v769
        %v2717 = vunpack.c.h.b16 %v769
        %v2718 = vunpack.c.l.b16 %v770
        %v2719 = vunpack.c.h.b16 %v770
        %v2720 = vunpack.c.l.b16 %v771
        %v2721 = vunpack.c.h.b16 %v771
        %v2722 = vunpack.c.l.b16 %v772
        %v2723 = vunpack.c.h.b16 %v772
        %v2724 = vunpack.c.l.b16 %v773
        %v2725 = vunpack.c.h.b16 %v773
        %v2726 = vunpack.c.l.b16 %v774
        %v2727 = vunpack.c.h.b16 %v774
        %v2728 = vunpack.c.l.b16 %v775
        %v2729 = vunpack.c.h.b16 %v775
        %v2730 = vunpack.c.l.b16 %v776
        %v2731 = vunpack.c.h.b16 %v776
        %v2732 = vunpack.c.l.b16 %v777
        %v2733 = vunpack.c.h.b16 %v777
        %v2734 = vunpack.c.l.b16 %v778
        %v2735 = vunpack.c.h.b16 %v778
        %v2736 = vunpack.c.l.b16 %v779
        %v2737 = vunpack.c.h.b16 %v779
        %v2738 = vunpack.c.l.b16 %v780
        %v2739 = vunpack.c.h.b16 %v780
        %v2740 = vunpack.c.l.b16 %v781
        %v2741 = vunpack.c.h.b16 %v781
        %v2742 = vunpack.c.l.b16 %v782
        %v2743 = vunpack.c.h.b16 %v782
        %v2744 = vunpack.c.l.b16 %v783
        %v2745 = vunpack.c.h.b16 %v783
        %v2746 = vunpack.c.l.b16 %v784
        %v2747 = vunpack.c.h.b16 %v784
        %v2748 = vunpack.c.l.b16 %v785
        %v2749 = vunpack.c.h.b16 %v785
        %v2750 = vunpack.c.l.b16 %v786
        %v2751 = vunpack.c.h.b16 %v786
        %v2752 = vunpack.c.l.b16 %v787
        %v2753 = vunpack.c.h.b16 %v787
        %v2754 = vunpack.c.l.b16 %v788
        %v2755 = vunpack.c.h.b16 %v788
        %v2756 = vunpack.c.l.b16 %v789
        %v2757 = vunpack.c.h.b16 %v789
        %v2758 = vunpack.c.l.b16 %v790
        %v2759 = vunpack.c.h.b16 %v790
        %v2760 = vunpack.c.l.b16 %v791
        %v2761 = vunpack.c.h.b16 %v791
        %v2762 = vunpack.c.l.b16 %v792
        %v2763 = vunpack.c.h.b16 %v792
        %v2764 = vunpack.c.l.b16 %v793
        %v2765 = vunpack.c.h.b16 %v793
        %v2766 = vunpack.c.l.b16 %v794
        %v2767 = vunpack.c.h.b16 %v794
        %v2768 = vunpack.c.l.b16 %v795
        %v2769 = vunpack.c.h.b16 %v795
        %v2770 = vunpack.c.l.b16 %v796
        %v2771 = vunpack.c.h.b16 %v796
        %v2772 = vunpack.c.l.b16 %v797
        %v2773 = vunpack.c.h.b16 %v797
        %v2774 = vunpack.c.l.b16 %v798
        %v2775 = vunpack.c.h.b16 %v798
        %v2776 = vunpack.c.l.b16 %v799
        %v2777 = vunpack.c.h.b16 %v799
        %v2778 = vunpack.c.l.b16 %v800
        %v2779 = vunpack.c.h.b16 %v800
        %v2780 = vunpack.c.l.b16 %v801
        %v2781 = vunpack.c.h.b16 %v801
        %v2782 = vunpack.c.l.b16 %v802
        %v2783 = vunpack.c.h.b16 %v802
        %v2784 = vunpack.c.l.b16 %v803
        %v2785 = vunpack.c.h.b16 %v803
        %v2786 = vunpack.c.l.b16 %v804
        %v2787 = vunpack.c.h.b16 %v804
        %v2788 = vunpack.c.l.b16 %v805
        %v2789 = vunpack.c.h.b16 %v805
        %v2790 = vunpack.c.l.b16 %v806
        %v2791 = vunpack.c.h.b16 %v806
        %v2792 = vunpack.c.l.b16 %v807
        %v2793 = vunpack.c.h.b16 %v807
        %v2794 = vunpack.c.l.b16 %v808
        %v2795 = vunpack.c.h.b16 %v808
        %v2796 = vunpack.c.l.b16 %v809
        %v2797 = vunpack.c.h.b16 %v809
        %v2798 = vunpack.c.l.b16 %v810
        %v2799 = vunpack.c.h.b16 %v810
        %v2800 = vunpack.c.l.b16 %v811
        %v2801 = vunpack.c.h.b16 %v811
        %v2802 = vunpack.c.l.b16 %v812
        %v2803 = vunpack.c.h.b16 %v812
        %v2804 = vunpack.c.l.b16 %v813
        %v2805 = vunpack.c.h.b16 %v813
        %v2806 = vunpack.c.l.b16 %v814
        %v2807 = vunpack.c.h.b16 %v814
        %v2808 = vunpack.c.l.b16 %v815
        %v2809 = vunpack.c.h.b16 %v815
        %v2810 = vunpack.c.l.b16 %v816
        %v2811 = vunpack.c.h.b16 %v816
        %v2812 = vunpack.c.l.b16 %v817
        %v2813 = vunpack.c.h.b16 %v817
        %v2814 = vunpack.c.l.b16 %v818
        %v2815 = vunpack.c.h.b16 %v818
        %v2816 = vunpack.c.l.b16 %v819
        %v2817 = vunpack.c.h.b16 %v819
        %v2818 = vunpack.c.l.b16 %v820
        %v2819 = vunpack.c.h.b16 %v820
        %v2820 = vunpack.c.l.b16 %v821
        %v2821 = vunpack.c.h.b16 %v821
        %v2822 = vunpack.c.l.b16 %v822
        %v2823 = vunpack.c.h.b16 %v822
        %v2824 = vunpack.c.l.b16 %v823
        %v2825 = vunpack.c.h.b16 %v823
        %v2826 = vunpack.c.l.b16 %v824
        %v2827 = vunpack.c.h.b16 %v824
        %v2828 = vunpack.c.l.b16 %v825
        %v2829 = vunpack.c.h.b16 %v825
        %v2830 = vunpack.c.l.b16 %v826
        %v2831 = vunpack.c.h.b16 %v826
        %v2832 = vunpack.c.l.b16 %v827
        %v2833 = vunpack.c.h.b16 %v827
        %v2834 = vunpack.c.l.b16 %v828
        %v2835 = vunpack.c.h.b16 %v828
        %v2836 = vunpack.c.l.b16 %v829
        %v2837 = vunpack.c.h.b16 %v829
        %v2838 = vunpack.c.l.b16 %v830
        %v2839 = vunpack.c.h.b16 %v830
        %v2840 = vunpack.c.l.b16 %v831
        %v2841 = vunpack.c.h.b16 %v831
        %v2842 = vunpack.c.l.b16 %v832
        %v2843 = vunpack.c.h.b16 %v832
        %v2844 = vunpack.c.l.b16 %v833
        %v2845 = vunpack.c.h.b16 %v833
        %v2846 = vunpack.c.l.b16 %v834
        %v2847 = vunpack.c.h.b16 %v834
        %v2848 = vunpack.c.l.b16 %v835
        %v2849 = vunpack.c.h.b16 %v835
        %v2850 = vunpack.c.l.b16 %v836
        %v2851 = vunpack.c.h.b16 %v836
        %v2852 = vunpack.c.l.b16 %v837
        %v2853 = vunpack.c.h.b16 %v837
        %v2854 = vunpack.c.l.b16 %v838
        %v2855 = vunpack.c.h.b16 %v838
        %v2856 = vunpack.c.l.b16 %v839
        %v2857 = vunpack.c.h.b16 %v839
        %v2858 = vunpack.c.l.b16 %v840
        %v2859 = vunpack.c.h.b16 %v840
        %v2860 = vunpack.c.l.b16 %v841
        %v2861 = vunpack.c.h.b16 %v841
        %v2862 = vunpack.c.l.b16 %v842
        %v2863 = vunpack.c.h.b16 %v842
        %v2864 = vunpack.c.l.b16 %v843
        %v2865 = vunpack.c.h.b16 %v843
        %v2866 = vunpack.c.l.b16 %v844
        %v2867 = vunpack.c.h.b16 %v844
        %v2868 = vunpack.c.l.b16 %v845
        %v2869 = vunpack.c.h.b16 %v845
        %v2870 = vunpack.c.l.b16 %v846
        %v2871 = vunpack.c.h.b16 %v846
        %v2872 = vunpack.c.l.b16 %v847
        %v2873 = vunpack.c.h.b16 %v847
        %v2874 = vunpack.c.l.b16 %v848
        %v2875 = vunpack.c.h.b16 %v848
        %v2876 = vunpack.c.l.b16 %v849
        %v2877 = vunpack.c.h.b16 %v849
        %v2878 = vunpack.c.l.b16 %v850
        %v2879 = vunpack.c.h.b16 %v850
        %v2880 = vunpack.c.l.b16 %v851
        %v2881 = vunpack.c.h.b16 %v851
        %v2882 = vunpack.c.l.b16 %v852
        %v2883 = vunpack.c.h.b16 %v852
        %v2884 = vunpack.c.l.b16 %v853
        %v2885 = vunpack.c.h.b16 %v853
        %v2886 = vunpack.c.l.b16 %v854
        %v2887 = vunpack.c.h.b16 %v854
        %v2888 = vunpack.c.l.b16 %v855
        %v2889 = vunpack.c.h.b16 %v855
        %v2890 = vunpack.c.l.b16 %v856
        %v2891 = vunpack.c.h.b16 %v856
        %v2892 = vunpack.c.l.b16 %v857
        %v2893 = vunpack.c.h.b16 %v857
        %v2894 = vunpack.c.l.b16 %v858
        %v2895 = vunpack.c.h.b16 %v858
        %v2896 = vunpack.c.l.b16 %v859
        %v2897 = vunpack.c.h.b16 %v859
        %v2898 = vunpack.c.l.b16 %v860
        %v2899 = vunpack.c.h.b16 %v860
        %v2900 = vunpack.c.l.b16 %v861
        %v2901 = vunpack.c.h.b16 %v861
        %v2902 = vunpack.c.l.b16 %v862
        %v2903 = vunpack.c.h.b16 %v862
        %v2904 = vunpack.c.l.b16 %v863
        %v2905 = vunpack.c.h.b16 %v863
        %v2906 = vunpack.c.l.b16 %v864
        %v2907 = vunpack.c.h.b16 %v864
        %v2908 = vunpack.c.l.b16 %v865
        %v2909 = vunpack.c.h.b16 %v865
        %v2910 = vunpack.c.l.b16 %v866
        %v2911 = vunpack.c.h.b16 %v866
        %v2912 = vunpack.c.l.b16 %v867
        %v2913 = vunpack.c.h.b16 %v867
        %v2914 = vunpack.c.l.b16 %v868
        %v2915 = vunpack.c.h.b16 %v868
        %v2916 = vunpack.c.l.b16 %v869
        %v2917 = vunpack.c.h.b16 %v869
        %v2918 = vunpack.c.l.b16 %v870
        %v2919 = vunpack.c.h.b16 %v870
        %v2920 = vunpack.c.l.b16 %v871
        %v2921 = vunpack.c.h.b16 %v871
        %v2922 = vunpack.c.l.b16 %v872
        %v2923 = vunpack.c.h.b16 %v872
        %v2924 = vunpack.c.l.b16 %v873
        %v2925 = vunpack.c.h.b16 %v873
        %v2926 = vunpack.c.l.b16 %v874
        %v2927 = vunpack.c.h.b16 %v874
        %v2928 = vunpack.c.l.b16 %v875
        %v2929 = vunpack.c.h.b16 %v875
        %v2930 = vunpack.c.l.b16 %v876
        %v2931 = vunpack.c.h.b16 %v876
        %v2932 = vunpack.c.l.b16 %v877
        %v2933 = vunpack.c.h.b16 %v877
        %v2934 = vunpack.c.l.b16 %v878
        %v2935 = vunpack.c.h.b16 %v878
        %v2936 = vunpack.c.l.b16 %v879
        %v2937 = vunpack.c.h.b16 %v879
        %v2938 = vunpack.c.l.b16 %v880
        %v2939 = vunpack.c.h.b16 %v880
        %v2940 = vunpack.c.l.b16 %v881
        %v2941 = vunpack.c.h.b16 %v881
        %v2942 = vunpack.c.l.b16 %v882
        %v2943 = vunpack.c.h.b16 %v882
        %v2944 = vunpack.c.l.b16 %v883
        %v2945 = vunpack.c.h.b16 %v883
        %v2946 = vunpack.c.l.b16 %v884
        %v2947 = vunpack.c.h.b16 %v884
        %v2948 = vunpack.c.l.b16 %v885
        %v2949 = vunpack.c.h.b16 %v885
        %v2950 = vunpack.c.l.b16 %v886
        %v2951 = vunpack.c.h.b16 %v886
        %v2952 = vunpack.c.l.b16 %v887
        %v2953 = vunpack.c.h.b16 %v887
        %v2954 = vunpack.c.l.b16 %v888
        %v2955 = vunpack.c.h.b16 %v888
        %v2956 = vunpack.c.l.b16 %v889
        %v2957 = vunpack.c.h.b16 %v889
        %v2958 = vunpack.c.l.b16 %v890
        %v2959 = vunpack.c.h.b16 %v890
        %v2960 = vunpack.c.l.b16 %v891
        %v2961 = vunpack.c.h.b16 %v891
        %v2962 = vunpack.c.l.b16 %v892
        %v2963 = vunpack.c.h.b16 %v892
        %v2964 = vunpack.c.l.b16 %v893
        %v2965 = vunpack.c.h.b16 %v893
        %v2966 = vunpack.c.l.b16 %v894
        %v2967 = vunpack.c.h.b16 %v894
        %v2968 = vunpack.c.l.b16 %v895
        %v2969 = vunpack.c.h.b16 %v895
        %v2970 = vunpack.c.l.b16 %v896
        %v2971 = vunpack.c.h.b16 %v896
        %v2972 = vunpack.c.l.b16 %v897
        %v2973 = vunpack.c.h.b16 %v897
        %v2974 = vunpack.c.l.b16 %v898
        %v2975 = vunpack.c.h.b16 %v898
        %v2976 = vunpack.c.l.b16 %v899
        %v2977 = vunpack.c.h.b16 %v899
        %v2978 = vunpack.c.l.b16 %v900
        %v2979 = vunpack.c.h.b16 %v900
        %v2980 = vunpack.c.l.b16 %v901
        %v2981 = vunpack.c.h.b16 %v901
        %v2982 = vunpack.c.l.b16 %v902
        %v2983 = vunpack.c.h.b16 %v902
        %v2984 = vunpack.c.l.b16 %v903
        %v2985 = vunpack.c.h.b16 %v903
        %v2986 = vunpack.c.l.b16 %v904
        %v2987 = vunpack.c.h.b16 %v904
        %v2988 = vunpack.c.l.b16 %v905
        %v2989 = vunpack.c.h.b16 %v905
        %v2990 = vunpack.c.l.b16 %v906
        %v2991 = vunpack.c.h.b16 %v906
        %v2992 = vunpack.c.l.b16 %v907
        %v2993 = vunpack.c.h.b16 %v907
        %v2994 = vunpack.c.l.b16 %v908
        %v2995 = vunpack.c.h.b16 %v908
        %v2996 = vunpack.c.l.b16 %v909
        %v2997 = vunpack.c.h.b16 %v909
        %v2998 = vunpack.c.l.b16 %v910
        %v2999 = vunpack.c.h.b16 %v910
        %v3000 = vunpack.c.l.b16 %v911
        %v3001 = vunpack.c.h.b16 %v911
        %v3002 = vunpack.c.l.b16 %v912
        %v3003 = vunpack.c.h.b16 %v912
        %v3004 = vunpack.c.l.b16 %v913
        %v3005 = vunpack.c.h.b16 %v913
        %v3006 = vunpack.c.l.b16 %v914
        %v3007 = vunpack.c.h.b16 %v914
        %v3008 = vunpack.c.l.b16 %v915
        %v3009 = vunpack.c.h.b16 %v915
        %v3010 = vunpack.c.l.b16 %v916
        %v3011 = vunpack.c.h.b16 %v916
        %v3012 = vunpack.c.l.b16 %v917
        %v3013 = vunpack.c.h.b16 %v917
        %v3014 = vunpack.c.l.b16 %v918
        %v3015 = vunpack.c.h.b16 %v918
        %v3016 = vunpack.c.l.b16 %v919
        %v3017 = vunpack.c.h.b16 %v919
        %v3018 = vunpack.c.l.b16 %v920
        %v3019 = vunpack.c.h.b16 %v920
        %v3020 = vunpack.c.l.b16 %v921
        %v3021 = vunpack.c.h.b16 %v921
        %v3022 = vunpack.c.l.b16 %v922
        %v3023 = vunpack.c.h.b16 %v922
        %v3024 = vunpack.c.l.b16 %v923
        %v3025 = vunpack.c.h.b16 %v923
        %v3026 = vunpack.c.l.b16 %v924
        %v3027 = vunpack.c.h.b16 %v924
        %v3028 = vunpack.c.l.b16 %v925
        %v3029 = vunpack.c.h.b16 %v925
        %v3030 = vunpack.c.l.b16 %v926
        %v3031 = vunpack.c.h.b16 %v926
        %v3032 = vunpack.c.l.b16 %v927
        %v3033 = vunpack.c.h.b16 %v927
        %v3034 = vunpack.c.l.b16 %v928
        %v3035 = vunpack.c.h.b16 %v928
        %v3036 = vunpack.c.l.b16 %v929
        %v3037 = vunpack.c.h.b16 %v929
        %v3038 = vunpack.c.l.b16 %v930
        %v3039 = vunpack.c.h.b16 %v930
        %v3040 = vunpack.c.l.b16 %v931
        %v3041 = vunpack.c.h.b16 %v931
        %v3042 = vunpack.c.l.b16 %v932
        %v3043 = vunpack.c.h.b16 %v932
        %v3044 = vunpack.c.l.b16 %v933
        %v3045 = vunpack.c.h.b16 %v933
        %v3046 = vunpack.c.l.b16 %v934
        %v3047 = vunpack.c.h.b16 %v934
        %v3048 = vunpack.c.l.b16 %v935
        %v3049 = vunpack.c.h.b16 %v935
        %v3050 = vunpack.c.l.b16 %v936
        %v3051 = vunpack.c.h.b16 %v936
        %v3052 = vunpack.c.l.b16 %v937
        %v3053 = vunpack.c.h.b16 %v937
        %v3054 = vunpack.c.l.b16 %v938
        %v3055 = vunpack.c.h.b16 %v938
        %v3056 = vunpack.c.l.b16 %v939
        %v3057 = vunpack.c.h.b16 %v939
        %v3058 = vunpack.c.l.b16 %v940
        %v3059 = vunpack.c.h.b16 %v940
        %v3060 = vunpack.c.l.b16 %v941
        %v3061 = vunpack.c.h.b16 %v941
        %v3062 = vunpack.c.l.b16 %v942
        %v3063 = vunpack.c.h.b16 %v942
        %v3064 = vunpack.c.l.b16 %v943
        %v3065 = vunpack.c.h.b16 %v943
        %v3066 = vunpack.c.l.b16 %v944
        %v3067 = vunpack.c.h.b16 %v944
        %v3068 = vunpack.c.l.b16 %v945
        %v3069 = vunpack.c.h.b16 %v945
        %v3070 = vunpack.c.l.b16 %v946
        %v3071 = vunpack.c.h.b16 %v946
        %v3072 = vunpack.c.l.b16 %v947
        %v3073 = vunpack.c.h.b16 %v947
        %v3074 = vunpack.c.l.b16 %v948
        %v3075 = vunpack.c.h.b16 %v948
        %v3076 = vunpack.c.l.b16 %v949
        %v3077 = vunpack.c.h.b16 %v949
        %v3078 = vunpack.c.l.b16 %v950
        %v3079 = vunpack.c.h.b16 %v950
        %v3080 = vunpack.c.l.b16 %v951
        %v3081 = vunpack.c.h.b16 %v951
        %v3082 = vunpack.c.l.b16 %v952
        %v3083 = vunpack.c.h.b16 %v952
        %v3084 = vunpack.c.l.b16 %v953
        %v3085 = vunpack.c.h.b16 %v953
        %v3086 = vunpack.c.l.b16 %v954
        %v3087 = vunpack.c.h.b16 %v954
        %v3088 = vunpack.c.l.b16 %v955
        %v3089 = vunpack.c.h.b16 %v955
        %v3090 = vunpack.c.l.b16 %v956
        %v3091 = vunpack.c.h.b16 %v956
        %v3092 = vunpack.c.l.b16 %v957
        %v3093 = vunpack.c.h.b16 %v957
        %v3094 = vunpack.c.l.b16 %v958
        %v3095 = vunpack.c.h.b16 %v958
        %v3096 = vunpack.c.l.b16 %v959
        %v3097 = vunpack.c.h.b16 %v959
        %v3098 = vunpack.c.l.b16 %v960
        %v3099 = vunpack.c.h.b16 %v960
        %v3100 = vunpack.c.l.b16 %v961
        %v3101 = vunpack.c.h.b16 %v961
        %v3102 = vunpack.c.l.b16 %v962
        %v3103 = vunpack.c.h.b16 %v962
        %v3104 = vunpack.c.l.b16 %v963
        %v3105 = vunpack.c.h.b16 %v963
        %v3106 = vunpack.c.l.b16 %v964
        %v3107 = vunpack.c.h.b16 %v964
        %v3108 = vunpack.c.l.b16 %v965
        %v3109 = vunpack.c.h.b16 %v965
        %v3110 = vunpack.c.l.b16 %v966
        %v3111 = vunpack.c.h.b16 %v966
        %v3112 = vunpack.c.l.b16 %v967
        %v3113 = vunpack.c.h.b16 %v967
        %v3114 = vunpack.c.l.b16 %v968
        %v3115 = vunpack.c.h.b16 %v968
        %v3116 = vunpack.c.l.b16 %v969
        %v3117 = vunpack.c.h.b16 %v969
        %v3118 = vunpack.c.l.b16 %v970
        %v3119 = vunpack.c.h.b16 %v970
        %v3120 = vunpack.c.l.b16 %v971
        %v3121 = vunpack.c.h.b16 %v971
        %v3122 = vunpack.c.l.b16 %v972
        %v3123 = vunpack.c.h.b16 %v972
        %v3124 = vunpack.c.l.b16 %v973
        %v3125 = vunpack.c.h.b16 %v973
        %v3126 = vunpack.c.l.b16 %v974
        %v3127 = vunpack.c.h.b16 %v974
        %v3128 = vunpack.c.l.b16 %v975
        %v3129 = vunpack.c.h.b16 %v975
        %v3130 = vunpack.c.l.b16 %v976
        %v3131 = vunpack.c.h.b16 %v976
        %v3132 = vunpack.c.l.b16 %v977
        %v3133 = vunpack.c.h.b16 %v977
        %v3134 = vunpack.c.l.b16 %v978
        %v3135 = vunpack.c.h.b16 %v978
        %v3136 = vunpack.c.l.b16 %v979
        %v3137 = vunpack.c.h.b16 %v979
        %v3138 = vunpack.c.l.b16 %v980
        %v3139 = vunpack.c.h.b16 %v980
        %v3140 = vunpack.c.l.b16 %v981
        %v3141 = vunpack.c.h.b16 %v981
        %v3142 = vunpack.c.l.b16 %v982
        %v3143 = vunpack.c.h.b16 %v982
        %v3144 = vunpack.c.l.b16 %v983
        %v3145 = vunpack.c.h.b16 %v983
        %v3146 = vunpack.c.l.b16 %v984
        %v3147 = vunpack.c.h.b16 %v984
        %v3148 = vunpack.c.l.b16 %v985
        %v3149 = vunpack.c.h.b16 %v985
        %v3150 = vunpack.c.l.b16 %v986
        %v3151 = vunpack.c.h.b16 %v986
        %v3152 = vunpack.c.l.b16 %v987
        %v3153 = vunpack.c.h.b16 %v987
        %v3154 = vunpack.c.l.b16 %v988
        %v3155 = vunpack.c.h.b16 %v988
        %v3156 = vunpack.c.l.b16 %v989
        %v3157 = vunpack.c.h.b16 %v989
        %v3158 = vunpack.c.l.b16 %v990
        %v3159 = vunpack.c.h.b16 %v990
        %v3160 = vunpack.c.l.b16 %v991
        %v3161 = vunpack.c.h.b16 %v991
        %v3162 = vunpack.c.l.b16 %v992
        %v3163 = vunpack.c.h.b16 %v992
        %v3164 = vunpack.c.l.b16 %v993
        %v3165 = vunpack.c.h.b16 %v993
        %v3166 = vunpack.c.l.b16 %v994
        %v3167 = vunpack.c.h.b16 %v994
        %v3168 = vunpack.c.l.b16 %v995
        %v3169 = vunpack.c.h.b16 %v995
        %v3170 = vunpack.c.l.b16 %v996
        %v3171 = vunpack.c.h.b16 %v996
        %v3172 = vunpack.c.l.b16 %v997
        %v3173 = vunpack.c.h.b16 %v997
        %v3174 = vunpack.c.l.b16 %v998
        %v3175 = vunpack.c.h.b16 %v998
        %v3176 = vunpack.c.l.b16 %v999
        %v3177 = vunpack.c.h.b16 %v999
        %v3178 = vunpack.c.l.b16 %v1000
        %v3179 = vunpack.c.h.b16 %v1000
        %v3180 = vunpack.c.l.b16 %v1001
        %v3181 = vunpack.c.h.b16 %v1001
        %v3182 = vunpack.c.l.b16 %v1002
        %v3183 = vunpack.c.h.b16 %v1002
        %v3184 = vunpack.c.l.b16 %v1003
        %v3185 = vunpack.c.h.b16 %v1003
        %v3186 = vunpack.c.l.b16 %v1004
        %v3187 = vunpack.c.h.b16 %v1004
        %v3188 = vunpack.c.l.b16 %v1005
        %v3189 = vunpack.c.h.b16 %v1005
        %v3190 = vunpack.c.l.b16 %v1006
        %v3191 = vunpack.c.h.b16 %v1006
        %v3192 = vunpack.c.l.b16 %v1007
        %v3193 = vunpack.c.h.b16 %v1007
        %v3194 = vunpack.c.l.b16 %v1008
        %v3195 = vunpack.c.h.b16 %v1008
        %v3196 = vunpack.c.l.b16 %v1009
        %v3197 = vunpack.c.h.b16 %v1009
        %v3198 = vunpack.c.l.b16 %v1010
        %v3199 = vunpack.c.h.b16 %v1010
        %v3200 = vunpack.c.l.b16 %v1011
        %v3201 = vunpack.c.h.b16 %v1011
        %v3202 = vunpack.c.l.b16 %v1012
        %v3203 = vunpack.c.h.b16 %v1012
        %v3204 = vunpack.c.l.b16 %v1013
        %v3205 = vunpack.c.h.b16 %v1013
        %v3206 = vunpack.c.l.b16 %v1014
        %v3207 = vunpack.c.h.b16 %v1014
        %v3208 = vunpack.c.l.b16 %v1015
        %v3209 = vunpack.c.h.b16 %v1015
        %v3210 = vunpack.c.l.b16 %v1016
        %v3211 = vunpack.c.h.b16 %v1016
        %v3212 = vunpack.c.l.b16 %v1017
        %v3213 = vunpack.c.h.b16 %v1017
        %v3214 = vunpack.c.l.b16 %v1018
        %v3215 = vunpack.c.h.b16 %v1018
        %v3216 = vunpack.c.l.b16 %v1019
        %v3217 = vunpack.c.h.b16 %v1019
        %v3218 = vunpack.c.l.b16 %v1020
        %v3219 = vunpack.c.h.b16 %v1020
        %v3220 = vunpack.c.l.b16 %v1021
        %v3221 = vunpack.c.h.b16 %v1021
        %v3222 = vunpack.c.l.b16 %v1022
        %v3223 = vunpack.c.h.b16 %v1022
        %v3224 = vunpack.c.l.b16 %v1023
        %v3225 = vunpack.c.h.b16 %v1023
        %v3226 = vunpack.c.l.b16 %v1024
        %v3227 = vunpack.c.h.b16 %v1024
        %v3228 = vunpack.c.l.b16 %v1025
        %v3229 = vunpack.c.h.b16 %v1025
        %v3230 = vunpack.c.l.b16 %v1026
        %v3231 = vunpack.c.h.b16 %v1026
        %v3232 = vunpack.c.l.b16 %v1027
        %v3233 = vunpack.c.h.b16 %v1027
        %v3234 = vunpack.c.l.b16 %v1028
        %v3235 = vunpack.c.h.b16 %v1028
        %v3236 = vunpack.c.l.b16 %v1029
        %v3237 = vunpack.c.h.b16 %v1029
        %v3238 = vunpack.c.l.b16 %v1030
        %v3239 = vunpack.c.h.b16 %v1030
        %v3240 = vunpack.c.l.b16 %v1031
        %v3241 = vunpack.c.h.b16 %v1031
        %v3242 = vunpack.c.l.b16 %v1032
        %v3243 = vunpack.c.h.b16 %v1032
        %v3244 = vunpack.c.l.b16 %v1033
        %v3245 = vunpack.c.h.b16 %v1033
        %v3246 = vunpack.c.l.b16 %v1034
        %v3247 = vunpack.c.h.b16 %v1034
        %v3248 = vunpack.c.l.b16 %v1035
        %v3249 = vunpack.c.h.b16 %v1035
        %v3250 = vunpack.c.l.b16 %v1036
        %v3251 = vunpack.c.h.b16 %v1036
        %v3252 = vunpack.c.l.b16 %v1037
        %v3253 = vunpack.c.h.b16 %v1037
        %v3254 = vunpack.c.l.b16 %v1038
        %v3255 = vunpack.c.h.b16 %v1038
        %v3256 = vunpack.c.l.b16 %v1039
        %v3257 = vunpack.c.h.b16 %v1039
        %v3258 = vunpack.c.l.b16 %v1040
        %v3259 = vunpack.c.h.b16 %v1040
        %v3260 = vunpack.c.l.b16 %v1041
        %v3261 = vunpack.c.h.b16 %v1041
        %v3262 = vunpack.c.l.b16 %v1042
        %v3263 = vunpack.c.h.b16 %v1042
        %v3264 = vunpack.c.l.b16 %v1043
        %v3265 = vunpack.c.h.b16 %v1043
        %v3266 = vunpack.c.l.b16 %v1044
        %v3267 = vunpack.c.h.b16 %v1044
        %v3268 = vunpack.c.l.b16 %v1045
        %v3269 = vunpack.c.h.b16 %v1045
        %v3270 = vunpack.c.l.b16 %v1046
        %v3271 = vunpack.c.h.b16 %v1046
        %v3272 = vunpack.c.l.b16 %v1047
        %v3273 = vunpack.c.h.b16 %v1047
        %v3274 = vunpack.c.l.b16 %v1048
        %v3275 = vunpack.c.h.b16 %v1048
        %v3276 = vunpack.c.l.b16 %v1049
        %v3277 = vunpack.c.h.b16 %v1049
        %v3278 = vunpack.c.l.b16 %v1050
        %v3279 = vunpack.c.h.b16 %v1050
        %v3280 = vunpack.c.l.b16 %v1051
        %v3281 = vunpack.c.h.b16 %v1051
        %v3282 = vunpack.c.l.b16 %v1052
        %v3283 = vunpack.c.h.b16 %v1052
        %v3284 = vunpack.c.l.b16 %v1053
        %v3285 = vunpack.c.h.b16 %v1053
        %v3286 = vunpack.c.l.b16 %v1054
        %v3287 = vunpack.c.h.b16 %v1054
        %v3288 = vunpack.c.l.b16 %v1055
        %v3289 = vunpack.c.h.b16 %v1055
        %v3290 = vunpack.c.l.b16 %v1056
        %v3291 = vunpack.c.h.b16 %v1056
        %v3292 = vunpack.c.l.b16 %v1057
        %v3293 = vunpack.c.h.b16 %v1057
        %v3294 = vunpack.c.l.b16 %v1058
        %v3295 = vunpack.c.h.b16 %v1058
        %v3296 = vunpack.c.l.b16 %v1059
        %v3297 = vunpack.c.h.b16 %v1059
        %v3298 = vunpack.c.l.b16 %v1060
        %v3299 = vunpack.c.h.b16 %v1060
        %v3300 = vunpack.c.l.b16 %v1061
        %v3301 = vunpack.c.h.b16 %v1061
        %v3302 = vunpack.c.l.b16 %v1062
        %v3303 = vunpack.c.h.b16 %v1062
        %v3304 = vunpack.c.l.b16 %v1063
        %v3305 = vunpack.c.h.b16 %v1063
        %v3306 = vunpack.c.l.b16 %v1064
        %v3307 = vunpack.c.h.b16 %v1064
        %v3308 = vunpack.c.l.b16 %v1065
        %v3309 = vunpack.c.h.b16 %v1065
        %v3310 = vunpack.c.l.b16 %v1066
        %v3311 = vunpack.c.h.b16 %v1066
        %v3312 = vunpack.c.l.b16 %v1067
        %v3313 = vunpack.c.h.b16 %v1067
        %v3314 = vunpack.c.l.b16 %v1068
        %v3315 = vunpack.c.h.b16 %v1068
        %v3316 = vunpack.c.l.b16 %v1069
        %v3317 = vunpack.c.h.b16 %v1069
        %v3318 = vunpack.c.l.b16 %v1070
        %v3319 = vunpack.c.h.b16 %v1070
        %v3320 = vunpack.c.l.b16 %v1071
        %v3321 = vunpack.c.h.b16 %v1071
        %v3322 = vunpack.c.l.b16 %v1072
        %v3323 = vunpack.c.h.b16 %v1072
        %v3324 = vunpack.c.l.b16 %v1073
        %v3325 = vunpack.c.h.b16 %v1073
        %v3326 = vunpack.c.l.b16 %v1074
        %v3327 = vunpack.c.h.b16 %v1074
        %v3328 = vunpack.c.l.b16 %v1075
        %v3329 = vunpack.c.h.b16 %v1075
        %v3330 = vunpack.c.l.b16 %v1076
        %v3331 = vunpack.c.h.b16 %v1076
        %v3332 = vunpack.c.l.b16 %v1077
        %v3333 = vunpack.c.h.b16 %v1077
        %v3334 = vunpack.c.l.b16 %v1078
        %v3335 = vunpack.c.h.b16 %v1078
        %v3336 = vunpack.c.l.b16 %v1079
        %v3337 = vunpack.c.h.b16 %v1079
        %v3338 = vunpack.c.l.b16 %v1080
        %v3339 = vunpack.c.h.b16 %v1080
        %v3340 = vunpack.c.l.b16 %v1081
        %v3341 = vunpack.c.h.b16 %v1081
        %v3342 = vunpack.c.l.b16 %v1082
        %v3343 = vunpack.c.h.b16 %v1082
        %v3344 = vunpack.c.l.b16 %v1083
        %v3345 = vunpack.c.h.b16 %v1083
        %v3346 = vunpack.c.l.b16 %v1084
        %v3347 = vunpack.c.h.b16 %v1084
        %v3348 = vunpack.c.l.b16 %v1085
        %v3349 = vunpack.c.h.b16 %v1085
        %v3350 = vunpack.c.l.b16 %v1086
        %v3351 = vunpack.c.h.b16 %v1086
        %v3352 = vunpack.c.l.b16 %v1087
        %v3353 = vunpack.c.h.b16 %v1087
        %v3354 = vunpack.c.l.b16 %v1088
        %v3355 = vunpack.c.h.b16 %v1088
        %v3356 = vunpack.c.l.b16 %v1089
        %v3357 = vunpack.c.h.b16 %v1089
        %v3358 = vunpack.c.l.b16 %v1090
        %v3359 = vunpack.c.h.b16 %v1090
        %v3360 = vunpack.c.l.b16 %v1091
        %v3361 = vunpack.c.h.b16 %v1091
        %v3362 = vunpack.c.l.b16 %v1092
        %v3363 = vunpack.c.h.b16 %v1092
        %v3364 = vunpack.c.l.b16 %v1093
        %v3365 = vunpack.c.h.b16 %v1093
        %v3366 = vunpack.c.l.b16 %v1094
        %v3367 = vunpack.c.h.b16 %v1094
        %v3368 = vunpack.c.l.b16 %v1095
        %v3369 = vunpack.c.h.b16 %v1095
        %v3370 = vunpack.c.l.b16 %v1096
        %v3371 = vunpack.c.h.b16 %v1096
        %v3372 = vunpack.c.l.b16 %v1097
        %v3373 = vunpack.c.h.b16 %v1097
        %v3374 = vunpack.c.l.b16 %v1098
        %v3375 = vunpack.c.h.b16 %v1098
        %v3376 = vunpack.c.l.b16 %v1099
        %v3377 = vunpack.c.h.b16 %v1099
        %v3378 = vunpack.c.l.b16 %v1100
        %v3379 = vunpack.c.h.b16 %v1100
        %v3380 = vunpack.c.l.b16 %v1101
        %v3381 = vunpack.c.h.b16 %v1101
        %v3382 = vunpack.c.l.b16 %v1102
        %v3383 = vunpack.c.h.b16 %v1102
        %v3384 = vunpack.c.l.b16 %v1103
        %v3385 = vunpack.c.h.b16 %v1103
        %v3386 = vunpack.c.l.b16 %v1104
        %v3387 = vunpack.c.h.b16 %v1104
        %v3388 = vunpack.c.l.b16 %v1105
        %v3389 = vunpack.c.h.b16 %v1105
        %v3390 = vunpack.c.l.b16 %v1106
        %v3391 = vunpack.c.h.b16 %v1106
        %v3392 = vunpack.c.l.b16 %v1107
        %v3393 = vunpack.c.h.b16 %v1107
        %v3394 = vunpack.c.l.b16 %v1108
        %v3395 = vunpack.c.h.b16 %v1108
        %v3396 = vunpack.c.l.b16 %v1109
        %v3397 = vunpack.c.h.b16 %v1109
        %v3398 = vunpack.c.l.b16 %v1110
        %v3399 = vunpack.c.h.b16 %v1110
        %v3400 = vunpack.c.l.b16 %v1111
        %v3401 = vunpack.c.h.b16 %v1111
        %v3402 = vunpack.c.l.b16 %v1112
        %v3403 = vunpack.c.h.b16 %v1112
        %v3404 = vunpack.c.l.b16 %v1113
        %v3405 = vunpack.c.h.b16 %v1113
        %v3406 = vunpack.c.l.b16 %v1114
        %v3407 = vunpack.c.h.b16 %v1114
        %v3408 = vunpack.c.l.b16 %v1115
        %v3409 = vunpack.c.h.b16 %v1115
        %v3410 = vunpack.c.l.b16 %v1116
        %v3411 = vunpack.c.h.b16 %v1116
        %v3412 = vunpack.c.l.b16 %v1117
        %v3413 = vunpack.c.h.b16 %v1117
        %v3414 = vunpack.c.l.b16 %v1118
        %v3415 = vunpack.c.h.b16 %v1118
        %v3416 = vunpack.c.l.b16 %v1119
        %v3417 = vunpack.c.h.b16 %v1119
        %v3418 = vunpack.c.l.b16 %v1120
        %v3419 = vunpack.c.h.b16 %v1120
        %v3420 = vunpack.c.l.b16 %v1121
        %v3421 = vunpack.c.h.b16 %v1121
        %v3422 = vunpack.c.l.b16 %v1122
        %v3423 = vunpack.c.h.b16 %v1122
        %v3424 = vunpack.c.l.b16 %v1123
        %v3425 = vunpack.c.h.b16 %v1123
        %v3426 = vunpack.c.l.b16 %v1124
        %v3427 = vunpack.c.h.b16 %v1124
        %v3428 = vunpack.c.l.b16 %v1125
        %v3429 = vunpack.c.h.b16 %v1125
        %v3430 = vunpack.c.l.b16 %v1126
        %v3431 = vunpack.c.h.b16 %v1126
        %v3432 = vunpack.c.l.b16 %v1127
        %v3433 = vunpack.c.h.b16 %v1127
        %v3434 = vunpack.c.l.b16 %v1128
        %v3435 = vunpack.c.h.b16 %v1128
        %v3436 = vunpack.c.l.b16 %v1129
        %v3437 = vunpack.c.h.b16 %v1129
        %v3438 = vunpack.c.l.b16 %v1130
        %v3439 = vunpack.c.h.b16 %v1130
        %v3440 = vunpack.c.l.b16 %v1131
        %v3441 = vunpack.c.h.b16 %v1131
        %v3442 = vunpack.c.l.b16 %v1132
        %v3443 = vunpack.c.h.b16 %v1132
        %v3444 = vunpack.c.l.b16 %v1133
        %v3445 = vunpack.c.h.b16 %v1133
        %v3446 = vunpack.c.l.b16 %v1134
        %v3447 = vunpack.c.h.b16 %v1134
        %v3448 = vunpack.c.l.b16 %v1135
        %v3449 = vunpack.c.h.b16 %v1135
        %v3450 = vunpack.c.l.b16 %v1136
        %v3451 = vunpack.c.h.b16 %v1136
        %v3452 = vunpack.c.l.b16 %v1137
        %v3453 = vunpack.c.h.b16 %v1137
        %v3454 = vunpack.c.l.b16 %v1138
        %v3455 = vunpack.c.h.b16 %v1138
        %v3456 = vunpack.c.l.b16 %v1139
        %v3457 = vunpack.c.h.b16 %v1139
        %v3458 = vunpack.c.l.b16 %v1140
        %v3459 = vunpack.c.h.b16 %v1140
        %v3460 = vunpack.c.l.b16 %v1141
        %v3461 = vunpack.c.h.b16 %v1141
        %v3462 = vunpack.c.l.b16 %v1142
        %v3463 = vunpack.c.h.b16 %v1142
        %v3464 = vunpack.c.l.b16 %v1143
        %v3465 = vunpack.c.h.b16 %v1143
        %v3466 = vunpack.c.l.b16 %v1144
        %v3467 = vunpack.c.h.b16 %v1144
        %v3468 = vunpack.c.l.b16 %v1145
        %v3469 = vunpack.c.h.b16 %v1145
        %v3470 = vunpack.c.l.b16 %v1146
        %v3471 = vunpack.c.h.b16 %v1146
        %v3472 = vunpack.c.l.b16 %v1147
        %v3473 = vunpack.c.h.b16 %v1147
        %v3474 = vunpack.c.l.b16 %v1148
        %v3475 = vunpack.c.h.b16 %v1148
        %v3476 = vunpack.c.l.b16 %v1149
        %v3477 = vunpack.c.h.b16 %v1149
        %v3478 = vunpack.c.l.b16 %v1150
        %v3479 = vunpack.c.h.b16 %v1150
        %v3480 = vunpack.c.l.b16 %v1151
        %v3481 = vunpack.c.h.b16 %v1151
        %v3482 = vunpack.c.l.b16 %v1152
        %v3483 = vunpack.c.h.b16 %v1152
        %v3484 = vunpack.c.l.b16 %v1153
        %v3485 = vunpack.c.h.b16 %v1153
        %v3486 = vunpack.c.l.b16 %v1154
        %v3487 = vunpack.c.h.b16 %v1154
        %v3488 = vunpack.c.l.b16 %v1155
        %v3489 = vunpack.c.h.b16 %v1155
        %v3490 = vunpack.c.l.b16 %v1156
        %v3491 = vunpack.c.h.b16 %v1156
        %v3492 = vunpack.c.l.b16 %v1157
        %v3493 = vunpack.c.h.b16 %v1157
        %v3494 = vunpack.c.l.b16 %v1158
        %v3495 = vunpack.c.h.b16 %v1158
        %v3496 = vunpack.c.l.b16 %v1159
        %v3497 = vunpack.c.h.b16 %v1159
        %v3498 = vunpack.c.l.b16 %v1160
        %v3499 = vunpack.c.h.b16 %v1160
        %v3500 = vunpack.c.l.b16 %v1161
        %v3501 = vunpack.c.h.b16 %v1161
        %v3502 = vunpack.c.l.b16 %v1162
        %v3503 = vunpack.c.h.b16 %v1162
        %v3504 = vunpack.c.l.b16 %v1163
        %v3505 = vunpack.c.h.b16 %v1163
        %v3506 = vunpack.c.l.b16 %v1164
        %v3507 = vunpack.c.h.b16 %v1164
        %v3508 = vunpack.c.l.b16 %v1165
        %v3509 = vunpack.c.h.b16 %v1165
        %v3510 = vunpack.c.l.b16 %v1166
        %v3511 = vunpack.c.h.b16 %v1166
        %v3512 = vunpack.c.l.b16 %v1167
        %v3513 = vunpack.c.h.b16 %v1167
        %v3514 = vunpack.c.l.b16 %v1168
        %v3515 = vunpack.c.h.b16 %v1168
        %v3516 = vunpack.c.l.b16 %v1169
        %v3517 = vunpack.c.h.b16 %v1169
        %v3518 = vunpack.c.l.b16 %v1170
        %v3519 = vunpack.c.h.b16 %v1170
        %v3520 = vunpack.c.l.b16 %v1171
        %v3521 = vunpack.c.h.b16 %v1171
        %v3522 = vunpack.c.l.b16 %v1172
        %v3523 = vunpack.c.h.b16 %v1172
        %v3524 = vunpack.c.l.b16 %v1173
        %v3525 = vunpack.c.h.b16 %v1173
        %v3526 = vunpack.c.l.b16 %v1174
        %v3527 = vunpack.c.h.b16 %v1174
        %v3528 = vunpack.c.l.b16 %v1175
        %v3529 = vunpack.c.h.b16 %v1175
        %v3530 = vunpack.c.l.b16 %v1176
        %v3531 = vunpack.c.h.b16 %v1176
        %v3532 = vunpack.c.l.b16 %v1177
        %v3533 = vunpack.c.h.b16 %v1177
        %v3534 = vunpack.c.l.b16 %v1178
        %v3535 = vunpack.c.h.b16 %v1178
        %v3536 = vunpack.c.l.b16 %v1179
        %v3537 = vunpack.c.h.b16 %v1179
        %v3538 = vpack.c.b16 %v2006, %v2002
        %v3539 = vpack.c.b16 %v2007, %v2003
        %v3540 = vpack.c.b16 %v2008, %v2004
        %v3541 = vpack.c.b16 %v2009, %v2005
        %v3542 = vpack.c.b16 %v2014, %v2010
        %v3543 = vpack.c.b16 %v2015, %v2011
        %v3544 = vpack.c.b16 %v2016, %v2012
        %v3545 = vpack.c.b16 %v2017, %v2013
        %v3546 = vpack.c.b16 %v2022, %v2018
        %v3547 = vpack.c.b16 %v2023, %v2019
        %v3548 = vpack.c.b16 %v2024, %v2020
        %v3549 = vpack.c.b16 %v2025, %v2021
        %v3550 = vpack.c.b16 %v2030, %v2026
        %v3551 = vpack.c.b16 %v2031, %v2027
        %v3552 = vpack.c.b16 %v2032, %v2028
        %v3553 = vpack.c.b16 %v2033, %v2029
        %v3554 = vpack.c.b16 %v2038, %v2034
        %v3555 = vpack.c.b16 %v2039, %v2035
        %v3556 = vpack.c.b16 %v2040, %v2036
        %v3557 = vpack.c.b16 %v2041, %v2037
        %v3558 = vpack.c.b16 %v2046, %v2042
        %v3559 = vpack.c.b16 %v2047, %v2043
        %v3560 = vpack.c.b16 %v2048, %v2044
        %v3561 = vpack.c.b16 %v2049, %v2045
        %v3562 = vpack.c.b16 %v2054, %v2050
        %v3563 = vpack.c.b16 %v2055, %v2051
        %v3564 = vpack.c.b16 %v2056, %v2052
        %v3565 = vpack.c.b16 %v2057, %v2053
        %v3566 = vpack.c.b16 %v2062, %v2058
        %v3567 = vpack.c.b16 %v2063, %v2059
        %v3568 = vpack.c.b16 %v2064, %v2060
        %v3569 = vpack.c.b16 %v2065, %v2061
        %v3570 = vpack.c.b16 %v2070, %v2066
        %v3571 = vpack.c.b16 %v2071, %v2067
        %v3572 = vpack.c.b16 %v2072, %v2068
        %v3573 = vpack.c.b16 %v2073, %v2069
        %v3574 = vpack.c.b16 %v2078, %v2074
        %v3575 = vpack.c.b16 %v2079, %v2075
        %v3576 = vpack.c.b16 %v2080, %v2076
        %v3577 = vpack.c.b16 %v2081, %v2077
        %v3578 = vpack.c.b16 %v2086, %v2082
        %v3579 = vpack.c.b16 %v2087, %v2083
        %v3580 = vpack.c.b16 %v2088, %v2084
        %v3581 = vpack.c.b16 %v2089, %v2085
        %v3582 = vpack.c.b16 %v2094, %v2090
        %v3583 = vpack.c.b16 %v2095, %v2091
        %v3584 = vpack.c.b16 %v2096, %v2092
        %v3585 = vpack.c.b16 %v2097, %v2093
        %v3586 = vpack.c.b16 %v2102, %v2098
        %v3587 = vpack.c.b16 %v2103, %v2099
        %v3588 = vpack.c.b16 %v2104, %v2100
        %v3589 = vpack.c.b16 %v2105, %v2101
        %v3590 = vpack.c.b16 %v2110, %v2106
        %v3591 = vpack.c.b16 %v2111, %v2107
        %v3592 = vpack.c.b16 %v2112, %v2108
        %v3593 = vpack.c.b16 %v2113, %v2109
        %v3594 = vpack.c.b16 %v2118, %v2114
        %v3595 = vpack.c.b16 %v2119, %v2115
        %v3596 = vpack.c.b16 %v2120, %v2116
        %v3597 = vpack.c.b16 %v2121, %v2117
        %v3598 = vpack.c.b16 %v2126, %v2122
        %v3599 = vpack.c.b16 %v2127, %v2123
        %v3600 = vpack.c.b16 %v2128, %v2124
        %v3601 = vpack.c.b16 %v2129, %v2125
        %v3602 = vpack.c.b16 %v2134, %v2130
        %v3603 = vpack.c.b16 %v2135, %v2131
        %v3604 = vpack.c.b16 %v2136, %v2132
        %v3605 = vpack.c.b16 %v2137, %v2133
        %v3606 = vpack.c.b16 %v2142, %v2138
        %v3607 = vpack.c.b16 %v2143, %v2139
        %v3608 = vpack.c.b16 %v2144, %v2140
        %v3609 = vpack.c.b16 %v2145, %v2141
        %v3610 = vpack.c.b16 %v2150, %v2146
        %v3611 = vpack.c.b16 %v2151, %v2147
        %v3612 = vpack.c.b16 %v2152, %v2148
        %v3613 = vpack.c.b16 %v2153, %v2149
        %v3614 = vpack.c.b16 %v2158, %v2154
        %v3615 = vpack.c.b16 %v2159, %v2155
        %v3616 = vpack.c.b16 %v2160, %v2156
        %v3617 = vpack.c.b16 %v2161, %v2157
        %v3618 = vpack.c.b16 %v2166, %v2162
        %v3619 = vpack.c.b16 %v2167, %v2163
        %v3620 = vpack.c.b16 %v2168, %v2164
        %v3621 = vpack.c.b16 %v2169, %v2165
        %v3622 = vpack.c.b16 %v2174, %v2170
        %v3623 = vpack.c.b16 %v2175, %v2171
        %v3624 = vpack.c.b16 %v2176, %v2172
        %v3625 = vpack.c.b16 %v2177, %v2173
        %v3626 = vpack.c.b16 %v2182, %v2178
        %v3627 = vpack.c.b16 %v2183, %v2179
        %v3628 = vpack.c.b16 %v2184, %v2180
        %v3629 = vpack.c.b16 %v2185, %v2181
        %v3630 = vpack.c.b16 %v2190, %v2186
        %v3631 = vpack.c.b16 %v2191, %v2187
        %v3632 = vpack.c.b16 %v2192, %v2188
        %v3633 = vpack.c.b16 %v2193, %v2189
        %v3634 = vpack.c.b16 %v2198, %v2194
        %v3635 = vpack.c.b16 %v2199, %v2195
        %v3636 = vpack.c.b16 %v2200, %v2196
        %v3637 = vpack.c.b16 %v2201, %v2197
        %v3638 = vpack.c.b16 %v2206, %v2202
        %v3639 = vpack.c.b16 %v2207, %v2203
        %v3640 = vpack.c.b16 %v2208, %v2204
        %v3641 = vpack.c.b16 %v2209, %v2205
        %v3642 = vpack.c.b16 %v2214, %v2210
        %v3643 = vpack.c.b16 %v2215, %v2211
        %v3644 = vpack.c.b16 %v2216, %v2212
        %v3645 = vpack.c.b16 %v2217, %v2213
        %v3646 = vpack.c.b16 %v2222, %v2218
        %v3647 = vpack.c.b16 %v2223, %v2219
        %v3648 = vpack.c.b16 %v2224, %v2220
        %v3649 = vpack.c.b16 %v2225, %v2221
        %v3650 = vpack.c.b16 %v2230, %v2226
        %v3651 = vpack.c.b16 %v2231, %v2227
        %v3652 = vpack.c.b16 %v2232, %v2228
        %v3653 = vpack.c.b16 %v2233, %v2229
        %v3654 = vpack.c.b16 %v2238, %v2234
        %v3655 = vpack.c.b16 %v2239, %v2235
        %v3656 = vpack.c.b16 %v2240, %v2236
        %v3657 = vpack.c.b16 %v2241, %v2237
        %v3658 = vpack.c.b16 %v2246, %v2242
        %v3659 = vpack.c.b16 %v2247, %v2243
        %v3660 = vpack.c.b16 %v2248, %v2244
        %v3661 = vpack.c.b16 %v2249, %v2245
        %v3662 = vpack.c.b16 %v2254, %v2250
        %v3663 = vpack.c.b16 %v2255, %v2251
        %v3664 = vpack.c.b16 %v2256, %v2252
        %v3665 = vpack.c.b16 %v2257, %v2253
        %v3666 = vpack.c.b16 %v2262, %v2258
        %v3667 = vpack.c.b16 %v2263, %v2259
        %v3668 = vpack.c.b16 %v2264, %v2260
        %v3669 = vpack.c.b16 %v2265, %v2261
        %v3670 = vpack.c.b16 %v2270, %v2266
        %v3671 = vpack.c.b16 %v2271, %v2267
        %v3672 = vpack.c.b16 %v2272, %v2268
        %v3673 = vpack.c.b16 %v2273, %v2269
        %v3674 = vpack.c.b16 %v2278, %v2274
        %v3675 = vpack.c.b16 %v2279, %v2275
        %v3676 = vpack.c.b16 %v2280, %v2276
        %v3677 = vpack.c.b16 %v2281, %v2277
        %v3678 = vpack.c.b16 %v2286, %v2282
        %v3679 = vpack.c.b16 %v2287, %v2283
        %v3680 = vpack.c.b16 %v2288, %v2284
        %v3681 = vpack.c.b16 %v2289, %v2285
        %v3682 = vpack.c.b16 %v2294, %v2290
        %v3683 = vpack.c.b16 %v2295, %v2291
        %v3684 = vpack.c.b16 %v2296, %v2292
        %v3685 = vpack.c.b16 %v2297, %v2293
        %v3686 = vpack.c.b16 %v2302, %v2298
        %v3687 = vpack.c.b16 %v2303, %v2299
        %v3688 = vpack.c.b16 %v2304, %v2300
        %v3689 = vpack.c.b16 %v2305, %v2301
        %v3690 = vpack.c.b16 %v2310, %v2306
        %v3691 = vpack.c.b16 %v2311, %v2307
        %v3692 = vpack.c.b16 %v2312, %v2308
        %v3693 = vpack.c.b16 %v2313, %v2309
        %v3694 = vpack.c.b16 %v2318, %v2314
        %v3695 = vpack.c.b16 %v2319, %v2315
        %v3696 = vpack.c.b16 %v2320, %v2316
        %v3697 = vpack.c.b16 %v2321, %v2317
        %v3698 = vpack.c.b16 %v2326, %v2322
        %v3699 = vpack.c.b16 %v2327, %v2323
        %v3700 = vpack.c.b16 %v2328, %v2324
        %v3701 = vpack.c.b16 %v2329, %v2325
        %v3702 = vpack.c.b16 %v2334, %v2330
        %v3703 = vpack.c.b16 %v2335, %v2331
        %v3704 = vpack.c.b16 %v2336, %v2332
        %v3705 = vpack.c.b16 %v2337, %v2333
        %v3706 = vpack.c.b16 %v2342, %v2338
        %v3707 = vpack.c.b16 %v2343, %v2339
        %v3708 = vpack.c.b16 %v2344, %v2340
        %v3709 = vpack.c.b16 %v2345, %v2341
        %v3710 = vpack.c.b16 %v2350, %v2346
        %v3711 = vpack.c.b16 %v2351, %v2347
        %v3712 = vpack.c.b16 %v2352, %v2348
        %v3713 = vpack.c.b16 %v2353, %v2349
        %v3714 = vpack.c.b16 %v2358, %v2354
        %v3715 = vpack.c.b16 %v2359, %v2355
        %v3716 = vpack.c.b16 %v2360, %v2356
        %v3717 = vpack.c.b16 %v2361, %v2357
        %v3718 = vpack.c.b16 %v2366, %v2362
        %v3719 = vpack.c.b16 %v2367, %v2363
        %v3720 = vpack.c.b16 %v2368, %v2364
        %v3721 = vpack.c.b16 %v2369, %v2365
        %v3722 = vpack.c.b16 %v2374, %v2370
        %v3723 = vpack.c.b16 %v2375, %v2371
        %v3724 = vpack.c.b16 %v2376, %v2372
        %v3725 = vpack.c.b16 %v2377, %v2373
        %v3726 = vpack.c.b16 %v2382, %v2378
        %v3727 = vpack.c.b16 %v2383, %v2379
        %v3728 = vpack.c.b16 %v2384, %v2380
        %v3729 = vpack.c.b16 %v2385, %v2381
        %v3730 = vpack.c.b16 %v2390, %v2386
        %v3731 = vpack.c.b16 %v2391, %v2387
        %v3732 = vpack.c.b16 %v2392, %v2388
        %v3733 = vpack.c.b16 %v2393, %v2389
        %v3734 = vpack.c.b16 %v2398, %v2394
        %v3735 = vpack.c.b16 %v2399, %v2395
        %v3736 = vpack.c.b16 %v2400, %v2396
        %v3737 = vpack.c.b16 %v2401, %v2397
        %v3738 = vpack.c.b16 %v2406, %v2402
        %v3739 = vpack.c.b16 %v2407, %v2403
        %v3740 = vpack.c.b16 %v2408, %v2404
        %v3741 = vpack.c.b16 %v2409, %v2405
        %v3742 = vpack.c.b16 %v2414, %v2410
        %v3743 = vpack.c.b16 %v2415, %v2411
        %v3744 = vpack.c.b16 %v2416, %v2412
        %v3745 = vpack.c.b16 %v2417, %v2413
        %v3746 = vpack.c.b16 %v2422, %v2418
        %v3747 = vpack.c.b16 %v2423, %v2419
        %v3748 = vpack.c.b16 %v2424, %v2420
        %v3749 = vpack.c.b16 %v2425, %v2421
        %v3750 = vpack.c.b16 %v2430, %v2426
        %v3751 = vpack.c.b16 %v2431, %v2427
        %v3752 = vpack.c.b16 %v2432, %v2428
        %v3753 = vpack.c.b16 %v2433, %v2429
        %v3754 = vpack.c.b16 %v2438, %v2434
        %v3755 = vpack.c.b16 %v2439, %v2435
        %v3756 = vpack.c.b16 %v2440, %v2436
        %v3757 = vpack.c.b16 %v2441, %v2437
        %v3758 = vpack.c.b16 %v2446, %v2442
        %v3759 = vpack.c.b16 %v2447, %v2443
        %v3760 = vpack.c.b16 %v2448, %v2444
        %v3761 = vpack.c.b16 %v2449, %v2445
        %v3762 = vpack.c.b16 %v2454, %v2450
        %v3763 = vpack.c.b16 %v2455, %v2451
        %v3764 = vpack.c.b16 %v2456, %v2452
        %v3765 = vpack.c.b16 %v2457, %v2453
        %v3766 = vpack.c.b16 %v2462, %v2458
        %v3767 = vpack.c.b16 %v2463, %v2459
        %v3768 = vpack.c.b16 %v2464, %v2460
        %v3769 = vpack.c.b16 %v2465, %v2461
        %v3770 = vpack.c.b16 %v2470, %v2466
        %v3771 = vpack.c.b16 %v2471, %v2467
        %v3772 = vpack.c.b16 %v2472, %v2468
        %v3773 = vpack.c.b16 %v2473, %v2469
        %v3774 = vpack.c.b16 %v2478, %v2474
        %v3775 = vpack.c.b16 %v2479, %v2475
        %v3776 = vpack.c.b16 %v2480, %v2476
        %v3777 = vpack.c.b16 %v2481, %v2477
        %v3778 = vpack.c.b16 %v2486, %v2482
        %v3779 = vpack.c.b16 %v2487, %v2483
        %v3780 = vpack.c.b16 %v2488, %v2484
        %v3781 = vpack.c.b16 %v2489, %v2485
        %v3782 = vpack.c.b16 %v2494, %v2490
        %v3783 = vpack.c.b16 %v2495, %v2491
        %v3784 = vpack.c.b16 %v2496, %v2492
        %v3785 = vpack.c.b16 %v2497, %v2493
        %v3786 = vpack.c.b16 %v2502, %v2498
        %v3787 = vpack.c.b16 %v2503, %v2499
        %v3788 = vpack.c.b16 %v2504, %v2500
        %v3789 = vpack.c.b16 %v2505, %v2501
        %v3790 = vpack.c.b16 %v2510, %v2506
        %v3791 = vpack.c.b16 %v2511, %v2507
        %v3792 = vpack.c.b16 %v2512, %v2508
        %v3793 = vpack.c.b16 %v2513, %v2509
        %v3794 = vpack.c.b16 %v2518, %v2514
        %v3795 = vpack.c.b16 %v2519, %v2515
        %v3796 = vpack.c.b16 %v2520, %v2516
        %v3797 = vpack.c.b16 %v2521, %v2517
        %v3798 = vpack.c.b16 %v2526, %v2522
        %v3799 = vpack.c.b16 %v2527, %v2523
        %v3800 = vpack.c.b16 %v2528, %v2524
        %v3801 = vpack.c.b16 %v2529, %v2525
        %v3802 = vpack.c.b16 %v2534, %v2530
        %v3803 = vpack.c.b16 %v2535, %v2531
        %v3804 = vpack.c.b16 %v2536, %v2532
        %v3805 = vpack.c.b16 %v2537, %v2533
        %v3806 = vpack.c.b16 %v2542, %v2538
        %v3807 = vpack.c.b16 %v2543, %v2539
        %v3808 = vpack.c.b16 %v2544, %v2540
        %v3809 = vpack.c.b16 %v2545, %v2541
        %v3810 = vpack.c.b16 %v2550, %v2546
        %v3811 = vpack.c.b16 %v2551, %v2547
        %v3812 = vpack.c.b16 %v2552, %v2548
        %v3813 = vpack.c.b16 %v2553, %v2549
        %v3814 = vpack.c.b16 %v2558, %v2554
        %v3815 = vpack.c.b16 %v2559, %v2555
        %v3816 = vpack.c.b16 %v2560, %v2556
        %v3817 = vpack.c.b16 %v2561, %v2557
        %v3818 = vpack.c.b16 %v2566, %v2562
        %v3819 = vpack.c.b16 %v2567, %v2563
        %v3820 = vpack.c.b16 %v2568, %v2564
        %v3821 = vpack.c.b16 %v2569, %v2565
        %v3822 = vpack.c.b16 %v2574, %v2570
        %v3823 = vpack.c.b16 %v2575, %v2571
        %v3824 = vpack.c.b16 %v2576, %v2572
        %v3825 = vpack.c.b16 %v2577, %v2573
        %v3826 = vpack.c.b16 %v2582, %v2578
        %v3827 = vpack.c.b16 %v2583, %v2579
        %v3828 = vpack.c.b16 %v2584, %v2580
        %v3829 = vpack.c.b16 %v2585, %v2581
        %v3830 = vpack.c.b16 %v2590, %v2586
        %v3831 = vpack.c.b16 %v2591, %v2587
        %v3832 = vpack.c.b16 %v2592, %v2588
        %v3833 = vpack.c.b16 %v2593, %v2589
        %v3834 = vpack.c.b16 %v2598, %v2594
        %v3835 = vpack.c.b16 %v2599, %v2595
        %v3836 = vpack.c.b16 %v2600, %v2596
        %v3837 = vpack.c.b16 %v2601, %v2597
        %v3838 = vpack.c.b16 %v2606, %v2602
        %v3839 = vpack.c.b16 %v2607, %v2603
        %v3840 = vpack.c.b16 %v2608, %v2604
        %v3841 = vpack.c.b16 %v2609, %v2605
        %v3842 = vpack.c.b16 %v2614, %v2610
        %v3843 = vpack.c.b16 %v2615, %v2611
        %v3844 = vpack.c.b16 %v2616, %v2612
        %v3845 = vpack.c.b16 %v2617, %v2613
        %v3846 = vpack.c.b16 %v2622, %v2618
        %v3847 = vpack.c.b16 %v2623, %v2619
        %v3848 = vpack.c.b16 %v2624, %v2620
        %v3849 = vpack.c.b16 %v2625, %v2621
        %v3850 = vpack.c.b16 %v2630, %v2626
        %v3851 = vpack.c.b16 %v2631, %v2627
        %v3852 = vpack.c.b16 %v2632, %v2628
        %v3853 = vpack.c.b16 %v2633, %v2629
        %v3854 = vpack.c.b16 %v2638, %v2634
        %v3855 = vpack.c.b16 %v2639, %v2635
        %v3856 = vpack.c.b16 %v2640, %v2636
        %v3857 = vpack.c.b16 %v2641, %v2637
        %v3858 = vpack.c.b16 %v2646, %v2642
        %v3859 = vpack.c.b16 %v2647, %v2643
        %v3860 = vpack.c.b16 %v2648, %v2644
        %v3861 = vpack.c.b16 %v2649, %v2645
        %v3862 = vpack.c.b16 %v2654, %v2650
        %v3863 = vpack.c.b16 %v2655, %v2651
        %v3864 = vpack.c.b16 %v2656, %v2652
        %v3865 = vpack.c.b16 %v2657, %v2653
        %v3866 = vpack.c.b16 %v2662, %v2658
        %v3867 = vpack.c.b16 %v2663, %v2659
        %v3868 = vpack.c.b16 %v2664, %v2660
        %v3869 = vpack.c.b16 %v2665, %v2661
        %v3870 = vpack.c.b16 %v2670, %v2666
        %v3871 = vpack.c.b16 %v2671, %v2667
        %v3872 = vpack.c.b16 %v2672, %v2668
        %v3873 = vpack.c.b16 %v2673, %v2669
        %v3874 = vpack.c.b16 %v2678, %v2674
        %v3875 = vpack.c.b16 %v2679, %v2675
        %v3876 = vpack.c.b16 %v2680, %v2676
        %v3877 = vpack.c.b16 %v2681, %v2677
        %v3878 = vpack.c.b16 %v2686, %v2682
        %v3879 = vpack.c.b16 %v2687, %v2683
        %v3880 = vpack.c.b16 %v2688, %v2684
        %v3881 = vpack.c.b16 %v2689, %v2685
        %v3882 = vpack.c.b16 %v2694, %v2690
        %v3883 = vpack.c.b16 %v2695, %v2691
        %v3884 = vpack.c.b16 %v2696, %v2692
        %v3885 = vpack.c.b16 %v2697, %v2693
        %v3886 = vpack.c.b16 %v2702, %v2698
        %v3887 = vpack.c.b16 %v2703, %v2699
        %v3888 = vpack.c.b16 %v2704, %v2700
        %v3889 = vpack.c.b16 %v2705, %v2701
        %v3890 = vpack.c.b16 %v2710, %v2706
        %v3891 = vpack.c.b16 %v2711, %v2707
        %v3892 = vpack.c.b16 %v2712, %v2708
        %v3893 = vpack.c.b16 %v2713, %v2709
        %v3894 = vpack.c.b16 %v2718, %v2714
        %v3895 = vpack.c.b16 %v2719, %v2715
        %v3896 = vpack.c.b16 %v2720, %v2716
        %v3897 = vpack.c.b16 %v2721, %v2717
        %v3898 = vpack.c.b16 %v2726, %v2722
        %v3899 = vpack.c.b16 %v2727, %v2723
        %v3900 = vpack.c.b16 %v2728, %v2724
        %v3901 = vpack.c.b16 %v2729, %v2725
        %v3902 = vpack.c.b16 %v2734, %v2730
        %v3903 = vpack.c.b16 %v2735, %v2731
        %v3904 = vpack.c.b16 %v2736, %v2732
        %v3905 = vpack.c.b16 %v2737, %v2733
        %v3906 = vpack.c.b16 %v2742, %v2738
        %v3907 = vpack.c.b16 %v2743, %v2739
        %v3908 = vpack.c.b16 %v2744, %v2740
        %v3909 = vpack.c.b16 %v2745, %v2741
        %v3910 = vpack.c.b16 %v2750, %v2746
        %v3911 = vpack.c.b16 %v2751, %v2747
        %v3912 = vpack.c.b16 %v2752, %v2748
        %v3913 = vpack.c.b16 %v2753, %v2749
        %v3914 = vpack.c.b16 %v2758, %v2754
        %v3915 = vpack.c.b16 %v2759, %v2755
        %v3916 = vpack.c.b16 %v2760, %v2756
        %v3917 = vpack.c.b16 %v2761, %v2757
        %v3918 = vpack.c.b16 %v2766, %v2762
        %v3919 = vpack.c.b16 %v2767, %v2763
        %v3920 = vpack.c.b16 %v2768, %v2764
        %v3921 = vpack.c.b16 %v2769, %v2765
        %v3922 = vpack.c.b16 %v2774, %v2770
        %v3923 = vpack.c.b16 %v2775, %v2771
        %v3924 = vpack.c.b16 %v2776, %v2772
        %v3925 = vpack.c.b16 %v2777, %v2773
        %v3926 = vpack.c.b16 %v2782, %v2778
        %v3927 = vpack.c.b16 %v2783, %v2779
        %v3928 = vpack.c.b16 %v2784, %v2780
        %v3929 = vpack.c.b16 %v2785, %v2781
        %v3930 = vpack.c.b16 %v2790, %v2786
        %v3931 = vpack.c.b16 %v2791, %v2787
        %v3932 = vpack.c.b16 %v2792, %v2788
        %v3933 = vpack.c.b16 %v2793, %v2789
        %v3934 = vpack.c.b16 %v2798, %v2794
        %v3935 = vpack.c.b16 %v2799, %v2795
        %v3936 = vpack.c.b16 %v2800, %v2796
        %v3937 = vpack.c.b16 %v2801, %v2797
        %v3938 = vpack.c.b16 %v2806, %v2802
        %v3939 = vpack.c.b16 %v2807, %v2803
        %v3940 = vpack.c.b16 %v2808, %v2804
        %v3941 = vpack.c.b16 %v2809, %v2805
        %v3942 = vpack.c.b16 %v2814, %v2810
        %v3943 = vpack.c.b16 %v2815, %v2811
        %v3944 = vpack.c.b16 %v2816, %v2812
        %v3945 = vpack.c.b16 %v2817, %v2813
        %v3946 = vpack.c.b16 %v2822, %v2818
        %v3947 = vpack.c.b16 %v2823, %v2819
        %v3948 = vpack.c.b16 %v2824, %v2820
        %v3949 = vpack.c.b16 %v2825, %v2821
        %v3950 = vpack.c.b16 %v2830, %v2826
        %v3951 = vpack.c.b16 %v2831, %v2827
        %v3952 = vpack.c.b16 %v2832, %v2828
        %v3953 = vpack.c.b16 %v2833, %v2829
        %v3954 = vpack.c.b16 %v2838, %v2834
        %v3955 = vpack.c.b16 %v2839, %v2835
        %v3956 = vpack.c.b16 %v2840, %v2836
        %v3957 = vpack.c.b16 %v2841, %v2837
        %v3958 = vpack.c.b16 %v2846, %v2842
        %v3959 = vpack.c.b16 %v2847, %v2843
        %v3960 = vpack.c.b16 %v2848, %v2844
        %v3961 = vpack.c.b16 %v2849, %v2845
        %v3962 = vpack.c.b16 %v2854, %v2850
        %v3963 = vpack.c.b16 %v2855, %v2851
        %v3964 = vpack.c.b16 %v2856, %v2852
        %v3965 = vpack.c.b16 %v2857, %v2853
        %v3966 = vpack.c.b16 %v2862, %v2858
        %v3967 = vpack.c.b16 %v2863, %v2859
        %v3968 = vpack.c.b16 %v2864, %v2860
        %v3969 = vpack.c.b16 %v2865, %v2861
        %v3970 = vpack.c.b16 %v2870, %v2866
        %v3971 = vpack.c.b16 %v2871, %v2867
        %v3972 = vpack.c.b16 %v2872, %v2868
        %v3973 = vpack.c.b16 %v2873, %v2869
        %v3974 = vpack.c.b16 %v2878, %v2874
        %v3975 = vpack.c.b16 %v2879, %v2875
        %v3976 = vpack.c.b16 %v2880, %v2876
        %v3977 = vpack.c.b16 %v2881, %v2877
        %v3978 = vpack.c.b16 %v2886, %v2882
        %v3979 = vpack.c.b16 %v2887, %v2883
        %v3980 = vpack.c.b16 %v2888, %v2884
        %v3981 = vpack.c.b16 %v2889, %v2885
        %v3982 = vpack.c.b16 %v2894, %v2890
        %v3983 = vpack.c.b16 %v2895, %v2891
        %v3984 = vpack.c.b16 %v2896, %v2892
        %v3985 = vpack.c.b16 %v2897, %v2893
        %v3986 = vpack.c.b16 %v2902, %v2898
        %v3987 = vpack.c.b16 %v2903, %v2899
        %v3988 = vpack.c.b16 %v2904, %v2900
        %v3989 = vpack.c.b16 %v2905, %v2901
        %v3990 = vpack.c.b16 %v2910, %v2906
        %v3991 = vpack.c.b16 %v2911, %v2907
        %v3992 = vpack.c.b16 %v2912, %v2908
        %v3993 = vpack.c.b16 %v2913, %v2909
        %v3994 = vpack.c.b16 %v2918, %v2914
        %v3995 = vpack.c.b16 %v2919, %v2915
        %v3996 = vpack.c.b16 %v2920, %v2916
        %v3997 = vpack.c.b16 %v2921, %v2917
        %v3998 = vpack.c.b16 %v2926, %v2922
        %v3999 = vpack.c.b16 %v2927, %v2923
        %v4000 = vpack.c.b16 %v2928, %v2924
        %v4001 = vpack.c.b16 %v2929, %v2925
        %v4002 = vpack.c.b16 %v2934, %v2930
        %v4003 = vpack.c.b16 %v2935, %v2931
        %v4004 = vpack.c.b16 %v2936, %v2932
        %v4005 = vpack.c.b16 %v2937, %v2933
        %v4006 = vpack.c.b16 %v2942, %v2938
        %v4007 = vpack.c.b16 %v2943, %v2939
        %v4008 = vpack.c.b16 %v2944, %v2940
        %v4009 = vpack.c.b16 %v2945, %v2941
        %v4010 = vpack.c.b16 %v2950, %v2946
        %v4011 = vpack.c.b16 %v2951, %v2947
        %v4012 = vpack.c.b16 %v2952, %v2948
        %v4013 = vpack.c.b16 %v2953, %v2949
        %v4014 = vpack.c.b16 %v2958, %v2954
        %v4015 = vpack.c.b16 %v2959, %v2955
        %v4016 = vpack.c.b16 %v2960, %v2956
        %v4017 = vpack.c.b16 %v2961, %v2957
        %v4018 = vpack.c.b16 %v2966, %v2962
        %v4019 = vpack.c.b16 %v2967, %v2963
        %v4020 = vpack.c.b16 %v2968, %v2964
        %v4021 = vpack.c.b16 %v2969, %v2965
        %v4022 = vpack.c.b16 %v2974, %v2970
        %v4023 = vpack.c.b16 %v2975, %v2971
        %v4024 = vpack.c.b16 %v2976, %v2972
        %v4025 = vpack.c.b16 %v2977, %v2973
        %v4026 = vpack.c.b16 %v2982, %v2978
        %v4027 = vpack.c.b16 %v2983, %v2979
        %v4028 = vpack.c.b16 %v2984, %v2980
        %v4029 = vpack.c.b16 %v2985, %v2981
        %v4030 = vpack.c.b16 %v2990, %v2986
        %v4031 = vpack.c.b16 %v2991, %v2987
        %v4032 = vpack.c.b16 %v2992, %v2988
        %v4033 = vpack.c.b16 %v2993, %v2989
        %v4034 = vpack.c.b16 %v2998, %v2994
        %v4035 = vpack.c.b16 %v2999, %v2995
        %v4036 = vpack.c.b16 %v3000, %v2996
        %v4037 = vpack.c.b16 %v3001, %v2997
        %v4038 = vpack.c.b16 %v3006, %v3002
        %v4039 = vpack.c.b16 %v3007, %v3003
        %v4040 = vpack.c.b16 %v3008, %v3004
        %v4041 = vpack.c.b16 %v3009, %v3005
        %v4042 = vpack.c.b16 %v3014, %v3010
        %v4043 = vpack.c.b16 %v3015, %v3011
        %v4044 = vpack.c.b16 %v3016, %v3012
        %v4045 = vpack.c.b16 %v3017, %v3013
        %v4046 = vpack.c.b16 %v3022, %v3018
        %v4047 = vpack.c.b16 %v3023, %v3019
        %v4048 = vpack.c.b16 %v3024, %v3020
        %v4049 = vpack.c.b16 %v3025, %v3021
        %v4050 = vpack.c.b16 %v3030, %v3026
        %v4051 = vpack.c.b16 %v3031, %v3027
        %v4052 = vpack.c.b16 %v3032, %v3028
        %v4053 = vpack.c.b16 %v3033, %v3029
        %v4054 = vpack.c.b16 %v3038, %v3034
        %v4055 = vpack.c.b16 %v3039, %v3035
        %v4056 = vpack.c.b16 %v3040, %v3036
        %v4057 = vpack.c.b16 %v3041, %v3037
        %v4058 = vpack.c.b16 %v3046, %v3042
        %v4059 = vpack.c.b16 %v3047, %v3043
        %v4060 = vpack.c.b16 %v3048, %v3044
        %v4061 = vpack.c.b16 %v3049, %v3045
        %v4062 = vpack.c.b16 %v3054, %v3050
        %v4063 = vpack.c.b16 %v3055, %v3051
        %v4064 = vpack.c.b16 %v3056, %v3052
        %v4065 = vpack.c.b16 %v3057, %v3053
        %v4066 = vpack.c.b16 %v3062, %v3058
        %v4067 = vpack.c.b16 %v3063, %v3059
        %v4068 = vpack.c.b16 %v3064, %v3060
        %v4069 = vpack.c.b16 %v3065, %v3061
        %v4070 = vpack.c.b16 %v3070, %v3066
        %v4071 = vpack.c.b16 %v3071, %v3067
        %v4072 = vpack.c.b16 %v3072, %v3068
        %v4073 = vpack.c.b16 %v3073, %v3069
        %v4074 = vpack.c.b16 %v3078, %v3074
        %v4075 = vpack.c.b16 %v3079, %v3075
        %v4076 = vpack.c.b16 %v3080, %v3076
        %v4077 = vpack.c.b16 %v3081, %v3077
        %v4078 = vpack.c.b16 %v3086, %v3082
        %v4079 = vpack.c.b16 %v3087, %v3083
        %v4080 = vpack.c.b16 %v3088, %v3084
        %v4081 = vpack.c.b16 %v3089, %v3085
        %v4082 = vpack.c.b16 %v3094, %v3090
        %v4083 = vpack.c.b16 %v3095, %v3091
        %v4084 = vpack.c.b16 %v3096, %v3092
        %v4085 = vpack.c.b16 %v3097, %v3093
        %v4086 = vpack.c.b16 %v3102, %v3098
        %v4087 = vpack.c.b16 %v3103, %v3099
        %v4088 = vpack.c.b16 %v3104, %v3100
        %v4089 = vpack.c.b16 %v3105, %v3101
        %v4090 = vpack.c.b16 %v3110, %v3106
        %v4091 = vpack.c.b16 %v3111, %v3107
        %v4092 = vpack.c.b16 %v3112, %v3108
        %v4093 = vpack.c.b16 %v3113, %v3109
        %v4094 = vpack.c.b16 %v3118, %v3114
        %v4095 = vpack.c.b16 %v3119, %v3115
        %v4096 = vpack.c.b16 %v3120, %v3116
        %v4097 = vpack.c.b16 %v3121, %v3117
        %v4098 = vpack.c.b16 %v3126, %v3122
        %v4099 = vpack.c.b16 %v3127, %v3123
        %v4100 = vpack.c.b16 %v3128, %v3124
        %v4101 = vpack.c.b16 %v3129, %v3125
        %v4102 = vpack.c.b16 %v3134, %v3130
        %v4103 = vpack.c.b16 %v3135, %v3131
        %v4104 = vpack.c.b16 %v3136, %v3132
        %v4105 = vpack.c.b16 %v3137, %v3133
        %v4106 = vpack.c.b16 %v3142, %v3138
        %v4107 = vpack.c.b16 %v3143, %v3139
        %v4108 = vpack.c.b16 %v3144, %v3140
        %v4109 = vpack.c.b16 %v3145, %v3141
        %v4110 = vpack.c.b16 %v3150, %v3146
        %v4111 = vpack.c.b16 %v3151, %v3147
        %v4112 = vpack.c.b16 %v3152, %v3148
        %v4113 = vpack.c.b16 %v3153, %v3149
        %v4114 = vpack.c.b16 %v3158, %v3154
        %v4115 = vpack.c.b16 %v3159, %v3155
        %v4116 = vpack.c.b16 %v3160, %v3156
        %v4117 = vpack.c.b16 %v3161, %v3157
        %v4118 = vpack.c.b16 %v3166, %v3162
        %v4119 = vpack.c.b16 %v3167, %v3163
        %v4120 = vpack.c.b16 %v3168, %v3164
        %v4121 = vpack.c.b16 %v3169, %v3165
        %v4122 = vpack.c.b16 %v3174, %v3170
        %v4123 = vpack.c.b16 %v3175, %v3171
        %v4124 = vpack.c.b16 %v3176, %v3172
        %v4125 = vpack.c.b16 %v3177, %v3173
        %v4126 = vpack.c.b16 %v3182, %v3178
        %v4127 = vpack.c.b16 %v3183, %v3179
        %v4128 = vpack.c.b16 %v3184, %v3180
        %v4129 = vpack.c.b16 %v3185, %v3181
        %v4130 = vpack.c.b16 %v3190, %v3186
        %v4131 = vpack.c.b16 %v3191, %v3187
        %v4132 = vpack.c.b16 %v3192, %v3188
        %v4133 = vpack.c.b16 %v3193, %v3189
        %v4134 = vpack.c.b16 %v3198, %v3194
        %v4135 = vpack.c.b16 %v3199, %v3195
        %v4136 = vpack.c.b16 %v3200, %v3196
        %v4137 = vpack.c.b16 %v3201, %v3197
        %v4138 = vpack.c.b16 %v3206, %v3202
        %v4139 = vpack.c.b16 %v3207, %v3203
        %v4140 = vpack.c.b16 %v3208, %v3204
        %v4141 = vpack.c.b16 %v3209, %v3205
        %v4142 = vpack.c.b16 %v3214, %v3210
        %v4143 = vpack.c.b16 %v3215, %v3211
        %v4144 = vpack.c.b16 %v3216, %v3212
        %v4145 = vpack.c.b16 %v3217, %v3213
        %v4146 = vpack.c.b16 %v3222, %v3218
        %v4147 = vpack.c.b16 %v3223, %v3219
        %v4148 = vpack.c.b16 %v3224, %v3220
        %v4149 = vpack.c.b16 %v3225, %v3221
        %v4150 = vpack.c.b16 %v3230, %v3226
        %v4151 = vpack.c.b16 %v3231, %v3227
        %v4152 = vpack.c.b16 %v3232, %v3228
        %v4153 = vpack.c.b16 %v3233, %v3229
        %v4154 = vpack.c.b16 %v3238, %v3234
        %v4155 = vpack.c.b16 %v3239, %v3235
        %v4156 = vpack.c.b16 %v3240, %v3236
        %v4157 = vpack.c.b16 %v3241, %v3237
        %v4158 = vpack.c.b16 %v3246, %v3242
        %v4159 = vpack.c.b16 %v3247, %v3243
        %v4160 = vpack.c.b16 %v3248, %v3244
        %v4161 = vpack.c.b16 %v3249, %v3245
        %v4162 = vpack.c.b16 %v3254, %v3250
        %v4163 = vpack.c.b16 %v3255, %v3251
        %v4164 = vpack.c.b16 %v3256, %v3252
        %v4165 = vpack.c.b16 %v3257, %v3253
        %v4166 = vpack.c.b16 %v3262, %v3258
        %v4167 = vpack.c.b16 %v3263, %v3259
        %v4168 = vpack.c.b16 %v3264, %v3260
        %v4169 = vpack.c.b16 %v3265, %v3261
        %v4170 = vpack.c.b16 %v3270, %v3266
        %v4171 = vpack.c.b16 %v3271, %v3267
        %v4172 = vpack.c.b16 %v3272, %v3268
        %v4173 = vpack.c.b16 %v3273, %v3269
        %v4174 = vpack.c.b16 %v3278, %v3274
        %v4175 = vpack.c.b16 %v3279, %v3275
        %v4176 = vpack.c.b16 %v3280, %v3276
        %v4177 = vpack.c.b16 %v3281, %v3277
        %v4178 = vpack.c.b16 %v3286, %v3282
        %v4179 = vpack.c.b16 %v3287, %v3283
        %v4180 = vpack.c.b16 %v3288, %v3284
        %v4181 = vpack.c.b16 %v3289, %v3285
        %v4182 = vpack.c.b16 %v3294, %v3290
        %v4183 = vpack.c.b16 %v3295, %v3291
        %v4184 = vpack.c.b16 %v3296, %v3292
        %v4185 = vpack.c.b16 %v3297, %v3293
        %v4186 = vpack.c.b16 %v3302, %v3298
        %v4187 = vpack.c.b16 %v3303, %v3299
        %v4188 = vpack.c.b16 %v3304, %v3300
        %v4189 = vpack.c.b16 %v3305, %v3301
        %v4190 = vpack.c.b16 %v3310, %v3306
        %v4191 = vpack.c.b16 %v3311, %v3307
        %v4192 = vpack.c.b16 %v3312, %v3308
        %v4193 = vpack.c.b16 %v3313, %v3309
        %v4194 = vpack.c.b16 %v3318, %v3314
        %v4195 = vpack.c.b16 %v3319, %v3315
        %v4196 = vpack.c.b16 %v3320, %v3316
        %v4197 = vpack.c.b16 %v3321, %v3317
        %v4198 = vpack.c.b16 %v3326, %v3322
        %v4199 = vpack.c.b16 %v3327, %v3323
        %v4200 = vpack.c.b16 %v3328, %v3324
        %v4201 = vpack.c.b16 %v3329, %v3325
        %v4202 = vpack.c.b16 %v3334, %v3330
        %v4203 = vpack.c.b16 %v3335, %v3331
        %v4204 = vpack.c.b16 %v3336, %v3332
        %v4205 = vpack.c.b16 %v3337, %v3333
        %v4206 = vpack.c.b16 %v3342, %v3338
        %v4207 = vpack.c.b16 %v3343, %v3339
        %v4208 = vpack.c.b16 %v3344, %v3340
        %v4209 = vpack.c.b16 %v3345, %v3341
        %v4210 = vpack.c.b16 %v3350, %v3346
        %v4211 = vpack.c.b16 %v3351, %v3347
        %v4212 = vpack.c.b16 %v3352, %v3348
        %v4213 = vpack.c.b16 %v3353, %v3349
        %v4214 = vpack.c.b16 %v3358, %v3354
        %v4215 = vpack.c.b16 %v3359, %v3355
        %v4216 = vpack.c.b16 %v3360, %v3356
        %v4217 = vpack.c.b16 %v3361, %v3357
        %v4218 = vpack.c.b16 %v3366, %v3362
        %v4219 = vpack.c.b16 %v3367, %v3363
        %v4220 = vpack.c.b16 %v3368, %v3364
        %v4221 = vpack.c.b16 %v3369, %v3365
        %v4222 = vpack.c.b16 %v3374, %v3370
        %v4223 = vpack.c.b16 %v3375, %v3371
        %v4224 = vpack.c.b16 %v3376, %v3372
        %v4225 = vpack.c.b16 %v3377, %v3373
        %v4226 = vpack.c.b16 %v3382, %v3378
        %v4227 = vpack.c.b16 %v3383, %v3379
        %v4228 = vpack.c.b16 %v3384, %v3380
        %v4229 = vpack.c.b16 %v3385, %v3381
        %v4230 = vpack.c.b16 %v3390, %v3386
        %v4231 = vpack.c.b16 %v3391, %v3387
        %v4232 = vpack.c.b16 %v3392, %v3388
        %v4233 = vpack.c.b16 %v3393, %v3389
        %v4234 = vpack.c.b16 %v3398, %v3394
        %v4235 = vpack.c.b16 %v3399, %v3395
        %v4236 = vpack.c.b16 %v3400, %v3396
        %v4237 = vpack.c.b16 %v3401, %v3397
        %v4238 = vpack.c.b16 %v3406, %v3402
        %v4239 = vpack.c.b16 %v3407, %v3403
        %v4240 = vpack.c.b16 %v3408, %v3404
        %v4241 = vpack.c.b16 %v3409, %v3405
        %v4242 = vpack.c.b16 %v3414, %v3410
        %v4243 = vpack.c.b16 %v3415, %v3411
        %v4244 = vpack.c.b16 %v3416, %v3412
        %v4245 = vpack.c.b16 %v3417, %v3413
        %v4246 = vpack.c.b16 %v3422, %v3418
        %v4247 = vpack.c.b16 %v3423, %v3419
        %v4248 = vpack.c.b16 %v3424, %v3420
        %v4249 = vpack.c.b16 %v3425, %v3421
        %v4250 = vpack.c.b16 %v3430, %v3426
        %v4251 = vpack.c.b16 %v3431, %v3427
        %v4252 = vpack.c.b16 %v3432, %v3428
        %v4253 = vpack.c.b16 %v3433, %v3429
        %v4254 = vpack.c.b16 %v3438, %v3434
        %v4255 = vpack.c.b16 %v3439, %v3435
        %v4256 = vpack.c.b16 %v3440, %v3436
        %v4257 = vpack.c.b16 %v3441, %v3437
        %v4258 = vpack.c.b16 %v3446, %v3442
        %v4259 = vpack.c.b16 %v3447, %v3443
        %v4260 = vpack.c.b16 %v3448, %v3444
        %v4261 = vpack.c.b16 %v3449, %v3445
        %v4262 = vpack.c.b16 %v3454, %v3450
        %v4263 = vpack.c.b16 %v3455, %v3451
        %v4264 = vpack.c.b16 %v3456, %v3452
        %v4265 = vpack.c.b16 %v3457, %v3453
        %v4266 = vpack.c.b16 %v3462, %v3458
        %v4267 = vpack.c.b16 %v3463, %v3459
        %v4268 = vpack.c.b16 %v3464, %v3460
        %v4269 = vpack.c.b16 %v3465, %v3461
        %v4270 = vpack.c.b16 %v3470, %v3466
        %v4271 = vpack.c.b16 %v3471, %v3467
        %v4272 = vpack.c.b16 %v3472, %v3468
        %v4273 = vpack.c.b16 %v3473, %v3469
        %v4274 = vpack.c.b16 %v3478, %v3474
        %v4275 = vpack.c.b16 %v3479, %v3475
        %v4276 = vpack.c.b16 %v3480, %v3476
        %v4277 = vpack.c.b16 %v3481, %v3477
        %v4278 = vpack.c.b16 %v3486, %v3482
        %v4279 = vpack.c.b16 %v3487, %v3483
        %v4280 = vpack.c.b16 %v3488, %v3484
        %v4281 = vpack.c.b16 %v3489, %v3485
        %v4282 = vpack.c.b16 %v3494, %v3490
        %v4283 = vpack.c.b16 %v3495, %v3491
        %v4284 = vpack.c.b16 %v3496, %v3492
        %v4285 = vpack.c.b16 %v3497, %v3493
        %v4286 = vpack.c.b16 %v3502, %v3498
        %v4287 = vpack.c.b16 %v3503, %v3499
        %v4288 = vpack.c.b16 %v3504, %v3500
        %v4289 = vpack.c.b16 %v3505, %v3501
        %v4290 = vpack.c.b16 %v3510, %v3506
        %v4291 = vpack.c.b16 %v3511, %v3507
        %v4292 = vpack.c.b16 %v3512, %v3508
        %v4293 = vpack.c.b16 %v3513, %v3509
        %v4294 = vpack.c.b16 %v3518, %v3514
        %v4295 = vpack.c.b16 %v3519, %v3515
        %v4296 = vpack.c.b16 %v3520, %v3516
        %v4297 = vpack.c.b16 %v3521, %v3517
        %v4298 = vpack.c.b16 %v3526, %v3522
        %v4299 = vpack.c.b16 %v3527, %v3523
        %v4300 = vpack.c.b16 %v3528, %v3524
        %v4301 = vpack.c.b16 %v3529, %v3525
        %v4302 = vpack.c.b16 %v3534, %v3530
        %v4303 = vpack.c.b16 %v3535, %v3531
        %v4304 = vpack.c.b16 %v3536, %v3532
        %v4305 = vpack.c.b16 %v3537, %v3533
        %5074 = vmatpush.bf16.msra.mxu0 %v3566
        %5075 = vmatpush.bf16.msra.mxu0 %v3562
        %5076 = vmatpush.bf16.msra.mxu0 %v3558
        %5077 = vmatpush.bf16.msra.mxu0 %v3554
        %5078 = vmatpush.bf16.msra.mxu0 %v3550
        %5079 = vmatpush.bf16.msra.mxu0 %v3546
        %5080 = vmatpush.bf16.msra.mxu0 %v3542
        %5081 = vmatpush.bf16.msra.mxu0 %v3538
        %5082 = vmatmul.bf16.gmra.mxu0 %v1182
        %v5083 = vpop.f32.mrf.mxu0
        %v5084 = vadd.f32 0.0, %v5083
        %v5085 = vpop.f32.mrf.mxu0
        %5086 = vdwg.mxu0
        %5087 = vmatpush.bf16.msra.mxu0 %v3598
        %5088 = vmatpush.bf16.msra.mxu0 %v3594
        %5089 = vmatpush.bf16.msra.mxu0 %v3590
        %5090 = vmatpush.bf16.msra.mxu0 %v3586
        %5091 = vmatpush.bf16.msra.mxu0 %v3582
        %5092 = vmatpush.bf16.msra.mxu0 %v3578
        %5093 = vmatpush.bf16.msra.mxu0 %v3574
        %5094 = vmatpush.bf16.msra.mxu0 %v3570
        %5095 = vmatmul.bf16.gmra.mxu0 %v1183
        %v5096 = vpop.f32.mrf.mxu0
        %v5097 = vadd.f32 %v5084, %v5096
        %v5098 = vpop.f32.mrf.mxu0
        %5099 = vdwg.mxu0
        %5100 = vmatpush.bf16.msra.mxu0 %v3630
        %5101 = vmatpush.bf16.msra.mxu0 %v3626
        %5102 = vmatpush.bf16.msra.mxu0 %v3622
        %5103 = vmatpush.bf16.msra.mxu0 %v3618
        %5104 = vmatpush.bf16.msra.mxu0 %v3614
        %5105 = vmatpush.bf16.msra.mxu0 %v3610
        %5106 = vmatpush.bf16.msra.mxu0 %v3606
        %5107 = vmatpush.bf16.msra.mxu0 %v3602
        %5108 = vmatmul.bf16.gmra.mxu0 %v1184
        %v5109 = vpop.f32.mrf.mxu0
        %v5110 = vadd.f32 %v5097, %v5109
        %v5111 = vpop.f32.mrf.mxu0
        %5112 = vdwg.mxu0
        %5113 = vmatpush.bf16.msra.mxu0 %v3662
        %5114 = vmatpush.bf16.msra.mxu0 %v3658
        %5115 = vmatpush.bf16.msra.mxu0 %v3654
        %5116 = vmatpush.bf16.msra.mxu0 %v3650
        %5117 = vmatpush.bf16.msra.mxu0 %v3646
        %5118 = vmatpush.bf16.msra.mxu0 %v3642
        %5119 = vmatpush.bf16.msra.mxu0 %v3638
        %5120 = vmatpush.bf16.msra.mxu0 %v3634
        %5121 = vmatmul.bf16.gmra.mxu0 %v1185
        %v5122 = vpop.f32.mrf.mxu0
        %v5123 = vadd.f32 %v5110, %v5122
        %v5124 = vpop.f32.mrf.mxu0
        %5125 = vdwg.mxu0
        %5126 = vmatpush.bf16.msra.mxu0 %v3694
        %5127 = vmatpush.bf16.msra.mxu0 %v3690
        %5128 = vmatpush.bf16.msra.mxu0 %v3686
        %5129 = vmatpush.bf16.msra.mxu0 %v3682
        %5130 = vmatpush.bf16.msra.mxu0 %v3678
        %5131 = vmatpush.bf16.msra.mxu0 %v3674
        %5132 = vmatpush.bf16.msra.mxu0 %v3670
        %5133 = vmatpush.bf16.msra.mxu0 %v3666
        %5134 = vmatmul.bf16.gmra.mxu0 %v1186
        %v5135 = vpop.f32.mrf.mxu0
        %v5136 = vadd.f32 %v5123, %v5135
        %v5137 = vpop.f32.mrf.mxu0
        %5138 = vdwg.mxu0
        %5139 = vmatpush.bf16.msra.mxu0 %v3726
        %5140 = vmatpush.bf16.msra.mxu0 %v3722
        %5141 = vmatpush.bf16.msra.mxu0 %v3718
        %5142 = vmatpush.bf16.msra.mxu0 %v3714
        %5143 = vmatpush.bf16.msra.mxu0 %v3710
        %5144 = vmatpush.bf16.msra.mxu0 %v3706
        %5145 = vmatpush.bf16.msra.mxu0 %v3702
        %5146 = vmatpush.bf16.msra.mxu0 %v3698
        %5147 = vmatmul.bf16.gmra.mxu0 %v1187
        %v5148 = vpop.f32.mrf.mxu0
        %v5149 = vadd.f32 %v5136, %v5148
        %v5150 = vpop.f32.mrf.mxu0
        %5151 = vdwg.mxu0
        %5152 = vmatpush.bf16.msra.mxu0 %v3758
        %5153 = vmatpush.bf16.msra.mxu0 %v3754
        %5154 = vmatpush.bf16.msra.mxu0 %v3750
        %5155 = vmatpush.bf16.msra.mxu0 %v3746
        %5156 = vmatpush.bf16.msra.mxu0 %v3742
        %5157 = vmatpush.bf16.msra.mxu0 %v3738
        %5158 = vmatpush.bf16.msra.mxu0 %v3734
        %5159 = vmatpush.bf16.msra.mxu0 %v3730
        %5160 = vmatmul.bf16.gmra.mxu0 %v1188
        %v5161 = vpop.f32.mrf.mxu0
        %v5162 = vadd.f32 %v5149, %v5161
        %v5163 = vpop.f32.mrf.mxu0
        %5164 = vdwg.mxu0
        %5165 = vmatpush.bf16.msra.mxu0 %v3790
        %5166 = vmatpush.bf16.msra.mxu0 %v3786
        %5167 = vmatpush.bf16.msra.mxu0 %v3782
        %5168 = vmatpush.bf16.msra.mxu0 %v3778
        %5169 = vmatpush.bf16.msra.mxu0 %v3774
        %5170 = vmatpush.bf16.msra.mxu0 %v3770
        %5171 = vmatpush.bf16.msra.mxu0 %v3766
        %5172 = vmatpush.bf16.msra.mxu0 %v3762
        %5173 = vmatmul.bf16.gmra.mxu0 %v1189
        %v5174 = vpop.f32.mrf.mxu0
        %v5175 = vadd.f32 %v5162, %v5174
        %v5176 = vpop.f32.mrf.mxu0
        %5177 = vdwg.mxu0
        %5178 = vmatpush.bf16.msra.mxu0 %v3822
        %5179 = vmatpush.bf16.msra.mxu0 %v3818
        %5180 = vmatpush.bf16.msra.mxu0 %v3814
        %5181 = vmatpush.bf16.msra.mxu0 %v3810
        %5182 = vmatpush.bf16.msra.mxu0 %v3806
        %5183 = vmatpush.bf16.msra.mxu0 %v3802
        %5184 = vmatpush.bf16.msra.mxu0 %v3798
        %5185 = vmatpush.bf16.msra.mxu0 %v3794
        %5186 = vmatmul.bf16.gmra.mxu0 %v1192
        %v5187 = vpop.f32.mrf.mxu0
        %v5188 = vadd.f32 %v5175, %v5187
        %v5189 = vpop.f32.mrf.mxu0
        %5190 = vdwg.mxu0
        %5191 = vmatpush.bf16.msra.mxu0 %v3854
        %5192 = vmatpush.bf16.msra.mxu0 %v3850
        %5193 = vmatpush.bf16.msra.mxu0 %v3846
        %5194 = vmatpush.bf16.msra.mxu0 %v3842
        %5195 = vmatpush.bf16.msra.mxu0 %v3838
        %5196 = vmatpush.bf16.msra.mxu0 %v3834
        %5197 = vmatpush.bf16.msra.mxu0 %v3830
        %5198 = vmatpush.bf16.msra.mxu0 %v3826
        %5199 = vmatmul.bf16.gmra.mxu0 %v1193
        %v5200 = vpop.f32.mrf.mxu0
        %v5201 = vadd.f32 %v5188, %v5200
        %v5202 = vpop.f32.mrf.mxu0
        %5203 = vdwg.mxu0
        %5204 = vmatpush.bf16.msra.mxu0 %v3886
        %5205 = vmatpush.bf16.msra.mxu0 %v3882
        %5206 = vmatpush.bf16.msra.mxu0 %v3878
        %5207 = vmatpush.bf16.msra.mxu0 %v3874
        %5208 = vmatpush.bf16.msra.mxu0 %v3870
        %5209 = vmatpush.bf16.msra.mxu0 %v3866
        %5210 = vmatpush.bf16.msra.mxu0 %v3862
        %5211 = vmatpush.bf16.msra.mxu0 %v3858
        %5212 = vmatmul.bf16.gmra.mxu0 %v1194
        %v5213 = vpop.f32.mrf.mxu0
        %v5214 = vadd.f32 %v5201, %v5213
        %v5215 = vpop.f32.mrf.mxu0
        %5216 = vdwg.mxu0
        %5217 = vmatpush.bf16.msra.mxu0 %v3918
        %5218 = vmatpush.bf16.msra.mxu0 %v3914
        %5219 = vmatpush.bf16.msra.mxu0 %v3910
        %5220 = vmatpush.bf16.msra.mxu0 %v3906
        %5221 = vmatpush.bf16.msra.mxu0 %v3902
        %5222 = vmatpush.bf16.msra.mxu0 %v3898
        %5223 = vmatpush.bf16.msra.mxu0 %v3894
        %5224 = vmatpush.bf16.msra.mxu0 %v3890
        %5225 = vmatmul.bf16.gmra.mxu0 %v1195
        %v5226 = vpop.f32.mrf.mxu0
        %v5227 = vadd.f32 %v5214, %v5226
        %v5228 = vpop.f32.mrf.mxu0
        %5229 = vdwg.mxu0
        %5230 = vmatpush.bf16.msra.mxu0 %v3950
        %5231 = vmatpush.bf16.msra.mxu0 %v3946
        %5232 = vmatpush.bf16.msra.mxu0 %v3942
        %5233 = vmatpush.bf16.msra.mxu0 %v3938
        %5234 = vmatpush.bf16.msra.mxu0 %v3934
        %5235 = vmatpush.bf16.msra.mxu0 %v3930
        %5236 = vmatpush.bf16.msra.mxu0 %v3926
        %5237 = vmatpush.bf16.msra.mxu0 %v3922
        %5238 = vmatmul.bf16.gmra.mxu0 %v1196
        %v5239 = vpop.f32.mrf.mxu0
        %v5240 = vadd.f32 %v5227, %v5239
        %v5241 = vpop.f32.mrf.mxu0
        %5242 = vdwg.mxu0
        %5243 = vmatpush.bf16.msra.mxu0 %v3982
        %5244 = vmatpush.bf16.msra.mxu0 %v3978
        %5245 = vmatpush.bf16.msra.mxu0 %v3974
        %5246 = vmatpush.bf16.msra.mxu0 %v3970
        %5247 = vmatpush.bf16.msra.mxu0 %v3966
        %5248 = vmatpush.bf16.msra.mxu0 %v3962
        %5249 = vmatpush.bf16.msra.mxu0 %v3958
        %5250 = vmatpush.bf16.msra.mxu0 %v3954
        %5251 = vmatmul.bf16.gmra.mxu0 %v1197
        %v5252 = vpop.f32.mrf.mxu0
        %v5253 = vadd.f32 %v5240, %v5252
        %v5254 = vpop.f32.mrf.mxu0
        %5255 = vdwg.mxu0
        %5256 = vmatpush.bf16.msra.mxu0 %v4014
        %5257 = vmatpush.bf16.msra.mxu0 %v4010
        %5258 = vmatpush.bf16.msra.mxu0 %v4006
        %5259 = vmatpush.bf16.msra.mxu0 %v4002
        %5260 = vmatpush.bf16.msra.mxu0 %v3998
        %5261 = vmatpush.bf16.msra.mxu0 %v3994
        %5262 = vmatpush.bf16.msra.mxu0 %v3990
        %5263 = vmatpush.bf16.msra.mxu0 %v3986
        %5264 = vmatmul.bf16.gmra.mxu0 %v1198
        %v5265 = vpop.f32.mrf.mxu0
        %v5266 = vadd.f32 %v5253, %v5265
        %v5267 = vpop.f32.mrf.mxu0
        %5268 = vdwg.mxu0
        %5269 = vmatpush.bf16.msra.mxu0 %v4046
        %5270 = vmatpush.bf16.msra.mxu0 %v4042
        %5271 = vmatpush.bf16.msra.mxu0 %v4038
        %5272 = vmatpush.bf16.msra.mxu0 %v4034
        %5273 = vmatpush.bf16.msra.mxu0 %v4030
        %5274 = vmatpush.bf16.msra.mxu0 %v4026
        %5275 = vmatpush.bf16.msra.mxu0 %v4022
        %5276 = vmatpush.bf16.msra.mxu0 %v4018
        %5277 = vmatmul.bf16.gmra.mxu0 %v1199
        %v5278 = vpop.f32.mrf.mxu0
        %v5279 = vadd.f32 %v5266, %v5278
        %v5280 = vpop.f32.mrf.mxu0
        %5281 = vdwg.mxu0
        %5282 = vmatpush.bf16.msra.mxu0 %v4078
        %5283 = vmatpush.bf16.msra.mxu0 %v4074
        %5284 = vmatpush.bf16.msra.mxu0 %v4070
        %5285 = vmatpush.bf16.msra.mxu0 %v4066
        %5286 = vmatpush.bf16.msra.mxu0 %v4062
        %5287 = vmatpush.bf16.msra.mxu0 %v4058
        %5288 = vmatpush.bf16.msra.mxu0 %v4054
        %5289 = vmatpush.bf16.msra.mxu0 %v4050
        %5290 = vmatmul.bf16.gmra.mxu0 %v1202
        %v5291 = vpop.f32.mrf.mxu0
        %v5292 = vadd.f32 %v5279, %v5291
        %v5293 = vpop.f32.mrf.mxu0
        %5294 = vdwg.mxu0
        %5295 = vmatpush.bf16.msra.mxu0 %v4110
        %5296 = vmatpush.bf16.msra.mxu0 %v4106
        %5297 = vmatpush.bf16.msra.mxu0 %v4102
        %5298 = vmatpush.bf16.msra.mxu0 %v4098
        %5299 = vmatpush.bf16.msra.mxu0 %v4094
        %5300 = vmatpush.bf16.msra.mxu0 %v4090
        %5301 = vmatpush.bf16.msra.mxu0 %v4086
        %5302 = vmatpush.bf16.msra.mxu0 %v4082
        %5303 = vmatmul.bf16.gmra.mxu0 %v1203
        %v5304 = vpop.f32.mrf.mxu0
        %v5305 = vadd.f32 %v5292, %v5304
        %v5306 = vpop.f32.mrf.mxu0
        %5307 = vdwg.mxu0
        %5308 = vmatpush.bf16.msra.mxu0 %v4142
        %5309 = vmatpush.bf16.msra.mxu0 %v4138
        %5310 = vmatpush.bf16.msra.mxu0 %v4134
        %5311 = vmatpush.bf16.msra.mxu0 %v4130
        %5312 = vmatpush.bf16.msra.mxu0 %v4126
        %5313 = vmatpush.bf16.msra.mxu0 %v4122
        %5314 = vmatpush.bf16.msra.mxu0 %v4118
        %5315 = vmatpush.bf16.msra.mxu0 %v4114
        %5316 = vmatmul.bf16.gmra.mxu0 %v1204
        %v5317 = vpop.f32.mrf.mxu0
        %v5318 = vadd.f32 %v5305, %v5317
        %v5319 = vpop.f32.mrf.mxu0
        %5320 = vdwg.mxu0
        %5321 = vmatpush.bf16.msra.mxu0 %v4174
        %5322 = vmatpush.bf16.msra.mxu0 %v4170
        %5323 = vmatpush.bf16.msra.mxu0 %v4166
        %5324 = vmatpush.bf16.msra.mxu0 %v4162
        %5325 = vmatpush.bf16.msra.mxu0 %v4158
        %5326 = vmatpush.bf16.msra.mxu0 %v4154
        %5327 = vmatpush.bf16.msra.mxu0 %v4150
        %5328 = vmatpush.bf16.msra.mxu0 %v4146
        %5329 = vmatmul.bf16.gmra.mxu0 %v1205
        %v5330 = vpop.f32.mrf.mxu0
        %v5331 = vadd.f32 %v5318, %v5330
        %v5332 = vpop.f32.mrf.mxu0
        %5333 = vdwg.mxu0
        %5334 = vmatpush.bf16.msra.mxu0 %v4206
        %5335 = vmatpush.bf16.msra.mxu0 %v4202
        %5336 = vmatpush.bf16.msra.mxu0 %v4198
        %5337 = vmatpush.bf16.msra.mxu0 %v4194
        %5338 = vmatpush.bf16.msra.mxu0 %v4190
        %5339 = vmatpush.bf16.msra.mxu0 %v4186
        %5340 = vmatpush.bf16.msra.mxu0 %v4182
        %5341 = vmatpush.bf16.msra.mxu0 %v4178
        %5342 = vmatmul.bf16.gmra.mxu0 %v1206
        %v5343 = vpop.f32.mrf.mxu0
        %v5344 = vadd.f32 %v5331, %v5343
        %v5345 = vpop.f32.mrf.mxu0
        %5346 = vdwg.mxu0
        %5347 = vmatpush.bf16.msra.mxu0 %v4238
        %5348 = vmatpush.bf16.msra.mxu0 %v4234
        %5349 = vmatpush.bf16.msra.mxu0 %v4230
        %5350 = vmatpush.bf16.msra.mxu0 %v4226
        %5351 = vmatpush.bf16.msra.mxu0 %v4222
        %5352 = vmatpush.bf16.msra.mxu0 %v4218
        %5353 = vmatpush.bf16.msra.mxu0 %v4214
        %5354 = vmatpush.bf16.msra.mxu0 %v4210
        %5355 = vmatmul.bf16.gmra.mxu0 %v1207
        %v5356 = vpop.f32.mrf.mxu0
        %v5357 = vadd.f32 %v5344, %v5356
        %v5358 = vpop.f32.mrf.mxu0
        %5359 = vdwg.mxu0
        %5360 = vmatpush.bf16.msra.mxu0 %v4270
        %5361 = vmatpush.bf16.msra.mxu0 %v4266
        %5362 = vmatpush.bf16.msra.mxu0 %v4262
        %5363 = vmatpush.bf16.msra.mxu0 %v4258
        %5364 = vmatpush.bf16.msra.mxu0 %v4254
        %5365 = vmatpush.bf16.msra.mxu0 %v4250
        %5366 = vmatpush.bf16.msra.mxu0 %v4246
        %5367 = vmatpush.bf16.msra.mxu0 %v4242
        %5368 = vmatmul.bf16.gmra.mxu0 %v1208
        %v5369 = vpop.f32.mrf.mxu0
        %v5370 = vadd.f32 %v5357, %v5369
        %v5371 = vpop.f32.mrf.mxu0
        %5372 = vdwg.mxu0
        %5373 = vmatpush.bf16.msra.mxu0 %v4302
        %5374 = vmatpush.bf16.msra.mxu0 %v4298
        %5375 = vmatpush.bf16.msra.mxu0 %v4294
        %5376 = vmatpush.bf16.msra.mxu0 %v4290
        %5377 = vmatpush.bf16.msra.mxu0 %v4286
        %5378 = vmatpush.bf16.msra.mxu0 %v4282
        %5379 = vmatpush.bf16.msra.mxu0 %v4278
        %5380 = vmatpush.bf16.msra.mxu0 %v4274
        %5381 = vmatmul.bf16.gmra.mxu0 %v1209
        %v5382 = vpop.f32.mrf.mxu0
        %v5383 = vadd.f32 %v5370, %v5382
        %v5384 = vpop.f32.mrf.mxu0
        %5385 = vdwg.mxu0
        %5386 = vmatpush.bf16.msra.mxu0 %v3567
        %5387 = vmatpush.bf16.msra.mxu0 %v3563
        %5388 = vmatpush.bf16.msra.mxu0 %v3559
        %5389 = vmatpush.bf16.msra.mxu0 %v3555
        %5390 = vmatpush.bf16.msra.mxu0 %v3551
        %5391 = vmatpush.bf16.msra.mxu0 %v3547
        %5392 = vmatpush.bf16.msra.mxu0 %v3543
        %5393 = vmatpush.bf16.msra.mxu0 %v3539
        %5394 = vmatmul.bf16.gmra.mxu0 %v1182
        %v5395 = vpop.f32.mrf.mxu0
        %v5396 = vadd.f32 0.0, %v5395
        %v5397 = vpop.f32.mrf.mxu0
        %5398 = vdwg.mxu0
        %5399 = vmatpush.bf16.msra.mxu0 %v3599
        %5400 = vmatpush.bf16.msra.mxu0 %v3595
        %5401 = vmatpush.bf16.msra.mxu0 %v3591
        %5402 = vmatpush.bf16.msra.mxu0 %v3587
        %5403 = vmatpush.bf16.msra.mxu0 %v3583
        %5404 = vmatpush.bf16.msra.mxu0 %v3579
        %5405 = vmatpush.bf16.msra.mxu0 %v3575
        %5406 = vmatpush.bf16.msra.mxu0 %v3571
        %5407 = vmatmul.bf16.gmra.mxu0 %v1183
        %v5408 = vpop.f32.mrf.mxu0
        %v5409 = vadd.f32 %v5396, %v5408
        %v5410 = vpop.f32.mrf.mxu0
        %5411 = vdwg.mxu0
        %5412 = vmatpush.bf16.msra.mxu0 %v3631
        %5413 = vmatpush.bf16.msra.mxu0 %v3627
        %5414 = vmatpush.bf16.msra.mxu0 %v3623
        %5415 = vmatpush.bf16.msra.mxu0 %v3619
        %5416 = vmatpush.bf16.msra.mxu0 %v3615
        %5417 = vmatpush.bf16.msra.mxu0 %v3611
        %5418 = vmatpush.bf16.msra.mxu0 %v3607
        %5419 = vmatpush.bf16.msra.mxu0 %v3603
        %5420 = vmatmul.bf16.gmra.mxu0 %v1184
        %v5421 = vpop.f32.mrf.mxu0
        %v5422 = vadd.f32 %v5409, %v5421
        %v5423 = vpop.f32.mrf.mxu0
        %5424 = vdwg.mxu0
        %5425 = vmatpush.bf16.msra.mxu0 %v3663
        %5426 = vmatpush.bf16.msra.mxu0 %v3659
        %5427 = vmatpush.bf16.msra.mxu0 %v3655
        %5428 = vmatpush.bf16.msra.mxu0 %v3651
        %5429 = vmatpush.bf16.msra.mxu0 %v3647
        %5430 = vmatpush.bf16.msra.mxu0 %v3643
        %5431 = vmatpush.bf16.msra.mxu0 %v3639
        %5432 = vmatpush.bf16.msra.mxu0 %v3635
        %5433 = vmatmul.bf16.gmra.mxu0 %v1185
        %v5434 = vpop.f32.mrf.mxu0
        %v5435 = vadd.f32 %v5422, %v5434
        %v5436 = vpop.f32.mrf.mxu0
        %5437 = vdwg.mxu0
        %5438 = vmatpush.bf16.msra.mxu0 %v3695
        %5439 = vmatpush.bf16.msra.mxu0 %v3691
        %5440 = vmatpush.bf16.msra.mxu0 %v3687
        %5441 = vmatpush.bf16.msra.mxu0 %v3683
        %5442 = vmatpush.bf16.msra.mxu0 %v3679
        %5443 = vmatpush.bf16.msra.mxu0 %v3675
        %5444 = vmatpush.bf16.msra.mxu0 %v3671
        %5445 = vmatpush.bf16.msra.mxu0 %v3667
        %5446 = vmatmul.bf16.gmra.mxu0 %v1186
        %v5447 = vpop.f32.mrf.mxu0
        %v5448 = vadd.f32 %v5435, %v5447
        %v5449 = vpop.f32.mrf.mxu0
        %5450 = vdwg.mxu0
        %5451 = vmatpush.bf16.msra.mxu0 %v3727
        %5452 = vmatpush.bf16.msra.mxu0 %v3723
        %5453 = vmatpush.bf16.msra.mxu0 %v3719
        %5454 = vmatpush.bf16.msra.mxu0 %v3715
        %5455 = vmatpush.bf16.msra.mxu0 %v3711
        %5456 = vmatpush.bf16.msra.mxu0 %v3707
        %5457 = vmatpush.bf16.msra.mxu0 %v3703
        %5458 = vmatpush.bf16.msra.mxu0 %v3699
        %5459 = vmatmul.bf16.gmra.mxu0 %v1187
        %v5460 = vpop.f32.mrf.mxu0
        %v5461 = vadd.f32 %v5448, %v5460
        %v5462 = vpop.f32.mrf.mxu0
        %5463 = vdwg.mxu0
        %5464 = vmatpush.bf16.msra.mxu0 %v3759
        %5465 = vmatpush.bf16.msra.mxu0 %v3755
        %5466 = vmatpush.bf16.msra.mxu0 %v3751
        %5467 = vmatpush.bf16.msra.mxu0 %v3747
        %5468 = vmatpush.bf16.msra.mxu0 %v3743
        %5469 = vmatpush.bf16.msra.mxu0 %v3739
        %5470 = vmatpush.bf16.msra.mxu0 %v3735
        %5471 = vmatpush.bf16.msra.mxu0 %v3731
        %5472 = vmatmul.bf16.gmra.mxu0 %v1188
        %v5473 = vpop.f32.mrf.mxu0
        %v5474 = vadd.f32 %v5461, %v5473
        %v5475 = vpop.f32.mrf.mxu0
        %5476 = vdwg.mxu0
        %5477 = vmatpush.bf16.msra.mxu0 %v3791
        %5478 = vmatpush.bf16.msra.mxu0 %v3787
        %5479 = vmatpush.bf16.msra.mxu0 %v3783
        %5480 = vmatpush.bf16.msra.mxu0 %v3779
        %5481 = vmatpush.bf16.msra.mxu0 %v3775
        %5482 = vmatpush.bf16.msra.mxu0 %v3771
        %5483 = vmatpush.bf16.msra.mxu0 %v3767
        %5484 = vmatpush.bf16.msra.mxu0 %v3763
        %5485 = vmatmul.bf16.gmra.mxu0 %v1189
        %v5486 = vpop.f32.mrf.mxu0
        %v5487 = vadd.f32 %v5474, %v5486
        %v5488 = vpop.f32.mrf.mxu0
        %5489 = vdwg.mxu0
        %5490 = vmatpush.bf16.msra.mxu0 %v3823
        %5491 = vmatpush.bf16.msra.mxu0 %v3819
        %5492 = vmatpush.bf16.msra.mxu0 %v3815
        %5493 = vmatpush.bf16.msra.mxu0 %v3811
        %5494 = vmatpush.bf16.msra.mxu0 %v3807
        %5495 = vmatpush.bf16.msra.mxu0 %v3803
        %5496 = vmatpush.bf16.msra.mxu0 %v3799
        %5497 = vmatpush.bf16.msra.mxu0 %v3795
        %5498 = vmatmul.bf16.gmra.mxu0 %v1192
        %v5499 = vpop.f32.mrf.mxu0
        %v5500 = vadd.f32 %v5487, %v5499
        %v5501 = vpop.f32.mrf.mxu0
        %5502 = vdwg.mxu0
        %5503 = vmatpush.bf16.msra.mxu0 %v3855
        %5504 = vmatpush.bf16.msra.mxu0 %v3851
        %5505 = vmatpush.bf16.msra.mxu0 %v3847
        %5506 = vmatpush.bf16.msra.mxu0 %v3843
        %5507 = vmatpush.bf16.msra.mxu0 %v3839
        %5508 = vmatpush.bf16.msra.mxu0 %v3835
        %5509 = vmatpush.bf16.msra.mxu0 %v3831
        %5510 = vmatpush.bf16.msra.mxu0 %v3827
        %5511 = vmatmul.bf16.gmra.mxu0 %v1193
        %v5512 = vpop.f32.mrf.mxu0
        %v5513 = vadd.f32 %v5500, %v5512
        %v5514 = vpop.f32.mrf.mxu0
        %5515 = vdwg.mxu0
        %5516 = vmatpush.bf16.msra.mxu0 %v3887
        %5517 = vmatpush.bf16.msra.mxu0 %v3883
        %5518 = vmatpush.bf16.msra.mxu0 %v3879
        %5519 = vmatpush.bf16.msra.mxu0 %v3875
        %5520 = vmatpush.bf16.msra.mxu0 %v3871
        %5521 = vmatpush.bf16.msra.mxu0 %v3867
        %5522 = vmatpush.bf16.msra.mxu0 %v3863
        %5523 = vmatpush.bf16.msra.mxu0 %v3859
        %5524 = vmatmul.bf16.gmra.mxu0 %v1194
        %v5525 = vpop.f32.mrf.mxu0
        %v5526 = vadd.f32 %v5513, %v5525
        %v5527 = vpop.f32.mrf.mxu0
        %5528 = vdwg.mxu0
        %5529 = vmatpush.bf16.msra.mxu0 %v3919
        %5530 = vmatpush.bf16.msra.mxu0 %v3915
        %5531 = vmatpush.bf16.msra.mxu0 %v3911
        %5532 = vmatpush.bf16.msra.mxu0 %v3907
        %5533 = vmatpush.bf16.msra.mxu0 %v3903
        %5534 = vmatpush.bf16.msra.mxu0 %v3899
        %5535 = vmatpush.bf16.msra.mxu0 %v3895
        %5536 = vmatpush.bf16.msra.mxu0 %v3891
        %5537 = vmatmul.bf16.gmra.mxu0 %v1195
        %v5538 = vpop.f32.mrf.mxu0
        %v5539 = vadd.f32 %v5526, %v5538
        %v5540 = vpop.f32.mrf.mxu0
        %5541 = vdwg.mxu0
        %5542 = vmatpush.bf16.msra.mxu0 %v3951
        %5543 = vmatpush.bf16.msra.mxu0 %v3947
        %5544 = vmatpush.bf16.msra.mxu0 %v3943
        %5545 = vmatpush.bf16.msra.mxu0 %v3939
        %5546 = vmatpush.bf16.msra.mxu0 %v3935
        %5547 = vmatpush.bf16.msra.mxu0 %v3931
        %5548 = vmatpush.bf16.msra.mxu0 %v3927
        %5549 = vmatpush.bf16.msra.mxu0 %v3923
        %5550 = vmatmul.bf16.gmra.mxu0 %v1196
        %v5551 = vpop.f32.mrf.mxu0
        %v5552 = vadd.f32 %v5539, %v5551
        %v5553 = vpop.f32.mrf.mxu0
        %5554 = vdwg.mxu0
        %5555 = vmatpush.bf16.msra.mxu0 %v3983
        %5556 = vmatpush.bf16.msra.mxu0 %v3979
        %5557 = vmatpush.bf16.msra.mxu0 %v3975
        %5558 = vmatpush.bf16.msra.mxu0 %v3971
        %5559 = vmatpush.bf16.msra.mxu0 %v3967
        %5560 = vmatpush.bf16.msra.mxu0 %v3963
        %5561 = vmatpush.bf16.msra.mxu0 %v3959
        %5562 = vmatpush.bf16.msra.mxu0 %v3955
        %5563 = vmatmul.bf16.gmra.mxu0 %v1197
        %v5564 = vpop.f32.mrf.mxu0
        %v5565 = vadd.f32 %v5552, %v5564
        %v5566 = vpop.f32.mrf.mxu0
        %5567 = vdwg.mxu0
        %5568 = vmatpush.bf16.msra.mxu0 %v4015
        %5569 = vmatpush.bf16.msra.mxu0 %v4011
        %5570 = vmatpush.bf16.msra.mxu0 %v4007
        %5571 = vmatpush.bf16.msra.mxu0 %v4003
        %5572 = vmatpush.bf16.msra.mxu0 %v3999
        %5573 = vmatpush.bf16.msra.mxu0 %v3995
        %5574 = vmatpush.bf16.msra.mxu0 %v3991
        %5575 = vmatpush.bf16.msra.mxu0 %v3987
        %5576 = vmatmul.bf16.gmra.mxu0 %v1198
        %v5577 = vpop.f32.mrf.mxu0
        %v5578 = vadd.f32 %v5565, %v5577
        %v5579 = vpop.f32.mrf.mxu0
        %5580 = vdwg.mxu0
        %5581 = vmatpush.bf16.msra.mxu0 %v4047
        %5582 = vmatpush.bf16.msra.mxu0 %v4043
        %5583 = vmatpush.bf16.msra.mxu0 %v4039
        %5584 = vmatpush.bf16.msra.mxu0 %v4035
        %5585 = vmatpush.bf16.msra.mxu0 %v4031
        %5586 = vmatpush.bf16.msra.mxu0 %v4027
        %5587 = vmatpush.bf16.msra.mxu0 %v4023
        %5588 = vmatpush.bf16.msra.mxu0 %v4019
        %5589 = vmatmul.bf16.gmra.mxu0 %v1199
        %v5590 = vpop.f32.mrf.mxu0
        %v5591 = vadd.f32 %v5578, %v5590
        %v5592 = vpop.f32.mrf.mxu0
        %5593 = vdwg.mxu0
        %5594 = vmatpush.bf16.msra.mxu0 %v4079
        %5595 = vmatpush.bf16.msra.mxu0 %v4075
        %5596 = vmatpush.bf16.msra.mxu0 %v4071
        %5597 = vmatpush.bf16.msra.mxu0 %v4067
        %5598 = vmatpush.bf16.msra.mxu0 %v4063
        %5599 = vmatpush.bf16.msra.mxu0 %v4059
        %5600 = vmatpush.bf16.msra.mxu0 %v4055
        %5601 = vmatpush.bf16.msra.mxu0 %v4051
        %5602 = vmatmul.bf16.gmra.mxu0 %v1202
        %v5603 = vpop.f32.mrf.mxu0
        %v5604 = vadd.f32 %v5591, %v5603
        %v5605 = vpop.f32.mrf.mxu0
        %5606 = vdwg.mxu0
        %5607 = vmatpush.bf16.msra.mxu0 %v4111
        %5608 = vmatpush.bf16.msra.mxu0 %v4107
        %5609 = vmatpush.bf16.msra.mxu0 %v4103
        %5610 = vmatpush.bf16.msra.mxu0 %v4099
        %5611 = vmatpush.bf16.msra.mxu0 %v4095
        %5612 = vmatpush.bf16.msra.mxu0 %v4091
        %5613 = vmatpush.bf16.msra.mxu0 %v4087
        %5614 = vmatpush.bf16.msra.mxu0 %v4083
        %5615 = vmatmul.bf16.gmra.mxu0 %v1203
        %v5616 = vpop.f32.mrf.mxu0
        %v5617 = vadd.f32 %v5604, %v5616
        %v5618 = vpop.f32.mrf.mxu0
        %5619 = vdwg.mxu0
        %5620 = vmatpush.bf16.msra.mxu0 %v4143
        %5621 = vmatpush.bf16.msra.mxu0 %v4139
        %5622 = vmatpush.bf16.msra.mxu0 %v4135
        %5623 = vmatpush.bf16.msra.mxu0 %v4131
        %5624 = vmatpush.bf16.msra.mxu0 %v4127
        %5625 = vmatpush.bf16.msra.mxu0 %v4123
        %5626 = vmatpush.bf16.msra.mxu0 %v4119
        %5627 = vmatpush.bf16.msra.mxu0 %v4115
        %5628 = vmatmul.bf16.gmra.mxu0 %v1204
        %v5629 = vpop.f32.mrf.mxu0
        %v5630 = vadd.f32 %v5617, %v5629
        %v5631 = vpop.f32.mrf.mxu0
        %5632 = vdwg.mxu0
        %5633 = vmatpush.bf16.msra.mxu0 %v4175
        %5634 = vmatpush.bf16.msra.mxu0 %v4171
        %5635 = vmatpush.bf16.msra.mxu0 %v4167
        %5636 = vmatpush.bf16.msra.mxu0 %v4163
        %5637 = vmatpush.bf16.msra.mxu0 %v4159
        %5638 = vmatpush.bf16.msra.mxu0 %v4155
        %5639 = vmatpush.bf16.msra.mxu0 %v4151
        %5640 = vmatpush.bf16.msra.mxu0 %v4147
        %5641 = vmatmul.bf16.gmra.mxu0 %v1205
        %v5642 = vpop.f32.mrf.mxu0
        %v5643 = vadd.f32 %v5630, %v5642
        %v5644 = vpop.f32.mrf.mxu0
        %5645 = vdwg.mxu0
        %5646 = vmatpush.bf16.msra.mxu0 %v4207
        %5647 = vmatpush.bf16.msra.mxu0 %v4203
        %5648 = vmatpush.bf16.msra.mxu0 %v4199
        %5649 = vmatpush.bf16.msra.mxu0 %v4195
        %5650 = vmatpush.bf16.msra.mxu0 %v4191
        %5651 = vmatpush.bf16.msra.mxu0 %v4187
        %5652 = vmatpush.bf16.msra.mxu0 %v4183
        %5653 = vmatpush.bf16.msra.mxu0 %v4179
        %5654 = vmatmul.bf16.gmra.mxu0 %v1206
        %v5655 = vpop.f32.mrf.mxu0
        %v5656 = vadd.f32 %v5643, %v5655
        %v5657 = vpop.f32.mrf.mxu0
        %5658 = vdwg.mxu0
        %5659 = vmatpush.bf16.msra.mxu0 %v4239
        %5660 = vmatpush.bf16.msra.mxu0 %v4235
        %5661 = vmatpush.bf16.msra.mxu0 %v4231
        %5662 = vmatpush.bf16.msra.mxu0 %v4227
        %5663 = vmatpush.bf16.msra.mxu0 %v4223
        %5664 = vmatpush.bf16.msra.mxu0 %v4219
        %5665 = vmatpush.bf16.msra.mxu0 %v4215
        %5666 = vmatpush.bf16.msra.mxu0 %v4211
        %5667 = vmatmul.bf16.gmra.mxu0 %v1207
        %v5668 = vpop.f32.mrf.mxu0
        %v5669 = vadd.f32 %v5656, %v5668
        %v5670 = vpop.f32.mrf.mxu0
        %5671 = vdwg.mxu0
        %5672 = vmatpush.bf16.msra.mxu0 %v4271
        %5673 = vmatpush.bf16.msra.mxu0 %v4267
        %5674 = vmatpush.bf16.msra.mxu0 %v4263
        %5675 = vmatpush.bf16.msra.mxu0 %v4259
        %5676 = vmatpush.bf16.msra.mxu0 %v4255
        %5677 = vmatpush.bf16.msra.mxu0 %v4251
        %5678 = vmatpush.bf16.msra.mxu0 %v4247
        %5679 = vmatpush.bf16.msra.mxu0 %v4243
        %5680 = vmatmul.bf16.gmra.mxu0 %v1208
        %v5681 = vpop.f32.mrf.mxu0
        %v5682 = vadd.f32 %v5669, %v5681
        %v5683 = vpop.f32.mrf.mxu0
        %5684 = vdwg.mxu0
        %5685 = vmatpush.bf16.msra.mxu0 %v4303
        %5686 = vmatpush.bf16.msra.mxu0 %v4299
        %5687 = vmatpush.bf16.msra.mxu0 %v4295
        %5688 = vmatpush.bf16.msra.mxu0 %v4291
        %5689 = vmatpush.bf16.msra.mxu0 %v4287
        %5690 = vmatpush.bf16.msra.mxu0 %v4283
        %5691 = vmatpush.bf16.msra.mxu0 %v4279
        %5692 = vmatpush.bf16.msra.mxu0 %v4275
        %5693 = vmatmul.bf16.gmra.mxu0 %v1209
        %v5694 = vpop.f32.mrf.mxu0
        %v5695 = vadd.f32 %v5682, %v5694
        %v5696 = vpop.f32.mrf.mxu0
        %5697 = vdwg.mxu0
        %5698 = vmatpush.bf16.msra.mxu0 %v3568
        %5699 = vmatpush.bf16.msra.mxu0 %v3564
        %5700 = vmatpush.bf16.msra.mxu0 %v3560
        %5701 = vmatpush.bf16.msra.mxu0 %v3556
        %5702 = vmatpush.bf16.msra.mxu0 %v3552
        %5703 = vmatpush.bf16.msra.mxu0 %v3548
        %5704 = vmatpush.bf16.msra.mxu0 %v3544
        %5705 = vmatpush.bf16.msra.mxu0 %v3540
        %5706 = vmatmul.bf16.gmra.mxu0 %v1182
        %v5707 = vpop.f32.mrf.mxu0
        %v5708 = vadd.f32 0.0, %v5707
        %v5709 = vpop.f32.mrf.mxu0
        %5710 = vdwg.mxu0
        %5711 = vmatpush.bf16.msra.mxu0 %v3600
        %5712 = vmatpush.bf16.msra.mxu0 %v3596
        %5713 = vmatpush.bf16.msra.mxu0 %v3592
        %5714 = vmatpush.bf16.msra.mxu0 %v3588
        %5715 = vmatpush.bf16.msra.mxu0 %v3584
        %5716 = vmatpush.bf16.msra.mxu0 %v3580
        %5717 = vmatpush.bf16.msra.mxu0 %v3576
        %5718 = vmatpush.bf16.msra.mxu0 %v3572
        %5719 = vmatmul.bf16.gmra.mxu0 %v1183
        %v5720 = vpop.f32.mrf.mxu0
        %v5721 = vadd.f32 %v5708, %v5720
        %v5722 = vpop.f32.mrf.mxu0
        %5723 = vdwg.mxu0
        %5724 = vmatpush.bf16.msra.mxu0 %v3632
        %5725 = vmatpush.bf16.msra.mxu0 %v3628
        %5726 = vmatpush.bf16.msra.mxu0 %v3624
        %5727 = vmatpush.bf16.msra.mxu0 %v3620
        %5728 = vmatpush.bf16.msra.mxu0 %v3616
        %5729 = vmatpush.bf16.msra.mxu0 %v3612
        %5730 = vmatpush.bf16.msra.mxu0 %v3608
        %5731 = vmatpush.bf16.msra.mxu0 %v3604
        %5732 = vmatmul.bf16.gmra.mxu0 %v1184
        %v5733 = vpop.f32.mrf.mxu0
        %v5734 = vadd.f32 %v5721, %v5733
        %v5735 = vpop.f32.mrf.mxu0
        %5736 = vdwg.mxu0
        %5737 = vmatpush.bf16.msra.mxu0 %v3664
        %5738 = vmatpush.bf16.msra.mxu0 %v3660
        %5739 = vmatpush.bf16.msra.mxu0 %v3656
        %5740 = vmatpush.bf16.msra.mxu0 %v3652
        %5741 = vmatpush.bf16.msra.mxu0 %v3648
        %5742 = vmatpush.bf16.msra.mxu0 %v3644
        %5743 = vmatpush.bf16.msra.mxu0 %v3640
        %5744 = vmatpush.bf16.msra.mxu0 %v3636
        %5745 = vmatmul.bf16.gmra.mxu0 %v1185
        %v5746 = vpop.f32.mrf.mxu0
        %v5747 = vadd.f32 %v5734, %v5746
        %v5748 = vpop.f32.mrf.mxu0
        %5749 = vdwg.mxu0
        %5750 = vmatpush.bf16.msra.mxu0 %v3696
        %5751 = vmatpush.bf16.msra.mxu0 %v3692
        %5752 = vmatpush.bf16.msra.mxu0 %v3688
        %5753 = vmatpush.bf16.msra.mxu0 %v3684
        %5754 = vmatpush.bf16.msra.mxu0 %v3680
        %5755 = vmatpush.bf16.msra.mxu0 %v3676
        %5756 = vmatpush.bf16.msra.mxu0 %v3672
        %5757 = vmatpush.bf16.msra.mxu0 %v3668
        %5758 = vmatmul.bf16.gmra.mxu0 %v1186
        %v5759 = vpop.f32.mrf.mxu0
        %v5760 = vadd.f32 %v5747, %v5759
        %v5761 = vpop.f32.mrf.mxu0
        %5762 = vdwg.mxu0
        %5763 = vmatpush.bf16.msra.mxu0 %v3728
        %5764 = vmatpush.bf16.msra.mxu0 %v3724
        %5765 = vmatpush.bf16.msra.mxu0 %v3720
        %5766 = vmatpush.bf16.msra.mxu0 %v3716
        %5767 = vmatpush.bf16.msra.mxu0 %v3712
        %5768 = vmatpush.bf16.msra.mxu0 %v3708
        %5769 = vmatpush.bf16.msra.mxu0 %v3704
        %5770 = vmatpush.bf16.msra.mxu0 %v3700
        %5771 = vmatmul.bf16.gmra.mxu0 %v1187
        %v5772 = vpop.f32.mrf.mxu0
        %v5773 = vadd.f32 %v5760, %v5772
        %v5774 = vpop.f32.mrf.mxu0
        %5775 = vdwg.mxu0
        %5776 = vmatpush.bf16.msra.mxu0 %v3760
        %5777 = vmatpush.bf16.msra.mxu0 %v3756
        %5778 = vmatpush.bf16.msra.mxu0 %v3752
        %5779 = vmatpush.bf16.msra.mxu0 %v3748
        %5780 = vmatpush.bf16.msra.mxu0 %v3744
        %5781 = vmatpush.bf16.msra.mxu0 %v3740
        %5782 = vmatpush.bf16.msra.mxu0 %v3736
        %5783 = vmatpush.bf16.msra.mxu0 %v3732
        %5784 = vmatmul.bf16.gmra.mxu0 %v1188
        %v5785 = vpop.f32.mrf.mxu0
        %v5786 = vadd.f32 %v5773, %v5785
        %v5787 = vpop.f32.mrf.mxu0
        %5788 = vdwg.mxu0
        %5789 = vmatpush.bf16.msra.mxu0 %v3792
        %5790 = vmatpush.bf16.msra.mxu0 %v3788
        %5791 = vmatpush.bf16.msra.mxu0 %v3784
        %5792 = vmatpush.bf16.msra.mxu0 %v3780
        %5793 = vmatpush.bf16.msra.mxu0 %v3776
        %5794 = vmatpush.bf16.msra.mxu0 %v3772
        %5795 = vmatpush.bf16.msra.mxu0 %v3768
        %5796 = vmatpush.bf16.msra.mxu0 %v3764
        %5797 = vmatmul.bf16.gmra.mxu0 %v1189
        %v5798 = vpop.f32.mrf.mxu0
        %v5799 = vadd.f32 %v5786, %v5798
        %v5800 = vpop.f32.mrf.mxu0
        %5801 = vdwg.mxu0
        %5802 = vmatpush.bf16.msra.mxu0 %v3824
        %5803 = vmatpush.bf16.msra.mxu0 %v3820
        %5804 = vmatpush.bf16.msra.mxu0 %v3816
        %5805 = vmatpush.bf16.msra.mxu0 %v3812
        %5806 = vmatpush.bf16.msra.mxu0 %v3808
        %5807 = vmatpush.bf16.msra.mxu0 %v3804
        %5808 = vmatpush.bf16.msra.mxu0 %v3800
        %5809 = vmatpush.bf16.msra.mxu0 %v3796
        %5810 = vmatmul.bf16.gmra.mxu0 %v1192
        %v5811 = vpop.f32.mrf.mxu0
        %v5812 = vadd.f32 %v5799, %v5811
        %v5813 = vpop.f32.mrf.mxu0
        %5814 = vdwg.mxu0
        %5815 = vmatpush.bf16.msra.mxu0 %v3856
        %5816 = vmatpush.bf16.msra.mxu0 %v3852
        %5817 = vmatpush.bf16.msra.mxu0 %v3848
        %5818 = vmatpush.bf16.msra.mxu0 %v3844
        %5819 = vmatpush.bf16.msra.mxu0 %v3840
        %5820 = vmatpush.bf16.msra.mxu0 %v3836
        %5821 = vmatpush.bf16.msra.mxu0 %v3832
        %5822 = vmatpush.bf16.msra.mxu0 %v3828
        %5823 = vmatmul.bf16.gmra.mxu0 %v1193
        %v5824 = vpop.f32.mrf.mxu0
        %v5825 = vadd.f32 %v5812, %v5824
        %v5826 = vpop.f32.mrf.mxu0
        %5827 = vdwg.mxu0
        %5828 = vmatpush.bf16.msra.mxu0 %v3888
        %5829 = vmatpush.bf16.msra.mxu0 %v3884
        %5830 = vmatpush.bf16.msra.mxu0 %v3880
        %5831 = vmatpush.bf16.msra.mxu0 %v3876
        %5832 = vmatpush.bf16.msra.mxu0 %v3872
        %5833 = vmatpush.bf16.msra.mxu0 %v3868
        %5834 = vmatpush.bf16.msra.mxu0 %v3864
        %5835 = vmatpush.bf16.msra.mxu0 %v3860
        %5836 = vmatmul.bf16.gmra.mxu0 %v1194
        %v5837 = vpop.f32.mrf.mxu0
        %v5838 = vadd.f32 %v5825, %v5837
        %v5839 = vpop.f32.mrf.mxu0
        %5840 = vdwg.mxu0
        %5841 = vmatpush.bf16.msra.mxu0 %v3920
        %5842 = vmatpush.bf16.msra.mxu0 %v3916
        %5843 = vmatpush.bf16.msra.mxu0 %v3912
        %5844 = vmatpush.bf16.msra.mxu0 %v3908
        %5845 = vmatpush.bf16.msra.mxu0 %v3904
        %5846 = vmatpush.bf16.msra.mxu0 %v3900
        %5847 = vmatpush.bf16.msra.mxu0 %v3896
        %5848 = vmatpush.bf16.msra.mxu0 %v3892
        %5849 = vmatmul.bf16.gmra.mxu0 %v1195
        %v5850 = vpop.f32.mrf.mxu0
        %v5851 = vadd.f32 %v5838, %v5850
        %v5852 = vpop.f32.mrf.mxu0
        %5853 = vdwg.mxu0
        %5854 = vmatpush.bf16.msra.mxu0 %v3952
        %5855 = vmatpush.bf16.msra.mxu0 %v3948
        %5856 = vmatpush.bf16.msra.mxu0 %v3944
        %5857 = vmatpush.bf16.msra.mxu0 %v3940
        %5858 = vmatpush.bf16.msra.mxu0 %v3936
        %5859 = vmatpush.bf16.msra.mxu0 %v3932
        %5860 = vmatpush.bf16.msra.mxu0 %v3928
        %5861 = vmatpush.bf16.msra.mxu0 %v3924
        %5862 = vmatmul.bf16.gmra.mxu0 %v1196
        %v5863 = vpop.f32.mrf.mxu0
        %v5864 = vadd.f32 %v5851, %v5863
        %v5865 = vpop.f32.mrf.mxu0
        %5866 = vdwg.mxu0
        %5867 = vmatpush.bf16.msra.mxu0 %v3984
        %5868 = vmatpush.bf16.msra.mxu0 %v3980
        %5869 = vmatpush.bf16.msra.mxu0 %v3976
        %5870 = vmatpush.bf16.msra.mxu0 %v3972
        %5871 = vmatpush.bf16.msra.mxu0 %v3968
        %5872 = vmatpush.bf16.msra.mxu0 %v3964
        %5873 = vmatpush.bf16.msra.mxu0 %v3960
        %5874 = vmatpush.bf16.msra.mxu0 %v3956
        %5875 = vmatmul.bf16.gmra.mxu0 %v1197
        %v5876 = vpop.f32.mrf.mxu0
        %v5877 = vadd.f32 %v5864, %v5876
        %v5878 = vpop.f32.mrf.mxu0
        %5879 = vdwg.mxu0
        %5880 = vmatpush.bf16.msra.mxu0 %v4016
        %5881 = vmatpush.bf16.msra.mxu0 %v4012
        %5882 = vmatpush.bf16.msra.mxu0 %v4008
        %5883 = vmatpush.bf16.msra.mxu0 %v4004
        %5884 = vmatpush.bf16.msra.mxu0 %v4000
        %5885 = vmatpush.bf16.msra.mxu0 %v3996
        %5886 = vmatpush.bf16.msra.mxu0 %v3992
        %5887 = vmatpush.bf16.msra.mxu0 %v3988
        %5888 = vmatmul.bf16.gmra.mxu0 %v1198
        %v5889 = vpop.f32.mrf.mxu0
        %v5890 = vadd.f32 %v5877, %v5889
        %v5891 = vpop.f32.mrf.mxu0
        %5892 = vdwg.mxu0
        %5893 = vmatpush.bf16.msra.mxu0 %v4048
        %5894 = vmatpush.bf16.msra.mxu0 %v4044
        %5895 = vmatpush.bf16.msra.mxu0 %v4040
        %5896 = vmatpush.bf16.msra.mxu0 %v4036
        %5897 = vmatpush.bf16.msra.mxu0 %v4032
        %5898 = vmatpush.bf16.msra.mxu0 %v4028
        %5899 = vmatpush.bf16.msra.mxu0 %v4024
        %5900 = vmatpush.bf16.msra.mxu0 %v4020
        %5901 = vmatmul.bf16.gmra.mxu0 %v1199
        %v5902 = vpop.f32.mrf.mxu0
        %v5903 = vadd.f32 %v5890, %v5902
        %v5904 = vpop.f32.mrf.mxu0
        %5905 = vdwg.mxu0
        %5906 = vmatpush.bf16.msra.mxu0 %v4080
        %5907 = vmatpush.bf16.msra.mxu0 %v4076
        %5908 = vmatpush.bf16.msra.mxu0 %v4072
        %5909 = vmatpush.bf16.msra.mxu0 %v4068
        %5910 = vmatpush.bf16.msra.mxu0 %v4064
        %5911 = vmatpush.bf16.msra.mxu0 %v4060
        %5912 = vmatpush.bf16.msra.mxu0 %v4056
        %5913 = vmatpush.bf16.msra.mxu0 %v4052
        %5914 = vmatmul.bf16.gmra.mxu0 %v1202
        %v5915 = vpop.f32.mrf.mxu0
        %v5916 = vadd.f32 %v5903, %v5915
        %v5917 = vpop.f32.mrf.mxu0
        %5918 = vdwg.mxu0
        %5919 = vmatpush.bf16.msra.mxu0 %v4112
        %5920 = vmatpush.bf16.msra.mxu0 %v4108
        %5921 = vmatpush.bf16.msra.mxu0 %v4104
        %5922 = vmatpush.bf16.msra.mxu0 %v4100
        %5923 = vmatpush.bf16.msra.mxu0 %v4096
        %5924 = vmatpush.bf16.msra.mxu0 %v4092
        %5925 = vmatpush.bf16.msra.mxu0 %v4088
        %5926 = vmatpush.bf16.msra.mxu0 %v4084
        %5927 = vmatmul.bf16.gmra.mxu0 %v1203
        %v5928 = vpop.f32.mrf.mxu0
        %v5929 = vadd.f32 %v5916, %v5928
        %v5930 = vpop.f32.mrf.mxu0
        %5931 = vdwg.mxu0
        %5932 = vmatpush.bf16.msra.mxu0 %v4144
        %5933 = vmatpush.bf16.msra.mxu0 %v4140
        %5934 = vmatpush.bf16.msra.mxu0 %v4136
        %5935 = vmatpush.bf16.msra.mxu0 %v4132
        %5936 = vmatpush.bf16.msra.mxu0 %v4128
        %5937 = vmatpush.bf16.msra.mxu0 %v4124
        %5938 = vmatpush.bf16.msra.mxu0 %v4120
        %5939 = vmatpush.bf16.msra.mxu0 %v4116
        %5940 = vmatmul.bf16.gmra.mxu0 %v1204
        %v5941 = vpop.f32.mrf.mxu0
        %v5942 = vadd.f32 %v5929, %v5941
        %v5943 = vpop.f32.mrf.mxu0
        %5944 = vdwg.mxu0
        %5945 = vmatpush.bf16.msra.mxu0 %v4176
        %5946 = vmatpush.bf16.msra.mxu0 %v4172
        %5947 = vmatpush.bf16.msra.mxu0 %v4168
        %5948 = vmatpush.bf16.msra.mxu0 %v4164
        %5949 = vmatpush.bf16.msra.mxu0 %v4160
        %5950 = vmatpush.bf16.msra.mxu0 %v4156
        %5951 = vmatpush.bf16.msra.mxu0 %v4152
        %5952 = vmatpush.bf16.msra.mxu0 %v4148
        %5953 = vmatmul.bf16.gmra.mxu0 %v1205
        %v5954 = vpop.f32.mrf.mxu0
        %v5955 = vadd.f32 %v5942, %v5954
        %v5956 = vpop.f32.mrf.mxu0
        %5957 = vdwg.mxu0
        %5958 = vmatpush.bf16.msra.mxu0 %v4208
        %5959 = vmatpush.bf16.msra.mxu0 %v4204
        %5960 = vmatpush.bf16.msra.mxu0 %v4200
        %5961 = vmatpush.bf16.msra.mxu0 %v4196
        %5962 = vmatpush.bf16.msra.mxu0 %v4192
        %5963 = vmatpush.bf16.msra.mxu0 %v4188
        %5964 = vmatpush.bf16.msra.mxu0 %v4184
        %5965 = vmatpush.bf16.msra.mxu0 %v4180
        %5966 = vmatmul.bf16.gmra.mxu0 %v1206
        %v5967 = vpop.f32.mrf.mxu0
        %v5968 = vadd.f32 %v5955, %v5967
        %v5969 = vpop.f32.mrf.mxu0
        %5970 = vdwg.mxu0
        %5971 = vmatpush.bf16.msra.mxu0 %v4240
        %5972 = vmatpush.bf16.msra.mxu0 %v4236
        %5973 = vmatpush.bf16.msra.mxu0 %v4232
        %5974 = vmatpush.bf16.msra.mxu0 %v4228
        %5975 = vmatpush.bf16.msra.mxu0 %v4224
        %5976 = vmatpush.bf16.msra.mxu0 %v4220
        %5977 = vmatpush.bf16.msra.mxu0 %v4216
        %5978 = vmatpush.bf16.msra.mxu0 %v4212
        %5979 = vmatmul.bf16.gmra.mxu0 %v1207
        %v5980 = vpop.f32.mrf.mxu0
        %v5981 = vadd.f32 %v5968, %v5980
        %v5982 = vpop.f32.mrf.mxu0
        %5983 = vdwg.mxu0
        %5984 = vmatpush.bf16.msra.mxu0 %v4272
        %5985 = vmatpush.bf16.msra.mxu0 %v4268
        %5986 = vmatpush.bf16.msra.mxu0 %v4264
        %5987 = vmatpush.bf16.msra.mxu0 %v4260
        %5988 = vmatpush.bf16.msra.mxu0 %v4256
        %5989 = vmatpush.bf16.msra.mxu0 %v4252
        %5990 = vmatpush.bf16.msra.mxu0 %v4248
        %5991 = vmatpush.bf16.msra.mxu0 %v4244
        %5992 = vmatmul.bf16.gmra.mxu0 %v1208
        %v5993 = vpop.f32.mrf.mxu0
        %v5994 = vadd.f32 %v5981, %v5993
        %v5995 = vpop.f32.mrf.mxu0
        %5996 = vdwg.mxu0
        %5997 = vmatpush.bf16.msra.mxu0 %v4304
        %5998 = vmatpush.bf16.msra.mxu0 %v4300
        %5999 = vmatpush.bf16.msra.mxu0 %v4296
        %6000 = vmatpush.bf16.msra.mxu0 %v4292
        %6001 = vmatpush.bf16.msra.mxu0 %v4288
        %6002 = vmatpush.bf16.msra.mxu0 %v4284
        %6003 = vmatpush.bf16.msra.mxu0 %v4280
        %6004 = vmatpush.bf16.msra.mxu0 %v4276
        %6005 = vmatmul.bf16.gmra.mxu0 %v1209
        %v6006 = vpop.f32.mrf.mxu0
        %v6007 = vadd.f32 %v5994, %v6006
        %v6008 = vpop.f32.mrf.mxu0
        %6009 = vdwg.mxu0
        %6010 = vmatpush.bf16.msra.mxu0 %v3569
        %6011 = vmatpush.bf16.msra.mxu0 %v3565
        %6012 = vmatpush.bf16.msra.mxu0 %v3561
        %6013 = vmatpush.bf16.msra.mxu0 %v3557
        %6014 = vmatpush.bf16.msra.mxu0 %v3553
        %6015 = vmatpush.bf16.msra.mxu0 %v3549
        %6016 = vmatpush.bf16.msra.mxu0 %v3545
        %6017 = vmatpush.bf16.msra.mxu0 %v3541
        %6018 = vmatmul.bf16.gmra.mxu0 %v1182
        %v6019 = vpop.f32.mrf.mxu0
        %v6020 = vadd.f32 0.0, %v6019
        %v6021 = vpop.f32.mrf.mxu0
        %6022 = vdwg.mxu0
        %6023 = vmatpush.bf16.msra.mxu0 %v3601
        %6024 = vmatpush.bf16.msra.mxu0 %v3597
        %6025 = vmatpush.bf16.msra.mxu0 %v3593
        %6026 = vmatpush.bf16.msra.mxu0 %v3589
        %6027 = vmatpush.bf16.msra.mxu0 %v3585
        %6028 = vmatpush.bf16.msra.mxu0 %v3581
        %6029 = vmatpush.bf16.msra.mxu0 %v3577
        %6030 = vmatpush.bf16.msra.mxu0 %v3573
        %6031 = vmatmul.bf16.gmra.mxu0 %v1183
        %v6032 = vpop.f32.mrf.mxu0
        %v6033 = vadd.f32 %v6020, %v6032
        %v6034 = vpop.f32.mrf.mxu0
        %6035 = vdwg.mxu0
        %6036 = vmatpush.bf16.msra.mxu0 %v3633
        %6037 = vmatpush.bf16.msra.mxu0 %v3629
        %6038 = vmatpush.bf16.msra.mxu0 %v3625
        %6039 = vmatpush.bf16.msra.mxu0 %v3621
        %6040 = vmatpush.bf16.msra.mxu0 %v3617
        %6041 = vmatpush.bf16.msra.mxu0 %v3613
        %6042 = vmatpush.bf16.msra.mxu0 %v3609
        %6043 = vmatpush.bf16.msra.mxu0 %v3605
        %6044 = vmatmul.bf16.gmra.mxu0 %v1184
        %v6045 = vpop.f32.mrf.mxu0
        %v6046 = vadd.f32 %v6033, %v6045
        %v6047 = vpop.f32.mrf.mxu0
        %6048 = vdwg.mxu0
        %6049 = vmatpush.bf16.msra.mxu0 %v3665
        %6050 = vmatpush.bf16.msra.mxu0 %v3661
        %6051 = vmatpush.bf16.msra.mxu0 %v3657
        %6052 = vmatpush.bf16.msra.mxu0 %v3653
        %6053 = vmatpush.bf16.msra.mxu0 %v3649
        %6054 = vmatpush.bf16.msra.mxu0 %v3645
        %6055 = vmatpush.bf16.msra.mxu0 %v3641
        %6056 = vmatpush.bf16.msra.mxu0 %v3637
        %6057 = vmatmul.bf16.gmra.mxu0 %v1185
        %v6058 = vpop.f32.mrf.mxu0
        %v6059 = vadd.f32 %v6046, %v6058
        %v6060 = vpop.f32.mrf.mxu0
        %6061 = vdwg.mxu0
        %6062 = vmatpush.bf16.msra.mxu0 %v3697
        %6063 = vmatpush.bf16.msra.mxu0 %v3693
        %6064 = vmatpush.bf16.msra.mxu0 %v3689
        %6065 = vmatpush.bf16.msra.mxu0 %v3685
        %6066 = vmatpush.bf16.msra.mxu0 %v3681
        %6067 = vmatpush.bf16.msra.mxu0 %v3677
        %6068 = vmatpush.bf16.msra.mxu0 %v3673
        %6069 = vmatpush.bf16.msra.mxu0 %v3669
        %6070 = vmatmul.bf16.gmra.mxu0 %v1186
        %v6071 = vpop.f32.mrf.mxu0
        %v6072 = vadd.f32 %v6059, %v6071
        %v6073 = vpop.f32.mrf.mxu0
        %6074 = vdwg.mxu0
        %6075 = vmatpush.bf16.msra.mxu0 %v3729
        %6076 = vmatpush.bf16.msra.mxu0 %v3725
        %6077 = vmatpush.bf16.msra.mxu0 %v3721
        %6078 = vmatpush.bf16.msra.mxu0 %v3717
        %6079 = vmatpush.bf16.msra.mxu0 %v3713
        %6080 = vmatpush.bf16.msra.mxu0 %v3709
        %6081 = vmatpush.bf16.msra.mxu0 %v3705
        %6082 = vmatpush.bf16.msra.mxu0 %v3701
        %6083 = vmatmul.bf16.gmra.mxu0 %v1187
        %v6084 = vpop.f32.mrf.mxu0
        %v6085 = vadd.f32 %v6072, %v6084
        %v6086 = vpop.f32.mrf.mxu0
        %6087 = vdwg.mxu0
        %6088 = vmatpush.bf16.msra.mxu0 %v3761
        %6089 = vmatpush.bf16.msra.mxu0 %v3757
        %6090 = vmatpush.bf16.msra.mxu0 %v3753
        %6091 = vmatpush.bf16.msra.mxu0 %v3749
        %6092 = vmatpush.bf16.msra.mxu0 %v3745
        %6093 = vmatpush.bf16.msra.mxu0 %v3741
        %6094 = vmatpush.bf16.msra.mxu0 %v3737
        %6095 = vmatpush.bf16.msra.mxu0 %v3733
        %6096 = vmatmul.bf16.gmra.mxu0 %v1188
        %v6097 = vpop.f32.mrf.mxu0
        %v6098 = vadd.f32 %v6085, %v6097
        %v6099 = vpop.f32.mrf.mxu0
        %6100 = vdwg.mxu0
        %6101 = vmatpush.bf16.msra.mxu0 %v3793
        %6102 = vmatpush.bf16.msra.mxu0 %v3789
        %6103 = vmatpush.bf16.msra.mxu0 %v3785
        %6104 = vmatpush.bf16.msra.mxu0 %v3781
        %6105 = vmatpush.bf16.msra.mxu0 %v3777
        %6106 = vmatpush.bf16.msra.mxu0 %v3773
        %6107 = vmatpush.bf16.msra.mxu0 %v3769
        %6108 = vmatpush.bf16.msra.mxu0 %v3765
        %6109 = vmatmul.bf16.gmra.mxu0 %v1189
        %v6110 = vpop.f32.mrf.mxu0
        %v6111 = vadd.f32 %v6098, %v6110
        %v6112 = vpop.f32.mrf.mxu0
        %6113 = vdwg.mxu0
        %6114 = vmatpush.bf16.msra.mxu0 %v3825
        %6115 = vmatpush.bf16.msra.mxu0 %v3821
        %6116 = vmatpush.bf16.msra.mxu0 %v3817
        %6117 = vmatpush.bf16.msra.mxu0 %v3813
        %6118 = vmatpush.bf16.msra.mxu0 %v3809
        %6119 = vmatpush.bf16.msra.mxu0 %v3805
        %6120 = vmatpush.bf16.msra.mxu0 %v3801
        %6121 = vmatpush.bf16.msra.mxu0 %v3797
        %6122 = vmatmul.bf16.gmra.mxu0 %v1192
        %v6123 = vpop.f32.mrf.mxu0
        %v6124 = vadd.f32 %v6111, %v6123
        %v6125 = vpop.f32.mrf.mxu0
        %6126 = vdwg.mxu0
        %6127 = vmatpush.bf16.msra.mxu0 %v3857
        %6128 = vmatpush.bf16.msra.mxu0 %v3853
        %6129 = vmatpush.bf16.msra.mxu0 %v3849
        %6130 = vmatpush.bf16.msra.mxu0 %v3845
        %6131 = vmatpush.bf16.msra.mxu0 %v3841
        %6132 = vmatpush.bf16.msra.mxu0 %v3837
        %6133 = vmatpush.bf16.msra.mxu0 %v3833
        %6134 = vmatpush.bf16.msra.mxu0 %v3829
        %6135 = vmatmul.bf16.gmra.mxu0 %v1193
        %v6136 = vpop.f32.mrf.mxu0
        %v6137 = vadd.f32 %v6124, %v6136
        %v6138 = vpop.f32.mrf.mxu0
        %6139 = vdwg.mxu0
        %6140 = vmatpush.bf16.msra.mxu0 %v3889
        %6141 = vmatpush.bf16.msra.mxu0 %v3885
        %6142 = vmatpush.bf16.msra.mxu0 %v3881
        %6143 = vmatpush.bf16.msra.mxu0 %v3877
        %6144 = vmatpush.bf16.msra.mxu0 %v3873
        %6145 = vmatpush.bf16.msra.mxu0 %v3869
        %6146 = vmatpush.bf16.msra.mxu0 %v3865
        %6147 = vmatpush.bf16.msra.mxu0 %v3861
        %6148 = vmatmul.bf16.gmra.mxu0 %v1194
        %v6149 = vpop.f32.mrf.mxu0
        %v6150 = vadd.f32 %v6137, %v6149
        %v6151 = vpop.f32.mrf.mxu0
        %6152 = vdwg.mxu0
        %6153 = vmatpush.bf16.msra.mxu0 %v3921
        %6154 = vmatpush.bf16.msra.mxu0 %v3917
        %6155 = vmatpush.bf16.msra.mxu0 %v3913
        %6156 = vmatpush.bf16.msra.mxu0 %v3909
        %6157 = vmatpush.bf16.msra.mxu0 %v3905
        %6158 = vmatpush.bf16.msra.mxu0 %v3901
        %6159 = vmatpush.bf16.msra.mxu0 %v3897
        %6160 = vmatpush.bf16.msra.mxu0 %v3893
        %6161 = vmatmul.bf16.gmra.mxu0 %v1195
        %v6162 = vpop.f32.mrf.mxu0
        %v6163 = vadd.f32 %v6150, %v6162
        %v6164 = vpop.f32.mrf.mxu0
        %6165 = vdwg.mxu0
        %6166 = vmatpush.bf16.msra.mxu0 %v3953
        %6167 = vmatpush.bf16.msra.mxu0 %v3949
        %6168 = vmatpush.bf16.msra.mxu0 %v3945
        %6169 = vmatpush.bf16.msra.mxu0 %v3941
        %6170 = vmatpush.bf16.msra.mxu0 %v3937
        %6171 = vmatpush.bf16.msra.mxu0 %v3933
        %6172 = vmatpush.bf16.msra.mxu0 %v3929
        %6173 = vmatpush.bf16.msra.mxu0 %v3925
        %6174 = vmatmul.bf16.gmra.mxu0 %v1196
        %v6175 = vpop.f32.mrf.mxu0
        %v6176 = vadd.f32 %v6163, %v6175
        %v6177 = vpop.f32.mrf.mxu0
        %6178 = vdwg.mxu0
        %6179 = vmatpush.bf16.msra.mxu0 %v3985
        %6180 = vmatpush.bf16.msra.mxu0 %v3981
        %6181 = vmatpush.bf16.msra.mxu0 %v3977
        %6182 = vmatpush.bf16.msra.mxu0 %v3973
        %6183 = vmatpush.bf16.msra.mxu0 %v3969
        %6184 = vmatpush.bf16.msra.mxu0 %v3965
        %6185 = vmatpush.bf16.msra.mxu0 %v3961
        %6186 = vmatpush.bf16.msra.mxu0 %v3957
        %6187 = vmatmul.bf16.gmra.mxu0 %v1197
        %v6188 = vpop.f32.mrf.mxu0
        %v6189 = vadd.f32 %v6176, %v6188
        %v6190 = vpop.f32.mrf.mxu0
        %6191 = vdwg.mxu0
        %6192 = vmatpush.bf16.msra.mxu0 %v4017
        %6193 = vmatpush.bf16.msra.mxu0 %v4013
        %6194 = vmatpush.bf16.msra.mxu0 %v4009
        %6195 = vmatpush.bf16.msra.mxu0 %v4005
        %6196 = vmatpush.bf16.msra.mxu0 %v4001
        %6197 = vmatpush.bf16.msra.mxu0 %v3997
        %6198 = vmatpush.bf16.msra.mxu0 %v3993
        %6199 = vmatpush.bf16.msra.mxu0 %v3989
        %6200 = vmatmul.bf16.gmra.mxu0 %v1198
        %v6201 = vpop.f32.mrf.mxu0
        %v6202 = vadd.f32 %v6189, %v6201
        %v6203 = vpop.f32.mrf.mxu0
        %6204 = vdwg.mxu0
        %6205 = vmatpush.bf16.msra.mxu0 %v4049
        %6206 = vmatpush.bf16.msra.mxu0 %v4045
        %6207 = vmatpush.bf16.msra.mxu0 %v4041
        %6208 = vmatpush.bf16.msra.mxu0 %v4037
        %6209 = vmatpush.bf16.msra.mxu0 %v4033
        %6210 = vmatpush.bf16.msra.mxu0 %v4029
        %6211 = vmatpush.bf16.msra.mxu0 %v4025
        %6212 = vmatpush.bf16.msra.mxu0 %v4021
        %6213 = vmatmul.bf16.gmra.mxu0 %v1199
        %v6214 = vpop.f32.mrf.mxu0
        %v6215 = vadd.f32 %v6202, %v6214
        %v6216 = vpop.f32.mrf.mxu0
        %6217 = vdwg.mxu0
        %6218 = vmatpush.bf16.msra.mxu0 %v4081
        %6219 = vmatpush.bf16.msra.mxu0 %v4077
        %6220 = vmatpush.bf16.msra.mxu0 %v4073
        %6221 = vmatpush.bf16.msra.mxu0 %v4069
        %6222 = vmatpush.bf16.msra.mxu0 %v4065
        %6223 = vmatpush.bf16.msra.mxu0 %v4061
        %6224 = vmatpush.bf16.msra.mxu0 %v4057
        %6225 = vmatpush.bf16.msra.mxu0 %v4053
        %6226 = vmatmul.bf16.gmra.mxu0 %v1202
        %v6227 = vpop.f32.mrf.mxu0
        %v6228 = vadd.f32 %v6215, %v6227
        %v6229 = vpop.f32.mrf.mxu0
        %6230 = vdwg.mxu0
        %6231 = vmatpush.bf16.msra.mxu0 %v4113
        %6232 = vmatpush.bf16.msra.mxu0 %v4109
        %6233 = vmatpush.bf16.msra.mxu0 %v4105
        %6234 = vmatpush.bf16.msra.mxu0 %v4101
        %6235 = vmatpush.bf16.msra.mxu0 %v4097
        %6236 = vmatpush.bf16.msra.mxu0 %v4093
        %6237 = vmatpush.bf16.msra.mxu0 %v4089
        %6238 = vmatpush.bf16.msra.mxu0 %v4085
        %6239 = vmatmul.bf16.gmra.mxu0 %v1203
        %v6240 = vpop.f32.mrf.mxu0
        %v6241 = vadd.f32 %v6228, %v6240
        %v6242 = vpop.f32.mrf.mxu0
        %6243 = vdwg.mxu0
        %6244 = vmatpush.bf16.msra.mxu0 %v4145
        %6245 = vmatpush.bf16.msra.mxu0 %v4141
        %6246 = vmatpush.bf16.msra.mxu0 %v4137
        %6247 = vmatpush.bf16.msra.mxu0 %v4133
        %6248 = vmatpush.bf16.msra.mxu0 %v4129
        %6249 = vmatpush.bf16.msra.mxu0 %v4125
        %6250 = vmatpush.bf16.msra.mxu0 %v4121
        %6251 = vmatpush.bf16.msra.mxu0 %v4117
        %6252 = vmatmul.bf16.gmra.mxu0 %v1204
        %v6253 = vpop.f32.mrf.mxu0
        %v6254 = vadd.f32 %v6241, %v6253
        %v6255 = vpop.f32.mrf.mxu0
        %6256 = vdwg.mxu0
        %6257 = vmatpush.bf16.msra.mxu0 %v4177
        %6258 = vmatpush.bf16.msra.mxu0 %v4173
        %6259 = vmatpush.bf16.msra.mxu0 %v4169
        %6260 = vmatpush.bf16.msra.mxu0 %v4165
        %6261 = vmatpush.bf16.msra.mxu0 %v4161
        %6262 = vmatpush.bf16.msra.mxu0 %v4157
        %6263 = vmatpush.bf16.msra.mxu0 %v4153
        %6264 = vmatpush.bf16.msra.mxu0 %v4149
        %6265 = vmatmul.bf16.gmra.mxu0 %v1205
        %v6266 = vpop.f32.mrf.mxu0
        %v6267 = vadd.f32 %v6254, %v6266
        %v6268 = vpop.f32.mrf.mxu0
        %6269 = vdwg.mxu0
        %6270 = vmatpush.bf16.msra.mxu0 %v4209
        %6271 = vmatpush.bf16.msra.mxu0 %v4205
        %6272 = vmatpush.bf16.msra.mxu0 %v4201
        %6273 = vmatpush.bf16.msra.mxu0 %v4197
        %6274 = vmatpush.bf16.msra.mxu0 %v4193
        %6275 = vmatpush.bf16.msra.mxu0 %v4189
        %6276 = vmatpush.bf16.msra.mxu0 %v4185
        %6277 = vmatpush.bf16.msra.mxu0 %v4181
        %6278 = vmatmul.bf16.gmra.mxu0 %v1206
        %v6279 = vpop.f32.mrf.mxu0
        %v6280 = vadd.f32 %v6267, %v6279
        %v6281 = vpop.f32.mrf.mxu0
        %6282 = vdwg.mxu0
        %6283 = vmatpush.bf16.msra.mxu0 %v4241
        %6284 = vmatpush.bf16.msra.mxu0 %v4237
        %6285 = vmatpush.bf16.msra.mxu0 %v4233
        %6286 = vmatpush.bf16.msra.mxu0 %v4229
        %6287 = vmatpush.bf16.msra.mxu0 %v4225
        %6288 = vmatpush.bf16.msra.mxu0 %v4221
        %6289 = vmatpush.bf16.msra.mxu0 %v4217
        %6290 = vmatpush.bf16.msra.mxu0 %v4213
        %6291 = vmatmul.bf16.gmra.mxu0 %v1207
        %v6292 = vpop.f32.mrf.mxu0
        %v6293 = vadd.f32 %v6280, %v6292
        %v6294 = vpop.f32.mrf.mxu0
        %6295 = vdwg.mxu0
        %6296 = vmatpush.bf16.msra.mxu0 %v4273
        %6297 = vmatpush.bf16.msra.mxu0 %v4269
        %6298 = vmatpush.bf16.msra.mxu0 %v4265
        %6299 = vmatpush.bf16.msra.mxu0 %v4261
        %6300 = vmatpush.bf16.msra.mxu0 %v4257
        %6301 = vmatpush.bf16.msra.mxu0 %v4253
        %6302 = vmatpush.bf16.msra.mxu0 %v4249
        %6303 = vmatpush.bf16.msra.mxu0 %v4245
        %6304 = vmatmul.bf16.gmra.mxu0 %v1208
        %v6305 = vpop.f32.mrf.mxu0
        %v6306 = vadd.f32 %v6293, %v6305
        %v6307 = vpop.f32.mrf.mxu0
        %6308 = vdwg.mxu0
        %6309 = vmatpush.bf16.msra.mxu0 %v4305
        %6310 = vmatpush.bf16.msra.mxu0 %v4301
        %6311 = vmatpush.bf16.msra.mxu0 %v4297
        %6312 = vmatpush.bf16.msra.mxu0 %v4293
        %6313 = vmatpush.bf16.msra.mxu0 %v4289
        %6314 = vmatpush.bf16.msra.mxu0 %v4285
        %6315 = vmatpush.bf16.msra.mxu0 %v4281
        %6316 = vmatpush.bf16.msra.mxu0 %v4277
        %6317 = vmatmul.bf16.gmra.mxu0 %v1209
        %v6318 = vpop.f32.mrf.mxu0
        %v6319 = vadd.f32 %v6306, %v6318
        %v6320 = vpop.f32.mrf.mxu0
        %6321 = vdwg.mxu0
        %v6326 = vrot.slane %v5695, 6
        %v6327 = vrot.slane %v6007, 4
        %v6328 = vrot.slane %v6319, 2
        %vm6329 = vcmask 1041408
        %v6330 = vsel %vm6329, %v5383, %v6326
        %vm6331 = vcmask 1045508
        %v6332 = vsel %vm6331, %v6327, %v6328
        %vm6333 = vcmask 1043456
        %v6334 = vsel %vm6333, %v6330, %v6332
        %v6336 = vadd.f32 %v408, %v6334
        %6337 = vst [vmem:[%s401] sm:$0xff] %v6336
        %p6338 = scmp.eq.s32.totalorder %s30, 1
        // Predicated region
        $region61: #{multiscale_forward.6} parent=39 // pred_check
          %p6339 = pneg %p6338
        $region62: #{multiscale_forward.6} parent=39 // pred_check_branch
          %6341 = sbr.rel (%p6339) target = $region64
        $region63: #{multiscale_forward.6} parent=39 // pred_region
          %v6342 = vld [vmem:[%s401] sm:$0xff]
          %v6343 = vld [vmem:[%s320] sm:$0xf]
          %v6345 = vperm.slane %v6343, 0
          %v6346 = vperm.slane %v6343, 1
          %v6347 = vperm.slane %v6343, 2
          %v6348 = vperm.slane %v6343, 3
          %v6349 = vrot.slane %v6346, 6
          %v6350 = vrot.slane %v6347, 4
          %v6351 = vrot.slane %v6348, 2
          %v6352 = vsel %vm6329, %v6345, %v6349
          %v6353 = vsel %vm6331, %v6350, %v6351
          %v6354 = vsel %vm6333, %v6352, %v6353
          %v6356 = vadd.f32 %v6342, %v6354
          %v6357 = vmax.f32 %v6356, 0.0
          %v6358 = vld [vmem:[%s330] sm:$0xf]
          %v6360 = vperm.slane %v6358, 0
          %v6361 = vperm.slane %v6358, 1
          %v6362 = vperm.slane %v6358, 2
          %v6363 = vperm.slane %v6358, 3
          %v6364 = vrot.slane %v6361, 6
          %v6365 = vrot.slane %v6362, 4
          %v6366 = vrot.slane %v6363, 2
          %v6367 = vsel %vm6329, %v6360, %v6364
          %v6368 = vsel %vm6331, %v6365, %v6366
          %v6369 = vsel %vm6333, %v6367, %v6368
          %v6371 = vmul.f32 %v6357, %v6369
          %v6372 = vld [vmem:[%s340] sm:$0xf]
          %v6374 = vperm.slane %v6372, 0
          %v6375 = vperm.slane %v6372, 1
          %v6376 = vperm.slane %v6372, 2
          %v6377 = vperm.slane %v6372, 3
          %v6378 = vrot.slane %v6375, 6
          %v6379 = vrot.slane %v6376, 4
          %v6380 = vrot.slane %v6377, 2
          %v6381 = vsel %vm6329, %v6374, %v6378
          %v6382 = vsel %vm6331, %v6379, %v6380
          %v6383 = vsel %vm6333, %v6381, %v6382
          %v6385 = vadd.f32 %v6371, %v6383
          %6386 = vst [vmem:[%s401] sm:$0xff] %v6385
        $region64: #{multiscale_forward.6} parent=39 // pred_fallthru
          _
        %s6387 = smul.u32 4, %s29
        %p6388 = scmp.lt.s32.totalorder %s6387, 7
        %s6389 = scalar_select %p6388, %s6387, 7
        %s6390 = smul.addr %s6389, 2
        %s6391 = scalar_lea.vmem %s5, %s6390
        // Predicated region
        $region65: #{multiscale_forward.6} parent=39 // pred_check
          %p6392 = pneg %p187
        $region66: #{multiscale_forward.6} parent=39 // pred_check_branch
          %6394 = sbr.rel (%p6392) target = $region68
        $region67: #{multiscale_forward.6} parent=39 // pred_region
          %s6395 = smul.u32 4, %s29
        $region68: #{multiscale_forward.6} parent=39 // pred_fallthru
          _
      $region40: #{multiscale_forward.6} parent=5 // pred_fallthru
        _
      %p6396 = scmp.le.s32.totalorder 2, %s20
      // Predicated region
      $region69: #{multiscale_forward.6} parent=5 // pred_check
        %p6397 = pneg %p6396
      $region70: #{multiscale_forward.6} parent=5 // pred_check_branch
        %6399 = sbr.rel (%p6397) target = $region72
      $region71: #{multiscale_forward.6} parent=5 // pred_region
        %s6400 = ssub.s32 %s20, 2
        // Predicated region
        $region73: #{multiscale_forward.6} parent=71 // pred_check
          %p6401 = pneg %p193
        $region74: #{multiscale_forward.6} parent=71 // pred_check_branch
          %6403 = sbr.rel (%p6401) target = $region76
        $region75: #{multiscale_forward.6} parent=71 // pred_region
          %s6404 = smul.u32 4, %s31
          %p6405 = scmp.lt.s32.totalorder %s6404, 7
          %s6406 = scalar_select %p6405, %s6404, 7
          %s6407 = smul.addr %s6406, 2
          %s6408 = scalar_lea.vmem %s5, %s6407
        $region76: #{multiscale_forward.6} parent=71 // pred_fallthru
          _
      $region72: #{multiscale_forward.6} parent=5 // pred_fallthru
        _
    $region6: #{multiscale_forward.6} parent=1 // loop_footer
      %s24 = sadd.s32 1, %s20
    $region7: #{multiscale_forward.6} parent=1 // loop_footer_branch
      %19 = sbr.rel target = $region3
    $region8: #{multiscale_forward.6} parent=1 // loop_exit
      _
    %6409 = vsyncpa [#allocation3], 1
    %s6410 = scalar_lea.sflag [#allocation3], 1
    %6411 = vsyncpa %s6410, 1
    %6412 = vsyncpa [#allocation5], 1
    %s6413 = scalar_lea.sflag [#allocation5], 1
    %6414 = vsyncpa %s6413, 1
    %6415 = vsyncpa [#allocation8], 1
    %s6416 = scalar_lea.sflag [#allocation8], 1
    %6417 = vsyncpa %s6416, 1

</llo_original>
